<compile_context>
chip_gen: v5e
topology: v5e:2x2
jax: 0.10.0
libtpu: 0.0.40
codegen_flags: <defaults>
</compile_context>

<pallas_src>
import functools
import math

import jax
import jax.numpy as jnp
from jax.experimental import pallas as pl
from jax.experimental.pallas import tpu as pltpu


# ---------------------------------------------------------------------------
# Fused kernel: one grid step == one batch element.
#   inputs  : x (1, HW, C) flat NHWC + all weights (whole arrays in VMEM)
#   output  : (1, C, HW) channel-major, lane-dense store
#   scratch : flat-padded input, flat-padded attended features, shared im2col
# ---------------------------------------------------------------------------
def _dilate_res_block_kernel(x_ref, wd_ref, bd_ref, w1_ref, b1_ref, w2_ref,
                             b2_ref, wf_ref, bf_ref, o_ref,
                             xpad_ref, fpad_ref, patch_ref,
                             *, H, W, C, PADX, PADF):
    HW = H * W
    C3 = 3 * C

    x = x_ref[0]                                          # (HW, C) flat NHWC

    # --- flat-padded input: zero only the halo strips, copy the interior ----
    zx = jnp.zeros((PADX, C), jnp.float32)
    xpad_ref[0:PADX, :] = zx
    xpad_ref[PADX + HW:2 * PADX + HW, :] = zx
    xpad_ref[PADX:PADX + HW, :] = x

    zf = jnp.zeros((PADF, C3), jnp.float32)
    fpad_ref[0:PADF, :] = zf
    fpad_ref[PADF + HW:2 * PADF + HW, :] = zf

    # --- shifted-window read: contiguous sublane slice + column-wrap mask ---
    # Row overflow (h+dh outside [0,H)) lands in the zero halo of the flat
    # buffer; column wrap (w+dw outside [0,W)) is masked with an iota compare.
    mask_cache = {}

    def shifted(ref, pad, dh, dw):
        off = dh * W + dw
        win = ref[pad + off:pad + off + HW, :]
        if dw == 0:
            return win
        width = win.shape[1]
        key = (dw, width)
        if key not in mask_cache:
            p = jax.lax.broadcasted_iota(jnp.int32, (HW, width), 0)
            col = (p & (W - 1)) if (W & (W - 1)) == 0 else (p % W)
            mask_cache[key] = (col < (W - dw)) if dw > 0 else (col >= -dw)
        return jnp.where(mask_cache[key], win, 0.0)

    # --- merged dilated convs: (HW, 27C) im2col + ONE block-diag matmul -----
    for di, d in enumerate((1, 2, 3)):
        for kh in range(3):
            for kw in range(3):
                blk = di * 9 + kh * 3 + kw
                patch_ref[:, blk * C:(blk + 1) * C] = shifted(
                    xpad_ref, PADX, (kh - 1) * d, (kw - 1) * d)
    feat = jnp.dot(patch_ref[...], wd_ref[...],
                   preferred_element_type=jnp.float32) + bd_ref[...]   # (HW,3C)

    # --- DirectAwareAtt: single-pass mean/var + two tiny MLPs ---------------
    inv_hw = 1.0 / float(HW)
    mean = jnp.sum(feat, axis=0, keepdims=True) * inv_hw               # (1,3C)
    sq = jnp.sum(feat * feat, axis=0, keepdims=True) * inv_hw
    std = jnp.sqrt(jnp.maximum(sq - mean * mean, 0.0))                 # (1,3C)

    def att_mlp(v, i):
        h = jnp.dot(v, w1_ref[i], preferred_element_type=jnp.float32) + b1_ref[i]
        h = jnp.maximum(h, 0.0)
        z = jnp.dot(h, w2_ref[i], preferred_element_type=jnp.float32) + b2_ref[i]
        return 1.0 / (1.0 + jnp.exp(-z))                               # sigmoid

    att = 0.5 * (att_mlp(mean, 0) + att_mlp(std, 1))                   # (1,3C)

    # --- attended features + ReLU into the flat-padded feature buffer -------
    fpad_ref[PADF:PADF + HW, :] = jnp.maximum(feat * att, 0.0)

    # --- fusion 3x3 conv (3C -> C): 9 full-width slab copies + one matmul ---
    for kh in range(3):
        for kw in range(3):
            t = kh * 3 + kw
            patch_ref[:, t * C3:(t + 1) * C3] = shifted(
                fpad_ref, PADF, kh - 1, kw - 1)
    res = jnp.dot(patch_ref[...], wf_ref[...],
                  preferred_element_type=jnp.float32) + bf_ref[...]    # (HW,C)

    # --- residual add; channel-major (lane-dense) store ---------------------
    o_ref[0] = (x + res).T                                             # (C,HW)


# ---------------------------------------------------------------------------
# Wrapper: NCHW in -> NCHW out (PyTorch convention).
# ---------------------------------------------------------------------------
def dilate_res_block(params, x_nchw):
    N, C, H, W = x_nchw.shape
    C3 = 3 * C
    R = params['wa1'].shape[-1]
    HW = H * W
    PADX = (3 * W + 3 + 7) // 8 * 8        # row halo for dilation <= 3, 8-aligned
    PADF = (W + 1 + 7) // 8 * 8            # row halo for the fusion 3x3 conv

    # merged dilated-conv weight: block-diagonal (27C, 3C)
    wd = jnp.zeros((9 * C3, C3), jnp.float32)
    for i in range(3):
        wd = wd.at[i * 9 * C:(i + 1) * 9 * C, i * C:(i + 1) * C].set(
            params['wd4'][i].reshape(9 * C, C))
    bd = params['bd'].reshape(1, C3)
    w1 = jnp.stack([params['wa1'], params['ws1']])                 # (2, 3C, R)
    b1 = jnp.stack([params['ba1'], params['bs1']]).reshape(2, 1, R)
    w2 = jnp.stack([params['wa2'], params['ws2']])                 # (2, R, 3C)
    b2 = jnp.stack([params['ba2'], params['bs2']]).reshape(2, 1, C3)
    wf = params['wf4'].reshape(9 * C3, C)                          # (27C, C)
    bf = params['bf'].reshape(1, C)

    x_flat = jnp.transpose(x_nchw, (0, 2, 3, 1)).reshape(N, HW, C)

    kernel = functools.partial(_dilate_res_block_kernel,
                               H=H, W=W, C=C, PADX=PADX, PADF=PADF)
    out = pl.pallas_call(
        kernel,
        out_shape=jax.ShapeDtypeStruct((N, C, HW), jnp.float32),
        grid=(N,),
        in_specs=[
            pl.BlockSpec((1, HW, C), lambda n: (n, 0, 0)),
            pl.BlockSpec((9 * C3, C3), lambda n: (0, 0)),
            pl.BlockSpec((1, C3), lambda n: (0, 0)),
            pl.BlockSpec((2, C3, R), lambda n: (0, 0, 0)),
            pl.BlockSpec((2, 1, R), lambda n: (0, 0, 0)),
            pl.BlockSpec((2, R, C3), lambda n: (0, 0, 0)),
            pl.BlockSpec((2, 1, C3), lambda n: (0, 0, 0)),
            pl.BlockSpec((9 * C3, C), lambda n: (0, 0)),
            pl.BlockSpec((1, C), lambda n: (0, 0)),
        ],
        out_specs=pl.BlockSpec((1, C, HW), lambda n: (n, 0, 0)),
        scratch_shapes=[
            pltpu.VMEM((2 * PADX + HW, C), jnp.float32),    # flat-padded input
            pltpu.VMEM((2 * PADF + HW, C3), jnp.float32),   # flat-padded relu(att*feat)
            pltpu.VMEM((HW, 9 * C3), jnp.float32),          # shared im2col patches
        ],
        compiler_params=pltpu.CompilerParams(
            dimension_semantics=("parallel",)),
    )(x_flat, wd, bd, w1, b1, w2, b2, wf, bf)

    return out.reshape(N, C, H, W)                                 # NCHW


# ---------------------------------------------------------------------------
# Deterministic synthetic parameters (xavier-normal weights, bias = 0.01,
# matching the module's init scheme). Conv weights are kept in HWIO form.
# ---------------------------------------------------------------------------
def init_dilate_res_block_params(key, channels):
    C = channels
    C3 = 3 * C
    R = max(C3 // 16, 1)                       # DirectAwareAtt(reduction=16)
    ks = jax.random.split(key, 8)

    def xavier(k, shape, fan_in, fan_out):
        std = math.sqrt(2.0 / (fan_in + fan_out))
        return jax.random.normal(k, shape, jnp.float32) * std

    wd4 = jnp.stack([xavier(ks[i], (3, 3, C, C), 9 * C, 9 * C) for i in range(3)])
    return {
        'wd4': wd4,                                            # (3, 3, 3, C, C)
        'bd':  jnp.full((3, C), 0.01, jnp.float32),
        'wa1': xavier(ks[3], (C3, R), C3, R),
        'ba1': jnp.full((R,), 0.01, jnp.float32),
        'wa2': xavier(ks[4], (R, C3), R, C3),
        'ba2': jnp.full((C3,), 0.01, jnp.float32),
        'ws1': xavier(ks[5], (C3, R), C3, R),
        'bs1': jnp.full((R,), 0.01, jnp.float32),
        'ws2': xavier(ks[6], (R, C3), R, C3),
        'bs2': jnp.full((C3,), 0.01, jnp.float32),
        'wf4': xavier(ks[7], (3, 3, C3, C), 9 * C3, 9 * C),
        'bf':  jnp.full((C,), 0.01, jnp.float32),
    }


# ---------------------------------------------------------------------------
# Pure-JAX reference (tolerance check against the fused kernel).
# ---------------------------------------------------------------------------
def _conv_ref(x_nhwc, w4, b, d):
    y = jax.lax.conv_general_dilated(
        x_nhwc, w4, window_strides=(1, 1), padding=[(d, d), (d, d)],
        rhs_dilation=(d, d), dimension_numbers=('NHWC', 'HWIO', 'NHWC'),
        precision=jax.lax.Precision.HIGHEST)
    return y + b


def dilate_res_block_ref(params, x_nchw):
    x = jnp.transpose(x_nchw, (0, 2, 3, 1))                    # NHWC
    feat = jnp.concatenate(
        [_conv_ref(x, params['wd4'][d], params['bd'][d], d + 1) for d in range(3)],
        axis=-1)                                               # (N, H, W, 3C)
    mean = jnp.mean(feat, axis=(1, 2))                         # (N, 3C)
    std = jnp.sqrt(jnp.mean((feat - mean[:, None, None, :]) ** 2, axis=(1, 2)))

    def mlp(v, w1, b1, w2, b2):
        h = jnp.maximum(jnp.dot(v, w1, precision=jax.lax.Precision.HIGHEST) + b1, 0.0)
        return jax.nn.sigmoid(jnp.dot(h, w2, precision=jax.lax.Precision.HIGHEST) + b2)

    att = 0.5 * (mlp(mean, params['wa1'], params['ba1'], params['wa2'], params['ba2'])
                 + mlp(std, params['ws1'], params['bs1'], params['ws2'], params['bs2']))
    fr = jnp.maximum(feat * att[:, None, None, :], 0.0)
    out = x + _conv_ref(fr, params['wf4'], params['bf'], 1)
    return jnp.transpose(out, (0, 3, 1, 2))                    # NCHW


if __name__ == "__main__":
    key = jax.random.PRNGKey(0)
    # channels must satisfy 3*channels // 16 >= 1 (the module's reduction=16),
    # so use a small but valid channels=16; batch=2, spatial=16x16.
    N, C, H, W = 2, 16, 16, 16
    kp, kx = jax.random.split(key)
    params = init_dilate_res_block_params(kp, C)
    x = jax.random.normal(kx, (N, C, H, W), jnp.float32)

    fwd = jax.jit(functools.partial(dilate_res_block, params))
    out = fwd(x)
    jax.block_until_ready(out)
    assert out.shape == (N, C, H, W)

    ref = dilate_res_block_ref(params, x)
    max_err = float(jnp.max(jnp.abs(out - ref)))
    assert jnp.allclose(out, ref, rtol=2e-3, atol=2e-3), f"max abs err {max_err}"
    print("KERNEL_OK")
</pallas_src>

<mosaic_0001>
module attributes {stable_mosaic.version = 11 : i64} {
  func.func @_dilate_res_block_kernel(%arg0: i32, %arg1: memref<1x256x16xf32, #tpu.memory_space<vmem>>, %arg2: memref<432x48xf32, #tpu.memory_space<vmem>>, %arg3: memref<1x48xf32, #tpu.memory_space<vmem>>, %arg4: memref<2x48x3xf32, #tpu.memory_space<vmem>>, %arg5: memref<2x1x3xf32, #tpu.memory_space<vmem>>, %arg6: memref<2x3x48xf32, #tpu.memory_space<vmem>>, %arg7: memref<2x1x48xf32, #tpu.memory_space<vmem>>, %arg8: memref<432x16xf32, #tpu.memory_space<vmem>>, %arg9: memref<1x16xf32, #tpu.memory_space<vmem>>, %arg10: memref<1x16x256xf32, #tpu.memory_space<vmem>>, %arg11: memref<368x16xf32, #tpu.memory_space<vmem>>, %arg12: memref<304x48xf32, #tpu.memory_space<vmem>>, %arg13: memref<256x432xf32, #tpu.memory_space<vmem>>) attributes {dimension_semantics = [#tpu.dimension_semantics<parallel>], iteration_bounds = array<i64: 2>, scalar_prefetch = 0 : i64, scratch_operands = 3 : i64, tpu.core_type = #tpu.core_type<tc>, window_params = [{transform_indices = @transform_0, window_bounds = array<i64: 1, 256, 16>}, {pipeline_mode = #tpu.pipeline_mode<synchronous>, transform_indices = @transform_1, window_bounds = array<i64: 432, 48>}, {pipeline_mode = #tpu.pipeline_mode<synchronous>, transform_indices = @transform_2, window_bounds = array<i64: 1, 48>}, {pipeline_mode = #tpu.pipeline_mode<synchronous>, transform_indices = @transform_3, window_bounds = array<i64: 2, 48, 3>}, {pipeline_mode = #tpu.pipeline_mode<synchronous>, transform_indices = @transform_4, window_bounds = array<i64: 2, 1, 3>}, {pipeline_mode = #tpu.pipeline_mode<synchronous>, transform_indices = @transform_5, window_bounds = array<i64: 2, 3, 48>}, {pipeline_mode = #tpu.pipeline_mode<synchronous>, transform_indices = @transform_6, window_bounds = array<i64: 2, 1, 48>}, {pipeline_mode = #tpu.pipeline_mode<synchronous>, transform_indices = @transform_7, window_bounds = array<i64: 432, 16>}, {pipeline_mode = #tpu.pipeline_mode<synchronous>, transform_indices = @transform_8, window_bounds = array<i64: 1, 16>}, {transform_indices = @transform_9, window_bounds = array<i64: 1, 16, 256>}]} {
    %c0 = arith.constant 0 : index
    %c0_0 = arith.constant 0 : index
    %c0_1 = arith.constant 0 : index
    %0 = vector.load %arg1[%c0, %c0_0, %c0_1] : memref<1x256x16xf32, #tpu.memory_space<vmem>>, vector<1x256x16xf32>
    %1 = vector.shape_cast %0 : vector<1x256x16xf32> to vector<256x16xf32>
    %cst = arith.constant 0.000000e+00 : f32
    %2 = vector.broadcast %cst : f32 to vector<56x16xf32>
    %c0_2 = arith.constant 0 : index
    %c0_3 = arith.constant 0 : index
    %3 = vector.load %arg11[%c0_2, %c0_3] : memref<368x16xf32, #tpu.memory_space<vmem>>, vector<56x16xf32>
    tpu.vector_store %arg11[%c0_2, %c0_3], %2 {strides = array<i32>} : memref<368x16xf32, #tpu.memory_space<vmem>>, vector<56x16xf32>,
    %c312 = arith.constant 312 : index
    %c0_4 = arith.constant 0 : index
    %4 = vector.load %arg11[%c312, %c0_4] : memref<368x16xf32, #tpu.memory_space<vmem>>, vector<56x16xf32>
    tpu.vector_store %arg11[%c312, %c0_4], %2 {strides = array<i32>} : memref<368x16xf32, #tpu.memory_space<vmem>>, vector<56x16xf32>,
    %c56 = arith.constant 56 : index
    %c0_5 = arith.constant 0 : index
    %5 = vector.load %arg11[%c56, %c0_5] : memref<368x16xf32, #tpu.memory_space<vmem>>, vector<256x16xf32>
    tpu.vector_store %arg11[%c56, %c0_5], %1 {strides = array<i32>} : memref<368x16xf32, #tpu.memory_space<vmem>>, vector<256x16xf32>,
    %cst_6 = arith.constant 0.000000e+00 : f32
    %6 = vector.broadcast %cst_6 : f32 to vector<24x48xf32>
    %c0_7 = arith.constant 0 : index
    %c0_8 = arith.constant 0 : index
    %7 = vector.load %arg12[%c0_7, %c0_8] : memref<304x48xf32, #tpu.memory_space<vmem>>, vector<24x48xf32>
    tpu.vector_store %arg12[%c0_7, %c0_8], %6 {strides = array<i32>} : memref<304x48xf32, #tpu.memory_space<vmem>>, vector<24x48xf32>,
    %c280 = arith.constant 280 : index
    %c0_9 = arith.constant 0 : index
    %8 = vector.load %arg12[%c280, %c0_9] : memref<304x48xf32, #tpu.memory_space<vmem>>, vector<24x48xf32>
    tpu.vector_store %arg12[%c280, %c0_9], %6 {strides = array<i32>} : memref<304x48xf32, #tpu.memory_space<vmem>>, vector<24x48xf32>,
    %c39 = arith.constant 39 : index
    %c0_10 = arith.constant 0 : index
    %9 = vector.load %arg11[%c39, %c0_10] : memref<368x16xf32, #tpu.memory_space<vmem>>, vector<256x16xf32>
    %10 = tpu.iota {dimensions = array<i32: 0>} : vector<256x16xi32>
    %c15_i32 = arith.constant 15 : i32
    %11 = vector.broadcast %c15_i32 : i32 to vector<256x16xi32>
    %12 = arith.andi %10, %11 : vector<256x16xi32>
    %c1_i32 = arith.constant 1 : i32
    %13 = vector.broadcast %c1_i32 : i32 to vector<256x16xi32>
    %14 = arith.cmpi sge, %12, %13 : vector<256x16xi32>
    %cst_11 = arith.constant 0.000000e+00 : f32
    %15 = vector.broadcast %cst_11 : f32 to vector<256x16xf32>
    %16 = arith.select %14, %9, %15 : vector<256x16xi1>, vector<256x16xf32>
    %c0_12 = arith.constant 0 : index
    %c0_13 = arith.constant 0 : index
    %17 = vector.load %arg13[%c0_12, %c0_13] : memref<256x432xf32, #tpu.memory_space<vmem>>, vector<256x16xf32>
    tpu.vector_store %arg13[%c0_12, %c0_13], %16 {strides = array<i32>} : memref<256x432xf32, #tpu.memory_space<vmem>>, vector<256x16xf32>,
    %c40 = arith.constant 40 : index
    %c0_14 = arith.constant 0 : index
    %18 = vector.load %arg11[%c40, %c0_14] : memref<368x16xf32, #tpu.memory_space<vmem>>, vector<256x16xf32>
    %c0_15 = arith.constant 0 : index
    %c16 = arith.constant 16 : index
    %19 = vector.load %arg13[%c0_15, %c16] : memref<256x432xf32, #tpu.memory_space<vmem>>, vector<256x16xf32>
    tpu.vector_store %arg13[%c0_15, %c16], %18 {strides = array<i32>} : memref<256x432xf32, #tpu.memory_space<vmem>>, vector<256x16xf32>,
    %c41 = arith.constant 41 : index
    %c0_16 = arith.constant 0 : index
    %20 = vector.load %arg11[%c41, %c0_16] : memref<368x16xf32, #tpu.memory_space<vmem>>, vector<256x16xf32>
    %21 = tpu.iota {dimensions = array<i32: 0>} : vector<256x16xi32>
    %c15_i32_17 = arith.constant 15 : i32
    %22 = vector.broadcast %c15_i32_17 : i32 to vector<256x16xi32>
    %23 = arith.andi %21, %22 : vector<256x16xi32>
    %c15_i32_18 = arith.constant 15 : i32
    %24 = vector.broadcast %c15_i32_18 : i32 to vector<256x16xi32>
    %25 = arith.cmpi slt, %23, %24 : vector<256x16xi32>
    %cst_19 = arith.constant 0.000000e+00 : f32
    %26 = vector.broadcast %cst_19 : f32 to vector<256x16xf32>
    %27 = arith.select %25, %20, %26 : vector<256x16xi1>, vector<256x16xf32>
    %c0_20 = arith.constant 0 : index
    %c32 = arith.constant 32 : index
    %28 = vector.load %arg13[%c0_20, %c32] : memref<256x432xf32, #tpu.memory_space<vmem>>, vector<256x16xf32>
    tpu.vector_store %arg13[%c0_20, %c32], %27 {strides = array<i32>} : memref<256x432xf32, #tpu.memory_space<vmem>>, vector<256x16xf32>,
    %c55 = arith.constant 55 : index
    %c0_21 = arith.constant 0 : index
    %29 = vector.load %arg11[%c55, %c0_21] : memref<368x16xf32, #tpu.memory_space<vmem>>, vector<256x16xf32>
    %cst_22 = arith.constant 0.000000e+00 : f32
    %30 = vector.broadcast %cst_22 : f32 to vector<256x16xf32>
    %31 = arith.select %14, %29, %30 : vector<256x16xi1>, vector<256x16xf32>
    %c0_23 = arith.constant 0 : index
    %c48 = arith.constant 48 : index
    %32 = vector.load %arg13[%c0_23, %c48] : memref<256x432xf32, #tpu.memory_space<vmem>>, vector<256x16xf32>
    tpu.vector_store %arg13[%c0_23, %c48], %31 {strides = array<i32>} : memref<256x432xf32, #tpu.memory_space<vmem>>, vector<256x16xf32>,
    %c56_24 = arith.constant 56 : index
    %c0_25 = arith.constant 0 : index
    %33 = vector.load %arg11[%c56_24, %c0_25] : memref<368x16xf32, #tpu.memory_space<vmem>>, vector<256x16xf32>
    %c0_26 = arith.constant 0 : index
    %c64 = arith.constant 64 : index
    %34 = vector.load %arg13[%c0_26, %c64] : memref<256x432xf32, #tpu.memory_space<vmem>>, vector<256x16xf32>
    tpu.vector_store %arg13[%c0_26, %c64], %33 {strides = array<i32>} : memref<256x432xf32, #tpu.memory_space<vmem>>, vector<256x16xf32>,
    %c57 = arith.constant 57 : index
    %c0_27 = arith.constant 0 : index
    %35 = vector.load %arg11[%c57, %c0_27] : memref<368x16xf32, #tpu.memory_space<vmem>>, vector<256x16xf32>
    %cst_28 = arith.constant 0.000000e+00 : f32
    %36 = vector.broadcast %cst_28 : f32 to vector<256x16xf32>
    %37 = arith.select %25, %35, %36 : vector<256x16xi1>, vector<256x16xf32>
    %c0_29 = arith.constant 0 : index
    %c80 = arith.constant 80 : index
    %38 = vector.load %arg13[%c0_29, %c80] : memref<256x432xf32, #tpu.memory_space<vmem>>, vector<256x16xf32>
    tpu.vector_store %arg13[%c0_29, %c80], %37 {strides = array<i32>} : memref<256x432xf32, #tpu.memory_space<vmem>>, vector<256x16xf32>,
    %c71 = arith.constant 71 : index
    %c0_30 = arith.constant 0 : index
    %39 = vector.load %arg11[%c71, %c0_30] : memref<368x16xf32, #tpu.memory_space<vmem>>, vector<256x16xf32>
    %cst_31 = arith.constant 0.000000e+00 : f32
    %40 = vector.broadcast %cst_31 : f32 to vector<256x16xf32>
    %41 = arith.select %14, %39, %40 : vector<256x16xi1>, vector<256x16xf32>
    %c0_32 = arith.constant 0 : index
    %c96 = arith.constant 96 : index
    %42 = vector.load %arg13[%c0_32, %c96] : memref<256x432xf32, #tpu.memory_space<vmem>>, vector<256x16xf32>
    tpu.vector_store %arg13[%c0_32, %c96], %41 {strides = array<i32>} : memref<256x432xf32, #tpu.memory_space<vmem>>, vector<256x16xf32>,
    %c72 = arith.constant 72 : index
    %c0_33 = arith.constant 0 : index
    %43 = vector.load %arg11[%c72, %c0_33] : memref<368x16xf32, #tpu.memory_space<vmem>>, vector<256x16xf32>
    %c0_34 = arith.constant 0 : index
    %c112 = arith.constant 112 : index
    %44 = vector.load %arg13[%c0_34, %c112] : memref<256x432xf32, #tpu.memory_space<vmem>>, vector<256x16xf32>
    tpu.vector_store %arg13[%c0_34, %c112], %43 {strides = array<i32>} : memref<256x432xf32, #tpu.memory_space<vmem>>, vector<256x16xf32>,
    %c73 = arith.constant 73 : index
    %c0_35 = arith.constant 0 : index
    %45 = vector.load %arg11[%c73, %c0_35] : memref<368x16xf32, #tpu.memory_space<vmem>>, vector<256x16xf32>
    %cst_36 = arith.constant 0.000000e+00 : f32
    %46 = vector.broadcast %cst_36 : f32 to vector<256x16xf32>
    %47 = arith.select %25, %45, %46 : vector<256x16xi1>, vector<256x16xf32>
    %c0_37 = arith.constant 0 : index
    %c128 = arith.constant 128 : index
    %48 = vector.load %arg13[%c0_37, %c128] : memref<256x432xf32, #tpu.memory_space<vmem>>, vector<256x16xf32>
    tpu.vector_store %arg13[%c0_37, %c128], %47 {strides = array<i32>} : memref<256x432xf32, #tpu.memory_space<vmem>>, vector<256x16xf32>,
    %c22 = arith.constant 22 : index
    %c0_38 = arith.constant 0 : index
    %49 = vector.load %arg11[%c22, %c0_38] : memref<368x16xf32, #tpu.memory_space<vmem>>, vector<256x16xf32>
    %50 = tpu.iota {dimensions = array<i32: 0>} : vector<256x16xi32>
    %c15_i32_39 = arith.constant 15 : i32
    %51 = vector.broadcast %c15_i32_39 : i32 to vector<256x16xi32>
    %52 = arith.andi %50, %51 : vector<256x16xi32>
    %c2_i32 = arith.constant 2 : i32
    %53 = vector.broadcast %c2_i32 : i32 to vector<256x16xi32>
    %54 = arith.cmpi sge, %52, %53 : vector<256x16xi32>
    %cst_40 = arith.constant 0.000000e+00 : f32
    %55 = vector.broadcast %cst_40 : f32 to vector<256x16xf32>
    %56 = arith.select %54, %49, %55 : vector<256x16xi1>, vector<256x16xf32>
    %c0_41 = arith.constant 0 : index
    %c144 = arith.constant 144 : index
    %57 = vector.load %arg13[%c0_41, %c144] : memref<256x432xf32, #tpu.memory_space<vmem>>, vector<256x16xf32>
    tpu.vector_store %arg13[%c0_41, %c144], %56 {strides = array<i32>} : memref<256x432xf32, #tpu.memory_space<vmem>>, vector<256x16xf32>,
    %c24 = arith.constant 24 : index
    %c0_42 = arith.constant 0 : index
    %58 = vector.load %arg11[%c24, %c0_42] : memref<368x16xf32, #tpu.memory_space<vmem>>, vector<256x16xf32>
    %c0_43 = arith.constant 0 : index
    %c160 = arith.constant 160 : index
    %59 = vector.load %arg13[%c0_43, %c160] : memref<256x432xf32, #tpu.memory_space<vmem>>, vector<256x16xf32>
    tpu.vector_store %arg13[%c0_43, %c160], %58 {strides = array<i32>} : memref<256x432xf32, #tpu.memory_space<vmem>>, vector<256x16xf32>,
    %c26 = arith.constant 26 : index
    %c0_44 = arith.constant 0 : index
    %60 = vector.load %arg11[%c26, %c0_44] : memref<368x16xf32, #tpu.memory_space<vmem>>, vector<256x16xf32>
    %61 = tpu.iota {dimensions = array<i32: 0>} : vector<256x16xi32>
    %c15_i32_45 = arith.constant 15 : i32
    %62 = vector.broadcast %c15_i32_45 : i32 to vector<256x16xi32>
    %63 = arith.andi %61, %62 : vector<256x16xi32>
    %c14_i32 = arith.constant 14 : i32
    %64 = vector.broadcast %c14_i32 : i32 to vector<256x16xi32>
    %65 = arith.cmpi slt, %63, %64 : vector<256x16xi32>
    %cst_46 = arith.constant 0.000000e+00 : f32
    %66 = vector.broadcast %cst_46 : f32 to vector<256x16xf32>
    %67 = arith.select %65, %60, %66 : vector<256x16xi1>, vector<256x16xf32>
    %c0_47 = arith.constant 0 : index
    %c176 = arith.constant 176 : index
    %68 = vector.load %arg13[%c0_47, %c176] : memref<256x432xf32, #tpu.memory_space<vmem>>, vector<256x16xf32>
    tpu.vector_store %arg13[%c0_47, %c176], %67 {strides = array<i32>} : memref<256x432xf32, #tpu.memory_space<vmem>>, vector<256x16xf32>,
    %c54 = arith.constant 54 : index
    %c0_48 = arith.constant 0 : index
    %69 = vector.load %arg11[%c54, %c0_48] : memref<368x16xf32, #tpu.memory_space<vmem>>, vector<256x16xf32>
    %cst_49 = arith.constant 0.000000e+00 : f32
    %70 = vector.broadcast %cst_49 : f32 to vector<256x16xf32>
    %71 = arith.select %54, %69, %70 : vector<256x16xi1>, vector<256x16xf32>
    %c0_50 = arith.constant 0 : index
    %c192 = arith.constant 192 : index
    %72 = vector.load %arg13[%c0_50, %c192] : memref<256x432xf32, #tpu.memory_space<vmem>>, vector<256x16xf32>
    tpu.vector_store %arg13[%c0_50, %c192], %71 {strides = array<i32>} : memref<256x432xf32, #tpu.memory_space<vmem>>, vector<256x16xf32>,
    %c56_51 = arith.constant 56 : index
    %c0_52 = arith.constant 0 : index
    %73 = vector.load %arg11[%c56_51, %c0_52] : memref<368x16xf32, #tpu.memory_space<vmem>>, vector<256x16xf32>
    %c0_53 = arith.constant 0 : index
    %c208 = arith.constant 208 : index
    %74 = vector.load %arg13[%c0_53, %c208] : memref<256x432xf32, #tpu.memory_space<vmem>>, vector<256x16xf32>
    tpu.vector_store %arg13[%c0_53, %c208], %73 {strides = array<i32>} : memref<256x432xf32, #tpu.memory_space<vmem>>, vector<256x16xf32>,
    %c58 = arith.constant 58 : index
    %c0_54 = arith.constant 0 : index
    %75 = vector.load %arg11[%c58, %c0_54] : memref<368x16xf32, #tpu.memory_space<vmem>>, vector<256x16xf32>
    %cst_55 = arith.constant 0.000000e+00 : f32
    %76 = vector.broadcast %cst_55 : f32 to vector<256x16xf32>
    %77 = arith.select %65, %75, %76 : vector<256x16xi1>, vector<256x16xf32>
    %c0_56 = arith.constant 0 : index
    %c224 = arith.constant 224 : index
    %78 = vector.load %arg13[%c0_56, %c224] : memref<256x432xf32, #tpu.memory_space<vmem>>, vector<256x16xf32>
    tpu.vector_store %arg13[%c0_56, %c224], %77 {strides = array<i32>} : memref<256x432xf32, #tpu.memory_space<vmem>>, vector<256x16xf32>,
    %c86 = arith.constant 86 : index
    %c0_57 = arith.constant 0 : index
    %79 = vector.load %arg11[%c86, %c0_57] : memref<368x16xf32, #tpu.memory_space<vmem>>, vector<256x16xf32>
    %cst_58 = arith.constant 0.000000e+00 : f32
    %80 = vector.broadcast %cst_58 : f32 to vector<256x16xf32>
    %81 = arith.select %54, %79, %80 : vector<256x16xi1>, vector<256x16xf32>
    %c0_59 = arith.constant 0 : index
    %c240 = arith.constant 240 : index
    %82 = vector.load %arg13[%c0_59, %c240] : memref<256x432xf32, #tpu.memory_space<vmem>>, vector<256x16xf32>
    tpu.vector_store %arg13[%c0_59, %c240], %81 {strides = array<i32>} : memref<256x432xf32, #tpu.memory_space<vmem>>, vector<256x16xf32>,
    %c88 = arith.constant 88 : index
    %c0_60 = arith.constant 0 : index
    %83 = vector.load %arg11[%c88, %c0_60] : memref<368x16xf32, #tpu.memory_space<vmem>>, vector<256x16xf32>
    %c0_61 = arith.constant 0 : index
    %c256 = arith.constant 256 : index
    %84 = vector.load %arg13[%c0_61, %c256] : memref<256x432xf32, #tpu.memory_space<vmem>>, vector<256x16xf32>
    tpu.vector_store %arg13[%c0_61, %c256], %83 {strides = array<i32>} : memref<256x432xf32, #tpu.memory_space<vmem>>, vector<256x16xf32>,
    %c90 = arith.constant 90 : index
    %c0_62 = arith.constant 0 : index
    %85 = vector.load %arg11[%c90, %c0_62] : memref<368x16xf32, #tpu.memory_space<vmem>>, vector<256x16xf32>
    %cst_63 = arith.constant 0.000000e+00 : f32
    %86 = vector.broadcast %cst_63 : f32 to vector<256x16xf32>
    %87 = arith.select %65, %85, %86 : vector<256x16xi1>, vector<256x16xf32>
    %c0_64 = arith.constant 0 : index
    %c272 = arith.constant 272 : index
    %88 = vector.load %arg13[%c0_64, %c272] : memref<256x432xf32, #tpu.memory_space<vmem>>, vector<256x16xf32>
    tpu.vector_store %arg13[%c0_64, %c272], %87 {strides = array<i32>} : memref<256x432xf32, #tpu.memory_space<vmem>>, vector<256x16xf32>,
    %c5 = arith.constant 5 : index
    %c0_65 = arith.constant 0 : index
    %89 = vector.load %arg11[%c5, %c0_65] : memref<368x16xf32, #tpu.memory_space<vmem>>, vector<256x16xf32>
    %90 = tpu.iota {dimensions = array<i32: 0>} : vector<256x16xi32>
    %c15_i32_66 = arith.constant 15 : i32
    %91 = vector.broadcast %c15_i32_66 : i32 to vector<256x16xi32>
    %92 = arith.andi %90, %91 : vector<256x16xi32>
    %c3_i32 = arith.constant 3 : i32
    %93 = vector.broadcast %c3_i32 : i32 to vector<256x16xi32>
    %94 = arith.cmpi sge, %92, %93 : vector<256x16xi32>
    %cst_67 = arith.constant 0.000000e+00 : f32
    %95 = vector.broadcast %cst_67 : f32 to vector<256x16xf32>
    %96 = arith.select %94, %89, %95 : vector<256x16xi1>, vector<256x16xf32>
    %c0_68 = arith.constant 0 : index
    %c288 = arith.constant 288 : index
    %97 = vector.load %arg13[%c0_68, %c288] : memref<256x432xf32, #tpu.memory_space<vmem>>, vector<256x16xf32>
    tpu.vector_store %arg13[%c0_68, %c288], %96 {strides = array<i32>} : memref<256x432xf32, #tpu.memory_space<vmem>>, vector<256x16xf32>,
    %c8 = arith.constant 8 : index
    %c0_69 = arith.constant 0 : index
    %98 = vector.load %arg11[%c8, %c0_69] : memref<368x16xf32, #tpu.memory_space<vmem>>, vector<256x16xf32>
    %c0_70 = arith.constant 0 : index
    %c304 = arith.constant 304 : index
    %99 = vector.load %arg13[%c0_70, %c304] : memref<256x432xf32, #tpu.memory_space<vmem>>, vector<256x16xf32>
    tpu.vector_store %arg13[%c0_70, %c304], %98 {strides = array<i32>} : memref<256x432xf32, #tpu.memory_space<vmem>>, vector<256x16xf32>,
    %c11 = arith.constant 11 : index
    %c0_71 = arith.constant 0 : index
    %100 = vector.load %arg11[%c11, %c0_71] : memref<368x16xf32, #tpu.memory_space<vmem>>, vector<256x16xf32>
    %101 = tpu.iota {dimensions = array<i32: 0>} : vector<256x16xi32>
    %c15_i32_72 = arith.constant 15 : i32
    %102 = vector.broadcast %c15_i32_72 : i32 to vector<256x16xi32>
    %103 = arith.andi %101, %102 : vector<256x16xi32>
    %c13_i32 = arith.constant 13 : i32
    %104 = vector.broadcast %c13_i32 : i32 to vector<256x16xi32>
    %105 = arith.cmpi slt, %103, %104 : vector<256x16xi32>
    %cst_73 = arith.constant 0.000000e+00 : f32
    %106 = vector.broadcast %cst_73 : f32 to vector<256x16xf32>
    %107 = arith.select %105, %100, %106 : vector<256x16xi1>, vector<256x16xf32>
    %c0_74 = arith.constant 0 : index
    %c320 = arith.constant 320 : index
    %108 = vector.load %arg13[%c0_74, %c320] : memref<256x432xf32, #tpu.memory_space<vmem>>, vector<256x16xf32>
    tpu.vector_store %arg13[%c0_74, %c320], %107 {strides = array<i32>} : memref<256x432xf32, #tpu.memory_space<vmem>>, vector<256x16xf32>,
    %c53 = arith.constant 53 : index
    %c0_75 = arith.constant 0 : index
    %109 = vector.load %arg11[%c53, %c0_75] : memref<368x16xf32, #tpu.memory_space<vmem>>, vector<256x16xf32>
    %cst_76 = arith.constant 0.000000e+00 : f32
    %110 = vector.broadcast %cst_76 : f32 to vector<256x16xf32>
    %111 = arith.select %94, %109, %110 : vector<256x16xi1>, vector<256x16xf32>
    %c0_77 = arith.constant 0 : index
    %c336 = arith.constant 336 : index
    %112 = vector.load %arg13[%c0_77, %c336] : memref<256x432xf32, #tpu.memory_space<vmem>>, vector<256x16xf32>
    tpu.vector_store %arg13[%c0_77, %c336], %111 {strides = array<i32>} : memref<256x432xf32, #tpu.memory_space<vmem>>, vector<256x16xf32>,
    %c56_78 = arith.constant 56 : index
    %c0_79 = arith.constant 0 : index
    %113 = vector.load %arg11[%c56_78, %c0_79] : memref<368x16xf32, #tpu.memory_space<vmem>>, vector<256x16xf32>
    %c0_80 = arith.constant 0 : index
    %c352 = arith.constant 352 : index
    %114 = vector.load %arg13[%c0_80, %c352] : memref<256x432xf32, #tpu.memory_space<vmem>>, vector<256x16xf32>
    tpu.vector_store %arg13[%c0_80, %c352], %113 {strides = array<i32>} : memref<256x432xf32, #tpu.memory_space<vmem>>, vector<256x16xf32>,
    %c59 = arith.constant 59 : index
    %c0_81 = arith.constant 0 : index
    %115 = vector.load %arg11[%c59, %c0_81] : memref<368x16xf32, #tpu.memory_space<vmem>>, vector<256x16xf32>
    %cst_82 = arith.constant 0.000000e+00 : f32
    %116 = vector.broadcast %cst_82 : f32 to vector<256x16xf32>
    %117 = arith.select %105, %115, %116 : vector<256x16xi1>, vector<256x16xf32>
    %c0_83 = arith.constant 0 : index
    %c368 = arith.constant 368 : index
    %118 = vector.load %arg13[%c0_83, %c368] : memref<256x432xf32, #tpu.memory_space<vmem>>, vector<256x16xf32>
    tpu.vector_store %arg13[%c0_83, %c368], %117 {strides = array<i32>} : memref<256x432xf32, #tpu.memory_space<vmem>>, vector<256x16xf32>,
    %c101 = arith.constant 101 : index
    %c0_84 = arith.constant 0 : index
    %119 = vector.load %arg11[%c101, %c0_84] : memref<368x16xf32, #tpu.memory_space<vmem>>, vector<256x16xf32>
    %cst_85 = arith.constant 0.000000e+00 : f32
    %120 = vector.broadcast %cst_85 : f32 to vector<256x16xf32>
    %121 = arith.select %94, %119, %120 : vector<256x16xi1>, vector<256x16xf32>
    %c0_86 = arith.constant 0 : index
    %c384 = arith.constant 384 : index
    %122 = vector.load %arg13[%c0_86, %c384] : memref<256x432xf32, #tpu.memory_space<vmem>>, vector<256x16xf32>
    tpu.vector_store %arg13[%c0_86, %c384], %121 {strides = array<i32>} : memref<256x432xf32, #tpu.memory_space<vmem>>, vector<256x16xf32>,
    %c104 = arith.constant 104 : index
    %c0_87 = arith.constant 0 : index
    %123 = vector.load %arg11[%c104, %c0_87] : memref<368x16xf32, #tpu.memory_space<vmem>>, vector<256x16xf32>
    %c0_88 = arith.constant 0 : index
    %c400 = arith.constant 400 : index
    %124 = vector.load %arg13[%c0_88, %c400] : memref<256x432xf32, #tpu.memory_space<vmem>>, vector<256x16xf32>
    tpu.vector_store %arg13[%c0_88, %c400], %123 {strides = array<i32>} : memref<256x432xf32, #tpu.memory_space<vmem>>, vector<256x16xf32>,
    %c107 = arith.constant 107 : index
    %c0_89 = arith.constant 0 : index
    %125 = vector.load %arg11[%c107, %c0_89] : memref<368x16xf32, #tpu.memory_space<vmem>>, vector<256x16xf32>
    %cst_90 = arith.constant 0.000000e+00 : f32
    %126 = vector.broadcast %cst_90 : f32 to vector<256x16xf32>
    %127 = arith.select %105, %125, %126 : vector<256x16xi1>, vector<256x16xf32>
    %c0_91 = arith.constant 0 : index
    %c416 = arith.constant 416 : index
    %128 = vector.load %arg13[%c0_91, %c416] : memref<256x432xf32, #tpu.memory_space<vmem>>, vector<256x16xf32>
    tpu.vector_store %arg13[%c0_91, %c416], %127 {strides = array<i32>} : memref<256x432xf32, #tpu.memory_space<vmem>>, vector<256x16xf32>,
    %c0_92 = arith.constant 0 : index
    %c0_93 = arith.constant 0 : index
    %129 = vector.load %arg13[%c0_92, %c0_93] : memref<256x432xf32, #tpu.memory_space<vmem>>, vector<256x432xf32>
    %c0_94 = arith.constant 0 : index
    %c0_95 = arith.constant 0 : index
    %130 = vector.load %arg2[%c0_94, %c0_95] : memref<432x48xf32, #tpu.memory_space<vmem>>, vector<432x48xf32>
    %cst_96 = arith.constant dense<0.000000e+00> : vector<256x48xf32>
    %131 = tpu.matmul %129, %130, %cst_96 {dimension_numbers = #tpu.dot_dimension_numbers<[1], [0], [0], [1], [0, 0, 1, 1], [], []>} : vector<256x432xf32>, vector<432x48xf32>, vector<256x48xf32> -> vector<256x48xf32>
    %c0_97 = arith.constant 0 : index
    %c0_98 = arith.constant 0 : index
    %132 = vector.load %arg3[%c0_97, %c0_98] : memref<1x48xf32, #tpu.memory_space<vmem>>, vector<1x48xf32>
    %133 = vector.broadcast %132 : vector<1x48xf32> to vector<256x48xf32>
    %134 = arith.addf %131, %133 : vector<256x48xf32>
    %cst_99 = arith.constant dense<0.000000e+00> : vector<48xf32>
    %135 = vector.multi_reduction <add>, %134, %cst_99 [0] : vector<256x48xf32> to vector<48xf32>
    %136 = vector.shape_cast %135 : vector<48xf32> to vector<1x48xf32>
    %cst_100 = arith.constant 3.906250e-03 : f32
    %137 = vector.broadcast %cst_100 : f32 to vector<1x48xf32>
    %138 = arith.mulf %136, %137 : vector<1x48xf32>
    %139 = arith.mulf %134, %134 : vector<256x48xf32>
    %cst_101 = arith.constant dense<0.000000e+00> : vector<48xf32>
    %140 = vector.multi_reduction <add>, %139, %cst_101 [0] : vector<256x48xf32> to vector<48xf32>
    %141 = vector.shape_cast %140 : vector<48xf32> to vector<1x48xf32>
    %cst_102 = arith.constant 3.906250e-03 : f32
    %142 = vector.broadcast %cst_102 : f32 to vector<1x48xf32>
    %143 = arith.mulf %141, %142 : vector<1x48xf32>
    %144 = arith.mulf %138, %138 : vector<1x48xf32>
    %145 = arith.subf %143, %144 : vector<1x48xf32>
    %cst_103 = arith.constant 0.000000e+00 : f32
    %146 = vector.broadcast %cst_103 : f32 to vector<1x48xf32>
    %147 = arith.maximumf %145, %146 : vector<1x48xf32>
    %148 = math.sqrt %147 : vector<1x48xf32>
    %c0_104 = arith.constant 0 : index
    %c0_105 = arith.constant 0 : index
    %c0_106 = arith.constant 0 : index
    %149 = vector.load %arg4[%c0_104, %c0_105, %c0_106] : memref<2x48x3xf32, #tpu.memory_space<vmem>>, vector<1x48x3xf32>
    %150 = vector.shape_cast %149 : vector<1x48x3xf32> to vector<48x3xf32>
    %cst_107 = arith.constant dense<0.000000e+00> : vector<1x3xf32>
    %151 = tpu.matmul %138, %150, %cst_107 {dimension_numbers = #tpu.dot_dimension_numbers<[1], [0], [0], [1], [0, 0, 1, 1], [], []>} : vector<1x48xf32>, vector<48x3xf32>, vector<1x3xf32> -> vector<1x3xf32>
    %c0_108 = arith.constant 0 : index
    %c0_109 = arith.constant 0 : index
    %c0_110 = arith.constant 0 : index
    %152 = vector.load %arg5[%c0_108, %c0_109, %c0_110] : memref<2x1x3xf32, #tpu.memory_space<vmem>>, vector<1x1x3xf32>
    %153 = vector.shape_cast %152 : vector<1x1x3xf32> to vector<1x3xf32>
    %154 = arith.addf %151, %153 : vector<1x3xf32>
    %cst_111 = arith.constant 0.000000e+00 : f32
    %155 = vector.broadcast %cst_111 : f32 to vector<1x3xf32>
    %156 = arith.maximumf %154, %155 : vector<1x3xf32>
    %c0_112 = arith.constant 0 : index
    %c0_113 = arith.constant 0 : index
    %c0_114 = arith.constant 0 : index
    %157 = vector.load %arg6[%c0_112, %c0_113, %c0_114] : memref<2x3x48xf32, #tpu.memory_space<vmem>>, vector<1x3x48xf32>
    %158 = vector.shape_cast %157 : vector<1x3x48xf32> to vector<3x48xf32>
    %cst_115 = arith.constant dense<0.000000e+00> : vector<1x48xf32>
    %159 = tpu.matmul %156, %158, %cst_115 {dimension_numbers = #tpu.dot_dimension_numbers<[1], [0], [0], [1], [0, 0, 1, 1], [], []>} : vector<1x3xf32>, vector<3x48xf32>, vector<1x48xf32> -> vector<1x48xf32>
    %c0_116 = arith.constant 0 : index
    %c0_117 = arith.constant 0 : index
    %c0_118 = arith.constant 0 : index
    %160 = vector.load %arg7[%c0_116, %c0_117, %c0_118] : memref<2x1x48xf32, #tpu.memory_space<vmem>>, vector<1x1x48xf32>
    %161 = vector.shape_cast %160 : vector<1x1x48xf32> to vector<1x48xf32>
    %162 = arith.addf %159, %161 : vector<1x48xf32>
    %cst_119 = arith.constant 0.000000e+00 : f32
    %163 = vector.broadcast %cst_119 : f32 to vector<1x48xf32>
    %164 = arith.subf %163, %162 : vector<1x48xf32>
    %165 = math.exp %164 : vector<1x48xf32>
    %cst_120 = arith.constant 1.000000e+00 : f32
    %166 = vector.broadcast %cst_120 : f32 to vector<1x48xf32>
    %167 = arith.addf %166, %165 : vector<1x48xf32>
    %cst_121 = arith.constant 1.000000e+00 : f32
    %168 = vector.broadcast %cst_121 : f32 to vector<1x48xf32>
    %169 = arith.divf %168, %167 : vector<1x48xf32>
    %c1 = arith.constant 1 : index
    %c0_122 = arith.constant 0 : index
    %c0_123 = arith.constant 0 : index
    %170 = vector.load %arg4[%c1, %c0_122, %c0_123] : memref<2x48x3xf32, #tpu.memory_space<vmem>>, vector<1x48x3xf32>
    %171 = vector.shape_cast %170 : vector<1x48x3xf32> to vector<48x3xf32>
    %cst_124 = arith.constant dense<0.000000e+00> : vector<1x3xf32>
    %172 = tpu.matmul %148, %171, %cst_124 {dimension_numbers = #tpu.dot_dimension_numbers<[1], [0], [0], [1], [0, 0, 1, 1], [], []>} : vector<1x48xf32>, vector<48x3xf32>, vector<1x3xf32> -> vector<1x3xf32>
    %c1_125 = arith.constant 1 : index
    %c0_126 = arith.constant 0 : index
    %c0_127 = arith.constant 0 : index
    %173 = vector.load %arg5[%c1_125, %c0_126, %c0_127] : memref<2x1x3xf32, #tpu.memory_space<vmem>>, vector<1x1x3xf32>
    %174 = vector.shape_cast %173 : vector<1x1x3xf32> to vector<1x3xf32>
    %175 = arith.addf %172, %174 : vector<1x3xf32>
    %cst_128 = arith.constant 0.000000e+00 : f32
    %176 = vector.broadcast %cst_128 : f32 to vector<1x3xf32>
    %177 = arith.maximumf %175, %176 : vector<1x3xf32>
    %c1_129 = arith.constant 1 : index
    %c0_130 = arith.constant 0 : index
    %c0_131 = arith.constant 0 : index
    %178 = vector.load %arg6[%c1_129, %c0_130, %c0_131] : memref<2x3x48xf32, #tpu.memory_space<vmem>>, vector<1x3x48xf32>
    %179 = vector.shape_cast %178 : vector<1x3x48xf32> to vector<3x48xf32>
    %cst_132 = arith.constant dense<0.000000e+00> : vector<1x48xf32>
    %180 = tpu.matmul %177, %179, %cst_132 {dimension_numbers = #tpu.dot_dimension_numbers<[1], [0], [0], [1], [0, 0, 1, 1], [], []>} : vector<1x3xf32>, vector<3x48xf32>, vector<1x48xf32> -> vector<1x48xf32>
    %c1_133 = arith.constant 1 : index
    %c0_134 = arith.constant 0 : index
    %c0_135 = arith.constant 0 : index
    %181 = vector.load %arg7[%c1_133, %c0_134, %c0_135] : memref<2x1x48xf32, #tpu.memory_space<vmem>>, vector<1x1x48xf32>
    %182 = vector.shape_cast %181 : vector<1x1x48xf32> to vector<1x48xf32>
    %183 = arith.addf %180, %182 : vector<1x48xf32>
    %cst_136 = arith.constant 0.000000e+00 : f32
    %184 = vector.broadcast %cst_136 : f32 to vector<1x48xf32>
    %185 = arith.subf %184, %183 : vector<1x48xf32>
    %186 = math.exp %185 : vector<1x48xf32>
    %cst_137 = arith.constant 1.000000e+00 : f32
    %187 = vector.broadcast %cst_137 : f32 to vector<1x48xf32>
    %188 = arith.addf %187, %186 : vector<1x48xf32>
    %cst_138 = arith.constant 1.000000e+00 : f32
    %189 = vector.broadcast %cst_138 : f32 to vector<1x48xf32>
    %190 = arith.divf %189, %188 : vector<1x48xf32>
    %191 = arith.addf %169, %190 : vector<1x48xf32>
    %cst_139 = arith.constant 5.000000e-01 : f32
    %192 = vector.broadcast %cst_139 : f32 to vector<1x48xf32>
    %193 = arith.mulf %192, %191 : vector<1x48xf32>
    %194 = vector.broadcast %193 : vector<1x48xf32> to vector<256x48xf32>
    %195 = arith.mulf %134, %194 : vector<256x48xf32>
    %cst_140 = arith.constant 0.000000e+00 : f32
    %196 = vector.broadcast %cst_140 : f32 to vector<256x48xf32>
    %197 = arith.maximumf %195, %196 : vector<256x48xf32>
    %c24_141 = arith.constant 24 : index
    %c0_142 = arith.constant 0 : index
    %198 = vector.load %arg12[%c24_141, %c0_142] : memref<304x48xf32, #tpu.memory_space<vmem>>, vector<256x48xf32>
    tpu.vector_store %arg12[%c24_141, %c0_142], %197 {strides = array<i32>} : memref<304x48xf32, #tpu.memory_space<vmem>>, vector<256x48xf32>,
    %c7 = arith.constant 7 : index
    %c0_143 = arith.constant 0 : index
    %199 = vector.load %arg12[%c7, %c0_143] : memref<304x48xf32, #tpu.memory_space<vmem>>, vector<256x48xf32>
    %200 = tpu.iota {dimensions = array<i32: 0>} : vector<256x48xi32>
    %c15_i32_144 = arith.constant 15 : i32
    %201 = vector.broadcast %c15_i32_144 : i32 to vector<256x48xi32>
    %202 = arith.andi %200, %201 : vector<256x48xi32>
    %c1_i32_145 = arith.constant 1 : i32
    %203 = vector.broadcast %c1_i32_145 : i32 to vector<256x48xi32>
    %204 = arith.cmpi sge, %202, %203 : vector<256x48xi32>
    %cst_146 = arith.constant 0.000000e+00 : f32
    %205 = vector.broadcast %cst_146 : f32 to vector<256x48xf32>
    %206 = arith.select %204, %199, %205 : vector<256x48xi1>, vector<256x48xf32>
    %c0_147 = arith.constant 0 : index
    %c0_148 = arith.constant 0 : index
    %207 = vector.load %arg13[%c0_147, %c0_148] : memref<256x432xf32, #tpu.memory_space<vmem>>, vector<256x48xf32>
    tpu.vector_store %arg13[%c0_147, %c0_148], %206 {strides = array<i32>} : memref<256x432xf32, #tpu.memory_space<vmem>>, vector<256x48xf32>,
    %c8_149 = arith.constant 8 : index
    %c0_150 = arith.constant 0 : index
    %208 = vector.load %arg12[%c8_149, %c0_150] : memref<304x48xf32, #tpu.memory_space<vmem>>, vector<256x48xf32>
    %c0_151 = arith.constant 0 : index
    %c48_152 = arith.constant 48 : index
    %209 = vector.load %arg13[%c0_151, %c48_152] : memref<256x432xf32, #tpu.memory_space<vmem>>, vector<256x48xf32>
    tpu.vector_store %arg13[%c0_151, %c48_152], %208 {strides = array<i32>} : memref<256x432xf32, #tpu.memory_space<vmem>>, vector<256x48xf32>,
    %c9 = arith.constant 9 : index
    %c0_153 = arith.constant 0 : index
    %210 = vector.load %arg12[%c9, %c0_153] : memref<304x48xf32, #tpu.memory_space<vmem>>, vector<256x48xf32>
    %211 = tpu.iota {dimensions = array<i32: 0>} : vector<256x48xi32>
    %c15_i32_154 = arith.constant 15 : i32
    %212 = vector.broadcast %c15_i32_154 : i32 to vector<256x48xi32>
    %213 = arith.andi %211, %212 : vector<256x48xi32>
    %c15_i32_155 = arith.constant 15 : i32
    %214 = vector.broadcast %c15_i32_155 : i32 to vector<256x48xi32>
    %215 = arith.cmpi slt, %213, %214 : vector<256x48xi32>
    %cst_156 = arith.constant 0.000000e+00 : f32
    %216 = vector.broadcast %cst_156 : f32 to vector<256x48xf32>
    %217 = arith.select %215, %210, %216 : vector<256x48xi1>, vector<256x48xf32>
    %c0_157 = arith.constant 0 : index
    %c96_158 = arith.constant 96 : index
    %218 = vector.load %arg13[%c0_157, %c96_158] : memref<256x432xf32, #tpu.memory_space<vmem>>, vector<256x48xf32>
    tpu.vector_store %arg13[%c0_157, %c96_158], %217 {strides = array<i32>} : memref<256x432xf32, #tpu.memory_space<vmem>>, vector<256x48xf32>,
    %c23 = arith.constant 23 : index
    %c0_159 = arith.constant 0 : index
    %219 = vector.load %arg12[%c23, %c0_159] : memref<304x48xf32, #tpu.memory_space<vmem>>, vector<256x48xf32>
    %cst_160 = arith.constant 0.000000e+00 : f32
    %220 = vector.broadcast %cst_160 : f32 to vector<256x48xf32>
    %221 = arith.select %204, %219, %220 : vector<256x48xi1>, vector<256x48xf32>
    %c0_161 = arith.constant 0 : index
    %c144_162 = arith.constant 144 : index
    %222 = vector.load %arg13[%c0_161, %c144_162] : memref<256x432xf32, #tpu.memory_space<vmem>>, vector<256x48xf32>
    tpu.vector_store %arg13[%c0_161, %c144_162], %221 {strides = array<i32>} : memref<256x432xf32, #tpu.memory_space<vmem>>, vector<256x48xf32>,
    %c24_163 = arith.constant 24 : index
    %c0_164 = arith.constant 0 : index
    %223 = vector.load %arg12[%c24_163, %c0_164] : memref<304x48xf32, #tpu.memory_space<vmem>>, vector<256x48xf32>
    %c0_165 = arith.constant 0 : index
    %c192_166 = arith.constant 192 : index
    %224 = vector.load %arg13[%c0_165, %c192_166] : memref<256x432xf32, #tpu.memory_space<vmem>>, vector<256x48xf32>
    tpu.vector_store %arg13[%c0_165, %c192_166], %223 {strides = array<i32>} : memref<256x432xf32, #tpu.memory_space<vmem>>, vector<256x48xf32>,
    %c25 = arith.constant 25 : index
    %c0_167 = arith.constant 0 : index
    %225 = vector.load %arg12[%c25, %c0_167] : memref<304x48xf32, #tpu.memory_space<vmem>>, vector<256x48xf32>
    %cst_168 = arith.constant 0.000000e+00 : f32
    %226 = vector.broadcast %cst_168 : f32 to vector<256x48xf32>
    %227 = arith.select %215, %225, %226 : vector<256x48xi1>, vector<256x48xf32>
    %c0_169 = arith.constant 0 : index
    %c240_170 = arith.constant 240 : index
    %228 = vector.load %arg13[%c0_169, %c240_170] : memref<256x432xf32, #tpu.memory_space<vmem>>, vector<256x48xf32>
    tpu.vector_store %arg13[%c0_169, %c240_170], %227 {strides = array<i32>} : memref<256x432xf32, #tpu.memory_space<vmem>>, vector<256x48xf32>,
    %c39_171 = arith.constant 39 : index
    %c0_172 = arith.constant 0 : index
    %229 = vector.load %arg12[%c39_171, %c0_172] : memref<304x48xf32, #tpu.memory_space<vmem>>, vector<256x48xf32>
    %cst_173 = arith.constant 0.000000e+00 : f32
    %230 = vector.broadcast %cst_173 : f32 to vector<256x48xf32>
    %231 = arith.select %204, %229, %230 : vector<256x48xi1>, vector<256x48xf32>
    %c0_174 = arith.constant 0 : index
    %c288_175 = arith.constant 288 : index
    %232 = vector.load %arg13[%c0_174, %c288_175] : memref<256x432xf32, #tpu.memory_space<vmem>>, vector<256x48xf32>
    tpu.vector_store %arg13[%c0_174, %c288_175], %231 {strides = array<i32>} : memref<256x432xf32, #tpu.memory_space<vmem>>, vector<256x48xf32>,
    %c40_176 = arith.constant 40 : index
    %c0_177 = arith.constant 0 : index
    %233 = vector.load %arg12[%c40_176, %c0_177] : memref<304x48xf32, #tpu.memory_space<vmem>>, vector<256x48xf32>
    %c0_178 = arith.constant 0 : index
    %c336_179 = arith.constant 336 : index
    %234 = vector.load %arg13[%c0_178, %c336_179] : memref<256x432xf32, #tpu.memory_space<vmem>>, vector<256x48xf32>
    tpu.vector_store %arg13[%c0_178, %c336_179], %233 {strides = array<i32>} : memref<256x432xf32, #tpu.memory_space<vmem>>, vector<256x48xf32>,
    %c41_180 = arith.constant 41 : index
    %c0_181 = arith.constant 0 : index
    %235 = vector.load %arg12[%c41_180, %c0_181] : memref<304x48xf32, #tpu.memory_space<vmem>>, vector<256x48xf32>
    %cst_182 = arith.constant 0.000000e+00 : f32
    %236 = vector.broadcast %cst_182 : f32 to vector<256x48xf32>
    %237 = arith.select %215, %235, %236 : vector<256x48xi1>, vector<256x48xf32>
    %c0_183 = arith.constant 0 : index
    %c384_184 = arith.constant 384 : index
    %238 = vector.load %arg13[%c0_183, %c384_184] : memref<256x432xf32, #tpu.memory_space<vmem>>, vector<256x48xf32>
    tpu.vector_store %arg13[%c0_183, %c384_184], %237 {strides = array<i32>} : memref<256x432xf32, #tpu.memory_space<vmem>>, vector<256x48xf32>,
    %c0_185 = arith.constant 0 : index
    %c0_186 = arith.constant 0 : index
    %239 = vector.load %arg13[%c0_185, %c0_186] : memref<256x432xf32, #tpu.memory_space<vmem>>, vector<256x432xf32>
    %c0_187 = arith.constant 0 : index
    %c0_188 = arith.constant 0 : index
    %240 = vector.load %arg8[%c0_187, %c0_188] : memref<432x16xf32, #tpu.memory_space<vmem>>, vector<432x16xf32>
    %cst_189 = arith.constant dense<0.000000e+00> : vector<256x16xf32>
    %241 = tpu.matmul %239, %240, %cst_189 {dimension_numbers = #tpu.dot_dimension_numbers<[1], [0], [0], [1], [0, 0, 1, 1], [], []>} : vector<256x432xf32>, vector<432x16xf32>, vector<256x16xf32> -> vector<256x16xf32>
    %c0_190 = arith.constant 0 : index
    %c0_191 = arith.constant 0 : index
    %242 = vector.load %arg9[%c0_190, %c0_191] : memref<1x16xf32, #tpu.memory_space<vmem>>, vector<1x16xf32>
    %243 = vector.broadcast %242 : vector<1x16xf32> to vector<256x16xf32>
    %244 = arith.addf %241, %243 : vector<256x16xf32>
    %245 = arith.addf %1, %244 : vector<256x16xf32>
    %246 = tpu.transpose %245, [1, 0] : vector<256x16xf32> -> vector<16x256xf32>
    %c0_192 = arith.constant 0 : index
    %c0_193 = arith.constant 0 : index
    %c0_194 = arith.constant 0 : index
    %247 = vector.load %arg10[%c0_192, %c0_193, %c0_194] : memref<1x16x256xf32, #tpu.memory_space<vmem>>, vector<1x16x256xf32>
    %248 = vector.shape_cast %247 : vector<1x16x256xf32> to vector<16x256xf32>
    %249 = vector.shape_cast %246 : vector<16x256xf32> to vector<1x16x256xf32>
    tpu.vector_store %arg10[%c0_192, %c0_193, %c0_194], %249 {strides = array<i32>} : memref<1x16x256xf32, #tpu.memory_space<vmem>>, vector<1x16x256xf32>,
    return
  }
  func.func @transform_0(%arg0: i32) -> (i32, i32, i32) {
    %c0_i32 = arith.constant 0 : i32
    %c0_i32_0 = arith.constant 0 : i32
    %c0_i32_1 = arith.constant 0 : i32
    return %arg0, %c0_i32, %c0_i32_0 : i32, i32, i32
  }
  func.func @transform_1(%arg0: i32) -> (i32, i32) {
    %c0_i32 = arith.constant 0 : i32
    %c0_i32_0 = arith.constant 0 : i32
    %c0_i32_1 = arith.constant 0 : i32
    return %c0_i32, %c0_i32_0 : i32, i32
  }
  func.func @transform_2(%arg0: i32) -> (i32, i32) {
    %c0_i32 = arith.constant 0 : i32
    %c0_i32_0 = arith.constant 0 : i32
    %c0_i32_1 = arith.constant 0 : i32
    return %c0_i32, %c0_i32_0 : i32, i32
  }
  func.func @transform_3(%arg0: i32) -> (i32, i32, i32) {
    %c0_i32 = arith.constant 0 : i32
    %c0_i32_0 = arith.constant 0 : i32
    %c0_i32_1 = arith.constant 0 : i32
    %c0_i32_2 = arith.constant 0 : i32
    return %c0_i32, %c0_i32_0, %c0_i32_1 : i32, i32, i32
  }
  func.func @transform_4(%arg0: i32) -> (i32, i32, i32) {
    %c0_i32 = arith.constant 0 : i32
    %c0_i32_0 = arith.constant 0 : i32
    %c0_i32_1 = arith.constant 0 : i32
    %c0_i32_2 = arith.constant 0 : i32
    return %c0_i32, %c0_i32_0, %c0_i32_1 : i32, i32, i32
  }
  func.func @transform_5(%arg0: i32) -> (i32, i32, i32) {
    %c0_i32 = arith.constant 0 : i32
    %c0_i32_0 = arith.constant 0 : i32
    %c0_i32_1 = arith.constant 0 : i32
    %c0_i32_2 = arith.constant 0 : i32
    return %c0_i32, %c0_i32_0, %c0_i32_1 : i32, i32, i32
  }
  func.func @transform_6(%arg0: i32) -> (i32, i32, i32) {
    %c0_i32 = arith.constant 0 : i32
    %c0_i32_0 = arith.constant 0 : i32
    %c0_i32_1 = arith.constant 0 : i32
    %c0_i32_2 = arith.constant 0 : i32
    return %c0_i32, %c0_i32_0, %c0_i32_1 : i32, i32, i32
  }
  func.func @transform_7(%arg0: i32) -> (i32, i32) {
    %c0_i32 = arith.constant 0 : i32
    %c0_i32_0 = arith.constant 0 : i32
    %c0_i32_1 = arith.constant 0 : i32
    return %c0_i32, %c0_i32_0 : i32, i32
  }
  func.func @transform_8(%arg0: i32) -> (i32, i32) {
    %c0_i32 = arith.constant 0 : i32
    %c0_i32_0 = arith.constant 0 : i32
    %c0_i32_1 = arith.constant 0 : i32
    return %c0_i32, %c0_i32_0 : i32, i32
  }
  func.func @transform_9(%arg0: i32) -> (i32, i32, i32) {
    %c0_i32 = arith.constant 0 : i32
    %c0_i32_0 = arith.constant 0 : i32
    %c0_i32_1 = arith.constant 0 : i32
    return %arg0, %c0_i32, %c0_i32_0 : i32, i32, i32
  }
}

</mosaic_0001>

<llo_original>
// kernel: dilate_res_block.1
$region0: #{dilate_res_block.1}
  #allocation0 [shape = 'u32[]', space=smem, size = 0x4, offset = 0x4, fixed_abs, tag = 'smem constant byte address 0x4 - core index']
  #allocation1 [shape = 'u32[72,128]{1,0:T(1,128)}', space=vmem, size = 0x9000, scoped, tag = 'internal scratch']
  #allocation2 [shape = 'f32[368,16]{1,0:T(8,128)}', space=vmem, size = 0x2e000, scoped, tag = 'scratch operand']
  #allocation3 [shape = 'f32[304,48]{1,0:T(8,128)}', space=vmem, size = 0x26000, scoped, tag = 'scratch operand']
  #allocation4 [shape = 'f32[256,432]{1,0:T(8,128)}', space=vmem, size = 0x80000, scoped, tag = 'scratch operand']
  %s0 = inlined_call_operand.vmem [shape: f32[2,256,16], index: 0, kind: input, shape index: {}]
  %s1 = inlined_call_operand.vmem [shape: f32[432,48], index: 1, kind: input, shape index: {}]
  %s2 = inlined_call_operand.vmem [shape: f32[1,48], index: 2, kind: input, shape index: {}]
  %s3 = inlined_call_operand.vmem [shape: f32[2,48,3], index: 3, kind: input, shape index: {}]
  %s4 = inlined_call_operand.vmem [shape: f32[2,1,3], index: 4, kind: input, shape index: {}]
  %s5 = inlined_call_operand.vmem [shape: f32[2,3,48], index: 5, kind: input, shape index: {}]
  %s6 = inlined_call_operand.vmem [shape: f32[2,1,48], index: 6, kind: input, shape index: {}]
  %s7 = inlined_call_operand.vmem [shape: f32[432,16], index: 7, kind: input, shape index: {}]
  %s8 = inlined_call_operand.vmem [shape: f32[1,16], index: 8, kind: input, shape index: {}]
  %s9 = inlined_call_operand.vmem [shape: f32[2,16,256], index: 9, kind: output, shape index: {}]
  %s10 = sld [smem:[#allocation0]]
  $region69: #{dilate_res_block.1} parent=0
    _
  %s12 = ssub.s32 1, %s10
  %s13 = scalar_select 0, %s12, %s10
  loop: start=0, step=1, limit=4
  $region2: #{dilate_res_block.1} parent=0 // loop_pre_header
    _
  $region3: #{dilate_res_block.1} parent=0 // loop_header
    %s15 = sphi 0, %s19
    %p16 = scmp.ge.s32.totalorder %s15, 4
    %s25 = sphi 0, %s27
    %s28 = sphi 0, %s25
    %s29 = sphi 0, %s28
    %s45 = sphi 0, %s29
    %s49 = sphi 0, %s49
    %s51 = sphi 0, %s49
    %s52 = sphi 0, %s51
    %s66 = sphi 0, %s52
    %s70 = sphi 0, %s70
    %s72 = sphi 0, %s70
    %s73 = sphi 0, %s72
    %s87 = sphi 0, %s73
    %s91 = sphi 0, %s91
    %s93 = sphi 0, %s91
    %s94 = sphi 0, %s93
    %s108 = sphi 0, %s94
    %s112 = sphi 0, %s112
    %s114 = sphi 0, %s112
    %s115 = sphi 0, %s114
    %s129 = sphi 0, %s115
    %s133 = sphi 0, %s133
    %s135 = sphi 0, %s133
    %s136 = sphi 0, %s135
    %s150 = sphi 0, %s136
    %s154 = sphi 0, %s154
    %s156 = sphi 0, %s154
    %s157 = sphi 0, %s156
    %s171 = sphi 0, %s157
    %s175 = sphi 0, %s175
    %s177 = sphi 0, %s175
    %s178 = sphi 0, %s177
    %s192 = sphi 0, %s178
    %s196 = sphi 0, %s196
    %s198 = sphi 0, %s196
    %s199 = sphi 0, %s198
    %s213 = sphi 0, %s199
    %s219 = sphi 0, %s221
    %s222 = sphi 0, %s219
    %s223 = sphi 0, %s222
    %s239 = sphi 0, %s223
  $region4: #{dilate_res_block.1} parent=0 // loop_header_branch
    %18 = sbr.rel (%p16) target = $region8
  $region5: #{dilate_res_block.1} parent=0 // loop_body
    %s20 = ssub.s32 %s15, 1
    %s21 = ssub.s32 %s15, 2
    %s22 = sadd.s32 %s15, 1
    %s23 = ssub.s32 %s15, %s22
    %p24 = scmp.eq.s32.totalorder %s23, 0
    %s26 = sadd.s32 %s25, 1
    %s27 = scalar_select %p24, %s25, %s26
    %p30 = pneg %p24
    %p31 = scmp.eq.s32.totalorder %s15, 1
    %p32 = por %p30, %p31
    %p33 = scmp.ne.s32.totalorder %s25, %s28
    %p34 = scmp.eq.s32.totalorder %s15, 0
    %p35 = por %p33, %p34
    %p36 = scmp.ne.s32.totalorder %s25, %s28
    %p37 = scmp.eq.s32.totalorder %s20, 1
    %p38 = por %p36, %p37
    %p39 = scmp.ne.s32.totalorder %s28, %s29
    %p40 = scmp.eq.s32.totalorder %s20, 0
    %p41 = por %p39, %p40
    %p42 = scmp.ne.s32.totalorder %s28, %s29
    %p43 = scmp.eq.s32.totalorder %s21, 1
    %p44 = por %p42, %p43
    %p46 = scmp.ne.s32.totalorder %s29, %s45
    %p47 = scmp.eq.s32.totalorder %s21, 0
    %p48 = por %p46, %p47
    %s50 = sadd.s32 %s49, 1
    %p53 = scmp.eq.s32.totalorder %s15, 1
    %p54 = scmp.ne.s32.totalorder %s49, %s51
    %p55 = scmp.eq.s32.totalorder %s15, 0
    %p56 = por %p54, %p55
    %p57 = scmp.ne.s32.totalorder %s49, %s51
    %p58 = scmp.eq.s32.totalorder %s20, 1
    %p59 = por %p57, %p58
    %p60 = scmp.ne.s32.totalorder %s51, %s52
    %p61 = scmp.eq.s32.totalorder %s20, 0
    %p62 = por %p60, %p61
    %p63 = scmp.ne.s32.totalorder %s51, %s52
    %p64 = scmp.eq.s32.totalorder %s21, 1
    %p65 = por %p63, %p64
    %p67 = scmp.ne.s32.totalorder %s52, %s66
    %p68 = scmp.eq.s32.totalorder %s21, 0
    %p69 = por %p67, %p68
    %s71 = sadd.s32 %s70, 1
    %p74 = scmp.eq.s32.totalorder %s15, 1
    %p75 = scmp.ne.s32.totalorder %s70, %s72
    %p76 = scmp.eq.s32.totalorder %s15, 0
    %p77 = por %p75, %p76
    %p78 = scmp.ne.s32.totalorder %s70, %s72
    %p79 = scmp.eq.s32.totalorder %s20, 1
    %p80 = por %p78, %p79
    %p81 = scmp.ne.s32.totalorder %s72, %s73
    %p82 = scmp.eq.s32.totalorder %s20, 0
    %p83 = por %p81, %p82
    %p84 = scmp.ne.s32.totalorder %s72, %s73
    %p85 = scmp.eq.s32.totalorder %s21, 1
    %p86 = por %p84, %p85
    %p88 = scmp.ne.s32.totalorder %s73, %s87
    %p89 = scmp.eq.s32.totalorder %s21, 0
    %p90 = por %p88, %p89
    %s92 = sadd.s32 %s91, 1
    %p95 = scmp.eq.s32.totalorder %s15, 1
    %p96 = scmp.ne.s32.totalorder %s91, %s93
    %p97 = scmp.eq.s32.totalorder %s15, 0
    %p98 = por %p96, %p97
    %p99 = scmp.ne.s32.totalorder %s91, %s93
    %p100 = scmp.eq.s32.totalorder %s20, 1
    %p101 = por %p99, %p100
    %p102 = scmp.ne.s32.totalorder %s93, %s94
    %p103 = scmp.eq.s32.totalorder %s20, 0
    %p104 = por %p102, %p103
    %p105 = scmp.ne.s32.totalorder %s93, %s94
    %p106 = scmp.eq.s32.totalorder %s21, 1
    %p107 = por %p105, %p106
    %p109 = scmp.ne.s32.totalorder %s94, %s108
    %p110 = scmp.eq.s32.totalorder %s21, 0
    %p111 = por %p109, %p110
    %s113 = sadd.s32 %s112, 1
    %p116 = scmp.eq.s32.totalorder %s15, 1
    %p117 = scmp.ne.s32.totalorder %s112, %s114
    %p118 = scmp.eq.s32.totalorder %s15, 0
    %p119 = por %p117, %p118
    %p120 = scmp.ne.s32.totalorder %s112, %s114
    %p121 = scmp.eq.s32.totalorder %s20, 1
    %p122 = por %p120, %p121
    %p123 = scmp.ne.s32.totalorder %s114, %s115
    %p124 = scmp.eq.s32.totalorder %s20, 0
    %p125 = por %p123, %p124
    %p126 = scmp.ne.s32.totalorder %s114, %s115
    %p127 = scmp.eq.s32.totalorder %s21, 1
    %p128 = por %p126, %p127
    %p130 = scmp.ne.s32.totalorder %s115, %s129
    %p131 = scmp.eq.s32.totalorder %s21, 0
    %p132 = por %p130, %p131
    %s134 = sadd.s32 %s133, 1
    %p137 = scmp.eq.s32.totalorder %s15, 1
    %p138 = scmp.ne.s32.totalorder %s133, %s135
    %p139 = scmp.eq.s32.totalorder %s15, 0
    %p140 = por %p138, %p139
    %p141 = scmp.ne.s32.totalorder %s133, %s135
    %p142 = scmp.eq.s32.totalorder %s20, 1
    %p143 = por %p141, %p142
    %p144 = scmp.ne.s32.totalorder %s135, %s136
    %p145 = scmp.eq.s32.totalorder %s20, 0
    %p146 = por %p144, %p145
    %p147 = scmp.ne.s32.totalorder %s135, %s136
    %p148 = scmp.eq.s32.totalorder %s21, 1
    %p149 = por %p147, %p148
    %p151 = scmp.ne.s32.totalorder %s136, %s150
    %p152 = scmp.eq.s32.totalorder %s21, 0
    %p153 = por %p151, %p152
    %s155 = sadd.s32 %s154, 1
    %p158 = scmp.eq.s32.totalorder %s15, 1
    %p159 = scmp.ne.s32.totalorder %s154, %s156
    %p160 = scmp.eq.s32.totalorder %s15, 0
    %p161 = por %p159, %p160
    %p162 = scmp.ne.s32.totalorder %s154, %s156
    %p163 = scmp.eq.s32.totalorder %s20, 1
    %p164 = por %p162, %p163
    %p165 = scmp.ne.s32.totalorder %s156, %s157
    %p166 = scmp.eq.s32.totalorder %s20, 0
    %p167 = por %p165, %p166
    %p168 = scmp.ne.s32.totalorder %s156, %s157
    %p169 = scmp.eq.s32.totalorder %s21, 1
    %p170 = por %p168, %p169
    %p172 = scmp.ne.s32.totalorder %s157, %s171
    %p173 = scmp.eq.s32.totalorder %s21, 0
    %p174 = por %p172, %p173
    %s176 = sadd.s32 %s175, 1
    %p179 = scmp.eq.s32.totalorder %s15, 1
    %p180 = scmp.ne.s32.totalorder %s175, %s177
    %p181 = scmp.eq.s32.totalorder %s15, 0
    %p182 = por %p180, %p181
    %p183 = scmp.ne.s32.totalorder %s175, %s177
    %p184 = scmp.eq.s32.totalorder %s20, 1
    %p185 = por %p183, %p184
    %p186 = scmp.ne.s32.totalorder %s177, %s178
    %p187 = scmp.eq.s32.totalorder %s20, 0
    %p188 = por %p186, %p187
    %p189 = scmp.ne.s32.totalorder %s177, %s178
    %p190 = scmp.eq.s32.totalorder %s21, 1
    %p191 = por %p189, %p190
    %p193 = scmp.ne.s32.totalorder %s178, %s192
    %p194 = scmp.eq.s32.totalorder %s21, 0
    %p195 = por %p193, %p194
    %s197 = sadd.s32 %s196, 1
    %p200 = scmp.eq.s32.totalorder %s15, 1
    %p201 = scmp.ne.s32.totalorder %s196, %s198
    %p202 = scmp.eq.s32.totalorder %s15, 0
    %p203 = por %p201, %p202
    %p204 = scmp.ne.s32.totalorder %s196, %s198
    %p205 = scmp.eq.s32.totalorder %s20, 1
    %p206 = por %p204, %p205
    %p207 = scmp.ne.s32.totalorder %s198, %s199
    %p208 = scmp.eq.s32.totalorder %s20, 0
    %p209 = por %p207, %p208
    %p210 = scmp.ne.s32.totalorder %s198, %s199
    %p211 = scmp.eq.s32.totalorder %s21, 1
    %p212 = por %p210, %p211
    %p214 = scmp.ne.s32.totalorder %s199, %s213
    %p215 = scmp.eq.s32.totalorder %s21, 0
    %p216 = por %p214, %p215
    %s217 = ssub.s32 %s15, %s22
    %p218 = scmp.eq.s32.totalorder %s217, 0
    %s220 = sadd.s32 %s219, 1
    %s221 = scalar_select %p218, %s219, %s220
    %p224 = pneg %p218
    %p225 = scmp.eq.s32.totalorder %s15, 1
    %p226 = por %p224, %p225
    %p227 = scmp.ne.s32.totalorder %s219, %s222
    %p228 = scmp.eq.s32.totalorder %s15, 0
    %p229 = por %p227, %p228
    %p230 = scmp.ne.s32.totalorder %s219, %s222
    %p231 = scmp.eq.s32.totalorder %s20, 1
    %p232 = por %p230, %p231
    %p233 = scmp.ne.s32.totalorder %s222, %s223
    %p234 = scmp.eq.s32.totalorder %s20, 0
    %p235 = por %p233, %p234
    %p236 = scmp.ne.s32.totalorder %s222, %s223
    %p237 = scmp.eq.s32.totalorder %s21, 1
    %p238 = por %p236, %p237
    %p240 = scmp.ne.s32.totalorder %s223, %s239
    %p241 = scmp.eq.s32.totalorder %s21, 0
    %p242 = por %p240, %p241
    %p243 = scmp.le.s32.totalorder 1, %s15
    %p244 = scmp.lt.s32.totalorder %s15, 3
    %p245 = pnand %p243, %p244
    %p246 = pneg %p245
    // Predicated region
    $region9: #{dilate_res_block.1} parent=5 // pred_check
      _
    $region10: #{dilate_res_block.1} parent=5 // pred_check_branch
      %248 = sbr.rel (%p245) target = $region12
    $region11: #{dilate_res_block.1} parent=5 // pred_region
      %s249 = ssub.s32 %s15, 1
      // Predicated region
      $region13: #{dilate_res_block.1} parent=11 // pred_check
        %p250 = pneg %p62
      $region14: #{dilate_res_block.1} parent=11 // pred_check_branch
        %252 = sbr.rel (%p250) target = $region16
      $region15: #{dilate_res_block.1} parent=11 // pred_region
        _
      $region16: #{dilate_res_block.1} parent=11 // pred_fallthru
        _
      // Predicated region
      $region17: #{dilate_res_block.1} parent=11 // pred_check
        %p253 = pneg %p83
      $region18: #{dilate_res_block.1} parent=11 // pred_check_branch
        %255 = sbr.rel (%p253) target = $region20
      $region19: #{dilate_res_block.1} parent=11 // pred_region
        _
      $region20: #{dilate_res_block.1} parent=11 // pred_fallthru
        _
      // Predicated region
      $region21: #{dilate_res_block.1} parent=11 // pred_check
        %p256 = pneg %p104
      $region22: #{dilate_res_block.1} parent=11 // pred_check_branch
        %258 = sbr.rel (%p256) target = $region24
      $region23: #{dilate_res_block.1} parent=11 // pred_region
        _
      $region24: #{dilate_res_block.1} parent=11 // pred_fallthru
        _
      // Predicated region
      $region25: #{dilate_res_block.1} parent=11 // pred_check
        %p259 = pneg %p125
      $region26: #{dilate_res_block.1} parent=11 // pred_check_branch
        %261 = sbr.rel (%p259) target = $region28
      $region27: #{dilate_res_block.1} parent=11 // pred_region
        _
      $region28: #{dilate_res_block.1} parent=11 // pred_fallthru
        _
      // Predicated region
      $region29: #{dilate_res_block.1} parent=11 // pred_check
        %p262 = pneg %p146
      $region30: #{dilate_res_block.1} parent=11 // pred_check_branch
        %264 = sbr.rel (%p262) target = $region32
      $region31: #{dilate_res_block.1} parent=11 // pred_region
        _
      $region32: #{dilate_res_block.1} parent=11 // pred_fallthru
        _
      // Predicated region
      $region33: #{dilate_res_block.1} parent=11 // pred_check
        %p265 = pneg %p167
      $region34: #{dilate_res_block.1} parent=11 // pred_check_branch
        %267 = sbr.rel (%p265) target = $region36
      $region35: #{dilate_res_block.1} parent=11 // pred_region
        _
      $region36: #{dilate_res_block.1} parent=11 // pred_fallthru
        _
      // Predicated region
      $region37: #{dilate_res_block.1} parent=11 // pred_check
        %p268 = pneg %p188
      $region38: #{dilate_res_block.1} parent=11 // pred_check_branch
        %270 = sbr.rel (%p268) target = $region40
      $region39: #{dilate_res_block.1} parent=11 // pred_region
        _
      $region40: #{dilate_res_block.1} parent=11 // pred_fallthru
        _
      // Predicated region
      $region41: #{dilate_res_block.1} parent=11 // pred_check
        %p271 = pneg %p209
      $region42: #{dilate_res_block.1} parent=11 // pred_check_branch
        %273 = sbr.rel (%p271) target = $region44
      $region43: #{dilate_res_block.1} parent=11 // pred_region
        _
      $region44: #{dilate_res_block.1} parent=11 // pred_fallthru
        _
    $region12: #{dilate_res_block.1} parent=5 // pred_fallthru
      _
    %p274 = scmp.lt.s32.totalorder %s15, 2
    // Predicated region
    $region45: #{dilate_res_block.1} parent=5 // pred_check
      %p275 = pneg %p274
    $region46: #{dilate_res_block.1} parent=5 // pred_check_branch
      %277 = sbr.rel (%p275) target = $region48
    $region47: #{dilate_res_block.1} parent=5 // pred_region
      // Predicated region
      $region49: #{dilate_res_block.1} parent=47 // pred_check
        %p278 = pneg %p35
      $region50: #{dilate_res_block.1} parent=47 // pred_check_branch
        %280 = sbr.rel (%p278) target = $region52
      $region51: #{dilate_res_block.1} parent=47 // pred_region
        %p281 = scmp.lt.s32.totalorder %s15, 1
        %s282 = scalar_select %p281, %s15, 1
        %s283 = smul.addr %s282, 32
        %s284 = smul.addr %s283, 8
        %s285 = scalar_lea.vmem %s0, %s284
      $region52: #{dilate_res_block.1} parent=47 // pred_fallthru
        _
    $region48: #{dilate_res_block.1} parent=5 // pred_fallthru
      _
    %p286 = scmp.le.s32.totalorder 1, %s15
    %p287 = scmp.lt.s32.totalorder %s15, 3
    %p288 = pnand %p286, %p287
    %p289 = pneg %p288
    // Predicated region
    $region53: #{dilate_res_block.1} parent=5 // pred_check
      _
    $region54: #{dilate_res_block.1} parent=5 // pred_check_branch
      %291 = sbr.rel (%p288) target = $region56
    $region55: #{dilate_res_block.1} parent=5 // pred_region
      %s292 = ssub.s32 %s15, 1
      %p293 = scmp.lt.s32.totalorder %s20, 1
      %s294 = scalar_select %p293, %s20, 1
      %s295 = smul.addr %s294, 32
      %s296 = smul.addr %s295, 8
      %s297 = scalar_lea.vmem %s0, %s296
      %p298 = pneg %p41
      %p299 = pneg %p38
      %p300 = pneg %p62
      %p301 = pneg %p59
      %p302 = pneg %p83
      %p303 = pneg %p80
      %p304 = pneg %p104
      %p305 = pneg %p101
      %p306 = pneg %p125
      %p307 = pneg %p122
      %p308 = pneg %p146
      %p309 = pneg %p143
      %p310 = pneg %p167
      %p311 = pneg %p164
      %p312 = pneg %p188
      %p313 = pneg %p185
      %p314 = pneg %p209
      %p315 = pneg %p206
      %p316 = pneg %p235
      %p317 = pneg %p232
      %p318 = scmp.lt.s32.totalorder %s20, 1
      %s319 = scalar_select %p318, %s20, 1
      %s320 = smul.addr %s319, 4
      %s321 = smul.addr %s320, 8
      %s322 = scalar_lea.vmem %s9, %s321
      %p323 = scmp.lt.s32.totalorder %s20, 1
      %s324 = scalar_select %p323, %s20, 1
      %s325 = smul.addr %s324, 32
      %s326 = smul.addr %s325, 8
      %s327 = scalar_lea.vmem %s0, %s326
      %p328 = scmp.lt.s32.totalorder %s20, 1
      %s329 = scalar_select %p328, %s20, 1
      %s330 = smul.addr %s329, 4
      %s331 = smul.addr %s330, 8
      %s332 = scalar_lea.vmem %s9, %s331
      %v333 = vld [vmem:[%s327] sm:$0xff]
      %v334 = vld [vmem:[%s327 + $0x8] sm:$0xff]
      %v335 = vld [vmem:[%s327 + $0x10] sm:$0xff]
      %v336 = vld [vmem:[%s327 + $0x18] sm:$0xff]
      %v337 = vld [vmem:[%s327 + $0x20] sm:$0xff]
      %v338 = vld [vmem:[%s327 + $0x28] sm:$0xff]
      %v339 = vld [vmem:[%s327 + $0x30] sm:$0xff]
      %v340 = vld [vmem:[%s327 + $0x38] sm:$0xff]
      %v341 = vld [vmem:[%s327 + $0x40] sm:$0xff]
      %v342 = vld [vmem:[%s327 + $0x48] sm:$0xff]
      %v343 = vld [vmem:[%s327 + $0x50] sm:$0xff]
      %v344 = vld [vmem:[%s327 + $0x58] sm:$0xff]
      %v345 = vld [vmem:[%s327 + $0x60] sm:$0xff]
      %v346 = vld [vmem:[%s327 + $0x68] sm:$0xff]
      %v347 = vld [vmem:[%s327 + $0x70] sm:$0xff]
      %v348 = vld [vmem:[%s327 + $0x78] sm:$0xff]
      %v349 = vld [vmem:[%s327 + $0x80] sm:$0xff]
      %v350 = vld [vmem:[%s327 + $0x88] sm:$0xff]
      %v351 = vld [vmem:[%s327 + $0x90] sm:$0xff]
      %v352 = vld [vmem:[%s327 + $0x98] sm:$0xff]
      %v353 = vld [vmem:[%s327 + $0xa0] sm:$0xff]
      %v354 = vld [vmem:[%s327 + $0xa8] sm:$0xff]
      %v355 = vld [vmem:[%s327 + $0xb0] sm:$0xff]
      %v356 = vld [vmem:[%s327 + $0xb8] sm:$0xff]
      %v357 = vld [vmem:[%s327 + $0xc0] sm:$0xff]
      %v358 = vld [vmem:[%s327 + $0xc8] sm:$0xff]
      %v359 = vld [vmem:[%s327 + $0xd0] sm:$0xff]
      %v360 = vld [vmem:[%s327 + $0xd8] sm:$0xff]
      %v361 = vld [vmem:[%s327 + $0xe0] sm:$0xff]
      %v362 = vld [vmem:[%s327 + $0xe8] sm:$0xff]
      %v363 = vld [vmem:[%s327 + $0xf0] sm:$0xff]
      %v364 = vld [vmem:[%s327 + $0xf8] sm:$0xff]
      %vm365 = vcmask 130048
      %366 = vst.msk [vmem:[#allocation2] sm:$0xff] %vm365, 0.0
      %367 = vst.msk [vmem:[#allocation2 + $0x8] sm:$0xff] %vm365, 0.0
      %368 = vst.msk [vmem:[#allocation2 + $0x10] sm:$0xff] %vm365, 0.0
      %369 = vst.msk [vmem:[#allocation2 + $0x18] sm:$0xff] %vm365, 0.0
      %370 = vst.msk [vmem:[#allocation2 + $0x20] sm:$0xff] %vm365, 0.0
      %371 = vst.msk [vmem:[#allocation2 + $0x28] sm:$0xff] %vm365, 0.0
      %372 = vst.msk [vmem:[#allocation2 + $0x30] sm:$0xff] %vm365, 0.0
      %373 = vst.msk [vmem:[#allocation2 + $0x138] sm:$0xff] %vm365, 0.0
      %374 = vst.msk [vmem:[#allocation2 + $0x140] sm:$0xff] %vm365, 0.0
      %375 = vst.msk [vmem:[#allocation2 + $0x148] sm:$0xff] %vm365, 0.0
      %376 = vst.msk [vmem:[#allocation2 + $0x150] sm:$0xff] %vm365, 0.0
      %377 = vst.msk [vmem:[#allocation2 + $0x158] sm:$0xff] %vm365, 0.0
      %378 = vst.msk [vmem:[#allocation2 + $0x160] sm:$0xff] %vm365, 0.0
      %379 = vst.msk [vmem:[#allocation2 + $0x168] sm:$0xff] %vm365, 0.0
      %380 = vst.msk [vmem:[#allocation2 + $0x38] sm:$0xff] %vm365, %v333
      %381 = vst.msk [vmem:[#allocation2 + $0x40] sm:$0xff] %vm365, %v334
      %382 = vst.msk [vmem:[#allocation2 + $0x48] sm:$0xff] %vm365, %v335
      %383 = vst.msk [vmem:[#allocation2 + $0x50] sm:$0xff] %vm365, %v336
      %384 = vst.msk [vmem:[#allocation2 + $0x58] sm:$0xff] %vm365, %v337
      %385 = vst.msk [vmem:[#allocation2 + $0x60] sm:$0xff] %vm365, %v338
      %386 = vst.msk [vmem:[#allocation2 + $0x68] sm:$0xff] %vm365, %v339
      %387 = vst.msk [vmem:[#allocation2 + $0x70] sm:$0xff] %vm365, %v340
      %388 = vst.msk [vmem:[#allocation2 + $0x78] sm:$0xff] %vm365, %v341
      %389 = vst.msk [vmem:[#allocation2 + $0x80] sm:$0xff] %vm365, %v342
      %390 = vst.msk [vmem:[#allocation2 + $0x88] sm:$0xff] %vm365, %v343
      %391 = vst.msk [vmem:[#allocation2 + $0x90] sm:$0xff] %vm365, %v344
      %392 = vst.msk [vmem:[#allocation2 + $0x98] sm:$0xff] %vm365, %v345
      %393 = vst.msk [vmem:[#allocation2 + $0xa0] sm:$0xff] %vm365, %v346
      %394 = vst.msk [vmem:[#allocation2 + $0xa8] sm:$0xff] %vm365, %v347
      %395 = vst.msk [vmem:[#allocation2 + $0xb0] sm:$0xff] %vm365, %v348
      %396 = vst.msk [vmem:[#allocation2 + $0xb8] sm:$0xff] %vm365, %v349
      %397 = vst.msk [vmem:[#allocation2 + $0xc0] sm:$0xff] %vm365, %v350
      %398 = vst.msk [vmem:[#allocation2 + $0xc8] sm:$0xff] %vm365, %v351
      %399 = vst.msk [vmem:[#allocation2 + $0xd0] sm:$0xff] %vm365, %v352
      %400 = vst.msk [vmem:[#allocation2 + $0xd8] sm:$0xff] %vm365, %v353
      %401 = vst.msk [vmem:[#allocation2 + $0xe0] sm:$0xff] %vm365, %v354
      %402 = vst.msk [vmem:[#allocation2 + $0xe8] sm:$0xff] %vm365, %v355
      %403 = vst.msk [vmem:[#allocation2 + $0xf0] sm:$0xff] %vm365, %v356
      %404 = vst.msk [vmem:[#allocation2 + $0xf8] sm:$0xff] %vm365, %v357
      %405 = vst.msk [vmem:[#allocation2 + $0x100] sm:$0xff] %vm365, %v358
      %406 = vst.msk [vmem:[#allocation2 + $0x108] sm:$0xff] %vm365, %v359
      %407 = vst.msk [vmem:[#allocation2 + $0x110] sm:$0xff] %vm365, %v360
      %408 = vst.msk [vmem:[#allocation2 + $0x118] sm:$0xff] %vm365, %v361
      %409 = vst.msk [vmem:[#allocation2 + $0x120] sm:$0xff] %vm365, %v362
      %410 = vst.msk [vmem:[#allocation2 + $0x128] sm:$0xff] %vm365, %v363
      %411 = vst.msk [vmem:[#allocation2 + $0x130] sm:$0xff] %vm365, %v364
      %vm412 = vcmask 392192
      %413 = vst.msk [vmem:[#allocation3] sm:$0xff] %vm412, 0.0
      %414 = vst.msk [vmem:[#allocation3 + $0x8] sm:$0xff] %vm412, 0.0
      %415 = vst.msk [vmem:[#allocation3 + $0x10] sm:$0xff] %vm412, 0.0
      %416 = vst.msk [vmem:[#allocation3 + $0x118] sm:$0xff] %vm412, 0.0
      %417 = vst.msk [vmem:[#allocation3 + $0x120] sm:$0xff] %vm412, 0.0
      %418 = vst.msk [vmem:[#allocation3 + $0x128] sm:$0xff] %vm412, 0.0
      %v419 = vld [vmem:[#allocation2 + $0x27] sm:$0xff]
      %v420 = vld [vmem:[#allocation2 + $0x2f] sm:$0xff]
      %v421 = vld [vmem:[#allocation2 + $0x37] sm:$0xff]
      %v422 = vld [vmem:[#allocation2 + $0x3f] sm:$0xff]
      %v423 = vld [vmem:[#allocation2 + $0x47] sm:$0xff]
      %v424 = vld [vmem:[#allocation2 + $0x4f] sm:$0xff]
      %v425 = vld [vmem:[#allocation2 + $0x57] sm:$0xff]
      %v426 = vld [vmem:[#allocation2 + $0x5f] sm:$0xff]
      %v427 = vld [vmem:[#allocation2 + $0x67] sm:$0xff]
      %v428 = vld [vmem:[#allocation2 + $0x6f] sm:$0xff]
      %v429 = vld [vmem:[#allocation2 + $0x77] sm:$0xff]
      %v430 = vld [vmem:[#allocation2 + $0x7f] sm:$0xff]
      %v431 = vld [vmem:[#allocation2 + $0x87] sm:$0xff]
      %v432 = vld [vmem:[#allocation2 + $0x8f] sm:$0xff]
      %v433 = vld [vmem:[#allocation2 + $0x97] sm:$0xff]
      %v434 = vld [vmem:[#allocation2 + $0x9f] sm:$0xff]
      %v435 = vld [vmem:[#allocation2 + $0xa7] sm:$0xff]
      %v436 = vld [vmem:[#allocation2 + $0xaf] sm:$0xff]
      %v437 = vld [vmem:[#allocation2 + $0xb7] sm:$0xff]
      %v438 = vld [vmem:[#allocation2 + $0xbf] sm:$0xff]
      %v439 = vld [vmem:[#allocation2 + $0xc7] sm:$0xff]
      %v440 = vld [vmem:[#allocation2 + $0xcf] sm:$0xff]
      %v441 = vld [vmem:[#allocation2 + $0xd7] sm:$0xff]
      %v442 = vld [vmem:[#allocation2 + $0xdf] sm:$0xff]
      %v443 = vld [vmem:[#allocation2 + $0xe7] sm:$0xff]
      %v444 = vld [vmem:[#allocation2 + $0xef] sm:$0xff]
      %v445 = vld [vmem:[#allocation2 + $0xf7] sm:$0xff]
      %v446 = vld [vmem:[#allocation2 + $0xff] sm:$0xff]
      %v447 = vld [vmem:[#allocation2 + $0x107] sm:$0xff]
      %v448 = vld [vmem:[#allocation2 + $0x10f] sm:$0xff]
      %v449 = vld [vmem:[#allocation2 + $0x117] sm:$0xff]
      %v450 = vld [vmem:[#allocation2 + $0x11f] sm:$0xff]
      %v451 = vlaneseq
      %v452 = vshrl.u32 %v451, 7
      %v453 = vadd.s32 %v452, 8
      %v454 = vadd.s32 %v452, 16
      %v455 = vadd.s32 %v452, 24
      %v456 = vadd.s32 %v452, 32
      %v457 = vadd.s32 %v452, 40
      %v458 = vadd.s32 %v452, 48
      %v459 = vadd.s32 %v452, 56
      %v460 = vadd.s32 %v452, 64
      %v461 = vadd.s32 %v452, 72
      %v462 = vadd.s32 %v452, 80
      %v463 = vadd.s32 %v452, 88
      %v464 = vadd.s32 %v452, 96
      %v465 = vadd.s32 %v452, 104
      %v466 = vadd.s32 %v452, 112
      %v467 = vadd.s32 %v452, 120
      %v468 = vadd.s32 %v452, 128
      %v469 = vadd.s32 %v452, 136
      %v470 = vadd.s32 %v452, 144
      %v471 = vadd.s32 %v452, 152
      %v472 = vadd.s32 %v452, 160
      %v473 = vadd.s32 %v452, 168
      %v474 = vadd.s32 %v452, 176
      %v475 = vadd.s32 %v452, 184
      %v476 = vadd.s32 %v452, 192
      %v477 = vadd.s32 %v452, 200
      %v478 = vadd.s32 %v452, 208
      %v479 = vadd.s32 %v452, 216
      %v480 = vadd.s32 %v452, 224
      %v481 = vadd.s32 %v452, 232
      %v482 = vadd.s32 %v452, 240
      %v483 = vadd.s32 %v452, 248
      %v484 = vand.u32 %v452, 15
      %v485 = vand.u32 %v453, 15
      %v486 = vand.u32 %v454, 15
      %v487 = vand.u32 %v455, 15
      %v488 = vand.u32 %v456, 15
      %v489 = vand.u32 %v457, 15
      %v490 = vand.u32 %v458, 15
      %v491 = vand.u32 %v459, 15
      %v492 = vand.u32 %v460, 15
      %v493 = vand.u32 %v461, 15
      %v494 = vand.u32 %v462, 15
      %v495 = vand.u32 %v463, 15
      %v496 = vand.u32 %v464, 15
      %v497 = vand.u32 %v465, 15
      %v498 = vand.u32 %v466, 15
      %v499 = vand.u32 %v467, 15
      %v500 = vand.u32 %v468, 15
      %v501 = vand.u32 %v469, 15
      %v502 = vand.u32 %v470, 15
      %v503 = vand.u32 %v471, 15
      %v504 = vand.u32 %v472, 15
      %v505 = vand.u32 %v473, 15
      %v506 = vand.u32 %v474, 15
      %v507 = vand.u32 %v475, 15
      %v508 = vand.u32 %v476, 15
      %v509 = vand.u32 %v477, 15
      %v510 = vand.u32 %v478, 15
      %v511 = vand.u32 %v479, 15
      %v512 = vand.u32 %v480, 15
      %v513 = vand.u32 %v481, 15
      %v514 = vand.u32 %v482, 15
      %v515 = vand.u32 %v483, 15
      %vm516 = vcmp.ge.s32.totalorder %v484, 1
      %vm517 = vcmp.ge.s32.totalorder %v485, 1
      %vm518 = vcmp.ge.s32.totalorder %v486, 1
      %vm519 = vcmp.ge.s32.totalorder %v487, 1
      %vm520 = vcmp.ge.s32.totalorder %v488, 1
      %vm521 = vcmp.ge.s32.totalorder %v489, 1
      %vm522 = vcmp.ge.s32.totalorder %v490, 1
      %vm523 = vcmp.ge.s32.totalorder %v491, 1
      %vm524 = vcmp.ge.s32.totalorder %v492, 1
      %vm525 = vcmp.ge.s32.totalorder %v493, 1
      %vm526 = vcmp.ge.s32.totalorder %v494, 1
      %vm527 = vcmp.ge.s32.totalorder %v495, 1
      %vm528 = vcmp.ge.s32.totalorder %v496, 1
      %vm529 = vcmp.ge.s32.totalorder %v497, 1
      %vm530 = vcmp.ge.s32.totalorder %v498, 1
      %vm531 = vcmp.ge.s32.totalorder %v499, 1
      %vm532 = vcmp.ge.s32.totalorder %v500, 1
      %vm533 = vcmp.ge.s32.totalorder %v501, 1
      %vm534 = vcmp.ge.s32.totalorder %v502, 1
      %vm535 = vcmp.ge.s32.totalorder %v503, 1
      %vm536 = vcmp.ge.s32.totalorder %v504, 1
      %vm537 = vcmp.ge.s32.totalorder %v505, 1
      %vm538 = vcmp.ge.s32.totalorder %v506, 1
      %vm539 = vcmp.ge.s32.totalorder %v507, 1
      %vm540 = vcmp.ge.s32.totalorder %v508, 1
      %vm541 = vcmp.ge.s32.totalorder %v509, 1
      %vm542 = vcmp.ge.s32.totalorder %v510, 1
      %vm543 = vcmp.ge.s32.totalorder %v511, 1
      %vm544 = vcmp.ge.s32.totalorder %v512, 1
      %vm545 = vcmp.ge.s32.totalorder %v513, 1
      %vm546 = vcmp.ge.s32.totalorder %v514, 1
      %vm547 = vcmp.ge.s32.totalorder %v515, 1
      %v548 = vsel %vm516, %v419, 0.0
      %v549 = vsel %vm517, %v420, 0.0
      %v550 = vsel %vm518, %v421, 0.0
      %v551 = vsel %vm519, %v422, 0.0
      %v552 = vsel %vm520, %v423, 0.0
      %v553 = vsel %vm521, %v424, 0.0
      %v554 = vsel %vm522, %v425, 0.0
      %v555 = vsel %vm523, %v426, 0.0
      %v556 = vsel %vm524, %v427, 0.0
      %v557 = vsel %vm525, %v428, 0.0
      %v558 = vsel %vm526, %v429, 0.0
      %v559 = vsel %vm527, %v430, 0.0
      %v560 = vsel %vm528, %v431, 0.0
      %v561 = vsel %vm529, %v432, 0.0
      %v562 = vsel %vm530, %v433, 0.0
      %v563 = vsel %vm531, %v434, 0.0
      %v564 = vsel %vm532, %v435, 0.0
      %v565 = vsel %vm533, %v436, 0.0
      %v566 = vsel %vm534, %v437, 0.0
      %v567 = vsel %vm535, %v438, 0.0
      %v568 = vsel %vm536, %v439, 0.0
      %v569 = vsel %vm537, %v440, 0.0
      %v570 = vsel %vm538, %v441, 0.0
      %v571 = vsel %vm539, %v442, 0.0
      %v572 = vsel %vm540, %v443, 0.0
      %v573 = vsel %vm541, %v444, 0.0
      %v574 = vsel %vm542, %v445, 0.0
      %v575 = vsel %vm543, %v446, 0.0
      %v576 = vsel %vm544, %v447, 0.0
      %v577 = vsel %vm545, %v448, 0.0
      %v578 = vsel %vm546, %v449, 0.0
      %v579 = vsel %vm547, %v450, 0.0
      %580 = vst.msk [vmem:[#allocation4] sm:$0xff] %vm365, %v548
      %581 = vst.msk [vmem:[#allocation4 + $0x20] sm:$0xff] %vm365, %v549
      %582 = vst.msk [vmem:[#allocation4 + $0x40] sm:$0xff] %vm365, %v550
      %583 = vst.msk [vmem:[#allocation4 + $0x60] sm:$0xff] %vm365, %v551
      %584 = vst.msk [vmem:[#allocation4 + $0x80] sm:$0xff] %vm365, %v552
      %585 = vst.msk [vmem:[#allocation4 + $0xa0] sm:$0xff] %vm365, %v553
      %586 = vst.msk [vmem:[#allocation4 + $0xc0] sm:$0xff] %vm365, %v554
      %587 = vst.msk [vmem:[#allocation4 + $0xe0] sm:$0xff] %vm365, %v555
      %588 = vst.msk [vmem:[#allocation4 + $0x100] sm:$0xff] %vm365, %v556
      %589 = vst.msk [vmem:[#allocation4 + $0x120] sm:$0xff] %vm365, %v557
      %590 = vst.msk [vmem:[#allocation4 + $0x140] sm:$0xff] %vm365, %v558
      %591 = vst.msk [vmem:[#allocation4 + $0x160] sm:$0xff] %vm365, %v559
      %592 = vst.msk [vmem:[#allocation4 + $0x180] sm:$0xff] %vm365, %v560
      %593 = vst.msk [vmem:[#allocation4 + $0x1a0] sm:$0xff] %vm365, %v561
      %594 = vst.msk [vmem:[#allocation4 + $0x1c0] sm:$0xff] %vm365, %v562
      %595 = vst.msk [vmem:[#allocation4 + $0x1e0] sm:$0xff] %vm365, %v563
      %596 = vst.msk [vmem:[#allocation4 + $0x200] sm:$0xff] %vm365, %v564
      %597 = vst.msk [vmem:[#allocation4 + $0x220] sm:$0xff] %vm365, %v565
      %598 = vst.msk [vmem:[#allocation4 + $0x240] sm:$0xff] %vm365, %v566
      %599 = vst.msk [vmem:[#allocation4 + $0x260] sm:$0xff] %vm365, %v567
      %600 = vst.msk [vmem:[#allocation4 + $0x280] sm:$0xff] %vm365, %v568
      %601 = vst.msk [vmem:[#allocation4 + $0x2a0] sm:$0xff] %vm365, %v569
      %602 = vst.msk [vmem:[#allocation4 + $0x2c0] sm:$0xff] %vm365, %v570
      %603 = vst.msk [vmem:[#allocation4 + $0x2e0] sm:$0xff] %vm365, %v571
      %604 = vst.msk [vmem:[#allocation4 + $0x300] sm:$0xff] %vm365, %v572
      %605 = vst.msk [vmem:[#allocation4 + $0x320] sm:$0xff] %vm365, %v573
      %606 = vst.msk [vmem:[#allocation4 + $0x340] sm:$0xff] %vm365, %v574
      %607 = vst.msk [vmem:[#allocation4 + $0x360] sm:$0xff] %vm365, %v575
      %608 = vst.msk [vmem:[#allocation4 + $0x380] sm:$0xff] %vm365, %v576
      %609 = vst.msk [vmem:[#allocation4 + $0x3a0] sm:$0xff] %vm365, %v577
      %610 = vst.msk [vmem:[#allocation4 + $0x3c0] sm:$0xff] %vm365, %v578
      %611 = vst.msk [vmem:[#allocation4 + $0x3e0] sm:$0xff] %vm365, %v579
      %v612 = vld [vmem:[#allocation2 + $0x28] sm:$0xff]
      %v613 = vld [vmem:[#allocation2 + $0x30] sm:$0xff]
      %v614 = vld [vmem:[#allocation2 + $0x38] sm:$0xff]
      %v615 = vld [vmem:[#allocation2 + $0x40] sm:$0xff]
      %v616 = vld [vmem:[#allocation2 + $0x48] sm:$0xff]
      %v617 = vld [vmem:[#allocation2 + $0x50] sm:$0xff]
      %v618 = vld [vmem:[#allocation2 + $0x58] sm:$0xff]
      %v619 = vld [vmem:[#allocation2 + $0x60] sm:$0xff]
      %v620 = vld [vmem:[#allocation2 + $0x68] sm:$0xff]
      %v621 = vld [vmem:[#allocation2 + $0x70] sm:$0xff]
      %v622 = vld [vmem:[#allocation2 + $0x78] sm:$0xff]
      %v623 = vld [vmem:[#allocation2 + $0x80] sm:$0xff]
      %v624 = vld [vmem:[#allocation2 + $0x88] sm:$0xff]
      %v625 = vld [vmem:[#allocation2 + $0x90] sm:$0xff]
      %v626 = vld [vmem:[#allocation2 + $0x98] sm:$0xff]
      %v627 = vld [vmem:[#allocation2 + $0xa0] sm:$0xff]
      %v628 = vld [vmem:[#allocation2 + $0xa8] sm:$0xff]
      %v629 = vld [vmem:[#allocation2 + $0xb0] sm:$0xff]
      %v630 = vld [vmem:[#allocation2 + $0xb8] sm:$0xff]
      %v631 = vld [vmem:[#allocation2 + $0xc0] sm:$0xff]
      %v632 = vld [vmem:[#allocation2 + $0xc8] sm:$0xff]
      %v633 = vld [vmem:[#allocation2 + $0xd0] sm:$0xff]
      %v634 = vld [vmem:[#allocation2 + $0xd8] sm:$0xff]
      %v635 = vld [vmem:[#allocation2 + $0xe0] sm:$0xff]
      %v636 = vld [vmem:[#allocation2 + $0xe8] sm:$0xff]
      %v637 = vld [vmem:[#allocation2 + $0xf0] sm:$0xff]
      %v638 = vld [vmem:[#allocation2 + $0xf8] sm:$0xff]
      %v639 = vld [vmem:[#allocation2 + $0x100] sm:$0xff]
      %v640 = vld [vmem:[#allocation2 + $0x108] sm:$0xff]
      %v641 = vld [vmem:[#allocation2 + $0x110] sm:$0xff]
      %v642 = vld [vmem:[#allocation2 + $0x118] sm:$0xff]
      %v643 = vld [vmem:[#allocation2 + $0x120] sm:$0xff]
      %676 = vrot.lane.b32.xlu0 %v612, 16
      %v677 = vpop.permute.xlu0 %676
      %678 = vrot.lane.b32.xlu0 %v613, 16
      %v679 = vpop.permute.xlu0 %678
      %680 = vrot.lane.b32.xlu0 %v614, 16
      %v681 = vpop.permute.xlu0 %680
      %682 = vrot.lane.b32.xlu0 %v615, 16
      %v683 = vpop.permute.xlu0 %682
      %684 = vrot.lane.b32.xlu0 %v616, 16
      %v685 = vpop.permute.xlu0 %684
      %686 = vrot.lane.b32.xlu0 %v617, 16
      %v687 = vpop.permute.xlu0 %686
      %688 = vrot.lane.b32.xlu0 %v618, 16
      %v689 = vpop.permute.xlu0 %688
      %690 = vrot.lane.b32.xlu0 %v619, 16
      %v691 = vpop.permute.xlu0 %690
      %692 = vrot.lane.b32.xlu0 %v620, 16
      %v693 = vpop.permute.xlu0 %692
      %694 = vrot.lane.b32.xlu0 %v621, 16
      %v695 = vpop.permute.xlu0 %694
      %696 = vrot.lane.b32.xlu0 %v622, 16
      %v697 = vpop.permute.xlu0 %696
      %698 = vrot.lane.b32.xlu0 %v623, 16
      %v699 = vpop.permute.xlu0 %698
      %700 = vrot.lane.b32.xlu0 %v624, 16
      %v701 = vpop.permute.xlu0 %700
      %702 = vrot.lane.b32.xlu0 %v625, 16
      %v703 = vpop.permute.xlu0 %702
      %704 = vrot.lane.b32.xlu0 %v626, 16
      %v705 = vpop.permute.xlu0 %704
      %706 = vrot.lane.b32.xlu0 %v627, 16
      %v707 = vpop.permute.xlu0 %706
      %708 = vrot.lane.b32.xlu0 %v628, 16
      %v709 = vpop.permute.xlu0 %708
      %710 = vrot.lane.b32.xlu0 %v629, 16
      %v711 = vpop.permute.xlu0 %710
      %712 = vrot.lane.b32.xlu0 %v630, 16
      %v713 = vpop.permute.xlu0 %712
      %714 = vrot.lane.b32.xlu0 %v631, 16
      %v715 = vpop.permute.xlu0 %714
      %716 = vrot.lane.b32.xlu0 %v632, 16
      %v717 = vpop.permute.xlu0 %716
      %718 = vrot.lane.b32.xlu0 %v633, 16
      %v719 = vpop.permute.xlu0 %718
      %720 = vrot.lane.b32.xlu0 %v634, 16
      %v721 = vpop.permute.xlu0 %720
      %722 = vrot.lane.b32.xlu0 %v635, 16
      %v723 = vpop.permute.xlu0 %722
      %724 = vrot.lane.b32.xlu0 %v636, 16
      %v725 = vpop.permute.xlu0 %724
      %726 = vrot.lane.b32.xlu0 %v637, 16
      %v727 = vpop.permute.xlu0 %726
      %728 = vrot.lane.b32.xlu0 %v638, 16
      %v729 = vpop.permute.xlu0 %728
      %730 = vrot.lane.b32.xlu0 %v639, 16
      %v731 = vpop.permute.xlu0 %730
      %732 = vrot.lane.b32.xlu0 %v640, 16
      %v733 = vpop.permute.xlu0 %732
      %734 = vrot.lane.b32.xlu0 %v641, 16
      %v735 = vpop.permute.xlu0 %734
      %736 = vrot.lane.b32.xlu0 %v642, 16
      %v737 = vpop.permute.xlu0 %736
      %738 = vrot.lane.b32.xlu0 %v643, 16
      %v739 = vpop.permute.xlu0 %738
      %vm772 = vcmask 261248
      %773 = vst.msk [vmem:[#allocation4] sm:$0xff] %vm772, %v677
      %774 = vst.msk [vmem:[#allocation4 + $0x20] sm:$0xff] %vm772, %v679
      %775 = vst.msk [vmem:[#allocation4 + $0x40] sm:$0xff] %vm772, %v681
      %776 = vst.msk [vmem:[#allocation4 + $0x60] sm:$0xff] %vm772, %v683
      %777 = vst.msk [vmem:[#allocation4 + $0x80] sm:$0xff] %vm772, %v685
      %778 = vst.msk [vmem:[#allocation4 + $0xa0] sm:$0xff] %vm772, %v687
      %779 = vst.msk [vmem:[#allocation4 + $0xc0] sm:$0xff] %vm772, %v689
      %780 = vst.msk [vmem:[#allocation4 + $0xe0] sm:$0xff] %vm772, %v691
      %781 = vst.msk [vmem:[#allocation4 + $0x100] sm:$0xff] %vm772, %v693
      %782 = vst.msk [vmem:[#allocation4 + $0x120] sm:$0xff] %vm772, %v695
      %783 = vst.msk [vmem:[#allocation4 + $0x140] sm:$0xff] %vm772, %v697
      %784 = vst.msk [vmem:[#allocation4 + $0x160] sm:$0xff] %vm772, %v699
      %785 = vst.msk [vmem:[#allocation4 + $0x180] sm:$0xff] %vm772, %v701
      %786 = vst.msk [vmem:[#allocation4 + $0x1a0] sm:$0xff] %vm772, %v703
      %787 = vst.msk [vmem:[#allocation4 + $0x1c0] sm:$0xff] %vm772, %v705
      %788 = vst.msk [vmem:[#allocation4 + $0x1e0] sm:$0xff] %vm772, %v707
      %789 = vst.msk [vmem:[#allocation4 + $0x200] sm:$0xff] %vm772, %v709
      %790 = vst.msk [vmem:[#allocation4 + $0x220] sm:$0xff] %vm772, %v711
      %791 = vst.msk [vmem:[#allocation4 + $0x240] sm:$0xff] %vm772, %v713
      %792 = vst.msk [vmem:[#allocation4 + $0x260] sm:$0xff] %vm772, %v715
      %793 = vst.msk [vmem:[#allocation4 + $0x280] sm:$0xff] %vm772, %v717
      %794 = vst.msk [vmem:[#allocation4 + $0x2a0] sm:$0xff] %vm772, %v719
      %795 = vst.msk [vmem:[#allocation4 + $0x2c0] sm:$0xff] %vm772, %v721
      %796 = vst.msk [vmem:[#allocation4 + $0x2e0] sm:$0xff] %vm772, %v723
      %797 = vst.msk [vmem:[#allocation4 + $0x300] sm:$0xff] %vm772, %v725
      %798 = vst.msk [vmem:[#allocation4 + $0x320] sm:$0xff] %vm772, %v727
      %799 = vst.msk [vmem:[#allocation4 + $0x340] sm:$0xff] %vm772, %v729
      %800 = vst.msk [vmem:[#allocation4 + $0x360] sm:$0xff] %vm772, %v731
      %801 = vst.msk [vmem:[#allocation4 + $0x380] sm:$0xff] %vm772, %v733
      %802 = vst.msk [vmem:[#allocation4 + $0x3a0] sm:$0xff] %vm772, %v735
      %803 = vst.msk [vmem:[#allocation4 + $0x3c0] sm:$0xff] %vm772, %v737
      %804 = vst.msk [vmem:[#allocation4 + $0x3e0] sm:$0xff] %vm772, %v739
      %v805 = vld [vmem:[#allocation2 + $0x29] sm:$0xff]
      %v806 = vld [vmem:[#allocation2 + $0x31] sm:$0xff]
      %v807 = vld [vmem:[#allocation2 + $0x39] sm:$0xff]
      %v808 = vld [vmem:[#allocation2 + $0x41] sm:$0xff]
      %v809 = vld [vmem:[#allocation2 + $0x49] sm:$0xff]
      %v810 = vld [vmem:[#allocation2 + $0x51] sm:$0xff]
      %v811 = vld [vmem:[#allocation2 + $0x59] sm:$0xff]
      %v812 = vld [vmem:[#allocation2 + $0x61] sm:$0xff]
      %v813 = vld [vmem:[#allocation2 + $0x69] sm:$0xff]
      %v814 = vld [vmem:[#allocation2 + $0x71] sm:$0xff]
      %v815 = vld [vmem:[#allocation2 + $0x79] sm:$0xff]
      %v816 = vld [vmem:[#allocation2 + $0x81] sm:$0xff]
      %v817 = vld [vmem:[#allocation2 + $0x89] sm:$0xff]
      %v818 = vld [vmem:[#allocation2 + $0x91] sm:$0xff]
      %v819 = vld [vmem:[#allocation2 + $0x99] sm:$0xff]
      %v820 = vld [vmem:[#allocation2 + $0xa1] sm:$0xff]
      %v821 = vld [vmem:[#allocation2 + $0xa9] sm:$0xff]
      %v822 = vld [vmem:[#allocation2 + $0xb1] sm:$0xff]
      %v823 = vld [vmem:[#allocation2 + $0xb9] sm:$0xff]
      %v824 = vld [vmem:[#allocation2 + $0xc1] sm:$0xff]
      %v825 = vld [vmem:[#allocation2 + $0xc9] sm:$0xff]
      %v826 = vld [vmem:[#allocation2 + $0xd1] sm:$0xff]
      %v827 = vld [vmem:[#allocation2 + $0xd9] sm:$0xff]
      %v828 = vld [vmem:[#allocation2 + $0xe1] sm:$0xff]
      %v829 = vld [vmem:[#allocation2 + $0xe9] sm:$0xff]
      %v830 = vld [vmem:[#allocation2 + $0xf1] sm:$0xff]
      %v831 = vld [vmem:[#allocation2 + $0xf9] sm:$0xff]
      %v832 = vld [vmem:[#allocation2 + $0x101] sm:$0xff]
      %v833 = vld [vmem:[#allocation2 + $0x109] sm:$0xff]
      %v834 = vld [vmem:[#allocation2 + $0x111] sm:$0xff]
      %v835 = vld [vmem:[#allocation2 + $0x119] sm:$0xff]
      %v836 = vld [vmem:[#allocation2 + $0x121] sm:$0xff]
      %vm837 = vcmp.lt.s32.totalorder %v484, 15
      %vm838 = vcmp.lt.s32.totalorder %v485, 15
      %vm839 = vcmp.lt.s32.totalorder %v486, 15
      %vm840 = vcmp.lt.s32.totalorder %v487, 15
      %vm841 = vcmp.lt.s32.totalorder %v488, 15
      %vm842 = vcmp.lt.s32.totalorder %v489, 15
      %vm843 = vcmp.lt.s32.totalorder %v490, 15
      %vm844 = vcmp.lt.s32.totalorder %v491, 15
      %vm845 = vcmp.lt.s32.totalorder %v492, 15
      %vm846 = vcmp.lt.s32.totalorder %v493, 15
      %vm847 = vcmp.lt.s32.totalorder %v494, 15
      %vm848 = vcmp.lt.s32.totalorder %v495, 15
      %vm849 = vcmp.lt.s32.totalorder %v496, 15
      %vm850 = vcmp.lt.s32.totalorder %v497, 15
      %vm851 = vcmp.lt.s32.totalorder %v498, 15
      %vm852 = vcmp.lt.s32.totalorder %v499, 15
      %vm853 = vcmp.lt.s32.totalorder %v500, 15
      %vm854 = vcmp.lt.s32.totalorder %v501, 15
      %vm855 = vcmp.lt.s32.totalorder %v502, 15
      %vm856 = vcmp.lt.s32.totalorder %v503, 15
      %vm857 = vcmp.lt.s32.totalorder %v504, 15
      %vm858 = vcmp.lt.s32.totalorder %v505, 15
      %vm859 = vcmp.lt.s32.totalorder %v506, 15
      %vm860 = vcmp.lt.s32.totalorder %v507, 15
      %vm861 = vcmp.lt.s32.totalorder %v508, 15
      %vm862 = vcmp.lt.s32.totalorder %v509, 15
      %vm863 = vcmp.lt.s32.totalorder %v510, 15
      %vm864 = vcmp.lt.s32.totalorder %v511, 15
      %vm865 = vcmp.lt.s32.totalorder %v512, 15
      %vm866 = vcmp.lt.s32.totalorder %v513, 15
      %vm867 = vcmp.lt.s32.totalorder %v514, 15
      %vm868 = vcmp.lt.s32.totalorder %v515, 15
      %v869 = vsel %vm837, %v805, 0.0
      %v870 = vsel %vm838, %v806, 0.0
      %v871 = vsel %vm839, %v807, 0.0
      %v872 = vsel %vm840, %v808, 0.0
      %v873 = vsel %vm841, %v809, 0.0
      %v874 = vsel %vm842, %v810, 0.0
      %v875 = vsel %vm843, %v811, 0.0
      %v876 = vsel %vm844, %v812, 0.0
      %v877 = vsel %vm845, %v813, 0.0
      %v878 = vsel %vm846, %v814, 0.0
      %v879 = vsel %vm847, %v815, 0.0
      %v880 = vsel %vm848, %v816, 0.0
      %v881 = vsel %vm849, %v817, 0.0
      %v882 = vsel %vm850, %v818, 0.0
      %v883 = vsel %vm851, %v819, 0.0
      %v884 = vsel %vm852, %v820, 0.0
      %v885 = vsel %vm853, %v821, 0.0
      %v886 = vsel %vm854, %v822, 0.0
      %v887 = vsel %vm855, %v823, 0.0
      %v888 = vsel %vm856, %v824, 0.0
      %v889 = vsel %vm857, %v825, 0.0
      %v890 = vsel %vm858, %v826, 0.0
      %v891 = vsel %vm859, %v827, 0.0
      %v892 = vsel %vm860, %v828, 0.0
      %v893 = vsel %vm861, %v829, 0.0
      %v894 = vsel %vm862, %v830, 0.0
      %v895 = vsel %vm863, %v831, 0.0
      %v896 = vsel %vm864, %v832, 0.0
      %v897 = vsel %vm865, %v833, 0.0
      %v898 = vsel %vm866, %v834, 0.0
      %v899 = vsel %vm867, %v835, 0.0
      %v900 = vsel %vm868, %v836, 0.0
      %933 = vrot.lane.b32.xlu0 %v869, 32
      %v934 = vpop.permute.xlu0 %933
      %935 = vrot.lane.b32.xlu0 %v870, 32
      %v936 = vpop.permute.xlu0 %935
      %937 = vrot.lane.b32.xlu0 %v871, 32
      %v938 = vpop.permute.xlu0 %937
      %939 = vrot.lane.b32.xlu0 %v872, 32
      %v940 = vpop.permute.xlu0 %939
      %941 = vrot.lane.b32.xlu0 %v873, 32
      %v942 = vpop.permute.xlu0 %941
      %943 = vrot.lane.b32.xlu0 %v874, 32
      %v944 = vpop.permute.xlu0 %943
      %945 = vrot.lane.b32.xlu0 %v875, 32
      %v946 = vpop.permute.xlu0 %945
      %947 = vrot.lane.b32.xlu0 %v876, 32
      %v948 = vpop.permute.xlu0 %947
      %949 = vrot.lane.b32.xlu0 %v877, 32
      %v950 = vpop.permute.xlu0 %949
      %951 = vrot.lane.b32.xlu0 %v878, 32
      %v952 = vpop.permute.xlu0 %951
      %953 = vrot.lane.b32.xlu0 %v879, 32
      %v954 = vpop.permute.xlu0 %953
      %955 = vrot.lane.b32.xlu0 %v880, 32
      %v956 = vpop.permute.xlu0 %955
      %957 = vrot.lane.b32.xlu0 %v881, 32
      %v958 = vpop.permute.xlu0 %957
      %959 = vrot.lane.b32.xlu0 %v882, 32
      %v960 = vpop.permute.xlu0 %959
      %961 = vrot.lane.b32.xlu0 %v883, 32
      %v962 = vpop.permute.xlu0 %961
      %963 = vrot.lane.b32.xlu0 %v884, 32
      %v964 = vpop.permute.xlu0 %963
      %965 = vrot.lane.b32.xlu0 %v885, 32
      %v966 = vpop.permute.xlu0 %965
      %967 = vrot.lane.b32.xlu0 %v886, 32
      %v968 = vpop.permute.xlu0 %967
      %969 = vrot.lane.b32.xlu0 %v887, 32
      %v970 = vpop.permute.xlu0 %969
      %971 = vrot.lane.b32.xlu0 %v888, 32
      %v972 = vpop.permute.xlu0 %971
      %973 = vrot.lane.b32.xlu0 %v889, 32
      %v974 = vpop.permute.xlu0 %973
      %975 = vrot.lane.b32.xlu0 %v890, 32
      %v976 = vpop.permute.xlu0 %975
      %977 = vrot.lane.b32.xlu0 %v891, 32
      %v978 = vpop.permute.xlu0 %977
      %979 = vrot.lane.b32.xlu0 %v892, 32
      %v980 = vpop.permute.xlu0 %979
      %981 = vrot.lane.b32.xlu0 %v893, 32
      %v982 = vpop.permute.xlu0 %981
      %983 = vrot.lane.b32.xlu0 %v894, 32
      %v984 = vpop.permute.xlu0 %983
      %985 = vrot.lane.b32.xlu0 %v895, 32
      %v986 = vpop.permute.xlu0 %985
      %987 = vrot.lane.b32.xlu0 %v896, 32
      %v988 = vpop.permute.xlu0 %987
      %989 = vrot.lane.b32.xlu0 %v897, 32
      %v990 = vpop.permute.xlu0 %989
      %991 = vrot.lane.b32.xlu0 %v898, 32
      %v992 = vpop.permute.xlu0 %991
      %993 = vrot.lane.b32.xlu0 %v899, 32
      %v994 = vpop.permute.xlu0 %993
      %995 = vrot.lane.b32.xlu0 %v900, 32
      %v996 = vpop.permute.xlu0 %995
      %vm1029 = vcmask 392448
      %1030 = vst.msk [vmem:[#allocation4] sm:$0xff] %vm1029, %v934
      %1031 = vst.msk [vmem:[#allocation4 + $0x20] sm:$0xff] %vm1029, %v936
      %1032 = vst.msk [vmem:[#allocation4 + $0x40] sm:$0xff] %vm1029, %v938
      %1033 = vst.msk [vmem:[#allocation4 + $0x60] sm:$0xff] %vm1029, %v940
      %1034 = vst.msk [vmem:[#allocation4 + $0x80] sm:$0xff] %vm1029, %v942
      %1035 = vst.msk [vmem:[#allocation4 + $0xa0] sm:$0xff] %vm1029, %v944
      %1036 = vst.msk [vmem:[#allocation4 + $0xc0] sm:$0xff] %vm1029, %v946
      %1037 = vst.msk [vmem:[#allocation4 + $0xe0] sm:$0xff] %vm1029, %v948
      %1038 = vst.msk [vmem:[#allocation4 + $0x100] sm:$0xff] %vm1029, %v950
      %1039 = vst.msk [vmem:[#allocation4 + $0x120] sm:$0xff] %vm1029, %v952
      %1040 = vst.msk [vmem:[#allocation4 + $0x140] sm:$0xff] %vm1029, %v954
      %1041 = vst.msk [vmem:[#allocation4 + $0x160] sm:$0xff] %vm1029, %v956
      %1042 = vst.msk [vmem:[#allocation4 + $0x180] sm:$0xff] %vm1029, %v958
      %1043 = vst.msk [vmem:[#allocation4 + $0x1a0] sm:$0xff] %vm1029, %v960
      %1044 = vst.msk [vmem:[#allocation4 + $0x1c0] sm:$0xff] %vm1029, %v962
      %1045 = vst.msk [vmem:[#allocation4 + $0x1e0] sm:$0xff] %vm1029, %v964
      %1046 = vst.msk [vmem:[#allocation4 + $0x200] sm:$0xff] %vm1029, %v966
      %1047 = vst.msk [vmem:[#allocation4 + $0x220] sm:$0xff] %vm1029, %v968
      %1048 = vst.msk [vmem:[#allocation4 + $0x240] sm:$0xff] %vm1029, %v970
      %1049 = vst.msk [vmem:[#allocation4 + $0x260] sm:$0xff] %vm1029, %v972
      %1050 = vst.msk [vmem:[#allocation4 + $0x280] sm:$0xff] %vm1029, %v974
      %1051 = vst.msk [vmem:[#allocation4 + $0x2a0] sm:$0xff] %vm1029, %v976
      %1052 = vst.msk [vmem:[#allocation4 + $0x2c0] sm:$0xff] %vm1029, %v978
      %1053 = vst.msk [vmem:[#allocation4 + $0x2e0] sm:$0xff] %vm1029, %v980
      %1054 = vst.msk [vmem:[#allocation4 + $0x300] sm:$0xff] %vm1029, %v982
      %1055 = vst.msk [vmem:[#allocation4 + $0x320] sm:$0xff] %vm1029, %v984
      %1056 = vst.msk [vmem:[#allocation4 + $0x340] sm:$0xff] %vm1029, %v986
      %1057 = vst.msk [vmem:[#allocation4 + $0x360] sm:$0xff] %vm1029, %v988
      %1058 = vst.msk [vmem:[#allocation4 + $0x380] sm:$0xff] %vm1029, %v990
      %1059 = vst.msk [vmem:[#allocation4 + $0x3a0] sm:$0xff] %vm1029, %v992
      %1060 = vst.msk [vmem:[#allocation4 + $0x3c0] sm:$0xff] %vm1029, %v994
      %1061 = vst.msk [vmem:[#allocation4 + $0x3e0] sm:$0xff] %vm1029, %v996
      %v1062 = vld [vmem:[#allocation2 + $0x37] sm:$0xff]
      %v1063 = vld [vmem:[#allocation2 + $0x3f] sm:$0xff]
      %v1064 = vld [vmem:[#allocation2 + $0x47] sm:$0xff]
      %v1065 = vld [vmem:[#allocation2 + $0x4f] sm:$0xff]
      %v1066 = vld [vmem:[#allocation2 + $0x57] sm:$0xff]
      %v1067 = vld [vmem:[#allocation2 + $0x5f] sm:$0xff]
      %v1068 = vld [vmem:[#allocation2 + $0x67] sm:$0xff]
      %v1069 = vld [vmem:[#allocation2 + $0x6f] sm:$0xff]
      %v1070 = vld [vmem:[#allocation2 + $0x77] sm:$0xff]
      %v1071 = vld [vmem:[#allocation2 + $0x7f] sm:$0xff]
      %v1072 = vld [vmem:[#allocation2 + $0x87] sm:$0xff]
      %v1073 = vld [vmem:[#allocation2 + $0x8f] sm:$0xff]
      %v1074 = vld [vmem:[#allocation2 + $0x97] sm:$0xff]
      %v1075 = vld [vmem:[#allocation2 + $0x9f] sm:$0xff]
      %v1076 = vld [vmem:[#allocation2 + $0xa7] sm:$0xff]
      %v1077 = vld [vmem:[#allocation2 + $0xaf] sm:$0xff]
      %v1078 = vld [vmem:[#allocation2 + $0xb7] sm:$0xff]
      %v1079 = vld [vmem:[#allocation2 + $0xbf] sm:$0xff]
      %v1080 = vld [vmem:[#allocation2 + $0xc7] sm:$0xff]
      %v1081 = vld [vmem:[#allocation2 + $0xcf] sm:$0xff]
      %v1082 = vld [vmem:[#allocation2 + $0xd7] sm:$0xff]
      %v1083 = vld [vmem:[#allocation2 + $0xdf] sm:$0xff]
      %v1084 = vld [vmem:[#allocation2 + $0xe7] sm:$0xff]
      %v1085 = vld [vmem:[#allocation2 + $0xef] sm:$0xff]
      %v1086 = vld [vmem:[#allocation2 + $0xf7] sm:$0xff]
      %v1087 = vld [vmem:[#allocation2 + $0xff] sm:$0xff]
      %v1088 = vld [vmem:[#allocation2 + $0x107] sm:$0xff]
      %v1089 = vld [vmem:[#allocation2 + $0x10f] sm:$0xff]
      %v1090 = vld [vmem:[#allocation2 + $0x117] sm:$0xff]
      %v1091 = vld [vmem:[#allocation2 + $0x11f] sm:$0xff]
      %v1092 = vld [vmem:[#allocation2 + $0x127] sm:$0xff]
      %v1093 = vld [vmem:[#allocation2 + $0x12f] sm:$0xff]
      %v1094 = vsel %vm516, %v1062, 0.0
      %v1095 = vsel %vm517, %v1063, 0.0
      %v1096 = vsel %vm518, %v1064, 0.0
      %v1097 = vsel %vm519, %v1065, 0.0
      %v1098 = vsel %vm520, %v1066, 0.0
      %v1099 = vsel %vm521, %v1067, 0.0
      %v1100 = vsel %vm522, %v1068, 0.0
      %v1101 = vsel %vm523, %v1069, 0.0
      %v1102 = vsel %vm524, %v1070, 0.0
      %v1103 = vsel %vm525, %v1071, 0.0
      %v1104 = vsel %vm526, %v1072, 0.0
      %v1105 = vsel %vm527, %v1073, 0.0
      %v1106 = vsel %vm528, %v1074, 0.0
      %v1107 = vsel %vm529, %v1075, 0.0
      %v1108 = vsel %vm530, %v1076, 0.0
      %v1109 = vsel %vm531, %v1077, 0.0
      %v1110 = vsel %vm532, %v1078, 0.0
      %v1111 = vsel %vm533, %v1079, 0.0
      %v1112 = vsel %vm534, %v1080, 0.0
      %v1113 = vsel %vm535, %v1081, 0.0
      %v1114 = vsel %vm536, %v1082, 0.0
      %v1115 = vsel %vm537, %v1083, 0.0
      %v1116 = vsel %vm538, %v1084, 0.0
      %v1117 = vsel %vm539, %v1085, 0.0
      %v1118 = vsel %vm540, %v1086, 0.0
      %v1119 = vsel %vm541, %v1087, 0.0
      %v1120 = vsel %vm542, %v1088, 0.0
      %v1121 = vsel %vm543, %v1089, 0.0
      %v1122 = vsel %vm544, %v1090, 0.0
      %v1123 = vsel %vm545, %v1091, 0.0
      %v1124 = vsel %vm546, %v1092, 0.0
      %v1125 = vsel %vm547, %v1093, 0.0
      %1158 = vrot.lane.b32.xlu0 %v1094, 48
      %v1159 = vpop.permute.xlu0 %1158
      %1160 = vrot.lane.b32.xlu0 %v1095, 48
      %v1161 = vpop.permute.xlu0 %1160
      %1162 = vrot.lane.b32.xlu0 %v1096, 48
      %v1163 = vpop.permute.xlu0 %1162
      %1164 = vrot.lane.b32.xlu0 %v1097, 48
      %v1165 = vpop.permute.xlu0 %1164
      %1166 = vrot.lane.b32.xlu0 %v1098, 48
      %v1167 = vpop.permute.xlu0 %1166
      %1168 = vrot.lane.b32.xlu0 %v1099, 48
      %v1169 = vpop.permute.xlu0 %1168
      %1170 = vrot.lane.b32.xlu0 %v1100, 48
      %v1171 = vpop.permute.xlu0 %1170
      %1172 = vrot.lane.b32.xlu0 %v1101, 48
      %v1173 = vpop.permute.xlu0 %1172
      %1174 = vrot.lane.b32.xlu0 %v1102, 48
      %v1175 = vpop.permute.xlu0 %1174
      %1176 = vrot.lane.b32.xlu0 %v1103, 48
      %v1177 = vpop.permute.xlu0 %1176
      %1178 = vrot.lane.b32.xlu0 %v1104, 48
      %v1179 = vpop.permute.xlu0 %1178
      %1180 = vrot.lane.b32.xlu0 %v1105, 48
      %v1181 = vpop.permute.xlu0 %1180
      %1182 = vrot.lane.b32.xlu0 %v1106, 48
      %v1183 = vpop.permute.xlu0 %1182
      %1184 = vrot.lane.b32.xlu0 %v1107, 48
      %v1185 = vpop.permute.xlu0 %1184
      %1186 = vrot.lane.b32.xlu0 %v1108, 48
      %v1187 = vpop.permute.xlu0 %1186
      %1188 = vrot.lane.b32.xlu0 %v1109, 48
      %v1189 = vpop.permute.xlu0 %1188
      %1190 = vrot.lane.b32.xlu0 %v1110, 48
      %v1191 = vpop.permute.xlu0 %1190
      %1192 = vrot.lane.b32.xlu0 %v1111, 48
      %v1193 = vpop.permute.xlu0 %1192
      %1194 = vrot.lane.b32.xlu0 %v1112, 48
      %v1195 = vpop.permute.xlu0 %1194
      %1196 = vrot.lane.b32.xlu0 %v1113, 48
      %v1197 = vpop.permute.xlu0 %1196
      %1198 = vrot.lane.b32.xlu0 %v1114, 48
      %v1199 = vpop.permute.xlu0 %1198
      %1200 = vrot.lane.b32.xlu0 %v1115, 48
      %v1201 = vpop.permute.xlu0 %1200
      %1202 = vrot.lane.b32.xlu0 %v1116, 48
      %v1203 = vpop.permute.xlu0 %1202
      %1204 = vrot.lane.b32.xlu0 %v1117, 48
      %v1205 = vpop.permute.xlu0 %1204
      %1206 = vrot.lane.b32.xlu0 %v1118, 48
      %v1207 = vpop.permute.xlu0 %1206
      %1208 = vrot.lane.b32.xlu0 %v1119, 48
      %v1209 = vpop.permute.xlu0 %1208
      %1210 = vrot.lane.b32.xlu0 %v1120, 48
      %v1211 = vpop.permute.xlu0 %1210
      %1212 = vrot.lane.b32.xlu0 %v1121, 48
      %v1213 = vpop.permute.xlu0 %1212
      %1214 = vrot.lane.b32.xlu0 %v1122, 48
      %v1215 = vpop.permute.xlu0 %1214
      %1216 = vrot.lane.b32.xlu0 %v1123, 48
      %v1217 = vpop.permute.xlu0 %1216
      %1218 = vrot.lane.b32.xlu0 %v1124, 48
      %v1219 = vpop.permute.xlu0 %1218
      %1220 = vrot.lane.b32.xlu0 %v1125, 48
      %v1221 = vpop.permute.xlu0 %1220
      %vm1254 = vcmask 523648
      %1255 = vst.msk [vmem:[#allocation4] sm:$0xff] %vm1254, %v1159
      %1256 = vst.msk [vmem:[#allocation4 + $0x20] sm:$0xff] %vm1254, %v1161
      %1257 = vst.msk [vmem:[#allocation4 + $0x40] sm:$0xff] %vm1254, %v1163
      %1258 = vst.msk [vmem:[#allocation4 + $0x60] sm:$0xff] %vm1254, %v1165
      %1259 = vst.msk [vmem:[#allocation4 + $0x80] sm:$0xff] %vm1254, %v1167
      %1260 = vst.msk [vmem:[#allocation4 + $0xa0] sm:$0xff] %vm1254, %v1169
      %1261 = vst.msk [vmem:[#allocation4 + $0xc0] sm:$0xff] %vm1254, %v1171
      %1262 = vst.msk [vmem:[#allocation4 + $0xe0] sm:$0xff] %vm1254, %v1173
      %1263 = vst.msk [vmem:[#allocation4 + $0x100] sm:$0xff] %vm1254, %v1175
      %1264 = vst.msk [vmem:[#allocation4 + $0x120] sm:$0xff] %vm1254, %v1177
      %1265 = vst.msk [vmem:[#allocation4 + $0x140] sm:$0xff] %vm1254, %v1179
      %1266 = vst.msk [vmem:[#allocation4 + $0x160] sm:$0xff] %vm1254, %v1181
      %1267 = vst.msk [vmem:[#allocation4 + $0x180] sm:$0xff] %vm1254, %v1183
      %1268 = vst.msk [vmem:[#allocation4 + $0x1a0] sm:$0xff] %vm1254, %v1185
      %1269 = vst.msk [vmem:[#allocation4 + $0x1c0] sm:$0xff] %vm1254, %v1187
      %1270 = vst.msk [vmem:[#allocation4 + $0x1e0] sm:$0xff] %vm1254, %v1189
      %1271 = vst.msk [vmem:[#allocation4 + $0x200] sm:$0xff] %vm1254, %v1191
      %1272 = vst.msk [vmem:[#allocation4 + $0x220] sm:$0xff] %vm1254, %v1193
      %1273 = vst.msk [vmem:[#allocation4 + $0x240] sm:$0xff] %vm1254, %v1195
      %1274 = vst.msk [vmem:[#allocation4 + $0x260] sm:$0xff] %vm1254, %v1197
      %1275 = vst.msk [vmem:[#allocation4 + $0x280] sm:$0xff] %vm1254, %v1199
      %1276 = vst.msk [vmem:[#allocation4 + $0x2a0] sm:$0xff] %vm1254, %v1201
      %1277 = vst.msk [vmem:[#allocation4 + $0x2c0] sm:$0xff] %vm1254, %v1203
      %1278 = vst.msk [vmem:[#allocation4 + $0x2e0] sm:$0xff] %vm1254, %v1205
      %1279 = vst.msk [vmem:[#allocation4 + $0x300] sm:$0xff] %vm1254, %v1207
      %1280 = vst.msk [vmem:[#allocation4 + $0x320] sm:$0xff] %vm1254, %v1209
      %1281 = vst.msk [vmem:[#allocation4 + $0x340] sm:$0xff] %vm1254, %v1211
      %1282 = vst.msk [vmem:[#allocation4 + $0x360] sm:$0xff] %vm1254, %v1213
      %1283 = vst.msk [vmem:[#allocation4 + $0x380] sm:$0xff] %vm1254, %v1215
      %1284 = vst.msk [vmem:[#allocation4 + $0x3a0] sm:$0xff] %vm1254, %v1217
      %1285 = vst.msk [vmem:[#allocation4 + $0x3c0] sm:$0xff] %vm1254, %v1219
      %1286 = vst.msk [vmem:[#allocation4 + $0x3e0] sm:$0xff] %vm1254, %v1221
      %v1287 = vld [vmem:[#allocation2 + $0x38] sm:$0xff]
      %v1288 = vld [vmem:[#allocation2 + $0x40] sm:$0xff]
      %v1289 = vld [vmem:[#allocation2 + $0x48] sm:$0xff]
      %v1290 = vld [vmem:[#allocation2 + $0x50] sm:$0xff]
      %v1291 = vld [vmem:[#allocation2 + $0x58] sm:$0xff]
      %v1292 = vld [vmem:[#allocation2 + $0x60] sm:$0xff]
      %v1293 = vld [vmem:[#allocation2 + $0x68] sm:$0xff]
      %v1294 = vld [vmem:[#allocation2 + $0x70] sm:$0xff]
      %v1295 = vld [vmem:[#allocation2 + $0x78] sm:$0xff]
      %v1296 = vld [vmem:[#allocation2 + $0x80] sm:$0xff]
      %v1297 = vld [vmem:[#allocation2 + $0x88] sm:$0xff]
      %v1298 = vld [vmem:[#allocation2 + $0x90] sm:$0xff]
      %v1299 = vld [vmem:[#allocation2 + $0x98] sm:$0xff]
      %v1300 = vld [vmem:[#allocation2 + $0xa0] sm:$0xff]
      %v1301 = vld [vmem:[#allocation2 + $0xa8] sm:$0xff]
      %v1302 = vld [vmem:[#allocation2 + $0xb0] sm:$0xff]
      %v1303 = vld [vmem:[#allocation2 + $0xb8] sm:$0xff]
      %v1304 = vld [vmem:[#allocation2 + $0xc0] sm:$0xff]
      %v1305 = vld [vmem:[#allocation2 + $0xc8] sm:$0xff]
      %v1306 = vld [vmem:[#allocation2 + $0xd0] sm:$0xff]
      %v1307 = vld [vmem:[#allocation2 + $0xd8] sm:$0xff]
      %v1308 = vld [vmem:[#allocation2 + $0xe0] sm:$0xff]
      %v1309 = vld [vmem:[#allocation2 + $0xe8] sm:$0xff]
      %v1310 = vld [vmem:[#allocation2 + $0xf0] sm:$0xff]
      %v1311 = vld [vmem:[#allocation2 + $0xf8] sm:$0xff]
      %v1312 = vld [vmem:[#allocation2 + $0x100] sm:$0xff]
      %v1313 = vld [vmem:[#allocation2 + $0x108] sm:$0xff]
      %v1314 = vld [vmem:[#allocation2 + $0x110] sm:$0xff]
      %v1315 = vld [vmem:[#allocation2 + $0x118] sm:$0xff]
      %v1316 = vld [vmem:[#allocation2 + $0x120] sm:$0xff]
      %v1317 = vld [vmem:[#allocation2 + $0x128] sm:$0xff]
      %v1318 = vld [vmem:[#allocation2 + $0x130] sm:$0xff]
      %1351 = vrot.lane.b32.xlu0 %v1287, 64
      %v1352 = vpop.permute.xlu0 %1351
      %1353 = vrot.lane.b32.xlu0 %v1288, 64
      %v1354 = vpop.permute.xlu0 %1353
      %1355 = vrot.lane.b32.xlu0 %v1289, 64
      %v1356 = vpop.permute.xlu0 %1355
      %1357 = vrot.lane.b32.xlu0 %v1290, 64
      %v1358 = vpop.permute.xlu0 %1357
      %1359 = vrot.lane.b32.xlu0 %v1291, 64
      %v1360 = vpop.permute.xlu0 %1359
      %1361 = vrot.lane.b32.xlu0 %v1292, 64
      %v1362 = vpop.permute.xlu0 %1361
      %1363 = vrot.lane.b32.xlu0 %v1293, 64
      %v1364 = vpop.permute.xlu0 %1363
      %1365 = vrot.lane.b32.xlu0 %v1294, 64
      %v1366 = vpop.permute.xlu0 %1365
      %1367 = vrot.lane.b32.xlu0 %v1295, 64
      %v1368 = vpop.permute.xlu0 %1367
      %1369 = vrot.lane.b32.xlu0 %v1296, 64
      %v1370 = vpop.permute.xlu0 %1369
      %1371 = vrot.lane.b32.xlu0 %v1297, 64
      %v1372 = vpop.permute.xlu0 %1371
      %1373 = vrot.lane.b32.xlu0 %v1298, 64
      %v1374 = vpop.permute.xlu0 %1373
      %1375 = vrot.lane.b32.xlu0 %v1299, 64
      %v1376 = vpop.permute.xlu0 %1375
      %1377 = vrot.lane.b32.xlu0 %v1300, 64
      %v1378 = vpop.permute.xlu0 %1377
      %1379 = vrot.lane.b32.xlu0 %v1301, 64
      %v1380 = vpop.permute.xlu0 %1379
      %1381 = vrot.lane.b32.xlu0 %v1302, 64
      %v1382 = vpop.permute.xlu0 %1381
      %1383 = vrot.lane.b32.xlu0 %v1303, 64
      %v1384 = vpop.permute.xlu0 %1383
      %1385 = vrot.lane.b32.xlu0 %v1304, 64
      %v1386 = vpop.permute.xlu0 %1385
      %1387 = vrot.lane.b32.xlu0 %v1305, 64
      %v1388 = vpop.permute.xlu0 %1387
      %1389 = vrot.lane.b32.xlu0 %v1306, 64
      %v1390 = vpop.permute.xlu0 %1389
      %1391 = vrot.lane.b32.xlu0 %v1307, 64
      %v1392 = vpop.permute.xlu0 %1391
      %1393 = vrot.lane.b32.xlu0 %v1308, 64
      %v1394 = vpop.permute.xlu0 %1393
      %1395 = vrot.lane.b32.xlu0 %v1309, 64
      %v1396 = vpop.permute.xlu0 %1395
      %1397 = vrot.lane.b32.xlu0 %v1310, 64
      %v1398 = vpop.permute.xlu0 %1397
      %1399 = vrot.lane.b32.xlu0 %v1311, 64
      %v1400 = vpop.permute.xlu0 %1399
      %1401 = vrot.lane.b32.xlu0 %v1312, 64
      %v1402 = vpop.permute.xlu0 %1401
      %1403 = vrot.lane.b32.xlu0 %v1313, 64
      %v1404 = vpop.permute.xlu0 %1403
      %1405 = vrot.lane.b32.xlu0 %v1314, 64
      %v1406 = vpop.permute.xlu0 %1405
      %1407 = vrot.lane.b32.xlu0 %v1315, 64
      %v1408 = vpop.permute.xlu0 %1407
      %1409 = vrot.lane.b32.xlu0 %v1316, 64
      %v1410 = vpop.permute.xlu0 %1409
      %1411 = vrot.lane.b32.xlu0 %v1317, 64
      %v1412 = vpop.permute.xlu0 %1411
      %1413 = vrot.lane.b32.xlu0 %v1318, 64
      %v1414 = vpop.permute.xlu0 %1413
      %vm1447 = vcmask 654848
      %1448 = vst.msk [vmem:[#allocation4] sm:$0xff] %vm1447, %v1352
      %1449 = vst.msk [vmem:[#allocation4 + $0x20] sm:$0xff] %vm1447, %v1354
      %1450 = vst.msk [vmem:[#allocation4 + $0x40] sm:$0xff] %vm1447, %v1356
      %1451 = vst.msk [vmem:[#allocation4 + $0x60] sm:$0xff] %vm1447, %v1358
      %1452 = vst.msk [vmem:[#allocation4 + $0x80] sm:$0xff] %vm1447, %v1360
      %1453 = vst.msk [vmem:[#allocation4 + $0xa0] sm:$0xff] %vm1447, %v1362
      %1454 = vst.msk [vmem:[#allocation4 + $0xc0] sm:$0xff] %vm1447, %v1364
      %1455 = vst.msk [vmem:[#allocation4 + $0xe0] sm:$0xff] %vm1447, %v1366
      %1456 = vst.msk [vmem:[#allocation4 + $0x100] sm:$0xff] %vm1447, %v1368
      %1457 = vst.msk [vmem:[#allocation4 + $0x120] sm:$0xff] %vm1447, %v1370
      %1458 = vst.msk [vmem:[#allocation4 + $0x140] sm:$0xff] %vm1447, %v1372
      %1459 = vst.msk [vmem:[#allocation4 + $0x160] sm:$0xff] %vm1447, %v1374
      %1460 = vst.msk [vmem:[#allocation4 + $0x180] sm:$0xff] %vm1447, %v1376
      %1461 = vst.msk [vmem:[#allocation4 + $0x1a0] sm:$0xff] %vm1447, %v1378
      %1462 = vst.msk [vmem:[#allocation4 + $0x1c0] sm:$0xff] %vm1447, %v1380
      %1463 = vst.msk [vmem:[#allocation4 + $0x1e0] sm:$0xff] %vm1447, %v1382
      %1464 = vst.msk [vmem:[#allocation4 + $0x200] sm:$0xff] %vm1447, %v1384
      %1465 = vst.msk [vmem:[#allocation4 + $0x220] sm:$0xff] %vm1447, %v1386
      %1466 = vst.msk [vmem:[#allocation4 + $0x240] sm:$0xff] %vm1447, %v1388
      %1467 = vst.msk [vmem:[#allocation4 + $0x260] sm:$0xff] %vm1447, %v1390
      %1468 = vst.msk [vmem:[#allocation4 + $0x280] sm:$0xff] %vm1447, %v1392
      %1469 = vst.msk [vmem:[#allocation4 + $0x2a0] sm:$0xff] %vm1447, %v1394
      %1470 = vst.msk [vmem:[#allocation4 + $0x2c0] sm:$0xff] %vm1447, %v1396
      %1471 = vst.msk [vmem:[#allocation4 + $0x2e0] sm:$0xff] %vm1447, %v1398
      %1472 = vst.msk [vmem:[#allocation4 + $0x300] sm:$0xff] %vm1447, %v1400
      %1473 = vst.msk [vmem:[#allocation4 + $0x320] sm:$0xff] %vm1447, %v1402
      %1474 = vst.msk [vmem:[#allocation4 + $0x340] sm:$0xff] %vm1447, %v1404
      %1475 = vst.msk [vmem:[#allocation4 + $0x360] sm:$0xff] %vm1447, %v1406
      %1476 = vst.msk [vmem:[#allocation4 + $0x380] sm:$0xff] %vm1447, %v1408
      %1477 = vst.msk [vmem:[#allocation4 + $0x3a0] sm:$0xff] %vm1447, %v1410
      %1478 = vst.msk [vmem:[#allocation4 + $0x3c0] sm:$0xff] %vm1447, %v1412
      %1479 = vst.msk [vmem:[#allocation4 + $0x3e0] sm:$0xff] %vm1447, %v1414
      %v1480 = vld [vmem:[#allocation2 + $0x39] sm:$0xff]
      %v1481 = vld [vmem:[#allocation2 + $0x41] sm:$0xff]
      %v1482 = vld [vmem:[#allocation2 + $0x49] sm:$0xff]
      %v1483 = vld [vmem:[#allocation2 + $0x51] sm:$0xff]
      %v1484 = vld [vmem:[#allocation2 + $0x59] sm:$0xff]
      %v1485 = vld [vmem:[#allocation2 + $0x61] sm:$0xff]
      %v1486 = vld [vmem:[#allocation2 + $0x69] sm:$0xff]
      %v1487 = vld [vmem:[#allocation2 + $0x71] sm:$0xff]
      %v1488 = vld [vmem:[#allocation2 + $0x79] sm:$0xff]
      %v1489 = vld [vmem:[#allocation2 + $0x81] sm:$0xff]
      %v1490 = vld [vmem:[#allocation2 + $0x89] sm:$0xff]
      %v1491 = vld [vmem:[#allocation2 + $0x91] sm:$0xff]
      %v1492 = vld [vmem:[#allocation2 + $0x99] sm:$0xff]
      %v1493 = vld [vmem:[#allocation2 + $0xa1] sm:$0xff]
      %v1494 = vld [vmem:[#allocation2 + $0xa9] sm:$0xff]
      %v1495 = vld [vmem:[#allocation2 + $0xb1] sm:$0xff]
      %v1496 = vld [vmem:[#allocation2 + $0xb9] sm:$0xff]
      %v1497 = vld [vmem:[#allocation2 + $0xc1] sm:$0xff]
      %v1498 = vld [vmem:[#allocation2 + $0xc9] sm:$0xff]
      %v1499 = vld [vmem:[#allocation2 + $0xd1] sm:$0xff]
      %v1500 = vld [vmem:[#allocation2 + $0xd9] sm:$0xff]
      %v1501 = vld [vmem:[#allocation2 + $0xe1] sm:$0xff]
      %v1502 = vld [vmem:[#allocation2 + $0xe9] sm:$0xff]
      %v1503 = vld [vmem:[#allocation2 + $0xf1] sm:$0xff]
      %v1504 = vld [vmem:[#allocation2 + $0xf9] sm:$0xff]
      %v1505 = vld [vmem:[#allocation2 + $0x101] sm:$0xff]
      %v1506 = vld [vmem:[#allocation2 + $0x109] sm:$0xff]
      %v1507 = vld [vmem:[#allocation2 + $0x111] sm:$0xff]
      %v1508 = vld [vmem:[#allocation2 + $0x119] sm:$0xff]
      %v1509 = vld [vmem:[#allocation2 + $0x121] sm:$0xff]
      %v1510 = vld [vmem:[#allocation2 + $0x129] sm:$0xff]
      %v1511 = vld [vmem:[#allocation2 + $0x131] sm:$0xff]
      %v1512 = vsel %vm837, %v1480, 0.0
      %v1513 = vsel %vm838, %v1481, 0.0
      %v1514 = vsel %vm839, %v1482, 0.0
      %v1515 = vsel %vm840, %v1483, 0.0
      %v1516 = vsel %vm841, %v1484, 0.0
      %v1517 = vsel %vm842, %v1485, 0.0
      %v1518 = vsel %vm843, %v1486, 0.0
      %v1519 = vsel %vm844, %v1487, 0.0
      %v1520 = vsel %vm845, %v1488, 0.0
      %v1521 = vsel %vm846, %v1489, 0.0
      %v1522 = vsel %vm847, %v1490, 0.0
      %v1523 = vsel %vm848, %v1491, 0.0
      %v1524 = vsel %vm849, %v1492, 0.0
      %v1525 = vsel %vm850, %v1493, 0.0
      %v1526 = vsel %vm851, %v1494, 0.0
      %v1527 = vsel %vm852, %v1495, 0.0
      %v1528 = vsel %vm853, %v1496, 0.0
      %v1529 = vsel %vm854, %v1497, 0.0
      %v1530 = vsel %vm855, %v1498, 0.0
      %v1531 = vsel %vm856, %v1499, 0.0
      %v1532 = vsel %vm857, %v1500, 0.0
      %v1533 = vsel %vm858, %v1501, 0.0
      %v1534 = vsel %vm859, %v1502, 0.0
      %v1535 = vsel %vm860, %v1503, 0.0
      %v1536 = vsel %vm861, %v1504, 0.0
      %v1537 = vsel %vm862, %v1505, 0.0
      %v1538 = vsel %vm863, %v1506, 0.0
      %v1539 = vsel %vm864, %v1507, 0.0
      %v1540 = vsel %vm865, %v1508, 0.0
      %v1541 = vsel %vm866, %v1509, 0.0
      %v1542 = vsel %vm867, %v1510, 0.0
      %v1543 = vsel %vm868, %v1511, 0.0
      %1576 = vrot.lane.b32.xlu0 %v1512, 80
      %v1577 = vpop.permute.xlu0 %1576
      %1578 = vrot.lane.b32.xlu0 %v1513, 80
      %v1579 = vpop.permute.xlu0 %1578
      %1580 = vrot.lane.b32.xlu0 %v1514, 80
      %v1581 = vpop.permute.xlu0 %1580
      %1582 = vrot.lane.b32.xlu0 %v1515, 80
      %v1583 = vpop.permute.xlu0 %1582
      %1584 = vrot.lane.b32.xlu0 %v1516, 80
      %v1585 = vpop.permute.xlu0 %1584
      %1586 = vrot.lane.b32.xlu0 %v1517, 80
      %v1587 = vpop.permute.xlu0 %1586
      %1588 = vrot.lane.b32.xlu0 %v1518, 80
      %v1589 = vpop.permute.xlu0 %1588
      %1590 = vrot.lane.b32.xlu0 %v1519, 80
      %v1591 = vpop.permute.xlu0 %1590
      %1592 = vrot.lane.b32.xlu0 %v1520, 80
      %v1593 = vpop.permute.xlu0 %1592
      %1594 = vrot.lane.b32.xlu0 %v1521, 80
      %v1595 = vpop.permute.xlu0 %1594
      %1596 = vrot.lane.b32.xlu0 %v1522, 80
      %v1597 = vpop.permute.xlu0 %1596
      %1598 = vrot.lane.b32.xlu0 %v1523, 80
      %v1599 = vpop.permute.xlu0 %1598
      %1600 = vrot.lane.b32.xlu0 %v1524, 80
      %v1601 = vpop.permute.xlu0 %1600
      %1602 = vrot.lane.b32.xlu0 %v1525, 80
      %v1603 = vpop.permute.xlu0 %1602
      %1604 = vrot.lane.b32.xlu0 %v1526, 80
      %v1605 = vpop.permute.xlu0 %1604
      %1606 = vrot.lane.b32.xlu0 %v1527, 80
      %v1607 = vpop.permute.xlu0 %1606
      %1608 = vrot.lane.b32.xlu0 %v1528, 80
      %v1609 = vpop.permute.xlu0 %1608
      %1610 = vrot.lane.b32.xlu0 %v1529, 80
      %v1611 = vpop.permute.xlu0 %1610
      %1612 = vrot.lane.b32.xlu0 %v1530, 80
      %v1613 = vpop.permute.xlu0 %1612
      %1614 = vrot.lane.b32.xlu0 %v1531, 80
      %v1615 = vpop.permute.xlu0 %1614
      %1616 = vrot.lane.b32.xlu0 %v1532, 80
      %v1617 = vpop.permute.xlu0 %1616
      %1618 = vrot.lane.b32.xlu0 %v1533, 80
      %v1619 = vpop.permute.xlu0 %1618
      %1620 = vrot.lane.b32.xlu0 %v1534, 80
      %v1621 = vpop.permute.xlu0 %1620
      %1622 = vrot.lane.b32.xlu0 %v1535, 80
      %v1623 = vpop.permute.xlu0 %1622
      %1624 = vrot.lane.b32.xlu0 %v1536, 80
      %v1625 = vpop.permute.xlu0 %1624
      %1626 = vrot.lane.b32.xlu0 %v1537, 80
      %v1627 = vpop.permute.xlu0 %1626
      %1628 = vrot.lane.b32.xlu0 %v1538, 80
      %v1629 = vpop.permute.xlu0 %1628
      %1630 = vrot.lane.b32.xlu0 %v1539, 80
      %v1631 = vpop.permute.xlu0 %1630
      %1632 = vrot.lane.b32.xlu0 %v1540, 80
      %v1633 = vpop.permute.xlu0 %1632
      %1634 = vrot.lane.b32.xlu0 %v1541, 80
      %v1635 = vpop.permute.xlu0 %1634
      %1636 = vrot.lane.b32.xlu0 %v1542, 80
      %v1637 = vpop.permute.xlu0 %1636
      %1638 = vrot.lane.b32.xlu0 %v1543, 80
      %v1639 = vpop.permute.xlu0 %1638
      %vm1672 = vcmask 786048
      %1673 = vst.msk [vmem:[#allocation4] sm:$0xff] %vm1672, %v1577
      %1674 = vst.msk [vmem:[#allocation4 + $0x20] sm:$0xff] %vm1672, %v1579
      %1675 = vst.msk [vmem:[#allocation4 + $0x40] sm:$0xff] %vm1672, %v1581
      %1676 = vst.msk [vmem:[#allocation4 + $0x60] sm:$0xff] %vm1672, %v1583
      %1677 = vst.msk [vmem:[#allocation4 + $0x80] sm:$0xff] %vm1672, %v1585
      %1678 = vst.msk [vmem:[#allocation4 + $0xa0] sm:$0xff] %vm1672, %v1587
      %1679 = vst.msk [vmem:[#allocation4 + $0xc0] sm:$0xff] %vm1672, %v1589
      %1680 = vst.msk [vmem:[#allocation4 + $0xe0] sm:$0xff] %vm1672, %v1591
      %1681 = vst.msk [vmem:[#allocation4 + $0x100] sm:$0xff] %vm1672, %v1593
      %1682 = vst.msk [vmem:[#allocation4 + $0x120] sm:$0xff] %vm1672, %v1595
      %1683 = vst.msk [vmem:[#allocation4 + $0x140] sm:$0xff] %vm1672, %v1597
      %1684 = vst.msk [vmem:[#allocation4 + $0x160] sm:$0xff] %vm1672, %v1599
      %1685 = vst.msk [vmem:[#allocation4 + $0x180] sm:$0xff] %vm1672, %v1601
      %1686 = vst.msk [vmem:[#allocation4 + $0x1a0] sm:$0xff] %vm1672, %v1603
      %1687 = vst.msk [vmem:[#allocation4 + $0x1c0] sm:$0xff] %vm1672, %v1605
      %1688 = vst.msk [vmem:[#allocation4 + $0x1e0] sm:$0xff] %vm1672, %v1607
      %1689 = vst.msk [vmem:[#allocation4 + $0x200] sm:$0xff] %vm1672, %v1609
      %1690 = vst.msk [vmem:[#allocation4 + $0x220] sm:$0xff] %vm1672, %v1611
      %1691 = vst.msk [vmem:[#allocation4 + $0x240] sm:$0xff] %vm1672, %v1613
      %1692 = vst.msk [vmem:[#allocation4 + $0x260] sm:$0xff] %vm1672, %v1615
      %1693 = vst.msk [vmem:[#allocation4 + $0x280] sm:$0xff] %vm1672, %v1617
      %1694 = vst.msk [vmem:[#allocation4 + $0x2a0] sm:$0xff] %vm1672, %v1619
      %1695 = vst.msk [vmem:[#allocation4 + $0x2c0] sm:$0xff] %vm1672, %v1621
      %1696 = vst.msk [vmem:[#allocation4 + $0x2e0] sm:$0xff] %vm1672, %v1623
      %1697 = vst.msk [vmem:[#allocation4 + $0x300] sm:$0xff] %vm1672, %v1625
      %1698 = vst.msk [vmem:[#allocation4 + $0x320] sm:$0xff] %vm1672, %v1627
      %1699 = vst.msk [vmem:[#allocation4 + $0x340] sm:$0xff] %vm1672, %v1629
      %1700 = vst.msk [vmem:[#allocation4 + $0x360] sm:$0xff] %vm1672, %v1631
      %1701 = vst.msk [vmem:[#allocation4 + $0x380] sm:$0xff] %vm1672, %v1633
      %1702 = vst.msk [vmem:[#allocation4 + $0x3a0] sm:$0xff] %vm1672, %v1635
      %1703 = vst.msk [vmem:[#allocation4 + $0x3c0] sm:$0xff] %vm1672, %v1637
      %1704 = vst.msk [vmem:[#allocation4 + $0x3e0] sm:$0xff] %vm1672, %v1639
      %v1705 = vld [vmem:[#allocation2 + $0x47] sm:$0xff]
      %v1706 = vld [vmem:[#allocation2 + $0x4f] sm:$0xff]
      %v1707 = vld [vmem:[#allocation2 + $0x57] sm:$0xff]
      %v1708 = vld [vmem:[#allocation2 + $0x5f] sm:$0xff]
      %v1709 = vld [vmem:[#allocation2 + $0x67] sm:$0xff]
      %v1710 = vld [vmem:[#allocation2 + $0x6f] sm:$0xff]
      %v1711 = vld [vmem:[#allocation2 + $0x77] sm:$0xff]
      %v1712 = vld [vmem:[#allocation2 + $0x7f] sm:$0xff]
      %v1713 = vld [vmem:[#allocation2 + $0x87] sm:$0xff]
      %v1714 = vld [vmem:[#allocation2 + $0x8f] sm:$0xff]
      %v1715 = vld [vmem:[#allocation2 + $0x97] sm:$0xff]
      %v1716 = vld [vmem:[#allocation2 + $0x9f] sm:$0xff]
      %v1717 = vld [vmem:[#allocation2 + $0xa7] sm:$0xff]
      %v1718 = vld [vmem:[#allocation2 + $0xaf] sm:$0xff]
      %v1719 = vld [vmem:[#allocation2 + $0xb7] sm:$0xff]
      %v1720 = vld [vmem:[#allocation2 + $0xbf] sm:$0xff]
      %v1721 = vld [vmem:[#allocation2 + $0xc7] sm:$0xff]
      %v1722 = vld [vmem:[#allocation2 + $0xcf] sm:$0xff]
      %v1723 = vld [vmem:[#allocation2 + $0xd7] sm:$0xff]
      %v1724 = vld [vmem:[#allocation2 + $0xdf] sm:$0xff]
      %v1725 = vld [vmem:[#allocation2 + $0xe7] sm:$0xff]
      %v1726 = vld [vmem:[#allocation2 + $0xef] sm:$0xff]
      %v1727 = vld [vmem:[#allocation2 + $0xf7] sm:$0xff]
      %v1728 = vld [vmem:[#allocation2 + $0xff] sm:$0xff]
      %v1729 = vld [vmem:[#allocation2 + $0x107] sm:$0xff]
      %v1730 = vld [vmem:[#allocation2 + $0x10f] sm:$0xff]
      %v1731 = vld [vmem:[#allocation2 + $0x117] sm:$0xff]
      %v1732 = vld [vmem:[#allocation2 + $0x11f] sm:$0xff]
      %v1733 = vld [vmem:[#allocation2 + $0x127] sm:$0xff]
      %v1734 = vld [vmem:[#allocation2 + $0x12f] sm:$0xff]
      %v1735 = vld [vmem:[#allocation2 + $0x137] sm:$0xff]
      %v1736 = vld [vmem:[#allocation2 + $0x13f] sm:$0xff]
      %v1737 = vsel %vm516, %v1705, 0.0
      %v1738 = vsel %vm517, %v1706, 0.0
      %v1739 = vsel %vm518, %v1707, 0.0
      %v1740 = vsel %vm519, %v1708, 0.0
      %v1741 = vsel %vm520, %v1709, 0.0
      %v1742 = vsel %vm521, %v1710, 0.0
      %v1743 = vsel %vm522, %v1711, 0.0
      %v1744 = vsel %vm523, %v1712, 0.0
      %v1745 = vsel %vm524, %v1713, 0.0
      %v1746 = vsel %vm525, %v1714, 0.0
      %v1747 = vsel %vm526, %v1715, 0.0
      %v1748 = vsel %vm527, %v1716, 0.0
      %v1749 = vsel %vm528, %v1717, 0.0
      %v1750 = vsel %vm529, %v1718, 0.0
      %v1751 = vsel %vm530, %v1719, 0.0
      %v1752 = vsel %vm531, %v1720, 0.0
      %v1753 = vsel %vm532, %v1721, 0.0
      %v1754 = vsel %vm533, %v1722, 0.0
      %v1755 = vsel %vm534, %v1723, 0.0
      %v1756 = vsel %vm535, %v1724, 0.0
      %v1757 = vsel %vm536, %v1725, 0.0
      %v1758 = vsel %vm537, %v1726, 0.0
      %v1759 = vsel %vm538, %v1727, 0.0
      %v1760 = vsel %vm539, %v1728, 0.0
      %v1761 = vsel %vm540, %v1729, 0.0
      %v1762 = vsel %vm541, %v1730, 0.0
      %v1763 = vsel %vm542, %v1731, 0.0
      %v1764 = vsel %vm543, %v1732, 0.0
      %v1765 = vsel %vm544, %v1733, 0.0
      %v1766 = vsel %vm545, %v1734, 0.0
      %v1767 = vsel %vm546, %v1735, 0.0
      %v1768 = vsel %vm547, %v1736, 0.0
      %1801 = vrot.lane.b32.xlu0 %v1737, 96
      %v1802 = vpop.permute.xlu0 %1801
      %1803 = vrot.lane.b32.xlu0 %v1738, 96
      %v1804 = vpop.permute.xlu0 %1803
      %1805 = vrot.lane.b32.xlu0 %v1739, 96
      %v1806 = vpop.permute.xlu0 %1805
      %1807 = vrot.lane.b32.xlu0 %v1740, 96
      %v1808 = vpop.permute.xlu0 %1807
      %1809 = vrot.lane.b32.xlu0 %v1741, 96
      %v1810 = vpop.permute.xlu0 %1809
      %1811 = vrot.lane.b32.xlu0 %v1742, 96
      %v1812 = vpop.permute.xlu0 %1811
      %1813 = vrot.lane.b32.xlu0 %v1743, 96
      %v1814 = vpop.permute.xlu0 %1813
      %1815 = vrot.lane.b32.xlu0 %v1744, 96
      %v1816 = vpop.permute.xlu0 %1815
      %1817 = vrot.lane.b32.xlu0 %v1745, 96
      %v1818 = vpop.permute.xlu0 %1817
      %1819 = vrot.lane.b32.xlu0 %v1746, 96
      %v1820 = vpop.permute.xlu0 %1819
      %1821 = vrot.lane.b32.xlu0 %v1747, 96
      %v1822 = vpop.permute.xlu0 %1821
      %1823 = vrot.lane.b32.xlu0 %v1748, 96
      %v1824 = vpop.permute.xlu0 %1823
      %1825 = vrot.lane.b32.xlu0 %v1749, 96
      %v1826 = vpop.permute.xlu0 %1825
      %1827 = vrot.lane.b32.xlu0 %v1750, 96
      %v1828 = vpop.permute.xlu0 %1827
      %1829 = vrot.lane.b32.xlu0 %v1751, 96
      %v1830 = vpop.permute.xlu0 %1829
      %1831 = vrot.lane.b32.xlu0 %v1752, 96
      %v1832 = vpop.permute.xlu0 %1831
      %1833 = vrot.lane.b32.xlu0 %v1753, 96
      %v1834 = vpop.permute.xlu0 %1833
      %1835 = vrot.lane.b32.xlu0 %v1754, 96
      %v1836 = vpop.permute.xlu0 %1835
      %1837 = vrot.lane.b32.xlu0 %v1755, 96
      %v1838 = vpop.permute.xlu0 %1837
      %1839 = vrot.lane.b32.xlu0 %v1756, 96
      %v1840 = vpop.permute.xlu0 %1839
      %1841 = vrot.lane.b32.xlu0 %v1757, 96
      %v1842 = vpop.permute.xlu0 %1841
      %1843 = vrot.lane.b32.xlu0 %v1758, 96
      %v1844 = vpop.permute.xlu0 %1843
      %1845 = vrot.lane.b32.xlu0 %v1759, 96
      %v1846 = vpop.permute.xlu0 %1845
      %1847 = vrot.lane.b32.xlu0 %v1760, 96
      %v1848 = vpop.permute.xlu0 %1847
      %1849 = vrot.lane.b32.xlu0 %v1761, 96
      %v1850 = vpop.permute.xlu0 %1849
      %1851 = vrot.lane.b32.xlu0 %v1762, 96
      %v1852 = vpop.permute.xlu0 %1851
      %1853 = vrot.lane.b32.xlu0 %v1763, 96
      %v1854 = vpop.permute.xlu0 %1853
      %1855 = vrot.lane.b32.xlu0 %v1764, 96
      %v1856 = vpop.permute.xlu0 %1855
      %1857 = vrot.lane.b32.xlu0 %v1765, 96
      %v1858 = vpop.permute.xlu0 %1857
      %1859 = vrot.lane.b32.xlu0 %v1766, 96
      %v1860 = vpop.permute.xlu0 %1859
      %1861 = vrot.lane.b32.xlu0 %v1767, 96
      %v1862 = vpop.permute.xlu0 %1861
      %1863 = vrot.lane.b32.xlu0 %v1768, 96
      %v1864 = vpop.permute.xlu0 %1863
      %vm1897 = vcmask 917248
      %1898 = vst.msk [vmem:[#allocation4] sm:$0xff] %vm1897, %v1802
      %1899 = vst.msk [vmem:[#allocation4 + $0x20] sm:$0xff] %vm1897, %v1804
      %1900 = vst.msk [vmem:[#allocation4 + $0x40] sm:$0xff] %vm1897, %v1806
      %1901 = vst.msk [vmem:[#allocation4 + $0x60] sm:$0xff] %vm1897, %v1808
      %1902 = vst.msk [vmem:[#allocation4 + $0x80] sm:$0xff] %vm1897, %v1810
      %1903 = vst.msk [vmem:[#allocation4 + $0xa0] sm:$0xff] %vm1897, %v1812
      %1904 = vst.msk [vmem:[#allocation4 + $0xc0] sm:$0xff] %vm1897, %v1814
      %1905 = vst.msk [vmem:[#allocation4 + $0xe0] sm:$0xff] %vm1897, %v1816
      %1906 = vst.msk [vmem:[#allocation4 + $0x100] sm:$0xff] %vm1897, %v1818
      %1907 = vst.msk [vmem:[#allocation4 + $0x120] sm:$0xff] %vm1897, %v1820
      %1908 = vst.msk [vmem:[#allocation4 + $0x140] sm:$0xff] %vm1897, %v1822
      %1909 = vst.msk [vmem:[#allocation4 + $0x160] sm:$0xff] %vm1897, %v1824
      %1910 = vst.msk [vmem:[#allocation4 + $0x180] sm:$0xff] %vm1897, %v1826
      %1911 = vst.msk [vmem:[#allocation4 + $0x1a0] sm:$0xff] %vm1897, %v1828
      %1912 = vst.msk [vmem:[#allocation4 + $0x1c0] sm:$0xff] %vm1897, %v1830
      %1913 = vst.msk [vmem:[#allocation4 + $0x1e0] sm:$0xff] %vm1897, %v1832
      %1914 = vst.msk [vmem:[#allocation4 + $0x200] sm:$0xff] %vm1897, %v1834
      %1915 = vst.msk [vmem:[#allocation4 + $0x220] sm:$0xff] %vm1897, %v1836
      %1916 = vst.msk [vmem:[#allocation4 + $0x240] sm:$0xff] %vm1897, %v1838
      %1917 = vst.msk [vmem:[#allocation4 + $0x260] sm:$0xff] %vm1897, %v1840
      %1918 = vst.msk [vmem:[#allocation4 + $0x280] sm:$0xff] %vm1897, %v1842
      %1919 = vst.msk [vmem:[#allocation4 + $0x2a0] sm:$0xff] %vm1897, %v1844
      %1920 = vst.msk [vmem:[#allocation4 + $0x2c0] sm:$0xff] %vm1897, %v1846
      %1921 = vst.msk [vmem:[#allocation4 + $0x2e0] sm:$0xff] %vm1897, %v1848
      %1922 = vst.msk [vmem:[#allocation4 + $0x300] sm:$0xff] %vm1897, %v1850
      %1923 = vst.msk [vmem:[#allocation4 + $0x320] sm:$0xff] %vm1897, %v1852
      %1924 = vst.msk [vmem:[#allocation4 + $0x340] sm:$0xff] %vm1897, %v1854
      %1925 = vst.msk [vmem:[#allocation4 + $0x360] sm:$0xff] %vm1897, %v1856
      %1926 = vst.msk [vmem:[#allocation4 + $0x380] sm:$0xff] %vm1897, %v1858
      %1927 = vst.msk [vmem:[#allocation4 + $0x3a0] sm:$0xff] %vm1897, %v1860
      %1928 = vst.msk [vmem:[#allocation4 + $0x3c0] sm:$0xff] %vm1897, %v1862
      %1929 = vst.msk [vmem:[#allocation4 + $0x3e0] sm:$0xff] %vm1897, %v1864
      %v1930 = vld [vmem:[#allocation2 + $0x48] sm:$0xff]
      %v1931 = vld [vmem:[#allocation2 + $0x50] sm:$0xff]
      %v1932 = vld [vmem:[#allocation2 + $0x58] sm:$0xff]
      %v1933 = vld [vmem:[#allocation2 + $0x60] sm:$0xff]
      %v1934 = vld [vmem:[#allocation2 + $0x68] sm:$0xff]
      %v1935 = vld [vmem:[#allocation2 + $0x70] sm:$0xff]
      %v1936 = vld [vmem:[#allocation2 + $0x78] sm:$0xff]
      %v1937 = vld [vmem:[#allocation2 + $0x80] sm:$0xff]
      %v1938 = vld [vmem:[#allocation2 + $0x88] sm:$0xff]
      %v1939 = vld [vmem:[#allocation2 + $0x90] sm:$0xff]
      %v1940 = vld [vmem:[#allocation2 + $0x98] sm:$0xff]
      %v1941 = vld [vmem:[#allocation2 + $0xa0] sm:$0xff]
      %v1942 = vld [vmem:[#allocation2 + $0xa8] sm:$0xff]
      %v1943 = vld [vmem:[#allocation2 + $0xb0] sm:$0xff]
      %v1944 = vld [vmem:[#allocation2 + $0xb8] sm:$0xff]
      %v1945 = vld [vmem:[#allocation2 + $0xc0] sm:$0xff]
      %v1946 = vld [vmem:[#allocation2 + $0xc8] sm:$0xff]
      %v1947 = vld [vmem:[#allocation2 + $0xd0] sm:$0xff]
      %v1948 = vld [vmem:[#allocation2 + $0xd8] sm:$0xff]
      %v1949 = vld [vmem:[#allocation2 + $0xe0] sm:$0xff]
      %v1950 = vld [vmem:[#allocation2 + $0xe8] sm:$0xff]
      %v1951 = vld [vmem:[#allocation2 + $0xf0] sm:$0xff]
      %v1952 = vld [vmem:[#allocation2 + $0xf8] sm:$0xff]
      %v1953 = vld [vmem:[#allocation2 + $0x100] sm:$0xff]
      %v1954 = vld [vmem:[#allocation2 + $0x108] sm:$0xff]
      %v1955 = vld [vmem:[#allocation2 + $0x110] sm:$0xff]
      %v1956 = vld [vmem:[#allocation2 + $0x118] sm:$0xff]
      %v1957 = vld [vmem:[#allocation2 + $0x120] sm:$0xff]
      %v1958 = vld [vmem:[#allocation2 + $0x128] sm:$0xff]
      %v1959 = vld [vmem:[#allocation2 + $0x130] sm:$0xff]
      %v1960 = vld [vmem:[#allocation2 + $0x138] sm:$0xff]
      %v1961 = vld [vmem:[#allocation2 + $0x140] sm:$0xff]
      %1994 = vrot.lane.b32.xlu0 %v1930, 112
      %v1995 = vpop.permute.xlu0 %1994
      %1996 = vrot.lane.b32.xlu0 %v1931, 112
      %v1997 = vpop.permute.xlu0 %1996
      %1998 = vrot.lane.b32.xlu0 %v1932, 112
      %v1999 = vpop.permute.xlu0 %1998
      %2000 = vrot.lane.b32.xlu0 %v1933, 112
      %v2001 = vpop.permute.xlu0 %2000
      %2002 = vrot.lane.b32.xlu0 %v1934, 112
      %v2003 = vpop.permute.xlu0 %2002
      %2004 = vrot.lane.b32.xlu0 %v1935, 112
      %v2005 = vpop.permute.xlu0 %2004
      %2006 = vrot.lane.b32.xlu0 %v1936, 112
      %v2007 = vpop.permute.xlu0 %2006
      %2008 = vrot.lane.b32.xlu0 %v1937, 112
      %v2009 = vpop.permute.xlu0 %2008
      %2010 = vrot.lane.b32.xlu0 %v1938, 112
      %v2011 = vpop.permute.xlu0 %2010
      %2012 = vrot.lane.b32.xlu0 %v1939, 112
      %v2013 = vpop.permute.xlu0 %2012
      %2014 = vrot.lane.b32.xlu0 %v1940, 112
      %v2015 = vpop.permute.xlu0 %2014
      %2016 = vrot.lane.b32.xlu0 %v1941, 112
      %v2017 = vpop.permute.xlu0 %2016
      %2018 = vrot.lane.b32.xlu0 %v1942, 112
      %v2019 = vpop.permute.xlu0 %2018
      %2020 = vrot.lane.b32.xlu0 %v1943, 112
      %v2021 = vpop.permute.xlu0 %2020
      %2022 = vrot.lane.b32.xlu0 %v1944, 112
      %v2023 = vpop.permute.xlu0 %2022
      %2024 = vrot.lane.b32.xlu0 %v1945, 112
      %v2025 = vpop.permute.xlu0 %2024
      %2026 = vrot.lane.b32.xlu0 %v1946, 112
      %v2027 = vpop.permute.xlu0 %2026
      %2028 = vrot.lane.b32.xlu0 %v1947, 112
      %v2029 = vpop.permute.xlu0 %2028
      %2030 = vrot.lane.b32.xlu0 %v1948, 112
      %v2031 = vpop.permute.xlu0 %2030
      %2032 = vrot.lane.b32.xlu0 %v1949, 112
      %v2033 = vpop.permute.xlu0 %2032
      %2034 = vrot.lane.b32.xlu0 %v1950, 112
      %v2035 = vpop.permute.xlu0 %2034
      %2036 = vrot.lane.b32.xlu0 %v1951, 112
      %v2037 = vpop.permute.xlu0 %2036
      %2038 = vrot.lane.b32.xlu0 %v1952, 112
      %v2039 = vpop.permute.xlu0 %2038
      %2040 = vrot.lane.b32.xlu0 %v1953, 112
      %v2041 = vpop.permute.xlu0 %2040
      %2042 = vrot.lane.b32.xlu0 %v1954, 112
      %v2043 = vpop.permute.xlu0 %2042
      %2044 = vrot.lane.b32.xlu0 %v1955, 112
      %v2045 = vpop.permute.xlu0 %2044
      %2046 = vrot.lane.b32.xlu0 %v1956, 112
      %v2047 = vpop.permute.xlu0 %2046
      %2048 = vrot.lane.b32.xlu0 %v1957, 112
      %v2049 = vpop.permute.xlu0 %2048
      %2050 = vrot.lane.b32.xlu0 %v1958, 112
      %v2051 = vpop.permute.xlu0 %2050
      %2052 = vrot.lane.b32.xlu0 %v1959, 112
      %v2053 = vpop.permute.xlu0 %2052
      %2054 = vrot.lane.b32.xlu0 %v1960, 112
      %v2055 = vpop.permute.xlu0 %2054
      %2056 = vrot.lane.b32.xlu0 %v1961, 112
      %v2057 = vpop.permute.xlu0 %2056
      %vm2090 = vcmask 1048448
      %2091 = vst.msk [vmem:[#allocation4] sm:$0xff] %vm2090, %v1995
      %2092 = vst.msk [vmem:[#allocation4 + $0x20] sm:$0xff] %vm2090, %v1997
      %2093 = vst.msk [vmem:[#allocation4 + $0x40] sm:$0xff] %vm2090, %v1999
      %2094 = vst.msk [vmem:[#allocation4 + $0x60] sm:$0xff] %vm2090, %v2001
      %2095 = vst.msk [vmem:[#allocation4 + $0x80] sm:$0xff] %vm2090, %v2003
      %2096 = vst.msk [vmem:[#allocation4 + $0xa0] sm:$0xff] %vm2090, %v2005
      %2097 = vst.msk [vmem:[#allocation4 + $0xc0] sm:$0xff] %vm2090, %v2007
      %2098 = vst.msk [vmem:[#allocation4 + $0xe0] sm:$0xff] %vm2090, %v2009
      %2099 = vst.msk [vmem:[#allocation4 + $0x100] sm:$0xff] %vm2090, %v2011
      %2100 = vst.msk [vmem:[#allocation4 + $0x120] sm:$0xff] %vm2090, %v2013
      %2101 = vst.msk [vmem:[#allocation4 + $0x140] sm:$0xff] %vm2090, %v2015
      %2102 = vst.msk [vmem:[#allocation4 + $0x160] sm:$0xff] %vm2090, %v2017
      %2103 = vst.msk [vmem:[#allocation4 + $0x180] sm:$0xff] %vm2090, %v2019
      %2104 = vst.msk [vmem:[#allocation4 + $0x1a0] sm:$0xff] %vm2090, %v2021
      %2105 = vst.msk [vmem:[#allocation4 + $0x1c0] sm:$0xff] %vm2090, %v2023
      %2106 = vst.msk [vmem:[#allocation4 + $0x1e0] sm:$0xff] %vm2090, %v2025
      %2107 = vst.msk [vmem:[#allocation4 + $0x200] sm:$0xff] %vm2090, %v2027
      %2108 = vst.msk [vmem:[#allocation4 + $0x220] sm:$0xff] %vm2090, %v2029
      %2109 = vst.msk [vmem:[#allocation4 + $0x240] sm:$0xff] %vm2090, %v2031
      %2110 = vst.msk [vmem:[#allocation4 + $0x260] sm:$0xff] %vm2090, %v2033
      %2111 = vst.msk [vmem:[#allocation4 + $0x280] sm:$0xff] %vm2090, %v2035
      %2112 = vst.msk [vmem:[#allocation4 + $0x2a0] sm:$0xff] %vm2090, %v2037
      %2113 = vst.msk [vmem:[#allocation4 + $0x2c0] sm:$0xff] %vm2090, %v2039
      %2114 = vst.msk [vmem:[#allocation4 + $0x2e0] sm:$0xff] %vm2090, %v2041
      %2115 = vst.msk [vmem:[#allocation4 + $0x300] sm:$0xff] %vm2090, %v2043
      %2116 = vst.msk [vmem:[#allocation4 + $0x320] sm:$0xff] %vm2090, %v2045
      %2117 = vst.msk [vmem:[#allocation4 + $0x340] sm:$0xff] %vm2090, %v2047
      %2118 = vst.msk [vmem:[#allocation4 + $0x360] sm:$0xff] %vm2090, %v2049
      %2119 = vst.msk [vmem:[#allocation4 + $0x380] sm:$0xff] %vm2090, %v2051
      %2120 = vst.msk [vmem:[#allocation4 + $0x3a0] sm:$0xff] %vm2090, %v2053
      %2121 = vst.msk [vmem:[#allocation4 + $0x3c0] sm:$0xff] %vm2090, %v2055
      %2122 = vst.msk [vmem:[#allocation4 + $0x3e0] sm:$0xff] %vm2090, %v2057
      %v2123 = vld [vmem:[#allocation2 + $0x49] sm:$0xff]
      %v2124 = vld [vmem:[#allocation2 + $0x51] sm:$0xff]
      %v2125 = vld [vmem:[#allocation2 + $0x59] sm:$0xff]
      %v2126 = vld [vmem:[#allocation2 + $0x61] sm:$0xff]
      %v2127 = vld [vmem:[#allocation2 + $0x69] sm:$0xff]
      %v2128 = vld [vmem:[#allocation2 + $0x71] sm:$0xff]
      %v2129 = vld [vmem:[#allocation2 + $0x79] sm:$0xff]
      %v2130 = vld [vmem:[#allocation2 + $0x81] sm:$0xff]
      %v2131 = vld [vmem:[#allocation2 + $0x89] sm:$0xff]
      %v2132 = vld [vmem:[#allocation2 + $0x91] sm:$0xff]
      %v2133 = vld [vmem:[#allocation2 + $0x99] sm:$0xff]
      %v2134 = vld [vmem:[#allocation2 + $0xa1] sm:$0xff]
      %v2135 = vld [vmem:[#allocation2 + $0xa9] sm:$0xff]
      %v2136 = vld [vmem:[#allocation2 + $0xb1] sm:$0xff]
      %v2137 = vld [vmem:[#allocation2 + $0xb9] sm:$0xff]
      %v2138 = vld [vmem:[#allocation2 + $0xc1] sm:$0xff]
      %v2139 = vld [vmem:[#allocation2 + $0xc9] sm:$0xff]
      %v2140 = vld [vmem:[#allocation2 + $0xd1] sm:$0xff]
      %v2141 = vld [vmem:[#allocation2 + $0xd9] sm:$0xff]
      %v2142 = vld [vmem:[#allocation2 + $0xe1] sm:$0xff]
      %v2143 = vld [vmem:[#allocation2 + $0xe9] sm:$0xff]
      %v2144 = vld [vmem:[#allocation2 + $0xf1] sm:$0xff]
      %v2145 = vld [vmem:[#allocation2 + $0xf9] sm:$0xff]
      %v2146 = vld [vmem:[#allocation2 + $0x101] sm:$0xff]
      %v2147 = vld [vmem:[#allocation2 + $0x109] sm:$0xff]
      %v2148 = vld [vmem:[#allocation2 + $0x111] sm:$0xff]
      %v2149 = vld [vmem:[#allocation2 + $0x119] sm:$0xff]
      %v2150 = vld [vmem:[#allocation2 + $0x121] sm:$0xff]
      %v2151 = vld [vmem:[#allocation2 + $0x129] sm:$0xff]
      %v2152 = vld [vmem:[#allocation2 + $0x131] sm:$0xff]
      %v2153 = vld [vmem:[#allocation2 + $0x139] sm:$0xff]
      %v2154 = vld [vmem:[#allocation2 + $0x141] sm:$0xff]
      %v2155 = vsel %vm837, %v2123, 0.0
      %v2156 = vsel %vm838, %v2124, 0.0
      %v2157 = vsel %vm839, %v2125, 0.0
      %v2158 = vsel %vm840, %v2126, 0.0
      %v2159 = vsel %vm841, %v2127, 0.0
      %v2160 = vsel %vm842, %v2128, 0.0
      %v2161 = vsel %vm843, %v2129, 0.0
      %v2162 = vsel %vm844, %v2130, 0.0
      %v2163 = vsel %vm845, %v2131, 0.0
      %v2164 = vsel %vm846, %v2132, 0.0
      %v2165 = vsel %vm847, %v2133, 0.0
      %v2166 = vsel %vm848, %v2134, 0.0
      %v2167 = vsel %vm849, %v2135, 0.0
      %v2168 = vsel %vm850, %v2136, 0.0
      %v2169 = vsel %vm851, %v2137, 0.0
      %v2170 = vsel %vm852, %v2138, 0.0
      %v2171 = vsel %vm853, %v2139, 0.0
      %v2172 = vsel %vm854, %v2140, 0.0
      %v2173 = vsel %vm855, %v2141, 0.0
      %v2174 = vsel %vm856, %v2142, 0.0
      %v2175 = vsel %vm857, %v2143, 0.0
      %v2176 = vsel %vm858, %v2144, 0.0
      %v2177 = vsel %vm859, %v2145, 0.0
      %v2178 = vsel %vm860, %v2146, 0.0
      %v2179 = vsel %vm861, %v2147, 0.0
      %v2180 = vsel %vm862, %v2148, 0.0
      %v2181 = vsel %vm863, %v2149, 0.0
      %v2182 = vsel %vm864, %v2150, 0.0
      %v2183 = vsel %vm865, %v2151, 0.0
      %v2184 = vsel %vm866, %v2152, 0.0
      %v2185 = vsel %vm867, %v2153, 0.0
      %v2186 = vsel %vm868, %v2154, 0.0
      %2187 = vst.msk [vmem:[#allocation4 + $0x8] sm:$0xff] %vm365, %v2155
      %2188 = vst.msk [vmem:[#allocation4 + $0x28] sm:$0xff] %vm365, %v2156
      %2189 = vst.msk [vmem:[#allocation4 + $0x48] sm:$0xff] %vm365, %v2157
      %2190 = vst.msk [vmem:[#allocation4 + $0x68] sm:$0xff] %vm365, %v2158
      %2191 = vst.msk [vmem:[#allocation4 + $0x88] sm:$0xff] %vm365, %v2159
      %2192 = vst.msk [vmem:[#allocation4 + $0xa8] sm:$0xff] %vm365, %v2160
      %2193 = vst.msk [vmem:[#allocation4 + $0xc8] sm:$0xff] %vm365, %v2161
      %2194 = vst.msk [vmem:[#allocation4 + $0xe8] sm:$0xff] %vm365, %v2162
      %2195 = vst.msk [vmem:[#allocation4 + $0x108] sm:$0xff] %vm365, %v2163
      %2196 = vst.msk [vmem:[#allocation4 + $0x128] sm:$0xff] %vm365, %v2164
      %2197 = vst.msk [vmem:[#allocation4 + $0x148] sm:$0xff] %vm365, %v2165
      %2198 = vst.msk [vmem:[#allocation4 + $0x168] sm:$0xff] %vm365, %v2166
      %2199 = vst.msk [vmem:[#allocation4 + $0x188] sm:$0xff] %vm365, %v2167
      %2200 = vst.msk [vmem:[#allocation4 + $0x1a8] sm:$0xff] %vm365, %v2168
      %2201 = vst.msk [vmem:[#allocation4 + $0x1c8] sm:$0xff] %vm365, %v2169
      %2202 = vst.msk [vmem:[#allocation4 + $0x1e8] sm:$0xff] %vm365, %v2170
      %2203 = vst.msk [vmem:[#allocation4 + $0x208] sm:$0xff] %vm365, %v2171
      %2204 = vst.msk [vmem:[#allocation4 + $0x228] sm:$0xff] %vm365, %v2172
      %2205 = vst.msk [vmem:[#allocation4 + $0x248] sm:$0xff] %vm365, %v2173
      %2206 = vst.msk [vmem:[#allocation4 + $0x268] sm:$0xff] %vm365, %v2174
      %2207 = vst.msk [vmem:[#allocation4 + $0x288] sm:$0xff] %vm365, %v2175
      %2208 = vst.msk [vmem:[#allocation4 + $0x2a8] sm:$0xff] %vm365, %v2176
      %2209 = vst.msk [vmem:[#allocation4 + $0x2c8] sm:$0xff] %vm365, %v2177
      %2210 = vst.msk [vmem:[#allocation4 + $0x2e8] sm:$0xff] %vm365, %v2178
      %2211 = vst.msk [vmem:[#allocation4 + $0x308] sm:$0xff] %vm365, %v2179
      %2212 = vst.msk [vmem:[#allocation4 + $0x328] sm:$0xff] %vm365, %v2180
      %2213 = vst.msk [vmem:[#allocation4 + $0x348] sm:$0xff] %vm365, %v2181
      %2214 = vst.msk [vmem:[#allocation4 + $0x368] sm:$0xff] %vm365, %v2182
      %2215 = vst.msk [vmem:[#allocation4 + $0x388] sm:$0xff] %vm365, %v2183
      %2216 = vst.msk [vmem:[#allocation4 + $0x3a8] sm:$0xff] %vm365, %v2184
      %2217 = vst.msk [vmem:[#allocation4 + $0x3c8] sm:$0xff] %vm365, %v2185
      %2218 = vst.msk [vmem:[#allocation4 + $0x3e8] sm:$0xff] %vm365, %v2186
      %v2219 = vld [vmem:[#allocation2 + $0x16] sm:$0xff]
      %v2220 = vld [vmem:[#allocation2 + $0x1e] sm:$0xff]
      %v2221 = vld [vmem:[#allocation2 + $0x26] sm:$0xff]
      %v2222 = vld [vmem:[#allocation2 + $0x2e] sm:$0xff]
      %v2223 = vld [vmem:[#allocation2 + $0x36] sm:$0xff]
      %v2224 = vld [vmem:[#allocation2 + $0x3e] sm:$0xff]
      %v2225 = vld [vmem:[#allocation2 + $0x46] sm:$0xff]
      %v2226 = vld [vmem:[#allocation2 + $0x4e] sm:$0xff]
      %v2227 = vld [vmem:[#allocation2 + $0x56] sm:$0xff]
      %v2228 = vld [vmem:[#allocation2 + $0x5e] sm:$0xff]
      %v2229 = vld [vmem:[#allocation2 + $0x66] sm:$0xff]
      %v2230 = vld [vmem:[#allocation2 + $0x6e] sm:$0xff]
      %v2231 = vld [vmem:[#allocation2 + $0x76] sm:$0xff]
      %v2232 = vld [vmem:[#allocation2 + $0x7e] sm:$0xff]
      %v2233 = vld [vmem:[#allocation2 + $0x86] sm:$0xff]
      %v2234 = vld [vmem:[#allocation2 + $0x8e] sm:$0xff]
      %v2235 = vld [vmem:[#allocation2 + $0x96] sm:$0xff]
      %v2236 = vld [vmem:[#allocation2 + $0x9e] sm:$0xff]
      %v2237 = vld [vmem:[#allocation2 + $0xa6] sm:$0xff]
      %v2238 = vld [vmem:[#allocation2 + $0xae] sm:$0xff]
      %v2239 = vld [vmem:[#allocation2 + $0xb6] sm:$0xff]
      %v2240 = vld [vmem:[#allocation2 + $0xbe] sm:$0xff]
      %v2241 = vld [vmem:[#allocation2 + $0xc6] sm:$0xff]
      %v2242 = vld [vmem:[#allocation2 + $0xce] sm:$0xff]
      %v2243 = vld [vmem:[#allocation2 + $0xd6] sm:$0xff]
      %v2244 = vld [vmem:[#allocation2 + $0xde] sm:$0xff]
      %v2245 = vld [vmem:[#allocation2 + $0xe6] sm:$0xff]
      %v2246 = vld [vmem:[#allocation2 + $0xee] sm:$0xff]
      %v2247 = vld [vmem:[#allocation2 + $0xf6] sm:$0xff]
      %v2248 = vld [vmem:[#allocation2 + $0xfe] sm:$0xff]
      %v2249 = vld [vmem:[#allocation2 + $0x106] sm:$0xff]
      %v2250 = vld [vmem:[#allocation2 + $0x10e] sm:$0xff]
      %vm2251 = vcmp.ge.s32.totalorder %v484, 2
      %vm2252 = vcmp.ge.s32.totalorder %v485, 2
      %vm2253 = vcmp.ge.s32.totalorder %v486, 2
      %vm2254 = vcmp.ge.s32.totalorder %v487, 2
      %vm2255 = vcmp.ge.s32.totalorder %v488, 2
      %vm2256 = vcmp.ge.s32.totalorder %v489, 2
      %vm2257 = vcmp.ge.s32.totalorder %v490, 2
      %vm2258 = vcmp.ge.s32.totalorder %v491, 2
      %vm2259 = vcmp.ge.s32.totalorder %v492, 2
      %vm2260 = vcmp.ge.s32.totalorder %v493, 2
      %vm2261 = vcmp.ge.s32.totalorder %v494, 2
      %vm2262 = vcmp.ge.s32.totalorder %v495, 2
      %vm2263 = vcmp.ge.s32.totalorder %v496, 2
      %vm2264 = vcmp.ge.s32.totalorder %v497, 2
      %vm2265 = vcmp.ge.s32.totalorder %v498, 2
      %vm2266 = vcmp.ge.s32.totalorder %v499, 2
      %vm2267 = vcmp.ge.s32.totalorder %v500, 2
      %vm2268 = vcmp.ge.s32.totalorder %v501, 2
      %vm2269 = vcmp.ge.s32.totalorder %v502, 2
      %vm2270 = vcmp.ge.s32.totalorder %v503, 2
      %vm2271 = vcmp.ge.s32.totalorder %v504, 2
      %vm2272 = vcmp.ge.s32.totalorder %v505, 2
      %vm2273 = vcmp.ge.s32.totalorder %v506, 2
      %vm2274 = vcmp.ge.s32.totalorder %v507, 2
      %vm2275 = vcmp.ge.s32.totalorder %v508, 2
      %vm2276 = vcmp.ge.s32.totalorder %v509, 2
      %vm2277 = vcmp.ge.s32.totalorder %v510, 2
      %vm2278 = vcmp.ge.s32.totalorder %v511, 2
      %vm2279 = vcmp.ge.s32.totalorder %v512, 2
      %vm2280 = vcmp.ge.s32.totalorder %v513, 2
      %vm2281 = vcmp.ge.s32.totalorder %v514, 2
      %vm2282 = vcmp.ge.s32.totalorder %v515, 2
      %v2283 = vsel %vm2251, %v2219, 0.0
      %v2284 = vsel %vm2252, %v2220, 0.0
      %v2285 = vsel %vm2253, %v2221, 0.0
      %v2286 = vsel %vm2254, %v2222, 0.0
      %v2287 = vsel %vm2255, %v2223, 0.0
      %v2288 = vsel %vm2256, %v2224, 0.0
      %v2289 = vsel %vm2257, %v2225, 0.0
      %v2290 = vsel %vm2258, %v2226, 0.0
      %v2291 = vsel %vm2259, %v2227, 0.0
      %v2292 = vsel %vm2260, %v2228, 0.0
      %v2293 = vsel %vm2261, %v2229, 0.0
      %v2294 = vsel %vm2262, %v2230, 0.0
      %v2295 = vsel %vm2263, %v2231, 0.0
      %v2296 = vsel %vm2264, %v2232, 0.0
      %v2297 = vsel %vm2265, %v2233, 0.0
      %v2298 = vsel %vm2266, %v2234, 0.0
      %v2299 = vsel %vm2267, %v2235, 0.0
      %v2300 = vsel %vm2268, %v2236, 0.0
      %v2301 = vsel %vm2269, %v2237, 0.0
      %v2302 = vsel %vm2270, %v2238, 0.0
      %v2303 = vsel %vm2271, %v2239, 0.0
      %v2304 = vsel %vm2272, %v2240, 0.0
      %v2305 = vsel %vm2273, %v2241, 0.0
      %v2306 = vsel %vm2274, %v2242, 0.0
      %v2307 = vsel %vm2275, %v2243, 0.0
      %v2308 = vsel %vm2276, %v2244, 0.0
      %v2309 = vsel %vm2277, %v2245, 0.0
      %v2310 = vsel %vm2278, %v2246, 0.0
      %v2311 = vsel %vm2279, %v2247, 0.0
      %v2312 = vsel %vm2280, %v2248, 0.0
      %v2313 = vsel %vm2281, %v2249, 0.0
      %v2314 = vsel %vm2282, %v2250, 0.0
      %2347 = vrot.lane.b32.xlu0 %v2283, 16
      %v2348 = vpop.permute.xlu0 %2347
      %2349 = vrot.lane.b32.xlu0 %v2284, 16
      %v2350 = vpop.permute.xlu0 %2349
      %2351 = vrot.lane.b32.xlu0 %v2285, 16
      %v2352 = vpop.permute.xlu0 %2351
      %2353 = vrot.lane.b32.xlu0 %v2286, 16
      %v2354 = vpop.permute.xlu0 %2353
      %2355 = vrot.lane.b32.xlu0 %v2287, 16
      %v2356 = vpop.permute.xlu0 %2355
      %2357 = vrot.lane.b32.xlu0 %v2288, 16
      %v2358 = vpop.permute.xlu0 %2357
      %2359 = vrot.lane.b32.xlu0 %v2289, 16
      %v2360 = vpop.permute.xlu0 %2359
      %2361 = vrot.lane.b32.xlu0 %v2290, 16
      %v2362 = vpop.permute.xlu0 %2361
      %2363 = vrot.lane.b32.xlu0 %v2291, 16
      %v2364 = vpop.permute.xlu0 %2363
      %2365 = vrot.lane.b32.xlu0 %v2292, 16
      %v2366 = vpop.permute.xlu0 %2365
      %2367 = vrot.lane.b32.xlu0 %v2293, 16
      %v2368 = vpop.permute.xlu0 %2367
      %2369 = vrot.lane.b32.xlu0 %v2294, 16
      %v2370 = vpop.permute.xlu0 %2369
      %2371 = vrot.lane.b32.xlu0 %v2295, 16
      %v2372 = vpop.permute.xlu0 %2371
      %2373 = vrot.lane.b32.xlu0 %v2296, 16
      %v2374 = vpop.permute.xlu0 %2373
      %2375 = vrot.lane.b32.xlu0 %v2297, 16
      %v2376 = vpop.permute.xlu0 %2375
      %2377 = vrot.lane.b32.xlu0 %v2298, 16
      %v2378 = vpop.permute.xlu0 %2377
      %2379 = vrot.lane.b32.xlu0 %v2299, 16
      %v2380 = vpop.permute.xlu0 %2379
      %2381 = vrot.lane.b32.xlu0 %v2300, 16
      %v2382 = vpop.permute.xlu0 %2381
      %2383 = vrot.lane.b32.xlu0 %v2301, 16
      %v2384 = vpop.permute.xlu0 %2383
      %2385 = vrot.lane.b32.xlu0 %v2302, 16
      %v2386 = vpop.permute.xlu0 %2385
      %2387 = vrot.lane.b32.xlu0 %v2303, 16
      %v2388 = vpop.permute.xlu0 %2387
      %2389 = vrot.lane.b32.xlu0 %v2304, 16
      %v2390 = vpop.permute.xlu0 %2389
      %2391 = vrot.lane.b32.xlu0 %v2305, 16
      %v2392 = vpop.permute.xlu0 %2391
      %2393 = vrot.lane.b32.xlu0 %v2306, 16
      %v2394 = vpop.permute.xlu0 %2393
      %2395 = vrot.lane.b32.xlu0 %v2307, 16
      %v2396 = vpop.permute.xlu0 %2395
      %2397 = vrot.lane.b32.xlu0 %v2308, 16
      %v2398 = vpop.permute.xlu0 %2397
      %2399 = vrot.lane.b32.xlu0 %v2309, 16
      %v2400 = vpop.permute.xlu0 %2399
      %2401 = vrot.lane.b32.xlu0 %v2310, 16
      %v2402 = vpop.permute.xlu0 %2401
      %2403 = vrot.lane.b32.xlu0 %v2311, 16
      %v2404 = vpop.permute.xlu0 %2403
      %2405 = vrot.lane.b32.xlu0 %v2312, 16
      %v2406 = vpop.permute.xlu0 %2405
      %2407 = vrot.lane.b32.xlu0 %v2313, 16
      %v2408 = vpop.permute.xlu0 %2407
      %2409 = vrot.lane.b32.xlu0 %v2314, 16
      %v2410 = vpop.permute.xlu0 %2409
      %2443 = vst.msk [vmem:[#allocation4 + $0x8] sm:$0xff] %vm772, %v2348
      %2444 = vst.msk [vmem:[#allocation4 + $0x28] sm:$0xff] %vm772, %v2350
      %2445 = vst.msk [vmem:[#allocation4 + $0x48] sm:$0xff] %vm772, %v2352
      %2446 = vst.msk [vmem:[#allocation4 + $0x68] sm:$0xff] %vm772, %v2354
      %2447 = vst.msk [vmem:[#allocation4 + $0x88] sm:$0xff] %vm772, %v2356
      %2448 = vst.msk [vmem:[#allocation4 + $0xa8] sm:$0xff] %vm772, %v2358
      %2449 = vst.msk [vmem:[#allocation4 + $0xc8] sm:$0xff] %vm772, %v2360
      %2450 = vst.msk [vmem:[#allocation4 + $0xe8] sm:$0xff] %vm772, %v2362
      %2451 = vst.msk [vmem:[#allocation4 + $0x108] sm:$0xff] %vm772, %v2364
      %2452 = vst.msk [vmem:[#allocation4 + $0x128] sm:$0xff] %vm772, %v2366
      %2453 = vst.msk [vmem:[#allocation4 + $0x148] sm:$0xff] %vm772, %v2368
      %2454 = vst.msk [vmem:[#allocation4 + $0x168] sm:$0xff] %vm772, %v2370
      %2455 = vst.msk [vmem:[#allocation4 + $0x188] sm:$0xff] %vm772, %v2372
      %2456 = vst.msk [vmem:[#allocation4 + $0x1a8] sm:$0xff] %vm772, %v2374
      %2457 = vst.msk [vmem:[#allocation4 + $0x1c8] sm:$0xff] %vm772, %v2376
      %2458 = vst.msk [vmem:[#allocation4 + $0x1e8] sm:$0xff] %vm772, %v2378
      %2459 = vst.msk [vmem:[#allocation4 + $0x208] sm:$0xff] %vm772, %v2380
      %2460 = vst.msk [vmem:[#allocation4 + $0x228] sm:$0xff] %vm772, %v2382
      %2461 = vst.msk [vmem:[#allocation4 + $0x248] sm:$0xff] %vm772, %v2384
      %2462 = vst.msk [vmem:[#allocation4 + $0x268] sm:$0xff] %vm772, %v2386
      %2463 = vst.msk [vmem:[#allocation4 + $0x288] sm:$0xff] %vm772, %v2388
      %2464 = vst.msk [vmem:[#allocation4 + $0x2a8] sm:$0xff] %vm772, %v2390
      %2465 = vst.msk [vmem:[#allocation4 + $0x2c8] sm:$0xff] %vm772, %v2392
      %2466 = vst.msk [vmem:[#allocation4 + $0x2e8] sm:$0xff] %vm772, %v2394
      %2467 = vst.msk [vmem:[#allocation4 + $0x308] sm:$0xff] %vm772, %v2396
      %2468 = vst.msk [vmem:[#allocation4 + $0x328] sm:$0xff] %vm772, %v2398
      %2469 = vst.msk [vmem:[#allocation4 + $0x348] sm:$0xff] %vm772, %v2400
      %2470 = vst.msk [vmem:[#allocation4 + $0x368] sm:$0xff] %vm772, %v2402
      %2471 = vst.msk [vmem:[#allocation4 + $0x388] sm:$0xff] %vm772, %v2404
      %2472 = vst.msk [vmem:[#allocation4 + $0x3a8] sm:$0xff] %vm772, %v2406
      %2473 = vst.msk [vmem:[#allocation4 + $0x3c8] sm:$0xff] %vm772, %v2408
      %2474 = vst.msk [vmem:[#allocation4 + $0x3e8] sm:$0xff] %vm772, %v2410
      %v2475 = vld [vmem:[#allocation2 + $0x18] sm:$0xff]
      %v2476 = vld [vmem:[#allocation2 + $0x20] sm:$0xff]
      %v2477 = vld [vmem:[#allocation2 + $0x28] sm:$0xff]
      %v2478 = vld [vmem:[#allocation2 + $0x30] sm:$0xff]
      %v2479 = vld [vmem:[#allocation2 + $0x38] sm:$0xff]
      %v2480 = vld [vmem:[#allocation2 + $0x40] sm:$0xff]
      %v2481 = vld [vmem:[#allocation2 + $0x48] sm:$0xff]
      %v2482 = vld [vmem:[#allocation2 + $0x50] sm:$0xff]
      %v2483 = vld [vmem:[#allocation2 + $0x58] sm:$0xff]
      %v2484 = vld [vmem:[#allocation2 + $0x60] sm:$0xff]
      %v2485 = vld [vmem:[#allocation2 + $0x68] sm:$0xff]
      %v2486 = vld [vmem:[#allocation2 + $0x70] sm:$0xff]
      %v2487 = vld [vmem:[#allocation2 + $0x78] sm:$0xff]
      %v2488 = vld [vmem:[#allocation2 + $0x80] sm:$0xff]
      %v2489 = vld [vmem:[#allocation2 + $0x88] sm:$0xff]
      %v2490 = vld [vmem:[#allocation2 + $0x90] sm:$0xff]
      %v2491 = vld [vmem:[#allocation2 + $0x98] sm:$0xff]
      %v2492 = vld [vmem:[#allocation2 + $0xa0] sm:$0xff]
      %v2493 = vld [vmem:[#allocation2 + $0xa8] sm:$0xff]
      %v2494 = vld [vmem:[#allocation2 + $0xb0] sm:$0xff]
      %v2495 = vld [vmem:[#allocation2 + $0xb8] sm:$0xff]
      %v2496 = vld [vmem:[#allocation2 + $0xc0] sm:$0xff]
      %v2497 = vld [vmem:[#allocation2 + $0xc8] sm:$0xff]
      %v2498 = vld [vmem:[#allocation2 + $0xd0] sm:$0xff]
      %v2499 = vld [vmem:[#allocation2 + $0xd8] sm:$0xff]
      %v2500 = vld [vmem:[#allocation2 + $0xe0] sm:$0xff]
      %v2501 = vld [vmem:[#allocation2 + $0xe8] sm:$0xff]
      %v2502 = vld [vmem:[#allocation2 + $0xf0] sm:$0xff]
      %v2503 = vld [vmem:[#allocation2 + $0xf8] sm:$0xff]
      %v2504 = vld [vmem:[#allocation2 + $0x100] sm:$0xff]
      %v2505 = vld [vmem:[#allocation2 + $0x108] sm:$0xff]
      %v2506 = vld [vmem:[#allocation2 + $0x110] sm:$0xff]
      %2539 = vrot.lane.b32.xlu0 %v2475, 32
      %v2540 = vpop.permute.xlu0 %2539
      %2541 = vrot.lane.b32.xlu0 %v2476, 32
      %v2542 = vpop.permute.xlu0 %2541
      %2543 = vrot.lane.b32.xlu0 %v2477, 32
      %v2544 = vpop.permute.xlu0 %2543
      %2545 = vrot.lane.b32.xlu0 %v2478, 32
      %v2546 = vpop.permute.xlu0 %2545
      %2547 = vrot.lane.b32.xlu0 %v2479, 32
      %v2548 = vpop.permute.xlu0 %2547
      %2549 = vrot.lane.b32.xlu0 %v2480, 32
      %v2550 = vpop.permute.xlu0 %2549
      %2551 = vrot.lane.b32.xlu0 %v2481, 32
      %v2552 = vpop.permute.xlu0 %2551
      %2553 = vrot.lane.b32.xlu0 %v2482, 32
      %v2554 = vpop.permute.xlu0 %2553
      %2555 = vrot.lane.b32.xlu0 %v2483, 32
      %v2556 = vpop.permute.xlu0 %2555
      %2557 = vrot.lane.b32.xlu0 %v2484, 32
      %v2558 = vpop.permute.xlu0 %2557
      %2559 = vrot.lane.b32.xlu0 %v2485, 32
      %v2560 = vpop.permute.xlu0 %2559
      %2561 = vrot.lane.b32.xlu0 %v2486, 32
      %v2562 = vpop.permute.xlu0 %2561
      %2563 = vrot.lane.b32.xlu0 %v2487, 32
      %v2564 = vpop.permute.xlu0 %2563
      %2565 = vrot.lane.b32.xlu0 %v2488, 32
      %v2566 = vpop.permute.xlu0 %2565
      %2567 = vrot.lane.b32.xlu0 %v2489, 32
      %v2568 = vpop.permute.xlu0 %2567
      %2569 = vrot.lane.b32.xlu0 %v2490, 32
      %v2570 = vpop.permute.xlu0 %2569
      %2571 = vrot.lane.b32.xlu0 %v2491, 32
      %v2572 = vpop.permute.xlu0 %2571
      %2573 = vrot.lane.b32.xlu0 %v2492, 32
      %v2574 = vpop.permute.xlu0 %2573
      %2575 = vrot.lane.b32.xlu0 %v2493, 32
      %v2576 = vpop.permute.xlu0 %2575
      %2577 = vrot.lane.b32.xlu0 %v2494, 32
      %v2578 = vpop.permute.xlu0 %2577
      %2579 = vrot.lane.b32.xlu0 %v2495, 32
      %v2580 = vpop.permute.xlu0 %2579
      %2581 = vrot.lane.b32.xlu0 %v2496, 32
      %v2582 = vpop.permute.xlu0 %2581
      %2583 = vrot.lane.b32.xlu0 %v2497, 32
      %v2584 = vpop.permute.xlu0 %2583
      %2585 = vrot.lane.b32.xlu0 %v2498, 32
      %v2586 = vpop.permute.xlu0 %2585
      %2587 = vrot.lane.b32.xlu0 %v2499, 32
      %v2588 = vpop.permute.xlu0 %2587
      %2589 = vrot.lane.b32.xlu0 %v2500, 32
      %v2590 = vpop.permute.xlu0 %2589
      %2591 = vrot.lane.b32.xlu0 %v2501, 32
      %v2592 = vpop.permute.xlu0 %2591
      %2593 = vrot.lane.b32.xlu0 %v2502, 32
      %v2594 = vpop.permute.xlu0 %2593
      %2595 = vrot.lane.b32.xlu0 %v2503, 32
      %v2596 = vpop.permute.xlu0 %2595
      %2597 = vrot.lane.b32.xlu0 %v2504, 32
      %v2598 = vpop.permute.xlu0 %2597
      %2599 = vrot.lane.b32.xlu0 %v2505, 32
      %v2600 = vpop.permute.xlu0 %2599
      %2601 = vrot.lane.b32.xlu0 %v2506, 32
      %v2602 = vpop.permute.xlu0 %2601
      %2635 = vst.msk [vmem:[#allocation4 + $0x8] sm:$0xff] %vm1029, %v2540
      %2636 = vst.msk [vmem:[#allocation4 + $0x28] sm:$0xff] %vm1029, %v2542
      %2637 = vst.msk [vmem:[#allocation4 + $0x48] sm:$0xff] %vm1029, %v2544
      %2638 = vst.msk [vmem:[#allocation4 + $0x68] sm:$0xff] %vm1029, %v2546
      %2639 = vst.msk [vmem:[#allocation4 + $0x88] sm:$0xff] %vm1029, %v2548
      %2640 = vst.msk [vmem:[#allocation4 + $0xa8] sm:$0xff] %vm1029, %v2550
      %2641 = vst.msk [vmem:[#allocation4 + $0xc8] sm:$0xff] %vm1029, %v2552
      %2642 = vst.msk [vmem:[#allocation4 + $0xe8] sm:$0xff] %vm1029, %v2554
      %2643 = vst.msk [vmem:[#allocation4 + $0x108] sm:$0xff] %vm1029, %v2556
      %2644 = vst.msk [vmem:[#allocation4 + $0x128] sm:$0xff] %vm1029, %v2558
      %2645 = vst.msk [vmem:[#allocation4 + $0x148] sm:$0xff] %vm1029, %v2560
      %2646 = vst.msk [vmem:[#allocation4 + $0x168] sm:$0xff] %vm1029, %v2562
      %2647 = vst.msk [vmem:[#allocation4 + $0x188] sm:$0xff] %vm1029, %v2564
      %2648 = vst.msk [vmem:[#allocation4 + $0x1a8] sm:$0xff] %vm1029, %v2566
      %2649 = vst.msk [vmem:[#allocation4 + $0x1c8] sm:$0xff] %vm1029, %v2568
      %2650 = vst.msk [vmem:[#allocation4 + $0x1e8] sm:$0xff] %vm1029, %v2570
      %2651 = vst.msk [vmem:[#allocation4 + $0x208] sm:$0xff] %vm1029, %v2572
      %2652 = vst.msk [vmem:[#allocation4 + $0x228] sm:$0xff] %vm1029, %v2574
      %2653 = vst.msk [vmem:[#allocation4 + $0x248] sm:$0xff] %vm1029, %v2576
      %2654 = vst.msk [vmem:[#allocation4 + $0x268] sm:$0xff] %vm1029, %v2578
      %2655 = vst.msk [vmem:[#allocation4 + $0x288] sm:$0xff] %vm1029, %v2580
      %2656 = vst.msk [vmem:[#allocation4 + $0x2a8] sm:$0xff] %vm1029, %v2582
      %2657 = vst.msk [vmem:[#allocation4 + $0x2c8] sm:$0xff] %vm1029, %v2584
      %2658 = vst.msk [vmem:[#allocation4 + $0x2e8] sm:$0xff] %vm1029, %v2586
      %2659 = vst.msk [vmem:[#allocation4 + $0x308] sm:$0xff] %vm1029, %v2588
      %2660 = vst.msk [vmem:[#allocation4 + $0x328] sm:$0xff] %vm1029, %v2590
      %2661 = vst.msk [vmem:[#allocation4 + $0x348] sm:$0xff] %vm1029, %v2592
      %2662 = vst.msk [vmem:[#allocation4 + $0x368] sm:$0xff] %vm1029, %v2594
      %2663 = vst.msk [vmem:[#allocation4 + $0x388] sm:$0xff] %vm1029, %v2596
      %2664 = vst.msk [vmem:[#allocation4 + $0x3a8] sm:$0xff] %vm1029, %v2598
      %2665 = vst.msk [vmem:[#allocation4 + $0x3c8] sm:$0xff] %vm1029, %v2600
      %2666 = vst.msk [vmem:[#allocation4 + $0x3e8] sm:$0xff] %vm1029, %v2602
      %v2667 = vld [vmem:[#allocation2 + $0x1a] sm:$0xff]
      %v2668 = vld [vmem:[#allocation2 + $0x22] sm:$0xff]
      %v2669 = vld [vmem:[#allocation2 + $0x2a] sm:$0xff]
      %v2670 = vld [vmem:[#allocation2 + $0x32] sm:$0xff]
      %v2671 = vld [vmem:[#allocation2 + $0x3a] sm:$0xff]
      %v2672 = vld [vmem:[#allocation2 + $0x42] sm:$0xff]
      %v2673 = vld [vmem:[#allocation2 + $0x4a] sm:$0xff]
      %v2674 = vld [vmem:[#allocation2 + $0x52] sm:$0xff]
      %v2675 = vld [vmem:[#allocation2 + $0x5a] sm:$0xff]
      %v2676 = vld [vmem:[#allocation2 + $0x62] sm:$0xff]
      %v2677 = vld [vmem:[#allocation2 + $0x6a] sm:$0xff]
      %v2678 = vld [vmem:[#allocation2 + $0x72] sm:$0xff]
      %v2679 = vld [vmem:[#allocation2 + $0x7a] sm:$0xff]
      %v2680 = vld [vmem:[#allocation2 + $0x82] sm:$0xff]
      %v2681 = vld [vmem:[#allocation2 + $0x8a] sm:$0xff]
      %v2682 = vld [vmem:[#allocation2 + $0x92] sm:$0xff]
      %v2683 = vld [vmem:[#allocation2 + $0x9a] sm:$0xff]
      %v2684 = vld [vmem:[#allocation2 + $0xa2] sm:$0xff]
      %v2685 = vld [vmem:[#allocation2 + $0xaa] sm:$0xff]
      %v2686 = vld [vmem:[#allocation2 + $0xb2] sm:$0xff]
      %v2687 = vld [vmem:[#allocation2 + $0xba] sm:$0xff]
      %v2688 = vld [vmem:[#allocation2 + $0xc2] sm:$0xff]
      %v2689 = vld [vmem:[#allocation2 + $0xca] sm:$0xff]
      %v2690 = vld [vmem:[#allocation2 + $0xd2] sm:$0xff]
      %v2691 = vld [vmem:[#allocation2 + $0xda] sm:$0xff]
      %v2692 = vld [vmem:[#allocation2 + $0xe2] sm:$0xff]
      %v2693 = vld [vmem:[#allocation2 + $0xea] sm:$0xff]
      %v2694 = vld [vmem:[#allocation2 + $0xf2] sm:$0xff]
      %v2695 = vld [vmem:[#allocation2 + $0xfa] sm:$0xff]
      %v2696 = vld [vmem:[#allocation2 + $0x102] sm:$0xff]
      %v2697 = vld [vmem:[#allocation2 + $0x10a] sm:$0xff]
      %v2698 = vld [vmem:[#allocation2 + $0x112] sm:$0xff]
      %vm2699 = vcmp.lt.s32.totalorder %v484, 14
      %vm2700 = vcmp.lt.s32.totalorder %v485, 14
      %vm2701 = vcmp.lt.s32.totalorder %v486, 14
      %vm2702 = vcmp.lt.s32.totalorder %v487, 14
      %vm2703 = vcmp.lt.s32.totalorder %v488, 14
      %vm2704 = vcmp.lt.s32.totalorder %v489, 14
      %vm2705 = vcmp.lt.s32.totalorder %v490, 14
      %vm2706 = vcmp.lt.s32.totalorder %v491, 14
      %vm2707 = vcmp.lt.s32.totalorder %v492, 14
      %vm2708 = vcmp.lt.s32.totalorder %v493, 14
      %vm2709 = vcmp.lt.s32.totalorder %v494, 14
      %vm2710 = vcmp.lt.s32.totalorder %v495, 14
      %vm2711 = vcmp.lt.s32.totalorder %v496, 14
      %vm2712 = vcmp.lt.s32.totalorder %v497, 14
      %vm2713 = vcmp.lt.s32.totalorder %v498, 14
      %vm2714 = vcmp.lt.s32.totalorder %v499, 14
      %vm2715 = vcmp.lt.s32.totalorder %v500, 14
      %vm2716 = vcmp.lt.s32.totalorder %v501, 14
      %vm2717 = vcmp.lt.s32.totalorder %v502, 14
      %vm2718 = vcmp.lt.s32.totalorder %v503, 14
      %vm2719 = vcmp.lt.s32.totalorder %v504, 14
      %vm2720 = vcmp.lt.s32.totalorder %v505, 14
      %vm2721 = vcmp.lt.s32.totalorder %v506, 14
      %vm2722 = vcmp.lt.s32.totalorder %v507, 14
      %vm2723 = vcmp.lt.s32.totalorder %v508, 14
      %vm2724 = vcmp.lt.s32.totalorder %v509, 14
      %vm2725 = vcmp.lt.s32.totalorder %v510, 14
      %vm2726 = vcmp.lt.s32.totalorder %v511, 14
      %vm2727 = vcmp.lt.s32.totalorder %v512, 14
      %vm2728 = vcmp.lt.s32.totalorder %v513, 14
      %vm2729 = vcmp.lt.s32.totalorder %v514, 14
      %vm2730 = vcmp.lt.s32.totalorder %v515, 14
      %v2731 = vsel %vm2699, %v2667, 0.0
      %v2732 = vsel %vm2700, %v2668, 0.0
      %v2733 = vsel %vm2701, %v2669, 0.0
      %v2734 = vsel %vm2702, %v2670, 0.0
      %v2735 = vsel %vm2703, %v2671, 0.0
      %v2736 = vsel %vm2704, %v2672, 0.0
      %v2737 = vsel %vm2705, %v2673, 0.0
      %v2738 = vsel %vm2706, %v2674, 0.0
      %v2739 = vsel %vm2707, %v2675, 0.0
      %v2740 = vsel %vm2708, %v2676, 0.0
      %v2741 = vsel %vm2709, %v2677, 0.0
      %v2742 = vsel %vm2710, %v2678, 0.0
      %v2743 = vsel %vm2711, %v2679, 0.0
      %v2744 = vsel %vm2712, %v2680, 0.0
      %v2745 = vsel %vm2713, %v2681, 0.0
      %v2746 = vsel %vm2714, %v2682, 0.0
      %v2747 = vsel %vm2715, %v2683, 0.0
      %v2748 = vsel %vm2716, %v2684, 0.0
      %v2749 = vsel %vm2717, %v2685, 0.0
      %v2750 = vsel %vm2718, %v2686, 0.0
      %v2751 = vsel %vm2719, %v2687, 0.0
      %v2752 = vsel %vm2720, %v2688, 0.0
      %v2753 = vsel %vm2721, %v2689, 0.0
      %v2754 = vsel %vm2722, %v2690, 0.0
      %v2755 = vsel %vm2723, %v2691, 0.0
      %v2756 = vsel %vm2724, %v2692, 0.0
      %v2757 = vsel %vm2725, %v2693, 0.0
      %v2758 = vsel %vm2726, %v2694, 0.0
      %v2759 = vsel %vm2727, %v2695, 0.0
      %v2760 = vsel %vm2728, %v2696, 0.0
      %v2761 = vsel %vm2729, %v2697, 0.0
      %v2762 = vsel %vm2730, %v2698, 0.0
      %2795 = vrot.lane.b32.xlu0 %v2731, 48
      %v2796 = vpop.permute.xlu0 %2795
      %2797 = vrot.lane.b32.xlu0 %v2732, 48
      %v2798 = vpop.permute.xlu0 %2797
      %2799 = vrot.lane.b32.xlu0 %v2733, 48
      %v2800 = vpop.permute.xlu0 %2799
      %2801 = vrot.lane.b32.xlu0 %v2734, 48
      %v2802 = vpop.permute.xlu0 %2801
      %2803 = vrot.lane.b32.xlu0 %v2735, 48
      %v2804 = vpop.permute.xlu0 %2803
      %2805 = vrot.lane.b32.xlu0 %v2736, 48
      %v2806 = vpop.permute.xlu0 %2805
      %2807 = vrot.lane.b32.xlu0 %v2737, 48
      %v2808 = vpop.permute.xlu0 %2807
      %2809 = vrot.lane.b32.xlu0 %v2738, 48
      %v2810 = vpop.permute.xlu0 %2809
      %2811 = vrot.lane.b32.xlu0 %v2739, 48
      %v2812 = vpop.permute.xlu0 %2811
      %2813 = vrot.lane.b32.xlu0 %v2740, 48
      %v2814 = vpop.permute.xlu0 %2813
      %2815 = vrot.lane.b32.xlu0 %v2741, 48
      %v2816 = vpop.permute.xlu0 %2815
      %2817 = vrot.lane.b32.xlu0 %v2742, 48
      %v2818 = vpop.permute.xlu0 %2817
      %2819 = vrot.lane.b32.xlu0 %v2743, 48
      %v2820 = vpop.permute.xlu0 %2819
      %2821 = vrot.lane.b32.xlu0 %v2744, 48
      %v2822 = vpop.permute.xlu0 %2821
      %2823 = vrot.lane.b32.xlu0 %v2745, 48
      %v2824 = vpop.permute.xlu0 %2823
      %2825 = vrot.lane.b32.xlu0 %v2746, 48
      %v2826 = vpop.permute.xlu0 %2825
      %2827 = vrot.lane.b32.xlu0 %v2747, 48
      %v2828 = vpop.permute.xlu0 %2827
      %2829 = vrot.lane.b32.xlu0 %v2748, 48
      %v2830 = vpop.permute.xlu0 %2829
      %2831 = vrot.lane.b32.xlu0 %v2749, 48
      %v2832 = vpop.permute.xlu0 %2831
      %2833 = vrot.lane.b32.xlu0 %v2750, 48
      %v2834 = vpop.permute.xlu0 %2833
      %2835 = vrot.lane.b32.xlu0 %v2751, 48
      %v2836 = vpop.permute.xlu0 %2835
      %2837 = vrot.lane.b32.xlu0 %v2752, 48
      %v2838 = vpop.permute.xlu0 %2837
      %2839 = vrot.lane.b32.xlu0 %v2753, 48
      %v2840 = vpop.permute.xlu0 %2839
      %2841 = vrot.lane.b32.xlu0 %v2754, 48
      %v2842 = vpop.permute.xlu0 %2841
      %2843 = vrot.lane.b32.xlu0 %v2755, 48
      %v2844 = vpop.permute.xlu0 %2843
      %2845 = vrot.lane.b32.xlu0 %v2756, 48
      %v2846 = vpop.permute.xlu0 %2845
      %2847 = vrot.lane.b32.xlu0 %v2757, 48
      %v2848 = vpop.permute.xlu0 %2847
      %2849 = vrot.lane.b32.xlu0 %v2758, 48
      %v2850 = vpop.permute.xlu0 %2849
      %2851 = vrot.lane.b32.xlu0 %v2759, 48
      %v2852 = vpop.permute.xlu0 %2851
      %2853 = vrot.lane.b32.xlu0 %v2760, 48
      %v2854 = vpop.permute.xlu0 %2853
      %2855 = vrot.lane.b32.xlu0 %v2761, 48
      %v2856 = vpop.permute.xlu0 %2855
      %2857 = vrot.lane.b32.xlu0 %v2762, 48
      %v2858 = vpop.permute.xlu0 %2857
      %2891 = vst.msk [vmem:[#allocation4 + $0x8] sm:$0xff] %vm1254, %v2796
      %2892 = vst.msk [vmem:[#allocation4 + $0x28] sm:$0xff] %vm1254, %v2798
      %2893 = vst.msk [vmem:[#allocation4 + $0x48] sm:$0xff] %vm1254, %v2800
      %2894 = vst.msk [vmem:[#allocation4 + $0x68] sm:$0xff] %vm1254, %v2802
      %2895 = vst.msk [vmem:[#allocation4 + $0x88] sm:$0xff] %vm1254, %v2804
      %2896 = vst.msk [vmem:[#allocation4 + $0xa8] sm:$0xff] %vm1254, %v2806
      %2897 = vst.msk [vmem:[#allocation4 + $0xc8] sm:$0xff] %vm1254, %v2808
      %2898 = vst.msk [vmem:[#allocation4 + $0xe8] sm:$0xff] %vm1254, %v2810
      %2899 = vst.msk [vmem:[#allocation4 + $0x108] sm:$0xff] %vm1254, %v2812
      %2900 = vst.msk [vmem:[#allocation4 + $0x128] sm:$0xff] %vm1254, %v2814
      %2901 = vst.msk [vmem:[#allocation4 + $0x148] sm:$0xff] %vm1254, %v2816
      %2902 = vst.msk [vmem:[#allocation4 + $0x168] sm:$0xff] %vm1254, %v2818
      %2903 = vst.msk [vmem:[#allocation4 + $0x188] sm:$0xff] %vm1254, %v2820
      %2904 = vst.msk [vmem:[#allocation4 + $0x1a8] sm:$0xff] %vm1254, %v2822
      %2905 = vst.msk [vmem:[#allocation4 + $0x1c8] sm:$0xff] %vm1254, %v2824
      %2906 = vst.msk [vmem:[#allocation4 + $0x1e8] sm:$0xff] %vm1254, %v2826
      %2907 = vst.msk [vmem:[#allocation4 + $0x208] sm:$0xff] %vm1254, %v2828
      %2908 = vst.msk [vmem:[#allocation4 + $0x228] sm:$0xff] %vm1254, %v2830
      %2909 = vst.msk [vmem:[#allocation4 + $0x248] sm:$0xff] %vm1254, %v2832
      %2910 = vst.msk [vmem:[#allocation4 + $0x268] sm:$0xff] %vm1254, %v2834
      %2911 = vst.msk [vmem:[#allocation4 + $0x288] sm:$0xff] %vm1254, %v2836
      %2912 = vst.msk [vmem:[#allocation4 + $0x2a8] sm:$0xff] %vm1254, %v2838
      %2913 = vst.msk [vmem:[#allocation4 + $0x2c8] sm:$0xff] %vm1254, %v2840
      %2914 = vst.msk [vmem:[#allocation4 + $0x2e8] sm:$0xff] %vm1254, %v2842
      %2915 = vst.msk [vmem:[#allocation4 + $0x308] sm:$0xff] %vm1254, %v2844
      %2916 = vst.msk [vmem:[#allocation4 + $0x328] sm:$0xff] %vm1254, %v2846
      %2917 = vst.msk [vmem:[#allocation4 + $0x348] sm:$0xff] %vm1254, %v2848
      %2918 = vst.msk [vmem:[#allocation4 + $0x368] sm:$0xff] %vm1254, %v2850
      %2919 = vst.msk [vmem:[#allocation4 + $0x388] sm:$0xff] %vm1254, %v2852
      %2920 = vst.msk [vmem:[#allocation4 + $0x3a8] sm:$0xff] %vm1254, %v2854
      %2921 = vst.msk [vmem:[#allocation4 + $0x3c8] sm:$0xff] %vm1254, %v2856
      %2922 = vst.msk [vmem:[#allocation4 + $0x3e8] sm:$0xff] %vm1254, %v2858
      %v2923 = vld [vmem:[#allocation2 + $0x36] sm:$0xff]
      %v2924 = vld [vmem:[#allocation2 + $0x3e] sm:$0xff]
      %v2925 = vld [vmem:[#allocation2 + $0x46] sm:$0xff]
      %v2926 = vld [vmem:[#allocation2 + $0x4e] sm:$0xff]
      %v2927 = vld [vmem:[#allocation2 + $0x56] sm:$0xff]
      %v2928 = vld [vmem:[#allocation2 + $0x5e] sm:$0xff]
      %v2929 = vld [vmem:[#allocation2 + $0x66] sm:$0xff]
      %v2930 = vld [vmem:[#allocation2 + $0x6e] sm:$0xff]
      %v2931 = vld [vmem:[#allocation2 + $0x76] sm:$0xff]
      %v2932 = vld [vmem:[#allocation2 + $0x7e] sm:$0xff]
      %v2933 = vld [vmem:[#allocation2 + $0x86] sm:$0xff]
      %v2934 = vld [vmem:[#allocation2 + $0x8e] sm:$0xff]
      %v2935 = vld [vmem:[#allocation2 + $0x96] sm:$0xff]
      %v2936 = vld [vmem:[#allocation2 + $0x9e] sm:$0xff]
      %v2937 = vld [vmem:[#allocation2 + $0xa6] sm:$0xff]
      %v2938 = vld [vmem:[#allocation2 + $0xae] sm:$0xff]
      %v2939 = vld [vmem:[#allocation2 + $0xb6] sm:$0xff]
      %v2940 = vld [vmem:[#allocation2 + $0xbe] sm:$0xff]
      %v2941 = vld [vmem:[#allocation2 + $0xc6] sm:$0xff]
      %v2942 = vld [vmem:[#allocation2 + $0xce] sm:$0xff]
      %v2943 = vld [vmem:[#allocation2 + $0xd6] sm:$0xff]
      %v2944 = vld [vmem:[#allocation2 + $0xde] sm:$0xff]
      %v2945 = vld [vmem:[#allocation2 + $0xe6] sm:$0xff]
      %v2946 = vld [vmem:[#allocation2 + $0xee] sm:$0xff]
      %v2947 = vld [vmem:[#allocation2 + $0xf6] sm:$0xff]
      %v2948 = vld [vmem:[#allocation2 + $0xfe] sm:$0xff]
      %v2949 = vld [vmem:[#allocation2 + $0x106] sm:$0xff]
      %v2950 = vld [vmem:[#allocation2 + $0x10e] sm:$0xff]
      %v2951 = vld [vmem:[#allocation2 + $0x116] sm:$0xff]
      %v2952 = vld [vmem:[#allocation2 + $0x11e] sm:$0xff]
      %v2953 = vld [vmem:[#allocation2 + $0x126] sm:$0xff]
      %v2954 = vld [vmem:[#allocation2 + $0x12e] sm:$0xff]
      %v2955 = vsel %vm2251, %v2923, 0.0
      %v2956 = vsel %vm2252, %v2924, 0.0
      %v2957 = vsel %vm2253, %v2925, 0.0
      %v2958 = vsel %vm2254, %v2926, 0.0
      %v2959 = vsel %vm2255, %v2927, 0.0
      %v2960 = vsel %vm2256, %v2928, 0.0
      %v2961 = vsel %vm2257, %v2929, 0.0
      %v2962 = vsel %vm2258, %v2930, 0.0
      %v2963 = vsel %vm2259, %v2931, 0.0
      %v2964 = vsel %vm2260, %v2932, 0.0
      %v2965 = vsel %vm2261, %v2933, 0.0
      %v2966 = vsel %vm2262, %v2934, 0.0
      %v2967 = vsel %vm2263, %v2935, 0.0
      %v2968 = vsel %vm2264, %v2936, 0.0
      %v2969 = vsel %vm2265, %v2937, 0.0
      %v2970 = vsel %vm2266, %v2938, 0.0
      %v2971 = vsel %vm2267, %v2939, 0.0
      %v2972 = vsel %vm2268, %v2940, 0.0
      %v2973 = vsel %vm2269, %v2941, 0.0
      %v2974 = vsel %vm2270, %v2942, 0.0
      %v2975 = vsel %vm2271, %v2943, 0.0
      %v2976 = vsel %vm2272, %v2944, 0.0
      %v2977 = vsel %vm2273, %v2945, 0.0
      %v2978 = vsel %vm2274, %v2946, 0.0
      %v2979 = vsel %vm2275, %v2947, 0.0
      %v2980 = vsel %vm2276, %v2948, 0.0
      %v2981 = vsel %vm2277, %v2949, 0.0
      %v2982 = vsel %vm2278, %v2950, 0.0
      %v2983 = vsel %vm2279, %v2951, 0.0
      %v2984 = vsel %vm2280, %v2952, 0.0
      %v2985 = vsel %vm2281, %v2953, 0.0
      %v2986 = vsel %vm2282, %v2954, 0.0
      %3019 = vrot.lane.b32.xlu0 %v2955, 64
      %v3020 = vpop.permute.xlu0 %3019
      %3021 = vrot.lane.b32.xlu0 %v2956, 64
      %v3022 = vpop.permute.xlu0 %3021
      %3023 = vrot.lane.b32.xlu0 %v2957, 64
      %v3024 = vpop.permute.xlu0 %3023
      %3025 = vrot.lane.b32.xlu0 %v2958, 64
      %v3026 = vpop.permute.xlu0 %3025
      %3027 = vrot.lane.b32.xlu0 %v2959, 64
      %v3028 = vpop.permute.xlu0 %3027
      %3029 = vrot.lane.b32.xlu0 %v2960, 64
      %v3030 = vpop.permute.xlu0 %3029
      %3031 = vrot.lane.b32.xlu0 %v2961, 64
      %v3032 = vpop.permute.xlu0 %3031
      %3033 = vrot.lane.b32.xlu0 %v2962, 64
      %v3034 = vpop.permute.xlu0 %3033
      %3035 = vrot.lane.b32.xlu0 %v2963, 64
      %v3036 = vpop.permute.xlu0 %3035
      %3037 = vrot.lane.b32.xlu0 %v2964, 64
      %v3038 = vpop.permute.xlu0 %3037
      %3039 = vrot.lane.b32.xlu0 %v2965, 64
      %v3040 = vpop.permute.xlu0 %3039
      %3041 = vrot.lane.b32.xlu0 %v2966, 64
      %v3042 = vpop.permute.xlu0 %3041
      %3043 = vrot.lane.b32.xlu0 %v2967, 64
      %v3044 = vpop.permute.xlu0 %3043
      %3045 = vrot.lane.b32.xlu0 %v2968, 64
      %v3046 = vpop.permute.xlu0 %3045
      %3047 = vrot.lane.b32.xlu0 %v2969, 64
      %v3048 = vpop.permute.xlu0 %3047
      %3049 = vrot.lane.b32.xlu0 %v2970, 64
      %v3050 = vpop.permute.xlu0 %3049
      %3051 = vrot.lane.b32.xlu0 %v2971, 64
      %v3052 = vpop.permute.xlu0 %3051
      %3053 = vrot.lane.b32.xlu0 %v2972, 64
      %v3054 = vpop.permute.xlu0 %3053
      %3055 = vrot.lane.b32.xlu0 %v2973, 64
      %v3056 = vpop.permute.xlu0 %3055
      %3057 = vrot.lane.b32.xlu0 %v2974, 64
      %v3058 = vpop.permute.xlu0 %3057
      %3059 = vrot.lane.b32.xlu0 %v2975, 64
      %v3060 = vpop.permute.xlu0 %3059
      %3061 = vrot.lane.b32.xlu0 %v2976, 64
      %v3062 = vpop.permute.xlu0 %3061
      %3063 = vrot.lane.b32.xlu0 %v2977, 64
      %v3064 = vpop.permute.xlu0 %3063
      %3065 = vrot.lane.b32.xlu0 %v2978, 64
      %v3066 = vpop.permute.xlu0 %3065
      %3067 = vrot.lane.b32.xlu0 %v2979, 64
      %v3068 = vpop.permute.xlu0 %3067
      %3069 = vrot.lane.b32.xlu0 %v2980, 64
      %v3070 = vpop.permute.xlu0 %3069
      %3071 = vrot.lane.b32.xlu0 %v2981, 64
      %v3072 = vpop.permute.xlu0 %3071
      %3073 = vrot.lane.b32.xlu0 %v2982, 64
      %v3074 = vpop.permute.xlu0 %3073
      %3075 = vrot.lane.b32.xlu0 %v2983, 64
      %v3076 = vpop.permute.xlu0 %3075
      %3077 = vrot.lane.b32.xlu0 %v2984, 64
      %v3078 = vpop.permute.xlu0 %3077
      %3079 = vrot.lane.b32.xlu0 %v2985, 64
      %v3080 = vpop.permute.xlu0 %3079
      %3081 = vrot.lane.b32.xlu0 %v2986, 64
      %v3082 = vpop.permute.xlu0 %3081
      %3115 = vst.msk [vmem:[#allocation4 + $0x8] sm:$0xff] %vm1447, %v3020
      %3116 = vst.msk [vmem:[#allocation4 + $0x28] sm:$0xff] %vm1447, %v3022
      %3117 = vst.msk [vmem:[#allocation4 + $0x48] sm:$0xff] %vm1447, %v3024
      %3118 = vst.msk [vmem:[#allocation4 + $0x68] sm:$0xff] %vm1447, %v3026
      %3119 = vst.msk [vmem:[#allocation4 + $0x88] sm:$0xff] %vm1447, %v3028
      %3120 = vst.msk [vmem:[#allocation4 + $0xa8] sm:$0xff] %vm1447, %v3030
      %3121 = vst.msk [vmem:[#allocation4 + $0xc8] sm:$0xff] %vm1447, %v3032
      %3122 = vst.msk [vmem:[#allocation4 + $0xe8] sm:$0xff] %vm1447, %v3034
      %3123 = vst.msk [vmem:[#allocation4 + $0x108] sm:$0xff] %vm1447, %v3036
      %3124 = vst.msk [vmem:[#allocation4 + $0x128] sm:$0xff] %vm1447, %v3038
      %3125 = vst.msk [vmem:[#allocation4 + $0x148] sm:$0xff] %vm1447, %v3040
      %3126 = vst.msk [vmem:[#allocation4 + $0x168] sm:$0xff] %vm1447, %v3042
      %3127 = vst.msk [vmem:[#allocation4 + $0x188] sm:$0xff] %vm1447, %v3044
      %3128 = vst.msk [vmem:[#allocation4 + $0x1a8] sm:$0xff] %vm1447, %v3046
      %3129 = vst.msk [vmem:[#allocation4 + $0x1c8] sm:$0xff] %vm1447, %v3048
      %3130 = vst.msk [vmem:[#allocation4 + $0x1e8] sm:$0xff] %vm1447, %v3050
      %3131 = vst.msk [vmem:[#allocation4 + $0x208] sm:$0xff] %vm1447, %v3052
      %3132 = vst.msk [vmem:[#allocation4 + $0x228] sm:$0xff] %vm1447, %v3054
      %3133 = vst.msk [vmem:[#allocation4 + $0x248] sm:$0xff] %vm1447, %v3056
      %3134 = vst.msk [vmem:[#allocation4 + $0x268] sm:$0xff] %vm1447, %v3058
      %3135 = vst.msk [vmem:[#allocation4 + $0x288] sm:$0xff] %vm1447, %v3060
      %3136 = vst.msk [vmem:[#allocation4 + $0x2a8] sm:$0xff] %vm1447, %v3062
      %3137 = vst.msk [vmem:[#allocation4 + $0x2c8] sm:$0xff] %vm1447, %v3064
      %3138 = vst.msk [vmem:[#allocation4 + $0x2e8] sm:$0xff] %vm1447, %v3066
      %3139 = vst.msk [vmem:[#allocation4 + $0x308] sm:$0xff] %vm1447, %v3068
      %3140 = vst.msk [vmem:[#allocation4 + $0x328] sm:$0xff] %vm1447, %v3070
      %3141 = vst.msk [vmem:[#allocation4 + $0x348] sm:$0xff] %vm1447, %v3072
      %3142 = vst.msk [vmem:[#allocation4 + $0x368] sm:$0xff] %vm1447, %v3074
      %3143 = vst.msk [vmem:[#allocation4 + $0x388] sm:$0xff] %vm1447, %v3076
      %3144 = vst.msk [vmem:[#allocation4 + $0x3a8] sm:$0xff] %vm1447, %v3078
      %3145 = vst.msk [vmem:[#allocation4 + $0x3c8] sm:$0xff] %vm1447, %v3080
      %3146 = vst.msk [vmem:[#allocation4 + $0x3e8] sm:$0xff] %vm1447, %v3082
      %v3147 = vld [vmem:[#allocation2 + $0x38] sm:$0xff]
      %v3148 = vld [vmem:[#allocation2 + $0x40] sm:$0xff]
      %v3149 = vld [vmem:[#allocation2 + $0x48] sm:$0xff]
      %v3150 = vld [vmem:[#allocation2 + $0x50] sm:$0xff]
      %v3151 = vld [vmem:[#allocation2 + $0x58] sm:$0xff]
      %v3152 = vld [vmem:[#allocation2 + $0x60] sm:$0xff]
      %v3153 = vld [vmem:[#allocation2 + $0x68] sm:$0xff]
      %v3154 = vld [vmem:[#allocation2 + $0x70] sm:$0xff]
      %v3155 = vld [vmem:[#allocation2 + $0x78] sm:$0xff]
      %v3156 = vld [vmem:[#allocation2 + $0x80] sm:$0xff]
      %v3157 = vld [vmem:[#allocation2 + $0x88] sm:$0xff]
      %v3158 = vld [vmem:[#allocation2 + $0x90] sm:$0xff]
      %v3159 = vld [vmem:[#allocation2 + $0x98] sm:$0xff]
      %v3160 = vld [vmem:[#allocation2 + $0xa0] sm:$0xff]
      %v3161 = vld [vmem:[#allocation2 + $0xa8] sm:$0xff]
      %v3162 = vld [vmem:[#allocation2 + $0xb0] sm:$0xff]
      %v3163 = vld [vmem:[#allocation2 + $0xb8] sm:$0xff]
      %v3164 = vld [vmem:[#allocation2 + $0xc0] sm:$0xff]
      %v3165 = vld [vmem:[#allocation2 + $0xc8] sm:$0xff]
      %v3166 = vld [vmem:[#allocation2 + $0xd0] sm:$0xff]
      %v3167 = vld [vmem:[#allocation2 + $0xd8] sm:$0xff]
      %v3168 = vld [vmem:[#allocation2 + $0xe0] sm:$0xff]
      %v3169 = vld [vmem:[#allocation2 + $0xe8] sm:$0xff]
      %v3170 = vld [vmem:[#allocation2 + $0xf0] sm:$0xff]
      %v3171 = vld [vmem:[#allocation2 + $0xf8] sm:$0xff]
      %v3172 = vld [vmem:[#allocation2 + $0x100] sm:$0xff]
      %v3173 = vld [vmem:[#allocation2 + $0x108] sm:$0xff]
      %v3174 = vld [vmem:[#allocation2 + $0x110] sm:$0xff]
      %v3175 = vld [vmem:[#allocation2 + $0x118] sm:$0xff]
      %v3176 = vld [vmem:[#allocation2 + $0x120] sm:$0xff]
      %v3177 = vld [vmem:[#allocation2 + $0x128] sm:$0xff]
      %v3178 = vld [vmem:[#allocation2 + $0x130] sm:$0xff]
      %3211 = vrot.lane.b32.xlu0 %v3147, 80
      %v3212 = vpop.permute.xlu0 %3211
      %3213 = vrot.lane.b32.xlu0 %v3148, 80
      %v3214 = vpop.permute.xlu0 %3213
      %3215 = vrot.lane.b32.xlu0 %v3149, 80
      %v3216 = vpop.permute.xlu0 %3215
      %3217 = vrot.lane.b32.xlu0 %v3150, 80
      %v3218 = vpop.permute.xlu0 %3217
      %3219 = vrot.lane.b32.xlu0 %v3151, 80
      %v3220 = vpop.permute.xlu0 %3219
      %3221 = vrot.lane.b32.xlu0 %v3152, 80
      %v3222 = vpop.permute.xlu0 %3221
      %3223 = vrot.lane.b32.xlu0 %v3153, 80
      %v3224 = vpop.permute.xlu0 %3223
      %3225 = vrot.lane.b32.xlu0 %v3154, 80
      %v3226 = vpop.permute.xlu0 %3225
      %3227 = vrot.lane.b32.xlu0 %v3155, 80
      %v3228 = vpop.permute.xlu0 %3227
      %3229 = vrot.lane.b32.xlu0 %v3156, 80
      %v3230 = vpop.permute.xlu0 %3229
      %3231 = vrot.lane.b32.xlu0 %v3157, 80
      %v3232 = vpop.permute.xlu0 %3231
      %3233 = vrot.lane.b32.xlu0 %v3158, 80
      %v3234 = vpop.permute.xlu0 %3233
      %3235 = vrot.lane.b32.xlu0 %v3159, 80
      %v3236 = vpop.permute.xlu0 %3235
      %3237 = vrot.lane.b32.xlu0 %v3160, 80
      %v3238 = vpop.permute.xlu0 %3237
      %3239 = vrot.lane.b32.xlu0 %v3161, 80
      %v3240 = vpop.permute.xlu0 %3239
      %3241 = vrot.lane.b32.xlu0 %v3162, 80
      %v3242 = vpop.permute.xlu0 %3241
      %3243 = vrot.lane.b32.xlu0 %v3163, 80
      %v3244 = vpop.permute.xlu0 %3243
      %3245 = vrot.lane.b32.xlu0 %v3164, 80
      %v3246 = vpop.permute.xlu0 %3245
      %3247 = vrot.lane.b32.xlu0 %v3165, 80
      %v3248 = vpop.permute.xlu0 %3247
      %3249 = vrot.lane.b32.xlu0 %v3166, 80
      %v3250 = vpop.permute.xlu0 %3249
      %3251 = vrot.lane.b32.xlu0 %v3167, 80
      %v3252 = vpop.permute.xlu0 %3251
      %3253 = vrot.lane.b32.xlu0 %v3168, 80
      %v3254 = vpop.permute.xlu0 %3253
      %3255 = vrot.lane.b32.xlu0 %v3169, 80
      %v3256 = vpop.permute.xlu0 %3255
      %3257 = vrot.lane.b32.xlu0 %v3170, 80
      %v3258 = vpop.permute.xlu0 %3257
      %3259 = vrot.lane.b32.xlu0 %v3171, 80
      %v3260 = vpop.permute.xlu0 %3259
      %3261 = vrot.lane.b32.xlu0 %v3172, 80
      %v3262 = vpop.permute.xlu0 %3261
      %3263 = vrot.lane.b32.xlu0 %v3173, 80
      %v3264 = vpop.permute.xlu0 %3263
      %3265 = vrot.lane.b32.xlu0 %v3174, 80
      %v3266 = vpop.permute.xlu0 %3265
      %3267 = vrot.lane.b32.xlu0 %v3175, 80
      %v3268 = vpop.permute.xlu0 %3267
      %3269 = vrot.lane.b32.xlu0 %v3176, 80
      %v3270 = vpop.permute.xlu0 %3269
      %3271 = vrot.lane.b32.xlu0 %v3177, 80
      %v3272 = vpop.permute.xlu0 %3271
      %3273 = vrot.lane.b32.xlu0 %v3178, 80
      %v3274 = vpop.permute.xlu0 %3273
      %3307 = vst.msk [vmem:[#allocation4 + $0x8] sm:$0xff] %vm1672, %v3212
      %3308 = vst.msk [vmem:[#allocation4 + $0x28] sm:$0xff] %vm1672, %v3214
      %3309 = vst.msk [vmem:[#allocation4 + $0x48] sm:$0xff] %vm1672, %v3216
      %3310 = vst.msk [vmem:[#allocation4 + $0x68] sm:$0xff] %vm1672, %v3218
      %3311 = vst.msk [vmem:[#allocation4 + $0x88] sm:$0xff] %vm1672, %v3220
      %3312 = vst.msk [vmem:[#allocation4 + $0xa8] sm:$0xff] %vm1672, %v3222
      %3313 = vst.msk [vmem:[#allocation4 + $0xc8] sm:$0xff] %vm1672, %v3224
      %3314 = vst.msk [vmem:[#allocation4 + $0xe8] sm:$0xff] %vm1672, %v3226
      %3315 = vst.msk [vmem:[#allocation4 + $0x108] sm:$0xff] %vm1672, %v3228
      %3316 = vst.msk [vmem:[#allocation4 + $0x128] sm:$0xff] %vm1672, %v3230
      %3317 = vst.msk [vmem:[#allocation4 + $0x148] sm:$0xff] %vm1672, %v3232
      %3318 = vst.msk [vmem:[#allocation4 + $0x168] sm:$0xff] %vm1672, %v3234
      %3319 = vst.msk [vmem:[#allocation4 + $0x188] sm:$0xff] %vm1672, %v3236
      %3320 = vst.msk [vmem:[#allocation4 + $0x1a8] sm:$0xff] %vm1672, %v3238
      %3321 = vst.msk [vmem:[#allocation4 + $0x1c8] sm:$0xff] %vm1672, %v3240
      %3322 = vst.msk [vmem:[#allocation4 + $0x1e8] sm:$0xff] %vm1672, %v3242
      %3323 = vst.msk [vmem:[#allocation4 + $0x208] sm:$0xff] %vm1672, %v3244
      %3324 = vst.msk [vmem:[#allocation4 + $0x228] sm:$0xff] %vm1672, %v3246
      %3325 = vst.msk [vmem:[#allocation4 + $0x248] sm:$0xff] %vm1672, %v3248
      %3326 = vst.msk [vmem:[#allocation4 + $0x268] sm:$0xff] %vm1672, %v3250
      %3327 = vst.msk [vmem:[#allocation4 + $0x288] sm:$0xff] %vm1672, %v3252
      %3328 = vst.msk [vmem:[#allocation4 + $0x2a8] sm:$0xff] %vm1672, %v3254
      %3329 = vst.msk [vmem:[#allocation4 + $0x2c8] sm:$0xff] %vm1672, %v3256
      %3330 = vst.msk [vmem:[#allocation4 + $0x2e8] sm:$0xff] %vm1672, %v3258
      %3331 = vst.msk [vmem:[#allocation4 + $0x308] sm:$0xff] %vm1672, %v3260
      %3332 = vst.msk [vmem:[#allocation4 + $0x328] sm:$0xff] %vm1672, %v3262
      %3333 = vst.msk [vmem:[#allocation4 + $0x348] sm:$0xff] %vm1672, %v3264
      %3334 = vst.msk [vmem:[#allocation4 + $0x368] sm:$0xff] %vm1672, %v3266
      %3335 = vst.msk [vmem:[#allocation4 + $0x388] sm:$0xff] %vm1672, %v3268
      %3336 = vst.msk [vmem:[#allocation4 + $0x3a8] sm:$0xff] %vm1672, %v3270
      %3337 = vst.msk [vmem:[#allocation4 + $0x3c8] sm:$0xff] %vm1672, %v3272
      %3338 = vst.msk [vmem:[#allocation4 + $0x3e8] sm:$0xff] %vm1672, %v3274
      %v3339 = vld [vmem:[#allocation2 + $0x3a] sm:$0xff]
      %v3340 = vld [vmem:[#allocation2 + $0x42] sm:$0xff]
      %v3341 = vld [vmem:[#allocation2 + $0x4a] sm:$0xff]
      %v3342 = vld [vmem:[#allocation2 + $0x52] sm:$0xff]
      %v3343 = vld [vmem:[#allocation2 + $0x5a] sm:$0xff]
      %v3344 = vld [vmem:[#allocation2 + $0x62] sm:$0xff]
      %v3345 = vld [vmem:[#allocation2 + $0x6a] sm:$0xff]
      %v3346 = vld [vmem:[#allocation2 + $0x72] sm:$0xff]
      %v3347 = vld [vmem:[#allocation2 + $0x7a] sm:$0xff]
      %v3348 = vld [vmem:[#allocation2 + $0x82] sm:$0xff]
      %v3349 = vld [vmem:[#allocation2 + $0x8a] sm:$0xff]
      %v3350 = vld [vmem:[#allocation2 + $0x92] sm:$0xff]
      %v3351 = vld [vmem:[#allocation2 + $0x9a] sm:$0xff]
      %v3352 = vld [vmem:[#allocation2 + $0xa2] sm:$0xff]
      %v3353 = vld [vmem:[#allocation2 + $0xaa] sm:$0xff]
      %v3354 = vld [vmem:[#allocation2 + $0xb2] sm:$0xff]
      %v3355 = vld [vmem:[#allocation2 + $0xba] sm:$0xff]
      %v3356 = vld [vmem:[#allocation2 + $0xc2] sm:$0xff]
      %v3357 = vld [vmem:[#allocation2 + $0xca] sm:$0xff]
      %v3358 = vld [vmem:[#allocation2 + $0xd2] sm:$0xff]
      %v3359 = vld [vmem:[#allocation2 + $0xda] sm:$0xff]
      %v3360 = vld [vmem:[#allocation2 + $0xe2] sm:$0xff]
      %v3361 = vld [vmem:[#allocation2 + $0xea] sm:$0xff]
      %v3362 = vld [vmem:[#allocation2 + $0xf2] sm:$0xff]
      %v3363 = vld [vmem:[#allocation2 + $0xfa] sm:$0xff]
      %v3364 = vld [vmem:[#allocation2 + $0x102] sm:$0xff]
      %v3365 = vld [vmem:[#allocation2 + $0x10a] sm:$0xff]
      %v3366 = vld [vmem:[#allocation2 + $0x112] sm:$0xff]
      %v3367 = vld [vmem:[#allocation2 + $0x11a] sm:$0xff]
      %v3368 = vld [vmem:[#allocation2 + $0x122] sm:$0xff]
      %v3369 = vld [vmem:[#allocation2 + $0x12a] sm:$0xff]
      %v3370 = vld [vmem:[#allocation2 + $0x132] sm:$0xff]
      %v3371 = vsel %vm2699, %v3339, 0.0
      %v3372 = vsel %vm2700, %v3340, 0.0
      %v3373 = vsel %vm2701, %v3341, 0.0
      %v3374 = vsel %vm2702, %v3342, 0.0
      %v3375 = vsel %vm2703, %v3343, 0.0
      %v3376 = vsel %vm2704, %v3344, 0.0
      %v3377 = vsel %vm2705, %v3345, 0.0
      %v3378 = vsel %vm2706, %v3346, 0.0
      %v3379 = vsel %vm2707, %v3347, 0.0
      %v3380 = vsel %vm2708, %v3348, 0.0
      %v3381 = vsel %vm2709, %v3349, 0.0
      %v3382 = vsel %vm2710, %v3350, 0.0
      %v3383 = vsel %vm2711, %v3351, 0.0
      %v3384 = vsel %vm2712, %v3352, 0.0
      %v3385 = vsel %vm2713, %v3353, 0.0
      %v3386 = vsel %vm2714, %v3354, 0.0
      %v3387 = vsel %vm2715, %v3355, 0.0
      %v3388 = vsel %vm2716, %v3356, 0.0
      %v3389 = vsel %vm2717, %v3357, 0.0
      %v3390 = vsel %vm2718, %v3358, 0.0
      %v3391 = vsel %vm2719, %v3359, 0.0
      %v3392 = vsel %vm2720, %v3360, 0.0
      %v3393 = vsel %vm2721, %v3361, 0.0
      %v3394 = vsel %vm2722, %v3362, 0.0
      %v3395 = vsel %vm2723, %v3363, 0.0
      %v3396 = vsel %vm2724, %v3364, 0.0
      %v3397 = vsel %vm2725, %v3365, 0.0
      %v3398 = vsel %vm2726, %v3366, 0.0
      %v3399 = vsel %vm2727, %v3367, 0.0
      %v3400 = vsel %vm2728, %v3368, 0.0
      %v3401 = vsel %vm2729, %v3369, 0.0
      %v3402 = vsel %vm2730, %v3370, 0.0
      %3435 = vrot.lane.b32.xlu0 %v3371, 96
      %v3436 = vpop.permute.xlu0 %3435
      %3437 = vrot.lane.b32.xlu0 %v3372, 96
      %v3438 = vpop.permute.xlu0 %3437
      %3439 = vrot.lane.b32.xlu0 %v3373, 96
      %v3440 = vpop.permute.xlu0 %3439
      %3441 = vrot.lane.b32.xlu0 %v3374, 96
      %v3442 = vpop.permute.xlu0 %3441
      %3443 = vrot.lane.b32.xlu0 %v3375, 96
      %v3444 = vpop.permute.xlu0 %3443
      %3445 = vrot.lane.b32.xlu0 %v3376, 96
      %v3446 = vpop.permute.xlu0 %3445
      %3447 = vrot.lane.b32.xlu0 %v3377, 96
      %v3448 = vpop.permute.xlu0 %3447
      %3449 = vrot.lane.b32.xlu0 %v3378, 96
      %v3450 = vpop.permute.xlu0 %3449
      %3451 = vrot.lane.b32.xlu0 %v3379, 96
      %v3452 = vpop.permute.xlu0 %3451
      %3453 = vrot.lane.b32.xlu0 %v3380, 96
      %v3454 = vpop.permute.xlu0 %3453
      %3455 = vrot.lane.b32.xlu0 %v3381, 96
      %v3456 = vpop.permute.xlu0 %3455
      %3457 = vrot.lane.b32.xlu0 %v3382, 96
      %v3458 = vpop.permute.xlu0 %3457
      %3459 = vrot.lane.b32.xlu0 %v3383, 96
      %v3460 = vpop.permute.xlu0 %3459
      %3461 = vrot.lane.b32.xlu0 %v3384, 96
      %v3462 = vpop.permute.xlu0 %3461
      %3463 = vrot.lane.b32.xlu0 %v3385, 96
      %v3464 = vpop.permute.xlu0 %3463
      %3465 = vrot.lane.b32.xlu0 %v3386, 96
      %v3466 = vpop.permute.xlu0 %3465
      %3467 = vrot.lane.b32.xlu0 %v3387, 96
      %v3468 = vpop.permute.xlu0 %3467
      %3469 = vrot.lane.b32.xlu0 %v3388, 96
      %v3470 = vpop.permute.xlu0 %3469
      %3471 = vrot.lane.b32.xlu0 %v3389, 96
      %v3472 = vpop.permute.xlu0 %3471
      %3473 = vrot.lane.b32.xlu0 %v3390, 96
      %v3474 = vpop.permute.xlu0 %3473
      %3475 = vrot.lane.b32.xlu0 %v3391, 96
      %v3476 = vpop.permute.xlu0 %3475
      %3477 = vrot.lane.b32.xlu0 %v3392, 96
      %v3478 = vpop.permute.xlu0 %3477
      %3479 = vrot.lane.b32.xlu0 %v3393, 96
      %v3480 = vpop.permute.xlu0 %3479
      %3481 = vrot.lane.b32.xlu0 %v3394, 96
      %v3482 = vpop.permute.xlu0 %3481
      %3483 = vrot.lane.b32.xlu0 %v3395, 96
      %v3484 = vpop.permute.xlu0 %3483
      %3485 = vrot.lane.b32.xlu0 %v3396, 96
      %v3486 = vpop.permute.xlu0 %3485
      %3487 = vrot.lane.b32.xlu0 %v3397, 96
      %v3488 = vpop.permute.xlu0 %3487
      %3489 = vrot.lane.b32.xlu0 %v3398, 96
      %v3490 = vpop.permute.xlu0 %3489
      %3491 = vrot.lane.b32.xlu0 %v3399, 96
      %v3492 = vpop.permute.xlu0 %3491
      %3493 = vrot.lane.b32.xlu0 %v3400, 96
      %v3494 = vpop.permute.xlu0 %3493
      %3495 = vrot.lane.b32.xlu0 %v3401, 96
      %v3496 = vpop.permute.xlu0 %3495
      %3497 = vrot.lane.b32.xlu0 %v3402, 96
      %v3498 = vpop.permute.xlu0 %3497
      %3531 = vst.msk [vmem:[#allocation4 + $0x8] sm:$0xff] %vm1897, %v3436
      %3532 = vst.msk [vmem:[#allocation4 + $0x28] sm:$0xff] %vm1897, %v3438
      %3533 = vst.msk [vmem:[#allocation4 + $0x48] sm:$0xff] %vm1897, %v3440
      %3534 = vst.msk [vmem:[#allocation4 + $0x68] sm:$0xff] %vm1897, %v3442
      %3535 = vst.msk [vmem:[#allocation4 + $0x88] sm:$0xff] %vm1897, %v3444
      %3536 = vst.msk [vmem:[#allocation4 + $0xa8] sm:$0xff] %vm1897, %v3446
      %3537 = vst.msk [vmem:[#allocation4 + $0xc8] sm:$0xff] %vm1897, %v3448
      %3538 = vst.msk [vmem:[#allocation4 + $0xe8] sm:$0xff] %vm1897, %v3450
      %3539 = vst.msk [vmem:[#allocation4 + $0x108] sm:$0xff] %vm1897, %v3452
      %3540 = vst.msk [vmem:[#allocation4 + $0x128] sm:$0xff] %vm1897, %v3454
      %3541 = vst.msk [vmem:[#allocation4 + $0x148] sm:$0xff] %vm1897, %v3456
      %3542 = vst.msk [vmem:[#allocation4 + $0x168] sm:$0xff] %vm1897, %v3458
      %3543 = vst.msk [vmem:[#allocation4 + $0x188] sm:$0xff] %vm1897, %v3460
      %3544 = vst.msk [vmem:[#allocation4 + $0x1a8] sm:$0xff] %vm1897, %v3462
      %3545 = vst.msk [vmem:[#allocation4 + $0x1c8] sm:$0xff] %vm1897, %v3464
      %3546 = vst.msk [vmem:[#allocation4 + $0x1e8] sm:$0xff] %vm1897, %v3466
      %3547 = vst.msk [vmem:[#allocation4 + $0x208] sm:$0xff] %vm1897, %v3468
      %3548 = vst.msk [vmem:[#allocation4 + $0x228] sm:$0xff] %vm1897, %v3470
      %3549 = vst.msk [vmem:[#allocation4 + $0x248] sm:$0xff] %vm1897, %v3472
      %3550 = vst.msk [vmem:[#allocation4 + $0x268] sm:$0xff] %vm1897, %v3474
      %3551 = vst.msk [vmem:[#allocation4 + $0x288] sm:$0xff] %vm1897, %v3476
      %3552 = vst.msk [vmem:[#allocation4 + $0x2a8] sm:$0xff] %vm1897, %v3478
      %3553 = vst.msk [vmem:[#allocation4 + $0x2c8] sm:$0xff] %vm1897, %v3480
      %3554 = vst.msk [vmem:[#allocation4 + $0x2e8] sm:$0xff] %vm1897, %v3482
      %3555 = vst.msk [vmem:[#allocation4 + $0x308] sm:$0xff] %vm1897, %v3484
      %3556 = vst.msk [vmem:[#allocation4 + $0x328] sm:$0xff] %vm1897, %v3486
      %3557 = vst.msk [vmem:[#allocation4 + $0x348] sm:$0xff] %vm1897, %v3488
      %3558 = vst.msk [vmem:[#allocation4 + $0x368] sm:$0xff] %vm1897, %v3490
      %3559 = vst.msk [vmem:[#allocation4 + $0x388] sm:$0xff] %vm1897, %v3492
      %3560 = vst.msk [vmem:[#allocation4 + $0x3a8] sm:$0xff] %vm1897, %v3494
      %3561 = vst.msk [vmem:[#allocation4 + $0x3c8] sm:$0xff] %vm1897, %v3496
      %3562 = vst.msk [vmem:[#allocation4 + $0x3e8] sm:$0xff] %vm1897, %v3498
      %v3563 = vld [vmem:[#allocation2 + $0x56] sm:$0xff]
      %v3564 = vld [vmem:[#allocation2 + $0x5e] sm:$0xff]
      %v3565 = vld [vmem:[#allocation2 + $0x66] sm:$0xff]
      %v3566 = vld [vmem:[#allocation2 + $0x6e] sm:$0xff]
      %v3567 = vld [vmem:[#allocation2 + $0x76] sm:$0xff]
      %v3568 = vld [vmem:[#allocation2 + $0x7e] sm:$0xff]
      %v3569 = vld [vmem:[#allocation2 + $0x86] sm:$0xff]
      %v3570 = vld [vmem:[#allocation2 + $0x8e] sm:$0xff]
      %v3571 = vld [vmem:[#allocation2 + $0x96] sm:$0xff]
      %v3572 = vld [vmem:[#allocation2 + $0x9e] sm:$0xff]
      %v3573 = vld [vmem:[#allocation2 + $0xa6] sm:$0xff]
      %v3574 = vld [vmem:[#allocation2 + $0xae] sm:$0xff]
      %v3575 = vld [vmem:[#allocation2 + $0xb6] sm:$0xff]
      %v3576 = vld [vmem:[#allocation2 + $0xbe] sm:$0xff]
      %v3577 = vld [vmem:[#allocation2 + $0xc6] sm:$0xff]
      %v3578 = vld [vmem:[#allocation2 + $0xce] sm:$0xff]
      %v3579 = vld [vmem:[#allocation2 + $0xd6] sm:$0xff]
      %v3580 = vld [vmem:[#allocation2 + $0xde] sm:$0xff]
      %v3581 = vld [vmem:[#allocation2 + $0xe6] sm:$0xff]
      %v3582 = vld [vmem:[#allocation2 + $0xee] sm:$0xff]
      %v3583 = vld [vmem:[#allocation2 + $0xf6] sm:$0xff]
      %v3584 = vld [vmem:[#allocation2 + $0xfe] sm:$0xff]
      %v3585 = vld [vmem:[#allocation2 + $0x106] sm:$0xff]
      %v3586 = vld [vmem:[#allocation2 + $0x10e] sm:$0xff]
      %v3587 = vld [vmem:[#allocation2 + $0x116] sm:$0xff]
      %v3588 = vld [vmem:[#allocation2 + $0x11e] sm:$0xff]
      %v3589 = vld [vmem:[#allocation2 + $0x126] sm:$0xff]
      %v3590 = vld [vmem:[#allocation2 + $0x12e] sm:$0xff]
      %v3591 = vld [vmem:[#allocation2 + $0x136] sm:$0xff]
      %v3592 = vld [vmem:[#allocation2 + $0x13e] sm:$0xff]
      %v3593 = vld [vmem:[#allocation2 + $0x146] sm:$0xff]
      %v3594 = vld [vmem:[#allocation2 + $0x14e] sm:$0xff]
      %v3595 = vsel %vm2251, %v3563, 0.0
      %v3596 = vsel %vm2252, %v3564, 0.0
      %v3597 = vsel %vm2253, %v3565, 0.0
      %v3598 = vsel %vm2254, %v3566, 0.0
      %v3599 = vsel %vm2255, %v3567, 0.0
      %v3600 = vsel %vm2256, %v3568, 0.0
      %v3601 = vsel %vm2257, %v3569, 0.0
      %v3602 = vsel %vm2258, %v3570, 0.0
      %v3603 = vsel %vm2259, %v3571, 0.0
      %v3604 = vsel %vm2260, %v3572, 0.0
      %v3605 = vsel %vm2261, %v3573, 0.0
      %v3606 = vsel %vm2262, %v3574, 0.0
      %v3607 = vsel %vm2263, %v3575, 0.0
      %v3608 = vsel %vm2264, %v3576, 0.0
      %v3609 = vsel %vm2265, %v3577, 0.0
      %v3610 = vsel %vm2266, %v3578, 0.0
      %v3611 = vsel %vm2267, %v3579, 0.0
      %v3612 = vsel %vm2268, %v3580, 0.0
      %v3613 = vsel %vm2269, %v3581, 0.0
      %v3614 = vsel %vm2270, %v3582, 0.0
      %v3615 = vsel %vm2271, %v3583, 0.0
      %v3616 = vsel %vm2272, %v3584, 0.0
      %v3617 = vsel %vm2273, %v3585, 0.0
      %v3618 = vsel %vm2274, %v3586, 0.0
      %v3619 = vsel %vm2275, %v3587, 0.0
      %v3620 = vsel %vm2276, %v3588, 0.0
      %v3621 = vsel %vm2277, %v3589, 0.0
      %v3622 = vsel %vm2278, %v3590, 0.0
      %v3623 = vsel %vm2279, %v3591, 0.0
      %v3624 = vsel %vm2280, %v3592, 0.0
      %v3625 = vsel %vm2281, %v3593, 0.0
      %v3626 = vsel %vm2282, %v3594, 0.0
      %3659 = vrot.lane.b32.xlu0 %v3595, 112
      %v3660 = vpop.permute.xlu0 %3659
      %3661 = vrot.lane.b32.xlu0 %v3596, 112
      %v3662 = vpop.permute.xlu0 %3661
      %3663 = vrot.lane.b32.xlu0 %v3597, 112
      %v3664 = vpop.permute.xlu0 %3663
      %3665 = vrot.lane.b32.xlu0 %v3598, 112
      %v3666 = vpop.permute.xlu0 %3665
      %3667 = vrot.lane.b32.xlu0 %v3599, 112
      %v3668 = vpop.permute.xlu0 %3667
      %3669 = vrot.lane.b32.xlu0 %v3600, 112
      %v3670 = vpop.permute.xlu0 %3669
      %3671 = vrot.lane.b32.xlu0 %v3601, 112
      %v3672 = vpop.permute.xlu0 %3671
      %3673 = vrot.lane.b32.xlu0 %v3602, 112
      %v3674 = vpop.permute.xlu0 %3673
      %3675 = vrot.lane.b32.xlu0 %v3603, 112
      %v3676 = vpop.permute.xlu0 %3675
      %3677 = vrot.lane.b32.xlu0 %v3604, 112
      %v3678 = vpop.permute.xlu0 %3677
      %3679 = vrot.lane.b32.xlu0 %v3605, 112
      %v3680 = vpop.permute.xlu0 %3679
      %3681 = vrot.lane.b32.xlu0 %v3606, 112
      %v3682 = vpop.permute.xlu0 %3681
      %3683 = vrot.lane.b32.xlu0 %v3607, 112
      %v3684 = vpop.permute.xlu0 %3683
      %3685 = vrot.lane.b32.xlu0 %v3608, 112
      %v3686 = vpop.permute.xlu0 %3685
      %3687 = vrot.lane.b32.xlu0 %v3609, 112
      %v3688 = vpop.permute.xlu0 %3687
      %3689 = vrot.lane.b32.xlu0 %v3610, 112
      %v3690 = vpop.permute.xlu0 %3689
      %3691 = vrot.lane.b32.xlu0 %v3611, 112
      %v3692 = vpop.permute.xlu0 %3691
      %3693 = vrot.lane.b32.xlu0 %v3612, 112
      %v3694 = vpop.permute.xlu0 %3693
      %3695 = vrot.lane.b32.xlu0 %v3613, 112
      %v3696 = vpop.permute.xlu0 %3695
      %3697 = vrot.lane.b32.xlu0 %v3614, 112
      %v3698 = vpop.permute.xlu0 %3697
      %3699 = vrot.lane.b32.xlu0 %v3615, 112
      %v3700 = vpop.permute.xlu0 %3699
      %3701 = vrot.lane.b32.xlu0 %v3616, 112
      %v3702 = vpop.permute.xlu0 %3701
      %3703 = vrot.lane.b32.xlu0 %v3617, 112
      %v3704 = vpop.permute.xlu0 %3703
      %3705 = vrot.lane.b32.xlu0 %v3618, 112
      %v3706 = vpop.permute.xlu0 %3705
      %3707 = vrot.lane.b32.xlu0 %v3619, 112
      %v3708 = vpop.permute.xlu0 %3707
      %3709 = vrot.lane.b32.xlu0 %v3620, 112
      %v3710 = vpop.permute.xlu0 %3709
      %3711 = vrot.lane.b32.xlu0 %v3621, 112
      %v3712 = vpop.permute.xlu0 %3711
      %3713 = vrot.lane.b32.xlu0 %v3622, 112
      %v3714 = vpop.permute.xlu0 %3713
      %3715 = vrot.lane.b32.xlu0 %v3623, 112
      %v3716 = vpop.permute.xlu0 %3715
      %3717 = vrot.lane.b32.xlu0 %v3624, 112
      %v3718 = vpop.permute.xlu0 %3717
      %3719 = vrot.lane.b32.xlu0 %v3625, 112
      %v3720 = vpop.permute.xlu0 %3719
      %3721 = vrot.lane.b32.xlu0 %v3626, 112
      %v3722 = vpop.permute.xlu0 %3721
      %3755 = vst.msk [vmem:[#allocation4 + $0x8] sm:$0xff] %vm2090, %v3660
      %3756 = vst.msk [vmem:[#allocation4 + $0x28] sm:$0xff] %vm2090, %v3662
      %3757 = vst.msk [vmem:[#allocation4 + $0x48] sm:$0xff] %vm2090, %v3664
      %3758 = vst.msk [vmem:[#allocation4 + $0x68] sm:$0xff] %vm2090, %v3666
      %3759 = vst.msk [vmem:[#allocation4 + $0x88] sm:$0xff] %vm2090, %v3668
      %3760 = vst.msk [vmem:[#allocation4 + $0xa8] sm:$0xff] %vm2090, %v3670
      %3761 = vst.msk [vmem:[#allocation4 + $0xc8] sm:$0xff] %vm2090, %v3672
      %3762 = vst.msk [vmem:[#allocation4 + $0xe8] sm:$0xff] %vm2090, %v3674
      %3763 = vst.msk [vmem:[#allocation4 + $0x108] sm:$0xff] %vm2090, %v3676
      %3764 = vst.msk [vmem:[#allocation4 + $0x128] sm:$0xff] %vm2090, %v3678
      %3765 = vst.msk [vmem:[#allocation4 + $0x148] sm:$0xff] %vm2090, %v3680
      %3766 = vst.msk [vmem:[#allocation4 + $0x168] sm:$0xff] %vm2090, %v3682
      %3767 = vst.msk [vmem:[#allocation4 + $0x188] sm:$0xff] %vm2090, %v3684
      %3768 = vst.msk [vmem:[#allocation4 + $0x1a8] sm:$0xff] %vm2090, %v3686
      %3769 = vst.msk [vmem:[#allocation4 + $0x1c8] sm:$0xff] %vm2090, %v3688
      %3770 = vst.msk [vmem:[#allocation4 + $0x1e8] sm:$0xff] %vm2090, %v3690
      %3771 = vst.msk [vmem:[#allocation4 + $0x208] sm:$0xff] %vm2090, %v3692
      %3772 = vst.msk [vmem:[#allocation4 + $0x228] sm:$0xff] %vm2090, %v3694
      %3773 = vst.msk [vmem:[#allocation4 + $0x248] sm:$0xff] %vm2090, %v3696
      %3774 = vst.msk [vmem:[#allocation4 + $0x268] sm:$0xff] %vm2090, %v3698
      %3775 = vst.msk [vmem:[#allocation4 + $0x288] sm:$0xff] %vm2090, %v3700
      %3776 = vst.msk [vmem:[#allocation4 + $0x2a8] sm:$0xff] %vm2090, %v3702
      %3777 = vst.msk [vmem:[#allocation4 + $0x2c8] sm:$0xff] %vm2090, %v3704
      %3778 = vst.msk [vmem:[#allocation4 + $0x2e8] sm:$0xff] %vm2090, %v3706
      %3779 = vst.msk [vmem:[#allocation4 + $0x308] sm:$0xff] %vm2090, %v3708
      %3780 = vst.msk [vmem:[#allocation4 + $0x328] sm:$0xff] %vm2090, %v3710
      %3781 = vst.msk [vmem:[#allocation4 + $0x348] sm:$0xff] %vm2090, %v3712
      %3782 = vst.msk [vmem:[#allocation4 + $0x368] sm:$0xff] %vm2090, %v3714
      %3783 = vst.msk [vmem:[#allocation4 + $0x388] sm:$0xff] %vm2090, %v3716
      %3784 = vst.msk [vmem:[#allocation4 + $0x3a8] sm:$0xff] %vm2090, %v3718
      %3785 = vst.msk [vmem:[#allocation4 + $0x3c8] sm:$0xff] %vm2090, %v3720
      %3786 = vst.msk [vmem:[#allocation4 + $0x3e8] sm:$0xff] %vm2090, %v3722
      %v3787 = vld [vmem:[#allocation2 + $0x58] sm:$0xff]
      %v3788 = vld [vmem:[#allocation2 + $0x60] sm:$0xff]
      %v3789 = vld [vmem:[#allocation2 + $0x68] sm:$0xff]
      %v3790 = vld [vmem:[#allocation2 + $0x70] sm:$0xff]
      %v3791 = vld [vmem:[#allocation2 + $0x78] sm:$0xff]
      %v3792 = vld [vmem:[#allocation2 + $0x80] sm:$0xff]
      %v3793 = vld [vmem:[#allocation2 + $0x88] sm:$0xff]
      %v3794 = vld [vmem:[#allocation2 + $0x90] sm:$0xff]
      %v3795 = vld [vmem:[#allocation2 + $0x98] sm:$0xff]
      %v3796 = vld [vmem:[#allocation2 + $0xa0] sm:$0xff]
      %v3797 = vld [vmem:[#allocation2 + $0xa8] sm:$0xff]
      %v3798 = vld [vmem:[#allocation2 + $0xb0] sm:$0xff]
      %v3799 = vld [vmem:[#allocation2 + $0xb8] sm:$0xff]
      %v3800 = vld [vmem:[#allocation2 + $0xc0] sm:$0xff]
      %v3801 = vld [vmem:[#allocation2 + $0xc8] sm:$0xff]
      %v3802 = vld [vmem:[#allocation2 + $0xd0] sm:$0xff]
      %v3803 = vld [vmem:[#allocation2 + $0xd8] sm:$0xff]
      %v3804 = vld [vmem:[#allocation2 + $0xe0] sm:$0xff]
      %v3805 = vld [vmem:[#allocation2 + $0xe8] sm:$0xff]
      %v3806 = vld [vmem:[#allocation2 + $0xf0] sm:$0xff]
      %v3807 = vld [vmem:[#allocation2 + $0xf8] sm:$0xff]
      %v3808 = vld [vmem:[#allocation2 + $0x100] sm:$0xff]
      %v3809 = vld [vmem:[#allocation2 + $0x108] sm:$0xff]
      %v3810 = vld [vmem:[#allocation2 + $0x110] sm:$0xff]
      %v3811 = vld [vmem:[#allocation2 + $0x118] sm:$0xff]
      %v3812 = vld [vmem:[#allocation2 + $0x120] sm:$0xff]
      %v3813 = vld [vmem:[#allocation2 + $0x128] sm:$0xff]
      %v3814 = vld [vmem:[#allocation2 + $0x130] sm:$0xff]
      %v3815 = vld [vmem:[#allocation2 + $0x138] sm:$0xff]
      %v3816 = vld [vmem:[#allocation2 + $0x140] sm:$0xff]
      %v3817 = vld [vmem:[#allocation2 + $0x148] sm:$0xff]
      %v3818 = vld [vmem:[#allocation2 + $0x150] sm:$0xff]
      %3819 = vst.msk [vmem:[#allocation4 + $0x10] sm:$0xff] %vm365, %v3787
      %3820 = vst.msk [vmem:[#allocation4 + $0x30] sm:$0xff] %vm365, %v3788
      %3821 = vst.msk [vmem:[#allocation4 + $0x50] sm:$0xff] %vm365, %v3789
      %3822 = vst.msk [vmem:[#allocation4 + $0x70] sm:$0xff] %vm365, %v3790
      %3823 = vst.msk [vmem:[#allocation4 + $0x90] sm:$0xff] %vm365, %v3791
      %3824 = vst.msk [vmem:[#allocation4 + $0xb0] sm:$0xff] %vm365, %v3792
      %3825 = vst.msk [vmem:[#allocation4 + $0xd0] sm:$0xff] %vm365, %v3793
      %3826 = vst.msk [vmem:[#allocation4 + $0xf0] sm:$0xff] %vm365, %v3794
      %3827 = vst.msk [vmem:[#allocation4 + $0x110] sm:$0xff] %vm365, %v3795
      %3828 = vst.msk [vmem:[#allocation4 + $0x130] sm:$0xff] %vm365, %v3796
      %3829 = vst.msk [vmem:[#allocation4 + $0x150] sm:$0xff] %vm365, %v3797
      %3830 = vst.msk [vmem:[#allocation4 + $0x170] sm:$0xff] %vm365, %v3798
      %3831 = vst.msk [vmem:[#allocation4 + $0x190] sm:$0xff] %vm365, %v3799
      %3832 = vst.msk [vmem:[#allocation4 + $0x1b0] sm:$0xff] %vm365, %v3800
      %3833 = vst.msk [vmem:[#allocation4 + $0x1d0] sm:$0xff] %vm365, %v3801
      %3834 = vst.msk [vmem:[#allocation4 + $0x1f0] sm:$0xff] %vm365, %v3802
      %3835 = vst.msk [vmem:[#allocation4 + $0x210] sm:$0xff] %vm365, %v3803
      %3836 = vst.msk [vmem:[#allocation4 + $0x230] sm:$0xff] %vm365, %v3804
      %3837 = vst.msk [vmem:[#allocation4 + $0x250] sm:$0xff] %vm365, %v3805
      %3838 = vst.msk [vmem:[#allocation4 + $0x270] sm:$0xff] %vm365, %v3806
      %3839 = vst.msk [vmem:[#allocation4 + $0x290] sm:$0xff] %vm365, %v3807
      %3840 = vst.msk [vmem:[#allocation4 + $0x2b0] sm:$0xff] %vm365, %v3808
      %3841 = vst.msk [vmem:[#allocation4 + $0x2d0] sm:$0xff] %vm365, %v3809
      %3842 = vst.msk [vmem:[#allocation4 + $0x2f0] sm:$0xff] %vm365, %v3810
      %3843 = vst.msk [vmem:[#allocation4 + $0x310] sm:$0xff] %vm365, %v3811
      %3844 = vst.msk [vmem:[#allocation4 + $0x330] sm:$0xff] %vm365, %v3812
      %3845 = vst.msk [vmem:[#allocation4 + $0x350] sm:$0xff] %vm365, %v3813
      %3846 = vst.msk [vmem:[#allocation4 + $0x370] sm:$0xff] %vm365, %v3814
      %3847 = vst.msk [vmem:[#allocation4 + $0x390] sm:$0xff] %vm365, %v3815
      %3848 = vst.msk [vmem:[#allocation4 + $0x3b0] sm:$0xff] %vm365, %v3816
      %3849 = vst.msk [vmem:[#allocation4 + $0x3d0] sm:$0xff] %vm365, %v3817
      %3850 = vst.msk [vmem:[#allocation4 + $0x3f0] sm:$0xff] %vm365, %v3818
      %v3851 = vld [vmem:[#allocation2 + $0x5a] sm:$0xff]
      %v3852 = vld [vmem:[#allocation2 + $0x62] sm:$0xff]
      %v3853 = vld [vmem:[#allocation2 + $0x6a] sm:$0xff]
      %v3854 = vld [vmem:[#allocation2 + $0x72] sm:$0xff]
      %v3855 = vld [vmem:[#allocation2 + $0x7a] sm:$0xff]
      %v3856 = vld [vmem:[#allocation2 + $0x82] sm:$0xff]
      %v3857 = vld [vmem:[#allocation2 + $0x8a] sm:$0xff]
      %v3858 = vld [vmem:[#allocation2 + $0x92] sm:$0xff]
      %v3859 = vld [vmem:[#allocation2 + $0x9a] sm:$0xff]
      %v3860 = vld [vmem:[#allocation2 + $0xa2] sm:$0xff]
      %v3861 = vld [vmem:[#allocation2 + $0xaa] sm:$0xff]
      %v3862 = vld [vmem:[#allocation2 + $0xb2] sm:$0xff]
      %v3863 = vld [vmem:[#allocation2 + $0xba] sm:$0xff]
      %v3864 = vld [vmem:[#allocation2 + $0xc2] sm:$0xff]
      %v3865 = vld [vmem:[#allocation2 + $0xca] sm:$0xff]
      %v3866 = vld [vmem:[#allocation2 + $0xd2] sm:$0xff]
      %v3867 = vld [vmem:[#allocation2 + $0xda] sm:$0xff]
      %v3868 = vld [vmem:[#allocation2 + $0xe2] sm:$0xff]
      %v3869 = vld [vmem:[#allocation2 + $0xea] sm:$0xff]
      %v3870 = vld [vmem:[#allocation2 + $0xf2] sm:$0xff]
      %v3871 = vld [vmem:[#allocation2 + $0xfa] sm:$0xff]
      %v3872 = vld [vmem:[#allocation2 + $0x102] sm:$0xff]
      %v3873 = vld [vmem:[#allocation2 + $0x10a] sm:$0xff]
      %v3874 = vld [vmem:[#allocation2 + $0x112] sm:$0xff]
      %v3875 = vld [vmem:[#allocation2 + $0x11a] sm:$0xff]
      %v3876 = vld [vmem:[#allocation2 + $0x122] sm:$0xff]
      %v3877 = vld [vmem:[#allocation2 + $0x12a] sm:$0xff]
      %v3878 = vld [vmem:[#allocation2 + $0x132] sm:$0xff]
      %v3879 = vld [vmem:[#allocation2 + $0x13a] sm:$0xff]
      %v3880 = vld [vmem:[#allocation2 + $0x142] sm:$0xff]
      %v3881 = vld [vmem:[#allocation2 + $0x14a] sm:$0xff]
      %v3882 = vld [vmem:[#allocation2 + $0x152] sm:$0xff]
      %v3883 = vsel %vm2699, %v3851, 0.0
      %v3884 = vsel %vm2700, %v3852, 0.0
      %v3885 = vsel %vm2701, %v3853, 0.0
      %v3886 = vsel %vm2702, %v3854, 0.0
      %v3887 = vsel %vm2703, %v3855, 0.0
      %v3888 = vsel %vm2704, %v3856, 0.0
      %v3889 = vsel %vm2705, %v3857, 0.0
      %v3890 = vsel %vm2706, %v3858, 0.0
      %v3891 = vsel %vm2707, %v3859, 0.0
      %v3892 = vsel %vm2708, %v3860, 0.0
      %v3893 = vsel %vm2709, %v3861, 0.0
      %v3894 = vsel %vm2710, %v3862, 0.0
      %v3895 = vsel %vm2711, %v3863, 0.0
      %v3896 = vsel %vm2712, %v3864, 0.0
      %v3897 = vsel %vm2713, %v3865, 0.0
      %v3898 = vsel %vm2714, %v3866, 0.0
      %v3899 = vsel %vm2715, %v3867, 0.0
      %v3900 = vsel %vm2716, %v3868, 0.0
      %v3901 = vsel %vm2717, %v3869, 0.0
      %v3902 = vsel %vm2718, %v3870, 0.0
      %v3903 = vsel %vm2719, %v3871, 0.0
      %v3904 = vsel %vm2720, %v3872, 0.0
      %v3905 = vsel %vm2721, %v3873, 0.0
      %v3906 = vsel %vm2722, %v3874, 0.0
      %v3907 = vsel %vm2723, %v3875, 0.0
      %v3908 = vsel %vm2724, %v3876, 0.0
      %v3909 = vsel %vm2725, %v3877, 0.0
      %v3910 = vsel %vm2726, %v3878, 0.0
      %v3911 = vsel %vm2727, %v3879, 0.0
      %v3912 = vsel %vm2728, %v3880, 0.0
      %v3913 = vsel %vm2729, %v3881, 0.0
      %v3914 = vsel %vm2730, %v3882, 0.0
      %3947 = vrot.lane.b32.xlu0 %v3883, 16
      %v3948 = vpop.permute.xlu0 %3947
      %3949 = vrot.lane.b32.xlu0 %v3884, 16
      %v3950 = vpop.permute.xlu0 %3949
      %3951 = vrot.lane.b32.xlu0 %v3885, 16
      %v3952 = vpop.permute.xlu0 %3951
      %3953 = vrot.lane.b32.xlu0 %v3886, 16
      %v3954 = vpop.permute.xlu0 %3953
      %3955 = vrot.lane.b32.xlu0 %v3887, 16
      %v3956 = vpop.permute.xlu0 %3955
      %3957 = vrot.lane.b32.xlu0 %v3888, 16
      %v3958 = vpop.permute.xlu0 %3957
      %3959 = vrot.lane.b32.xlu0 %v3889, 16
      %v3960 = vpop.permute.xlu0 %3959
      %3961 = vrot.lane.b32.xlu0 %v3890, 16
      %v3962 = vpop.permute.xlu0 %3961
      %3963 = vrot.lane.b32.xlu0 %v3891, 16
      %v3964 = vpop.permute.xlu0 %3963
      %3965 = vrot.lane.b32.xlu0 %v3892, 16
      %v3966 = vpop.permute.xlu0 %3965
      %3967 = vrot.lane.b32.xlu0 %v3893, 16
      %v3968 = vpop.permute.xlu0 %3967
      %3969 = vrot.lane.b32.xlu0 %v3894, 16
      %v3970 = vpop.permute.xlu0 %3969
      %3971 = vrot.lane.b32.xlu0 %v3895, 16
      %v3972 = vpop.permute.xlu0 %3971
      %3973 = vrot.lane.b32.xlu0 %v3896, 16
      %v3974 = vpop.permute.xlu0 %3973
      %3975 = vrot.lane.b32.xlu0 %v3897, 16
      %v3976 = vpop.permute.xlu0 %3975
      %3977 = vrot.lane.b32.xlu0 %v3898, 16
      %v3978 = vpop.permute.xlu0 %3977
      %3979 = vrot.lane.b32.xlu0 %v3899, 16
      %v3980 = vpop.permute.xlu0 %3979
      %3981 = vrot.lane.b32.xlu0 %v3900, 16
      %v3982 = vpop.permute.xlu0 %3981
      %3983 = vrot.lane.b32.xlu0 %v3901, 16
      %v3984 = vpop.permute.xlu0 %3983
      %3985 = vrot.lane.b32.xlu0 %v3902, 16
      %v3986 = vpop.permute.xlu0 %3985
      %3987 = vrot.lane.b32.xlu0 %v3903, 16
      %v3988 = vpop.permute.xlu0 %3987
      %3989 = vrot.lane.b32.xlu0 %v3904, 16
      %v3990 = vpop.permute.xlu0 %3989
      %3991 = vrot.lane.b32.xlu0 %v3905, 16
      %v3992 = vpop.permute.xlu0 %3991
      %3993 = vrot.lane.b32.xlu0 %v3906, 16
      %v3994 = vpop.permute.xlu0 %3993
      %3995 = vrot.lane.b32.xlu0 %v3907, 16
      %v3996 = vpop.permute.xlu0 %3995
      %3997 = vrot.lane.b32.xlu0 %v3908, 16
      %v3998 = vpop.permute.xlu0 %3997
      %3999 = vrot.lane.b32.xlu0 %v3909, 16
      %v4000 = vpop.permute.xlu0 %3999
      %4001 = vrot.lane.b32.xlu0 %v3910, 16
      %v4002 = vpop.permute.xlu0 %4001
      %4003 = vrot.lane.b32.xlu0 %v3911, 16
      %v4004 = vpop.permute.xlu0 %4003
      %4005 = vrot.lane.b32.xlu0 %v3912, 16
      %v4006 = vpop.permute.xlu0 %4005
      %4007 = vrot.lane.b32.xlu0 %v3913, 16
      %v4008 = vpop.permute.xlu0 %4007
      %4009 = vrot.lane.b32.xlu0 %v3914, 16
      %v4010 = vpop.permute.xlu0 %4009
      %4043 = vst.msk [vmem:[#allocation4 + $0x10] sm:$0xff] %vm772, %v3948
      %4044 = vst.msk [vmem:[#allocation4 + $0x30] sm:$0xff] %vm772, %v3950
      %4045 = vst.msk [vmem:[#allocation4 + $0x50] sm:$0xff] %vm772, %v3952
      %4046 = vst.msk [vmem:[#allocation4 + $0x70] sm:$0xff] %vm772, %v3954
      %4047 = vst.msk [vmem:[#allocation4 + $0x90] sm:$0xff] %vm772, %v3956
      %4048 = vst.msk [vmem:[#allocation4 + $0xb0] sm:$0xff] %vm772, %v3958
      %4049 = vst.msk [vmem:[#allocation4 + $0xd0] sm:$0xff] %vm772, %v3960
      %4050 = vst.msk [vmem:[#allocation4 + $0xf0] sm:$0xff] %vm772, %v3962
      %4051 = vst.msk [vmem:[#allocation4 + $0x110] sm:$0xff] %vm772, %v3964
      %4052 = vst.msk [vmem:[#allocation4 + $0x130] sm:$0xff] %vm772, %v3966
      %4053 = vst.msk [vmem:[#allocation4 + $0x150] sm:$0xff] %vm772, %v3968
      %4054 = vst.msk [vmem:[#allocation4 + $0x170] sm:$0xff] %vm772, %v3970
      %4055 = vst.msk [vmem:[#allocation4 + $0x190] sm:$0xff] %vm772, %v3972
      %4056 = vst.msk [vmem:[#allocation4 + $0x1b0] sm:$0xff] %vm772, %v3974
      %4057 = vst.msk [vmem:[#allocation4 + $0x1d0] sm:$0xff] %vm772, %v3976
      %4058 = vst.msk [vmem:[#allocation4 + $0x1f0] sm:$0xff] %vm772, %v3978
      %4059 = vst.msk [vmem:[#allocation4 + $0x210] sm:$0xff] %vm772, %v3980
      %4060 = vst.msk [vmem:[#allocation4 + $0x230] sm:$0xff] %vm772, %v3982
      %4061 = vst.msk [vmem:[#allocation4 + $0x250] sm:$0xff] %vm772, %v3984
      %4062 = vst.msk [vmem:[#allocation4 + $0x270] sm:$0xff] %vm772, %v3986
      %4063 = vst.msk [vmem:[#allocation4 + $0x290] sm:$0xff] %vm772, %v3988
      %4064 = vst.msk [vmem:[#allocation4 + $0x2b0] sm:$0xff] %vm772, %v3990
      %4065 = vst.msk [vmem:[#allocation4 + $0x2d0] sm:$0xff] %vm772, %v3992
      %4066 = vst.msk [vmem:[#allocation4 + $0x2f0] sm:$0xff] %vm772, %v3994
      %4067 = vst.msk [vmem:[#allocation4 + $0x310] sm:$0xff] %vm772, %v3996
      %4068 = vst.msk [vmem:[#allocation4 + $0x330] sm:$0xff] %vm772, %v3998
      %4069 = vst.msk [vmem:[#allocation4 + $0x350] sm:$0xff] %vm772, %v4000
      %4070 = vst.msk [vmem:[#allocation4 + $0x370] sm:$0xff] %vm772, %v4002
      %4071 = vst.msk [vmem:[#allocation4 + $0x390] sm:$0xff] %vm772, %v4004
      %4072 = vst.msk [vmem:[#allocation4 + $0x3b0] sm:$0xff] %vm772, %v4006
      %4073 = vst.msk [vmem:[#allocation4 + $0x3d0] sm:$0xff] %vm772, %v4008
      %4074 = vst.msk [vmem:[#allocation4 + $0x3f0] sm:$0xff] %vm772, %v4010
      %v4075 = vld [vmem:[#allocation2 + $0x5] sm:$0xff]
      %v4076 = vld [vmem:[#allocation2 + $0xd] sm:$0xff]
      %v4077 = vld [vmem:[#allocation2 + $0x15] sm:$0xff]
      %v4078 = vld [vmem:[#allocation2 + $0x1d] sm:$0xff]
      %v4079 = vld [vmem:[#allocation2 + $0x25] sm:$0xff]
      %v4080 = vld [vmem:[#allocation2 + $0x2d] sm:$0xff]
      %v4081 = vld [vmem:[#allocation2 + $0x35] sm:$0xff]
      %v4082 = vld [vmem:[#allocation2 + $0x3d] sm:$0xff]
      %v4083 = vld [vmem:[#allocation2 + $0x45] sm:$0xff]
      %v4084 = vld [vmem:[#allocation2 + $0x4d] sm:$0xff]
      %v4085 = vld [vmem:[#allocation2 + $0x55] sm:$0xff]
      %v4086 = vld [vmem:[#allocation2 + $0x5d] sm:$0xff]
      %v4087 = vld [vmem:[#allocation2 + $0x65] sm:$0xff]
      %v4088 = vld [vmem:[#allocation2 + $0x6d] sm:$0xff]
      %v4089 = vld [vmem:[#allocation2 + $0x75] sm:$0xff]
      %v4090 = vld [vmem:[#allocation2 + $0x7d] sm:$0xff]
      %v4091 = vld [vmem:[#allocation2 + $0x85] sm:$0xff]
      %v4092 = vld [vmem:[#allocation2 + $0x8d] sm:$0xff]
      %v4093 = vld [vmem:[#allocation2 + $0x95] sm:$0xff]
      %v4094 = vld [vmem:[#allocation2 + $0x9d] sm:$0xff]
      %v4095 = vld [vmem:[#allocation2 + $0xa5] sm:$0xff]
      %v4096 = vld [vmem:[#allocation2 + $0xad] sm:$0xff]
      %v4097 = vld [vmem:[#allocation2 + $0xb5] sm:$0xff]
      %v4098 = vld [vmem:[#allocation2 + $0xbd] sm:$0xff]
      %v4099 = vld [vmem:[#allocation2 + $0xc5] sm:$0xff]
      %v4100 = vld [vmem:[#allocation2 + $0xcd] sm:$0xff]
      %v4101 = vld [vmem:[#allocation2 + $0xd5] sm:$0xff]
      %v4102 = vld [vmem:[#allocation2 + $0xdd] sm:$0xff]
      %v4103 = vld [vmem:[#allocation2 + $0xe5] sm:$0xff]
      %v4104 = vld [vmem:[#allocation2 + $0xed] sm:$0xff]
      %v4105 = vld [vmem:[#allocation2 + $0xf5] sm:$0xff]
      %v4106 = vld [vmem:[#allocation2 + $0xfd] sm:$0xff]
      %vm4107 = vcmp.ge.s32.totalorder %v484, 3
      %vm4108 = vcmp.ge.s32.totalorder %v485, 3
      %vm4109 = vcmp.ge.s32.totalorder %v486, 3
      %vm4110 = vcmp.ge.s32.totalorder %v487, 3
      %vm4111 = vcmp.ge.s32.totalorder %v488, 3
      %vm4112 = vcmp.ge.s32.totalorder %v489, 3
      %vm4113 = vcmp.ge.s32.totalorder %v490, 3
      %vm4114 = vcmp.ge.s32.totalorder %v491, 3
      %vm4115 = vcmp.ge.s32.totalorder %v492, 3
      %vm4116 = vcmp.ge.s32.totalorder %v493, 3
      %vm4117 = vcmp.ge.s32.totalorder %v494, 3
      %vm4118 = vcmp.ge.s32.totalorder %v495, 3
      %vm4119 = vcmp.ge.s32.totalorder %v496, 3
      %vm4120 = vcmp.ge.s32.totalorder %v497, 3
      %vm4121 = vcmp.ge.s32.totalorder %v498, 3
      %vm4122 = vcmp.ge.s32.totalorder %v499, 3
      %vm4123 = vcmp.ge.s32.totalorder %v500, 3
      %vm4124 = vcmp.ge.s32.totalorder %v501, 3
      %vm4125 = vcmp.ge.s32.totalorder %v502, 3
      %vm4126 = vcmp.ge.s32.totalorder %v503, 3
      %vm4127 = vcmp.ge.s32.totalorder %v504, 3
      %vm4128 = vcmp.ge.s32.totalorder %v505, 3
      %vm4129 = vcmp.ge.s32.totalorder %v506, 3
      %vm4130 = vcmp.ge.s32.totalorder %v507, 3
      %vm4131 = vcmp.ge.s32.totalorder %v508, 3
      %vm4132 = vcmp.ge.s32.totalorder %v509, 3
      %vm4133 = vcmp.ge.s32.totalorder %v510, 3
      %vm4134 = vcmp.ge.s32.totalorder %v511, 3
      %vm4135 = vcmp.ge.s32.totalorder %v512, 3
      %vm4136 = vcmp.ge.s32.totalorder %v513, 3
      %vm4137 = vcmp.ge.s32.totalorder %v514, 3
      %vm4138 = vcmp.ge.s32.totalorder %v515, 3
      %v4139 = vsel %vm4107, %v4075, 0.0
      %v4140 = vsel %vm4108, %v4076, 0.0
      %v4141 = vsel %vm4109, %v4077, 0.0
      %v4142 = vsel %vm4110, %v4078, 0.0
      %v4143 = vsel %vm4111, %v4079, 0.0
      %v4144 = vsel %vm4112, %v4080, 0.0
      %v4145 = vsel %vm4113, %v4081, 0.0
      %v4146 = vsel %vm4114, %v4082, 0.0
      %v4147 = vsel %vm4115, %v4083, 0.0
      %v4148 = vsel %vm4116, %v4084, 0.0
      %v4149 = vsel %vm4117, %v4085, 0.0
      %v4150 = vsel %vm4118, %v4086, 0.0
      %v4151 = vsel %vm4119, %v4087, 0.0
      %v4152 = vsel %vm4120, %v4088, 0.0
      %v4153 = vsel %vm4121, %v4089, 0.0
      %v4154 = vsel %vm4122, %v4090, 0.0
      %v4155 = vsel %vm4123, %v4091, 0.0
      %v4156 = vsel %vm4124, %v4092, 0.0
      %v4157 = vsel %vm4125, %v4093, 0.0
      %v4158 = vsel %vm4126, %v4094, 0.0
      %v4159 = vsel %vm4127, %v4095, 0.0
      %v4160 = vsel %vm4128, %v4096, 0.0
      %v4161 = vsel %vm4129, %v4097, 0.0
      %v4162 = vsel %vm4130, %v4098, 0.0
      %v4163 = vsel %vm4131, %v4099, 0.0
      %v4164 = vsel %vm4132, %v4100, 0.0
      %v4165 = vsel %vm4133, %v4101, 0.0
      %v4166 = vsel %vm4134, %v4102, 0.0
      %v4167 = vsel %vm4135, %v4103, 0.0
      %v4168 = vsel %vm4136, %v4104, 0.0
      %v4169 = vsel %vm4137, %v4105, 0.0
      %v4170 = vsel %vm4138, %v4106, 0.0
      %4203 = vrot.lane.b32.xlu0 %v4139, 32
      %v4204 = vpop.permute.xlu0 %4203
      %4205 = vrot.lane.b32.xlu0 %v4140, 32
      %v4206 = vpop.permute.xlu0 %4205
      %4207 = vrot.lane.b32.xlu0 %v4141, 32
      %v4208 = vpop.permute.xlu0 %4207
      %4209 = vrot.lane.b32.xlu0 %v4142, 32
      %v4210 = vpop.permute.xlu0 %4209
      %4211 = vrot.lane.b32.xlu0 %v4143, 32
      %v4212 = vpop.permute.xlu0 %4211
      %4213 = vrot.lane.b32.xlu0 %v4144, 32
      %v4214 = vpop.permute.xlu0 %4213
      %4215 = vrot.lane.b32.xlu0 %v4145, 32
      %v4216 = vpop.permute.xlu0 %4215
      %4217 = vrot.lane.b32.xlu0 %v4146, 32
      %v4218 = vpop.permute.xlu0 %4217
      %4219 = vrot.lane.b32.xlu0 %v4147, 32
      %v4220 = vpop.permute.xlu0 %4219
      %4221 = vrot.lane.b32.xlu0 %v4148, 32
      %v4222 = vpop.permute.xlu0 %4221
      %4223 = vrot.lane.b32.xlu0 %v4149, 32
      %v4224 = vpop.permute.xlu0 %4223
      %4225 = vrot.lane.b32.xlu0 %v4150, 32
      %v4226 = vpop.permute.xlu0 %4225
      %4227 = vrot.lane.b32.xlu0 %v4151, 32
      %v4228 = vpop.permute.xlu0 %4227
      %4229 = vrot.lane.b32.xlu0 %v4152, 32
      %v4230 = vpop.permute.xlu0 %4229
      %4231 = vrot.lane.b32.xlu0 %v4153, 32
      %v4232 = vpop.permute.xlu0 %4231
      %4233 = vrot.lane.b32.xlu0 %v4154, 32
      %v4234 = vpop.permute.xlu0 %4233
      %4235 = vrot.lane.b32.xlu0 %v4155, 32
      %v4236 = vpop.permute.xlu0 %4235
      %4237 = vrot.lane.b32.xlu0 %v4156, 32
      %v4238 = vpop.permute.xlu0 %4237
      %4239 = vrot.lane.b32.xlu0 %v4157, 32
      %v4240 = vpop.permute.xlu0 %4239
      %4241 = vrot.lane.b32.xlu0 %v4158, 32
      %v4242 = vpop.permute.xlu0 %4241
      %4243 = vrot.lane.b32.xlu0 %v4159, 32
      %v4244 = vpop.permute.xlu0 %4243
      %4245 = vrot.lane.b32.xlu0 %v4160, 32
      %v4246 = vpop.permute.xlu0 %4245
      %4247 = vrot.lane.b32.xlu0 %v4161, 32
      %v4248 = vpop.permute.xlu0 %4247
      %4249 = vrot.lane.b32.xlu0 %v4162, 32
      %v4250 = vpop.permute.xlu0 %4249
      %4251 = vrot.lane.b32.xlu0 %v4163, 32
      %v4252 = vpop.permute.xlu0 %4251
      %4253 = vrot.lane.b32.xlu0 %v4164, 32
      %v4254 = vpop.permute.xlu0 %4253
      %4255 = vrot.lane.b32.xlu0 %v4165, 32
      %v4256 = vpop.permute.xlu0 %4255
      %4257 = vrot.lane.b32.xlu0 %v4166, 32
      %v4258 = vpop.permute.xlu0 %4257
      %4259 = vrot.lane.b32.xlu0 %v4167, 32
      %v4260 = vpop.permute.xlu0 %4259
      %4261 = vrot.lane.b32.xlu0 %v4168, 32
      %v4262 = vpop.permute.xlu0 %4261
      %4263 = vrot.lane.b32.xlu0 %v4169, 32
      %v4264 = vpop.permute.xlu0 %4263
      %4265 = vrot.lane.b32.xlu0 %v4170, 32
      %v4266 = vpop.permute.xlu0 %4265
      %4299 = vst.msk [vmem:[#allocation4 + $0x10] sm:$0xff] %vm1029, %v4204
      %4300 = vst.msk [vmem:[#allocation4 + $0x30] sm:$0xff] %vm1029, %v4206
      %4301 = vst.msk [vmem:[#allocation4 + $0x50] sm:$0xff] %vm1029, %v4208
      %4302 = vst.msk [vmem:[#allocation4 + $0x70] sm:$0xff] %vm1029, %v4210
      %4303 = vst.msk [vmem:[#allocation4 + $0x90] sm:$0xff] %vm1029, %v4212
      %4304 = vst.msk [vmem:[#allocation4 + $0xb0] sm:$0xff] %vm1029, %v4214
      %4305 = vst.msk [vmem:[#allocation4 + $0xd0] sm:$0xff] %vm1029, %v4216
      %4306 = vst.msk [vmem:[#allocation4 + $0xf0] sm:$0xff] %vm1029, %v4218
      %4307 = vst.msk [vmem:[#allocation4 + $0x110] sm:$0xff] %vm1029, %v4220
      %4308 = vst.msk [vmem:[#allocation4 + $0x130] sm:$0xff] %vm1029, %v4222
      %4309 = vst.msk [vmem:[#allocation4 + $0x150] sm:$0xff] %vm1029, %v4224
      %4310 = vst.msk [vmem:[#allocation4 + $0x170] sm:$0xff] %vm1029, %v4226
      %4311 = vst.msk [vmem:[#allocation4 + $0x190] sm:$0xff] %vm1029, %v4228
      %4312 = vst.msk [vmem:[#allocation4 + $0x1b0] sm:$0xff] %vm1029, %v4230
      %4313 = vst.msk [vmem:[#allocation4 + $0x1d0] sm:$0xff] %vm1029, %v4232
      %4314 = vst.msk [vmem:[#allocation4 + $0x1f0] sm:$0xff] %vm1029, %v4234
      %4315 = vst.msk [vmem:[#allocation4 + $0x210] sm:$0xff] %vm1029, %v4236
      %4316 = vst.msk [vmem:[#allocation4 + $0x230] sm:$0xff] %vm1029, %v4238
      %4317 = vst.msk [vmem:[#allocation4 + $0x250] sm:$0xff] %vm1029, %v4240
      %4318 = vst.msk [vmem:[#allocation4 + $0x270] sm:$0xff] %vm1029, %v4242
      %4319 = vst.msk [vmem:[#allocation4 + $0x290] sm:$0xff] %vm1029, %v4244
      %4320 = vst.msk [vmem:[#allocation4 + $0x2b0] sm:$0xff] %vm1029, %v4246
      %4321 = vst.msk [vmem:[#allocation4 + $0x2d0] sm:$0xff] %vm1029, %v4248
      %4322 = vst.msk [vmem:[#allocation4 + $0x2f0] sm:$0xff] %vm1029, %v4250
      %4323 = vst.msk [vmem:[#allocation4 + $0x310] sm:$0xff] %vm1029, %v4252
      %4324 = vst.msk [vmem:[#allocation4 + $0x330] sm:$0xff] %vm1029, %v4254
      %4325 = vst.msk [vmem:[#allocation4 + $0x350] sm:$0xff] %vm1029, %v4256
      %4326 = vst.msk [vmem:[#allocation4 + $0x370] sm:$0xff] %vm1029, %v4258
      %4327 = vst.msk [vmem:[#allocation4 + $0x390] sm:$0xff] %vm1029, %v4260
      %4328 = vst.msk [vmem:[#allocation4 + $0x3b0] sm:$0xff] %vm1029, %v4262
      %4329 = vst.msk [vmem:[#allocation4 + $0x3d0] sm:$0xff] %vm1029, %v4264
      %4330 = vst.msk [vmem:[#allocation4 + $0x3f0] sm:$0xff] %vm1029, %v4266
      %v4331 = vld [vmem:[#allocation2 + $0x8] sm:$0xff]
      %v4332 = vld [vmem:[#allocation2 + $0x10] sm:$0xff]
      %v4333 = vld [vmem:[#allocation2 + $0x18] sm:$0xff]
      %v4334 = vld [vmem:[#allocation2 + $0x20] sm:$0xff]
      %v4335 = vld [vmem:[#allocation2 + $0x28] sm:$0xff]
      %v4336 = vld [vmem:[#allocation2 + $0x30] sm:$0xff]
      %v4337 = vld [vmem:[#allocation2 + $0x38] sm:$0xff]
      %v4338 = vld [vmem:[#allocation2 + $0x40] sm:$0xff]
      %v4339 = vld [vmem:[#allocation2 + $0x48] sm:$0xff]
      %v4340 = vld [vmem:[#allocation2 + $0x50] sm:$0xff]
      %v4341 = vld [vmem:[#allocation2 + $0x58] sm:$0xff]
      %v4342 = vld [vmem:[#allocation2 + $0x60] sm:$0xff]
      %v4343 = vld [vmem:[#allocation2 + $0x68] sm:$0xff]
      %v4344 = vld [vmem:[#allocation2 + $0x70] sm:$0xff]
      %v4345 = vld [vmem:[#allocation2 + $0x78] sm:$0xff]
      %v4346 = vld [vmem:[#allocation2 + $0x80] sm:$0xff]
      %v4347 = vld [vmem:[#allocation2 + $0x88] sm:$0xff]
      %v4348 = vld [vmem:[#allocation2 + $0x90] sm:$0xff]
      %v4349 = vld [vmem:[#allocation2 + $0x98] sm:$0xff]
      %v4350 = vld [vmem:[#allocation2 + $0xa0] sm:$0xff]
      %v4351 = vld [vmem:[#allocation2 + $0xa8] sm:$0xff]
      %v4352 = vld [vmem:[#allocation2 + $0xb0] sm:$0xff]
      %v4353 = vld [vmem:[#allocation2 + $0xb8] sm:$0xff]
      %v4354 = vld [vmem:[#allocation2 + $0xc0] sm:$0xff]
      %v4355 = vld [vmem:[#allocation2 + $0xc8] sm:$0xff]
      %v4356 = vld [vmem:[#allocation2 + $0xd0] sm:$0xff]
      %v4357 = vld [vmem:[#allocation2 + $0xd8] sm:$0xff]
      %v4358 = vld [vmem:[#allocation2 + $0xe0] sm:$0xff]
      %v4359 = vld [vmem:[#allocation2 + $0xe8] sm:$0xff]
      %v4360 = vld [vmem:[#allocation2 + $0xf0] sm:$0xff]
      %v4361 = vld [vmem:[#allocation2 + $0xf8] sm:$0xff]
      %v4362 = vld [vmem:[#allocation2 + $0x100] sm:$0xff]
      %4395 = vrot.lane.b32.xlu0 %v4331, 48
      %v4396 = vpop.permute.xlu0 %4395
      %4397 = vrot.lane.b32.xlu0 %v4332, 48
      %v4398 = vpop.permute.xlu0 %4397
      %4399 = vrot.lane.b32.xlu0 %v4333, 48
      %v4400 = vpop.permute.xlu0 %4399
      %4401 = vrot.lane.b32.xlu0 %v4334, 48
      %v4402 = vpop.permute.xlu0 %4401
      %4403 = vrot.lane.b32.xlu0 %v4335, 48
      %v4404 = vpop.permute.xlu0 %4403
      %4405 = vrot.lane.b32.xlu0 %v4336, 48
      %v4406 = vpop.permute.xlu0 %4405
      %4407 = vrot.lane.b32.xlu0 %v4337, 48
      %v4408 = vpop.permute.xlu0 %4407
      %4409 = vrot.lane.b32.xlu0 %v4338, 48
      %v4410 = vpop.permute.xlu0 %4409
      %4411 = vrot.lane.b32.xlu0 %v4339, 48
      %v4412 = vpop.permute.xlu0 %4411
      %4413 = vrot.lane.b32.xlu0 %v4340, 48
      %v4414 = vpop.permute.xlu0 %4413
      %4415 = vrot.lane.b32.xlu0 %v4341, 48
      %v4416 = vpop.permute.xlu0 %4415
      %4417 = vrot.lane.b32.xlu0 %v4342, 48
      %v4418 = vpop.permute.xlu0 %4417
      %4419 = vrot.lane.b32.xlu0 %v4343, 48
      %v4420 = vpop.permute.xlu0 %4419
      %4421 = vrot.lane.b32.xlu0 %v4344, 48
      %v4422 = vpop.permute.xlu0 %4421
      %4423 = vrot.lane.b32.xlu0 %v4345, 48
      %v4424 = vpop.permute.xlu0 %4423
      %4425 = vrot.lane.b32.xlu0 %v4346, 48
      %v4426 = vpop.permute.xlu0 %4425
      %4427 = vrot.lane.b32.xlu0 %v4347, 48
      %v4428 = vpop.permute.xlu0 %4427
      %4429 = vrot.lane.b32.xlu0 %v4348, 48
      %v4430 = vpop.permute.xlu0 %4429
      %4431 = vrot.lane.b32.xlu0 %v4349, 48
      %v4432 = vpop.permute.xlu0 %4431
      %4433 = vrot.lane.b32.xlu0 %v4350, 48
      %v4434 = vpop.permute.xlu0 %4433
      %4435 = vrot.lane.b32.xlu0 %v4351, 48
      %v4436 = vpop.permute.xlu0 %4435
      %4437 = vrot.lane.b32.xlu0 %v4352, 48
      %v4438 = vpop.permute.xlu0 %4437
      %4439 = vrot.lane.b32.xlu0 %v4353, 48
      %v4440 = vpop.permute.xlu0 %4439
      %4441 = vrot.lane.b32.xlu0 %v4354, 48
      %v4442 = vpop.permute.xlu0 %4441
      %4443 = vrot.lane.b32.xlu0 %v4355, 48
      %v4444 = vpop.permute.xlu0 %4443
      %4445 = vrot.lane.b32.xlu0 %v4356, 48
      %v4446 = vpop.permute.xlu0 %4445
      %4447 = vrot.lane.b32.xlu0 %v4357, 48
      %v4448 = vpop.permute.xlu0 %4447
      %4449 = vrot.lane.b32.xlu0 %v4358, 48
      %v4450 = vpop.permute.xlu0 %4449
      %4451 = vrot.lane.b32.xlu0 %v4359, 48
      %v4452 = vpop.permute.xlu0 %4451
      %4453 = vrot.lane.b32.xlu0 %v4360, 48
      %v4454 = vpop.permute.xlu0 %4453
      %4455 = vrot.lane.b32.xlu0 %v4361, 48
      %v4456 = vpop.permute.xlu0 %4455
      %4457 = vrot.lane.b32.xlu0 %v4362, 48
      %v4458 = vpop.permute.xlu0 %4457
      %4491 = vst.msk [vmem:[#allocation4 + $0x10] sm:$0xff] %vm1254, %v4396
      %4492 = vst.msk [vmem:[#allocation4 + $0x30] sm:$0xff] %vm1254, %v4398
      %4493 = vst.msk [vmem:[#allocation4 + $0x50] sm:$0xff] %vm1254, %v4400
      %4494 = vst.msk [vmem:[#allocation4 + $0x70] sm:$0xff] %vm1254, %v4402
      %4495 = vst.msk [vmem:[#allocation4 + $0x90] sm:$0xff] %vm1254, %v4404
      %4496 = vst.msk [vmem:[#allocation4 + $0xb0] sm:$0xff] %vm1254, %v4406
      %4497 = vst.msk [vmem:[#allocation4 + $0xd0] sm:$0xff] %vm1254, %v4408
      %4498 = vst.msk [vmem:[#allocation4 + $0xf0] sm:$0xff] %vm1254, %v4410
      %4499 = vst.msk [vmem:[#allocation4 + $0x110] sm:$0xff] %vm1254, %v4412
      %4500 = vst.msk [vmem:[#allocation4 + $0x130] sm:$0xff] %vm1254, %v4414
      %4501 = vst.msk [vmem:[#allocation4 + $0x150] sm:$0xff] %vm1254, %v4416
      %4502 = vst.msk [vmem:[#allocation4 + $0x170] sm:$0xff] %vm1254, %v4418
      %4503 = vst.msk [vmem:[#allocation4 + $0x190] sm:$0xff] %vm1254, %v4420
      %4504 = vst.msk [vmem:[#allocation4 + $0x1b0] sm:$0xff] %vm1254, %v4422
      %4505 = vst.msk [vmem:[#allocation4 + $0x1d0] sm:$0xff] %vm1254, %v4424
      %4506 = vst.msk [vmem:[#allocation4 + $0x1f0] sm:$0xff] %vm1254, %v4426
      %4507 = vst.msk [vmem:[#allocation4 + $0x210] sm:$0xff] %vm1254, %v4428
      %4508 = vst.msk [vmem:[#allocation4 + $0x230] sm:$0xff] %vm1254, %v4430
      %4509 = vst.msk [vmem:[#allocation4 + $0x250] sm:$0xff] %vm1254, %v4432
      %4510 = vst.msk [vmem:[#allocation4 + $0x270] sm:$0xff] %vm1254, %v4434
      %4511 = vst.msk [vmem:[#allocation4 + $0x290] sm:$0xff] %vm1254, %v4436
      %4512 = vst.msk [vmem:[#allocation4 + $0x2b0] sm:$0xff] %vm1254, %v4438
      %4513 = vst.msk [vmem:[#allocation4 + $0x2d0] sm:$0xff] %vm1254, %v4440
      %4514 = vst.msk [vmem:[#allocation4 + $0x2f0] sm:$0xff] %vm1254, %v4442
      %4515 = vst.msk [vmem:[#allocation4 + $0x310] sm:$0xff] %vm1254, %v4444
      %4516 = vst.msk [vmem:[#allocation4 + $0x330] sm:$0xff] %vm1254, %v4446
      %4517 = vst.msk [vmem:[#allocation4 + $0x350] sm:$0xff] %vm1254, %v4448
      %4518 = vst.msk [vmem:[#allocation4 + $0x370] sm:$0xff] %vm1254, %v4450
      %4519 = vst.msk [vmem:[#allocation4 + $0x390] sm:$0xff] %vm1254, %v4452
      %4520 = vst.msk [vmem:[#allocation4 + $0x3b0] sm:$0xff] %vm1254, %v4454
      %4521 = vst.msk [vmem:[#allocation4 + $0x3d0] sm:$0xff] %vm1254, %v4456
      %4522 = vst.msk [vmem:[#allocation4 + $0x3f0] sm:$0xff] %vm1254, %v4458
      %v4523 = vld [vmem:[#allocation2 + $0xb] sm:$0xff]
      %v4524 = vld [vmem:[#allocation2 + $0x13] sm:$0xff]
      %v4525 = vld [vmem:[#allocation2 + $0x1b] sm:$0xff]
      %v4526 = vld [vmem:[#allocation2 + $0x23] sm:$0xff]
      %v4527 = vld [vmem:[#allocation2 + $0x2b] sm:$0xff]
      %v4528 = vld [vmem:[#allocation2 + $0x33] sm:$0xff]
      %v4529 = vld [vmem:[#allocation2 + $0x3b] sm:$0xff]
      %v4530 = vld [vmem:[#allocation2 + $0x43] sm:$0xff]
      %v4531 = vld [vmem:[#allocation2 + $0x4b] sm:$0xff]
      %v4532 = vld [vmem:[#allocation2 + $0x53] sm:$0xff]
      %v4533 = vld [vmem:[#allocation2 + $0x5b] sm:$0xff]
      %v4534 = vld [vmem:[#allocation2 + $0x63] sm:$0xff]
      %v4535 = vld [vmem:[#allocation2 + $0x6b] sm:$0xff]
      %v4536 = vld [vmem:[#allocation2 + $0x73] sm:$0xff]
      %v4537 = vld [vmem:[#allocation2 + $0x7b] sm:$0xff]
      %v4538 = vld [vmem:[#allocation2 + $0x83] sm:$0xff]
      %v4539 = vld [vmem:[#allocation2 + $0x8b] sm:$0xff]
      %v4540 = vld [vmem:[#allocation2 + $0x93] sm:$0xff]
      %v4541 = vld [vmem:[#allocation2 + $0x9b] sm:$0xff]
      %v4542 = vld [vmem:[#allocation2 + $0xa3] sm:$0xff]
      %v4543 = vld [vmem:[#allocation2 + $0xab] sm:$0xff]
      %v4544 = vld [vmem:[#allocation2 + $0xb3] sm:$0xff]
      %v4545 = vld [vmem:[#allocation2 + $0xbb] sm:$0xff]
      %v4546 = vld [vmem:[#allocation2 + $0xc3] sm:$0xff]
      %v4547 = vld [vmem:[#allocation2 + $0xcb] sm:$0xff]
      %v4548 = vld [vmem:[#allocation2 + $0xd3] sm:$0xff]
      %v4549 = vld [vmem:[#allocation2 + $0xdb] sm:$0xff]
      %v4550 = vld [vmem:[#allocation2 + $0xe3] sm:$0xff]
      %v4551 = vld [vmem:[#allocation2 + $0xeb] sm:$0xff]
      %v4552 = vld [vmem:[#allocation2 + $0xf3] sm:$0xff]
      %v4553 = vld [vmem:[#allocation2 + $0xfb] sm:$0xff]
      %v4554 = vld [vmem:[#allocation2 + $0x103] sm:$0xff]
      %vm4555 = vcmp.lt.s32.totalorder %v484, 13
      %vm4556 = vcmp.lt.s32.totalorder %v485, 13
      %vm4557 = vcmp.lt.s32.totalorder %v486, 13
      %vm4558 = vcmp.lt.s32.totalorder %v487, 13
      %vm4559 = vcmp.lt.s32.totalorder %v488, 13
      %vm4560 = vcmp.lt.s32.totalorder %v489, 13
      %vm4561 = vcmp.lt.s32.totalorder %v490, 13
      %vm4562 = vcmp.lt.s32.totalorder %v491, 13
      %vm4563 = vcmp.lt.s32.totalorder %v492, 13
      %vm4564 = vcmp.lt.s32.totalorder %v493, 13
      %vm4565 = vcmp.lt.s32.totalorder %v494, 13
      %vm4566 = vcmp.lt.s32.totalorder %v495, 13
      %vm4567 = vcmp.lt.s32.totalorder %v496, 13
      %vm4568 = vcmp.lt.s32.totalorder %v497, 13
      %vm4569 = vcmp.lt.s32.totalorder %v498, 13
      %vm4570 = vcmp.lt.s32.totalorder %v499, 13
      %vm4571 = vcmp.lt.s32.totalorder %v500, 13
      %vm4572 = vcmp.lt.s32.totalorder %v501, 13
      %vm4573 = vcmp.lt.s32.totalorder %v502, 13
      %vm4574 = vcmp.lt.s32.totalorder %v503, 13
      %vm4575 = vcmp.lt.s32.totalorder %v504, 13
      %vm4576 = vcmp.lt.s32.totalorder %v505, 13
      %vm4577 = vcmp.lt.s32.totalorder %v506, 13
      %vm4578 = vcmp.lt.s32.totalorder %v507, 13
      %vm4579 = vcmp.lt.s32.totalorder %v508, 13
      %vm4580 = vcmp.lt.s32.totalorder %v509, 13
      %vm4581 = vcmp.lt.s32.totalorder %v510, 13
      %vm4582 = vcmp.lt.s32.totalorder %v511, 13
      %vm4583 = vcmp.lt.s32.totalorder %v512, 13
      %vm4584 = vcmp.lt.s32.totalorder %v513, 13
      %vm4585 = vcmp.lt.s32.totalorder %v514, 13
      %vm4586 = vcmp.lt.s32.totalorder %v515, 13
      %v4587 = vsel %vm4555, %v4523, 0.0
      %v4588 = vsel %vm4556, %v4524, 0.0
      %v4589 = vsel %vm4557, %v4525, 0.0
      %v4590 = vsel %vm4558, %v4526, 0.0
      %v4591 = vsel %vm4559, %v4527, 0.0
      %v4592 = vsel %vm4560, %v4528, 0.0
      %v4593 = vsel %vm4561, %v4529, 0.0
      %v4594 = vsel %vm4562, %v4530, 0.0
      %v4595 = vsel %vm4563, %v4531, 0.0
      %v4596 = vsel %vm4564, %v4532, 0.0
      %v4597 = vsel %vm4565, %v4533, 0.0
      %v4598 = vsel %vm4566, %v4534, 0.0
      %v4599 = vsel %vm4567, %v4535, 0.0
      %v4600 = vsel %vm4568, %v4536, 0.0
      %v4601 = vsel %vm4569, %v4537, 0.0
      %v4602 = vsel %vm4570, %v4538, 0.0
      %v4603 = vsel %vm4571, %v4539, 0.0
      %v4604 = vsel %vm4572, %v4540, 0.0
      %v4605 = vsel %vm4573, %v4541, 0.0
      %v4606 = vsel %vm4574, %v4542, 0.0
      %v4607 = vsel %vm4575, %v4543, 0.0
      %v4608 = vsel %vm4576, %v4544, 0.0
      %v4609 = vsel %vm4577, %v4545, 0.0
      %v4610 = vsel %vm4578, %v4546, 0.0
      %v4611 = vsel %vm4579, %v4547, 0.0
      %v4612 = vsel %vm4580, %v4548, 0.0
      %v4613 = vsel %vm4581, %v4549, 0.0
      %v4614 = vsel %vm4582, %v4550, 0.0
      %v4615 = vsel %vm4583, %v4551, 0.0
      %v4616 = vsel %vm4584, %v4552, 0.0
      %v4617 = vsel %vm4585, %v4553, 0.0
      %v4618 = vsel %vm4586, %v4554, 0.0
      %4651 = vrot.lane.b32.xlu0 %v4587, 64
      %v4652 = vpop.permute.xlu0 %4651
      %4653 = vrot.lane.b32.xlu0 %v4588, 64
      %v4654 = vpop.permute.xlu0 %4653
      %4655 = vrot.lane.b32.xlu0 %v4589, 64
      %v4656 = vpop.permute.xlu0 %4655
      %4657 = vrot.lane.b32.xlu0 %v4590, 64
      %v4658 = vpop.permute.xlu0 %4657
      %4659 = vrot.lane.b32.xlu0 %v4591, 64
      %v4660 = vpop.permute.xlu0 %4659
      %4661 = vrot.lane.b32.xlu0 %v4592, 64
      %v4662 = vpop.permute.xlu0 %4661
      %4663 = vrot.lane.b32.xlu0 %v4593, 64
      %v4664 = vpop.permute.xlu0 %4663
      %4665 = vrot.lane.b32.xlu0 %v4594, 64
      %v4666 = vpop.permute.xlu0 %4665
      %4667 = vrot.lane.b32.xlu0 %v4595, 64
      %v4668 = vpop.permute.xlu0 %4667
      %4669 = vrot.lane.b32.xlu0 %v4596, 64
      %v4670 = vpop.permute.xlu0 %4669
      %4671 = vrot.lane.b32.xlu0 %v4597, 64
      %v4672 = vpop.permute.xlu0 %4671
      %4673 = vrot.lane.b32.xlu0 %v4598, 64
      %v4674 = vpop.permute.xlu0 %4673
      %4675 = vrot.lane.b32.xlu0 %v4599, 64
      %v4676 = vpop.permute.xlu0 %4675
      %4677 = vrot.lane.b32.xlu0 %v4600, 64
      %v4678 = vpop.permute.xlu0 %4677
      %4679 = vrot.lane.b32.xlu0 %v4601, 64
      %v4680 = vpop.permute.xlu0 %4679
      %4681 = vrot.lane.b32.xlu0 %v4602, 64
      %v4682 = vpop.permute.xlu0 %4681
      %4683 = vrot.lane.b32.xlu0 %v4603, 64
      %v4684 = vpop.permute.xlu0 %4683
      %4685 = vrot.lane.b32.xlu0 %v4604, 64
      %v4686 = vpop.permute.xlu0 %4685
      %4687 = vrot.lane.b32.xlu0 %v4605, 64
      %v4688 = vpop.permute.xlu0 %4687
      %4689 = vrot.lane.b32.xlu0 %v4606, 64
      %v4690 = vpop.permute.xlu0 %4689
      %4691 = vrot.lane.b32.xlu0 %v4607, 64
      %v4692 = vpop.permute.xlu0 %4691
      %4693 = vrot.lane.b32.xlu0 %v4608, 64
      %v4694 = vpop.permute.xlu0 %4693
      %4695 = vrot.lane.b32.xlu0 %v4609, 64
      %v4696 = vpop.permute.xlu0 %4695
      %4697 = vrot.lane.b32.xlu0 %v4610, 64
      %v4698 = vpop.permute.xlu0 %4697
      %4699 = vrot.lane.b32.xlu0 %v4611, 64
      %v4700 = vpop.permute.xlu0 %4699
      %4701 = vrot.lane.b32.xlu0 %v4612, 64
      %v4702 = vpop.permute.xlu0 %4701
      %4703 = vrot.lane.b32.xlu0 %v4613, 64
      %v4704 = vpop.permute.xlu0 %4703
      %4705 = vrot.lane.b32.xlu0 %v4614, 64
      %v4706 = vpop.permute.xlu0 %4705
      %4707 = vrot.lane.b32.xlu0 %v4615, 64
      %v4708 = vpop.permute.xlu0 %4707
      %4709 = vrot.lane.b32.xlu0 %v4616, 64
      %v4710 = vpop.permute.xlu0 %4709
      %4711 = vrot.lane.b32.xlu0 %v4617, 64
      %v4712 = vpop.permute.xlu0 %4711
      %4713 = vrot.lane.b32.xlu0 %v4618, 64
      %v4714 = vpop.permute.xlu0 %4713
      %4747 = vst.msk [vmem:[#allocation4 + $0x10] sm:$0xff] %vm1447, %v4652
      %4748 = vst.msk [vmem:[#allocation4 + $0x30] sm:$0xff] %vm1447, %v4654
      %4749 = vst.msk [vmem:[#allocation4 + $0x50] sm:$0xff] %vm1447, %v4656
      %4750 = vst.msk [vmem:[#allocation4 + $0x70] sm:$0xff] %vm1447, %v4658
      %4751 = vst.msk [vmem:[#allocation4 + $0x90] sm:$0xff] %vm1447, %v4660
      %4752 = vst.msk [vmem:[#allocation4 + $0xb0] sm:$0xff] %vm1447, %v4662
      %4753 = vst.msk [vmem:[#allocation4 + $0xd0] sm:$0xff] %vm1447, %v4664
      %4754 = vst.msk [vmem:[#allocation4 + $0xf0] sm:$0xff] %vm1447, %v4666
      %4755 = vst.msk [vmem:[#allocation4 + $0x110] sm:$0xff] %vm1447, %v4668
      %4756 = vst.msk [vmem:[#allocation4 + $0x130] sm:$0xff] %vm1447, %v4670
      %4757 = vst.msk [vmem:[#allocation4 + $0x150] sm:$0xff] %vm1447, %v4672
      %4758 = vst.msk [vmem:[#allocation4 + $0x170] sm:$0xff] %vm1447, %v4674
      %4759 = vst.msk [vmem:[#allocation4 + $0x190] sm:$0xff] %vm1447, %v4676
      %4760 = vst.msk [vmem:[#allocation4 + $0x1b0] sm:$0xff] %vm1447, %v4678
      %4761 = vst.msk [vmem:[#allocation4 + $0x1d0] sm:$0xff] %vm1447, %v4680
      %4762 = vst.msk [vmem:[#allocation4 + $0x1f0] sm:$0xff] %vm1447, %v4682
      %4763 = vst.msk [vmem:[#allocation4 + $0x210] sm:$0xff] %vm1447, %v4684
      %4764 = vst.msk [vmem:[#allocation4 + $0x230] sm:$0xff] %vm1447, %v4686
      %4765 = vst.msk [vmem:[#allocation4 + $0x250] sm:$0xff] %vm1447, %v4688
      %4766 = vst.msk [vmem:[#allocation4 + $0x270] sm:$0xff] %vm1447, %v4690
      %4767 = vst.msk [vmem:[#allocation4 + $0x290] sm:$0xff] %vm1447, %v4692
      %4768 = vst.msk [vmem:[#allocation4 + $0x2b0] sm:$0xff] %vm1447, %v4694
      %4769 = vst.msk [vmem:[#allocation4 + $0x2d0] sm:$0xff] %vm1447, %v4696
      %4770 = vst.msk [vmem:[#allocation4 + $0x2f0] sm:$0xff] %vm1447, %v4698
      %4771 = vst.msk [vmem:[#allocation4 + $0x310] sm:$0xff] %vm1447, %v4700
      %4772 = vst.msk [vmem:[#allocation4 + $0x330] sm:$0xff] %vm1447, %v4702
      %4773 = vst.msk [vmem:[#allocation4 + $0x350] sm:$0xff] %vm1447, %v4704
      %4774 = vst.msk [vmem:[#allocation4 + $0x370] sm:$0xff] %vm1447, %v4706
      %4775 = vst.msk [vmem:[#allocation4 + $0x390] sm:$0xff] %vm1447, %v4708
      %4776 = vst.msk [vmem:[#allocation4 + $0x3b0] sm:$0xff] %vm1447, %v4710
      %4777 = vst.msk [vmem:[#allocation4 + $0x3d0] sm:$0xff] %vm1447, %v4712
      %4778 = vst.msk [vmem:[#allocation4 + $0x3f0] sm:$0xff] %vm1447, %v4714
      %v4779 = vld [vmem:[#allocation2 + $0x35] sm:$0xff]
      %v4780 = vld [vmem:[#allocation2 + $0x3d] sm:$0xff]
      %v4781 = vld [vmem:[#allocation2 + $0x45] sm:$0xff]
      %v4782 = vld [vmem:[#allocation2 + $0x4d] sm:$0xff]
      %v4783 = vld [vmem:[#allocation2 + $0x55] sm:$0xff]
      %v4784 = vld [vmem:[#allocation2 + $0x5d] sm:$0xff]
      %v4785 = vld [vmem:[#allocation2 + $0x65] sm:$0xff]
      %v4786 = vld [vmem:[#allocation2 + $0x6d] sm:$0xff]
      %v4787 = vld [vmem:[#allocation2 + $0x75] sm:$0xff]
      %v4788 = vld [vmem:[#allocation2 + $0x7d] sm:$0xff]
      %v4789 = vld [vmem:[#allocation2 + $0x85] sm:$0xff]
      %v4790 = vld [vmem:[#allocation2 + $0x8d] sm:$0xff]
      %v4791 = vld [vmem:[#allocation2 + $0x95] sm:$0xff]
      %v4792 = vld [vmem:[#allocation2 + $0x9d] sm:$0xff]
      %v4793 = vld [vmem:[#allocation2 + $0xa5] sm:$0xff]
      %v4794 = vld [vmem:[#allocation2 + $0xad] sm:$0xff]
      %v4795 = vld [vmem:[#allocation2 + $0xb5] sm:$0xff]
      %v4796 = vld [vmem:[#allocation2 + $0xbd] sm:$0xff]
      %v4797 = vld [vmem:[#allocation2 + $0xc5] sm:$0xff]
      %v4798 = vld [vmem:[#allocation2 + $0xcd] sm:$0xff]
      %v4799 = vld [vmem:[#allocation2 + $0xd5] sm:$0xff]
      %v4800 = vld [vmem:[#allocation2 + $0xdd] sm:$0xff]
      %v4801 = vld [vmem:[#allocation2 + $0xe5] sm:$0xff]
      %v4802 = vld [vmem:[#allocation2 + $0xed] sm:$0xff]
      %v4803 = vld [vmem:[#allocation2 + $0xf5] sm:$0xff]
      %v4804 = vld [vmem:[#allocation2 + $0xfd] sm:$0xff]
      %v4805 = vld [vmem:[#allocation2 + $0x105] sm:$0xff]
      %v4806 = vld [vmem:[#allocation2 + $0x10d] sm:$0xff]
      %v4807 = vld [vmem:[#allocation2 + $0x115] sm:$0xff]
      %v4808 = vld [vmem:[#allocation2 + $0x11d] sm:$0xff]
      %v4809 = vld [vmem:[#allocation2 + $0x125] sm:$0xff]
      %v4810 = vld [vmem:[#allocation2 + $0x12d] sm:$0xff]
      %v4811 = vsel %vm4107, %v4779, 0.0
      %v4812 = vsel %vm4108, %v4780, 0.0
      %v4813 = vsel %vm4109, %v4781, 0.0
      %v4814 = vsel %vm4110, %v4782, 0.0
      %v4815 = vsel %vm4111, %v4783, 0.0
      %v4816 = vsel %vm4112, %v4784, 0.0
      %v4817 = vsel %vm4113, %v4785, 0.0
      %v4818 = vsel %vm4114, %v4786, 0.0
      %v4819 = vsel %vm4115, %v4787, 0.0
      %v4820 = vsel %vm4116, %v4788, 0.0
      %v4821 = vsel %vm4117, %v4789, 0.0
      %v4822 = vsel %vm4118, %v4790, 0.0
      %v4823 = vsel %vm4119, %v4791, 0.0
      %v4824 = vsel %vm4120, %v4792, 0.0
      %v4825 = vsel %vm4121, %v4793, 0.0
      %v4826 = vsel %vm4122, %v4794, 0.0
      %v4827 = vsel %vm4123, %v4795, 0.0
      %v4828 = vsel %vm4124, %v4796, 0.0
      %v4829 = vsel %vm4125, %v4797, 0.0
      %v4830 = vsel %vm4126, %v4798, 0.0
      %v4831 = vsel %vm4127, %v4799, 0.0
      %v4832 = vsel %vm4128, %v4800, 0.0
      %v4833 = vsel %vm4129, %v4801, 0.0
      %v4834 = vsel %vm4130, %v4802, 0.0
      %v4835 = vsel %vm4131, %v4803, 0.0
      %v4836 = vsel %vm4132, %v4804, 0.0
      %v4837 = vsel %vm4133, %v4805, 0.0
      %v4838 = vsel %vm4134, %v4806, 0.0
      %v4839 = vsel %vm4135, %v4807, 0.0
      %v4840 = vsel %vm4136, %v4808, 0.0
      %v4841 = vsel %vm4137, %v4809, 0.0
      %v4842 = vsel %vm4138, %v4810, 0.0
      %4875 = vrot.lane.b32.xlu0 %v4811, 80
      %v4876 = vpop.permute.xlu0 %4875
      %4877 = vrot.lane.b32.xlu0 %v4812, 80
      %v4878 = vpop.permute.xlu0 %4877
      %4879 = vrot.lane.b32.xlu0 %v4813, 80
      %v4880 = vpop.permute.xlu0 %4879
      %4881 = vrot.lane.b32.xlu0 %v4814, 80
      %v4882 = vpop.permute.xlu0 %4881
      %4883 = vrot.lane.b32.xlu0 %v4815, 80
      %v4884 = vpop.permute.xlu0 %4883
      %4885 = vrot.lane.b32.xlu0 %v4816, 80
      %v4886 = vpop.permute.xlu0 %4885
      %4887 = vrot.lane.b32.xlu0 %v4817, 80
      %v4888 = vpop.permute.xlu0 %4887
      %4889 = vrot.lane.b32.xlu0 %v4818, 80
      %v4890 = vpop.permute.xlu0 %4889
      %4891 = vrot.lane.b32.xlu0 %v4819, 80
      %v4892 = vpop.permute.xlu0 %4891
      %4893 = vrot.lane.b32.xlu0 %v4820, 80
      %v4894 = vpop.permute.xlu0 %4893
      %4895 = vrot.lane.b32.xlu0 %v4821, 80
      %v4896 = vpop.permute.xlu0 %4895
      %4897 = vrot.lane.b32.xlu0 %v4822, 80
      %v4898 = vpop.permute.xlu0 %4897
      %4899 = vrot.lane.b32.xlu0 %v4823, 80
      %v4900 = vpop.permute.xlu0 %4899
      %4901 = vrot.lane.b32.xlu0 %v4824, 80
      %v4902 = vpop.permute.xlu0 %4901
      %4903 = vrot.lane.b32.xlu0 %v4825, 80
      %v4904 = vpop.permute.xlu0 %4903
      %4905 = vrot.lane.b32.xlu0 %v4826, 80
      %v4906 = vpop.permute.xlu0 %4905
      %4907 = vrot.lane.b32.xlu0 %v4827, 80
      %v4908 = vpop.permute.xlu0 %4907
      %4909 = vrot.lane.b32.xlu0 %v4828, 80
      %v4910 = vpop.permute.xlu0 %4909
      %4911 = vrot.lane.b32.xlu0 %v4829, 80
      %v4912 = vpop.permute.xlu0 %4911
      %4913 = vrot.lane.b32.xlu0 %v4830, 80
      %v4914 = vpop.permute.xlu0 %4913
      %4915 = vrot.lane.b32.xlu0 %v4831, 80
      %v4916 = vpop.permute.xlu0 %4915
      %4917 = vrot.lane.b32.xlu0 %v4832, 80
      %v4918 = vpop.permute.xlu0 %4917
      %4919 = vrot.lane.b32.xlu0 %v4833, 80
      %v4920 = vpop.permute.xlu0 %4919
      %4921 = vrot.lane.b32.xlu0 %v4834, 80
      %v4922 = vpop.permute.xlu0 %4921
      %4923 = vrot.lane.b32.xlu0 %v4835, 80
      %v4924 = vpop.permute.xlu0 %4923
      %4925 = vrot.lane.b32.xlu0 %v4836, 80
      %v4926 = vpop.permute.xlu0 %4925
      %4927 = vrot.lane.b32.xlu0 %v4837, 80
      %v4928 = vpop.permute.xlu0 %4927
      %4929 = vrot.lane.b32.xlu0 %v4838, 80
      %v4930 = vpop.permute.xlu0 %4929
      %4931 = vrot.lane.b32.xlu0 %v4839, 80
      %v4932 = vpop.permute.xlu0 %4931
      %4933 = vrot.lane.b32.xlu0 %v4840, 80
      %v4934 = vpop.permute.xlu0 %4933
      %4935 = vrot.lane.b32.xlu0 %v4841, 80
      %v4936 = vpop.permute.xlu0 %4935
      %4937 = vrot.lane.b32.xlu0 %v4842, 80
      %v4938 = vpop.permute.xlu0 %4937
      %4971 = vst.msk [vmem:[#allocation4 + $0x10] sm:$0xff] %vm1672, %v4876
      %4972 = vst.msk [vmem:[#allocation4 + $0x30] sm:$0xff] %vm1672, %v4878
      %4973 = vst.msk [vmem:[#allocation4 + $0x50] sm:$0xff] %vm1672, %v4880
      %4974 = vst.msk [vmem:[#allocation4 + $0x70] sm:$0xff] %vm1672, %v4882
      %4975 = vst.msk [vmem:[#allocation4 + $0x90] sm:$0xff] %vm1672, %v4884
      %4976 = vst.msk [vmem:[#allocation4 + $0xb0] sm:$0xff] %vm1672, %v4886
      %4977 = vst.msk [vmem:[#allocation4 + $0xd0] sm:$0xff] %vm1672, %v4888
      %4978 = vst.msk [vmem:[#allocation4 + $0xf0] sm:$0xff] %vm1672, %v4890
      %4979 = vst.msk [vmem:[#allocation4 + $0x110] sm:$0xff] %vm1672, %v4892
      %4980 = vst.msk [vmem:[#allocation4 + $0x130] sm:$0xff] %vm1672, %v4894
      %4981 = vst.msk [vmem:[#allocation4 + $0x150] sm:$0xff] %vm1672, %v4896
      %4982 = vst.msk [vmem:[#allocation4 + $0x170] sm:$0xff] %vm1672, %v4898
      %4983 = vst.msk [vmem:[#allocation4 + $0x190] sm:$0xff] %vm1672, %v4900
      %4984 = vst.msk [vmem:[#allocation4 + $0x1b0] sm:$0xff] %vm1672, %v4902
      %4985 = vst.msk [vmem:[#allocation4 + $0x1d0] sm:$0xff] %vm1672, %v4904
      %4986 = vst.msk [vmem:[#allocation4 + $0x1f0] sm:$0xff] %vm1672, %v4906
      %4987 = vst.msk [vmem:[#allocation4 + $0x210] sm:$0xff] %vm1672, %v4908
      %4988 = vst.msk [vmem:[#allocation4 + $0x230] sm:$0xff] %vm1672, %v4910
      %4989 = vst.msk [vmem:[#allocation4 + $0x250] sm:$0xff] %vm1672, %v4912
      %4990 = vst.msk [vmem:[#allocation4 + $0x270] sm:$0xff] %vm1672, %v4914
      %4991 = vst.msk [vmem:[#allocation4 + $0x290] sm:$0xff] %vm1672, %v4916
      %4992 = vst.msk [vmem:[#allocation4 + $0x2b0] sm:$0xff] %vm1672, %v4918
      %4993 = vst.msk [vmem:[#allocation4 + $0x2d0] sm:$0xff] %vm1672, %v4920
      %4994 = vst.msk [vmem:[#allocation4 + $0x2f0] sm:$0xff] %vm1672, %v4922
      %4995 = vst.msk [vmem:[#allocation4 + $0x310] sm:$0xff] %vm1672, %v4924
      %4996 = vst.msk [vmem:[#allocation4 + $0x330] sm:$0xff] %vm1672, %v4926
      %4997 = vst.msk [vmem:[#allocation4 + $0x350] sm:$0xff] %vm1672, %v4928
      %4998 = vst.msk [vmem:[#allocation4 + $0x370] sm:$0xff] %vm1672, %v4930
      %4999 = vst.msk [vmem:[#allocation4 + $0x390] sm:$0xff] %vm1672, %v4932
      %5000 = vst.msk [vmem:[#allocation4 + $0x3b0] sm:$0xff] %vm1672, %v4934
      %5001 = vst.msk [vmem:[#allocation4 + $0x3d0] sm:$0xff] %vm1672, %v4936
      %5002 = vst.msk [vmem:[#allocation4 + $0x3f0] sm:$0xff] %vm1672, %v4938
      %v5003 = vld [vmem:[#allocation2 + $0x38] sm:$0xff]
      %v5004 = vld [vmem:[#allocation2 + $0x40] sm:$0xff]
      %v5005 = vld [vmem:[#allocation2 + $0x48] sm:$0xff]
      %v5006 = vld [vmem:[#allocation2 + $0x50] sm:$0xff]
      %v5007 = vld [vmem:[#allocation2 + $0x58] sm:$0xff]
      %v5008 = vld [vmem:[#allocation2 + $0x60] sm:$0xff]
      %v5009 = vld [vmem:[#allocation2 + $0x68] sm:$0xff]
      %v5010 = vld [vmem:[#allocation2 + $0x70] sm:$0xff]
      %v5011 = vld [vmem:[#allocation2 + $0x78] sm:$0xff]
      %v5012 = vld [vmem:[#allocation2 + $0x80] sm:$0xff]
      %v5013 = vld [vmem:[#allocation2 + $0x88] sm:$0xff]
      %v5014 = vld [vmem:[#allocation2 + $0x90] sm:$0xff]
      %v5015 = vld [vmem:[#allocation2 + $0x98] sm:$0xff]
      %v5016 = vld [vmem:[#allocation2 + $0xa0] sm:$0xff]
      %v5017 = vld [vmem:[#allocation2 + $0xa8] sm:$0xff]
      %v5018 = vld [vmem:[#allocation2 + $0xb0] sm:$0xff]
      %v5019 = vld [vmem:[#allocation2 + $0xb8] sm:$0xff]
      %v5020 = vld [vmem:[#allocation2 + $0xc0] sm:$0xff]
      %v5021 = vld [vmem:[#allocation2 + $0xc8] sm:$0xff]
      %v5022 = vld [vmem:[#allocation2 + $0xd0] sm:$0xff]
      %v5023 = vld [vmem:[#allocation2 + $0xd8] sm:$0xff]
      %v5024 = vld [vmem:[#allocation2 + $0xe0] sm:$0xff]
      %v5025 = vld [vmem:[#allocation2 + $0xe8] sm:$0xff]
      %v5026 = vld [vmem:[#allocation2 + $0xf0] sm:$0xff]
      %v5027 = vld [vmem:[#allocation2 + $0xf8] sm:$0xff]
      %v5028 = vld [vmem:[#allocation2 + $0x100] sm:$0xff]
      %v5029 = vld [vmem:[#allocation2 + $0x108] sm:$0xff]
      %v5030 = vld [vmem:[#allocation2 + $0x110] sm:$0xff]
      %v5031 = vld [vmem:[#allocation2 + $0x118] sm:$0xff]
      %v5032 = vld [vmem:[#allocation2 + $0x120] sm:$0xff]
      %v5033 = vld [vmem:[#allocation2 + $0x128] sm:$0xff]
      %v5034 = vld [vmem:[#allocation2 + $0x130] sm:$0xff]
      %5067 = vrot.lane.b32.xlu0 %v5003, 96
      %v5068 = vpop.permute.xlu0 %5067
      %5069 = vrot.lane.b32.xlu0 %v5004, 96
      %v5070 = vpop.permute.xlu0 %5069
      %5071 = vrot.lane.b32.xlu0 %v5005, 96
      %v5072 = vpop.permute.xlu0 %5071
      %5073 = vrot.lane.b32.xlu0 %v5006, 96
      %v5074 = vpop.permute.xlu0 %5073
      %5075 = vrot.lane.b32.xlu0 %v5007, 96
      %v5076 = vpop.permute.xlu0 %5075
      %5077 = vrot.lane.b32.xlu0 %v5008, 96
      %v5078 = vpop.permute.xlu0 %5077
      %5079 = vrot.lane.b32.xlu0 %v5009, 96
      %v5080 = vpop.permute.xlu0 %5079
      %5081 = vrot.lane.b32.xlu0 %v5010, 96
      %v5082 = vpop.permute.xlu0 %5081
      %5083 = vrot.lane.b32.xlu0 %v5011, 96
      %v5084 = vpop.permute.xlu0 %5083
      %5085 = vrot.lane.b32.xlu0 %v5012, 96
      %v5086 = vpop.permute.xlu0 %5085
      %5087 = vrot.lane.b32.xlu0 %v5013, 96
      %v5088 = vpop.permute.xlu0 %5087
      %5089 = vrot.lane.b32.xlu0 %v5014, 96
      %v5090 = vpop.permute.xlu0 %5089
      %5091 = vrot.lane.b32.xlu0 %v5015, 96
      %v5092 = vpop.permute.xlu0 %5091
      %5093 = vrot.lane.b32.xlu0 %v5016, 96
      %v5094 = vpop.permute.xlu0 %5093
      %5095 = vrot.lane.b32.xlu0 %v5017, 96
      %v5096 = vpop.permute.xlu0 %5095
      %5097 = vrot.lane.b32.xlu0 %v5018, 96
      %v5098 = vpop.permute.xlu0 %5097
      %5099 = vrot.lane.b32.xlu0 %v5019, 96
      %v5100 = vpop.permute.xlu0 %5099
      %5101 = vrot.lane.b32.xlu0 %v5020, 96
      %v5102 = vpop.permute.xlu0 %5101
      %5103 = vrot.lane.b32.xlu0 %v5021, 96
      %v5104 = vpop.permute.xlu0 %5103
      %5105 = vrot.lane.b32.xlu0 %v5022, 96
      %v5106 = vpop.permute.xlu0 %5105
      %5107 = vrot.lane.b32.xlu0 %v5023, 96
      %v5108 = vpop.permute.xlu0 %5107
      %5109 = vrot.lane.b32.xlu0 %v5024, 96
      %v5110 = vpop.permute.xlu0 %5109
      %5111 = vrot.lane.b32.xlu0 %v5025, 96
      %v5112 = vpop.permute.xlu0 %5111
      %5113 = vrot.lane.b32.xlu0 %v5026, 96
      %v5114 = vpop.permute.xlu0 %5113
      %5115 = vrot.lane.b32.xlu0 %v5027, 96
      %v5116 = vpop.permute.xlu0 %5115
      %5117 = vrot.lane.b32.xlu0 %v5028, 96
      %v5118 = vpop.permute.xlu0 %5117
      %5119 = vrot.lane.b32.xlu0 %v5029, 96
      %v5120 = vpop.permute.xlu0 %5119
      %5121 = vrot.lane.b32.xlu0 %v5030, 96
      %v5122 = vpop.permute.xlu0 %5121
      %5123 = vrot.lane.b32.xlu0 %v5031, 96
      %v5124 = vpop.permute.xlu0 %5123
      %5125 = vrot.lane.b32.xlu0 %v5032, 96
      %v5126 = vpop.permute.xlu0 %5125
      %5127 = vrot.lane.b32.xlu0 %v5033, 96
      %v5128 = vpop.permute.xlu0 %5127
      %5129 = vrot.lane.b32.xlu0 %v5034, 96
      %v5130 = vpop.permute.xlu0 %5129
      %5163 = vst.msk [vmem:[#allocation4 + $0x10] sm:$0xff] %vm1897, %v5068
      %5164 = vst.msk [vmem:[#allocation4 + $0x30] sm:$0xff] %vm1897, %v5070
      %5165 = vst.msk [vmem:[#allocation4 + $0x50] sm:$0xff] %vm1897, %v5072
      %5166 = vst.msk [vmem:[#allocation4 + $0x70] sm:$0xff] %vm1897, %v5074
      %5167 = vst.msk [vmem:[#allocation4 + $0x90] sm:$0xff] %vm1897, %v5076
      %5168 = vst.msk [vmem:[#allocation4 + $0xb0] sm:$0xff] %vm1897, %v5078
      %5169 = vst.msk [vmem:[#allocation4 + $0xd0] sm:$0xff] %vm1897, %v5080
      %5170 = vst.msk [vmem:[#allocation4 + $0xf0] sm:$0xff] %vm1897, %v5082
      %5171 = vst.msk [vmem:[#allocation4 + $0x110] sm:$0xff] %vm1897, %v5084
      %5172 = vst.msk [vmem:[#allocation4 + $0x130] sm:$0xff] %vm1897, %v5086
      %5173 = vst.msk [vmem:[#allocation4 + $0x150] sm:$0xff] %vm1897, %v5088
      %5174 = vst.msk [vmem:[#allocation4 + $0x170] sm:$0xff] %vm1897, %v5090
      %5175 = vst.msk [vmem:[#allocation4 + $0x190] sm:$0xff] %vm1897, %v5092
      %5176 = vst.msk [vmem:[#allocation4 + $0x1b0] sm:$0xff] %vm1897, %v5094
      %5177 = vst.msk [vmem:[#allocation4 + $0x1d0] sm:$0xff] %vm1897, %v5096
      %5178 = vst.msk [vmem:[#allocation4 + $0x1f0] sm:$0xff] %vm1897, %v5098
      %5179 = vst.msk [vmem:[#allocation4 + $0x210] sm:$0xff] %vm1897, %v5100
      %5180 = vst.msk [vmem:[#allocation4 + $0x230] sm:$0xff] %vm1897, %v5102
      %5181 = vst.msk [vmem:[#allocation4 + $0x250] sm:$0xff] %vm1897, %v5104
      %5182 = vst.msk [vmem:[#allocation4 + $0x270] sm:$0xff] %vm1897, %v5106
      %5183 = vst.msk [vmem:[#allocation4 + $0x290] sm:$0xff] %vm1897, %v5108
      %5184 = vst.msk [vmem:[#allocation4 + $0x2b0] sm:$0xff] %vm1897, %v5110
      %5185 = vst.msk [vmem:[#allocation4 + $0x2d0] sm:$0xff] %vm1897, %v5112
      %5186 = vst.msk [vmem:[#allocation4 + $0x2f0] sm:$0xff] %vm1897, %v5114
      %5187 = vst.msk [vmem:[#allocation4 + $0x310] sm:$0xff] %vm1897, %v5116
      %5188 = vst.msk [vmem:[#allocation4 + $0x330] sm:$0xff] %vm1897, %v5118
      %5189 = vst.msk [vmem:[#allocation4 + $0x350] sm:$0xff] %vm1897, %v5120
      %5190 = vst.msk [vmem:[#allocation4 + $0x370] sm:$0xff] %vm1897, %v5122
      %5191 = vst.msk [vmem:[#allocation4 + $0x390] sm:$0xff] %vm1897, %v5124
      %5192 = vst.msk [vmem:[#allocation4 + $0x3b0] sm:$0xff] %vm1897, %v5126
      %5193 = vst.msk [vmem:[#allocation4 + $0x3d0] sm:$0xff] %vm1897, %v5128
      %5194 = vst.msk [vmem:[#allocation4 + $0x3f0] sm:$0xff] %vm1897, %v5130
      %v5195 = vld [vmem:[#allocation2 + $0x3b] sm:$0xff]
      %v5196 = vld [vmem:[#allocation2 + $0x43] sm:$0xff]
      %v5197 = vld [vmem:[#allocation2 + $0x4b] sm:$0xff]
      %v5198 = vld [vmem:[#allocation2 + $0x53] sm:$0xff]
      %v5199 = vld [vmem:[#allocation2 + $0x5b] sm:$0xff]
      %v5200 = vld [vmem:[#allocation2 + $0x63] sm:$0xff]
      %v5201 = vld [vmem:[#allocation2 + $0x6b] sm:$0xff]
      %v5202 = vld [vmem:[#allocation2 + $0x73] sm:$0xff]
      %v5203 = vld [vmem:[#allocation2 + $0x7b] sm:$0xff]
      %v5204 = vld [vmem:[#allocation2 + $0x83] sm:$0xff]
      %v5205 = vld [vmem:[#allocation2 + $0x8b] sm:$0xff]
      %v5206 = vld [vmem:[#allocation2 + $0x93] sm:$0xff]
      %v5207 = vld [vmem:[#allocation2 + $0x9b] sm:$0xff]
      %v5208 = vld [vmem:[#allocation2 + $0xa3] sm:$0xff]
      %v5209 = vld [vmem:[#allocation2 + $0xab] sm:$0xff]
      %v5210 = vld [vmem:[#allocation2 + $0xb3] sm:$0xff]
      %v5211 = vld [vmem:[#allocation2 + $0xbb] sm:$0xff]
      %v5212 = vld [vmem:[#allocation2 + $0xc3] sm:$0xff]
      %v5213 = vld [vmem:[#allocation2 + $0xcb] sm:$0xff]
      %v5214 = vld [vmem:[#allocation2 + $0xd3] sm:$0xff]
      %v5215 = vld [vmem:[#allocation2 + $0xdb] sm:$0xff]
      %v5216 = vld [vmem:[#allocation2 + $0xe3] sm:$0xff]
      %v5217 = vld [vmem:[#allocation2 + $0xeb] sm:$0xff]
      %v5218 = vld [vmem:[#allocation2 + $0xf3] sm:$0xff]
      %v5219 = vld [vmem:[#allocation2 + $0xfb] sm:$0xff]
      %v5220 = vld [vmem:[#allocation2 + $0x103] sm:$0xff]
      %v5221 = vld [vmem:[#allocation2 + $0x10b] sm:$0xff]
      %v5222 = vld [vmem:[#allocation2 + $0x113] sm:$0xff]
      %v5223 = vld [vmem:[#allocation2 + $0x11b] sm:$0xff]
      %v5224 = vld [vmem:[#allocation2 + $0x123] sm:$0xff]
      %v5225 = vld [vmem:[#allocation2 + $0x12b] sm:$0xff]
      %v5226 = vld [vmem:[#allocation2 + $0x133] sm:$0xff]
      %v5227 = vsel %vm4555, %v5195, 0.0
      %v5228 = vsel %vm4556, %v5196, 0.0
      %v5229 = vsel %vm4557, %v5197, 0.0
      %v5230 = vsel %vm4558, %v5198, 0.0
      %v5231 = vsel %vm4559, %v5199, 0.0
      %v5232 = vsel %vm4560, %v5200, 0.0
      %v5233 = vsel %vm4561, %v5201, 0.0
      %v5234 = vsel %vm4562, %v5202, 0.0
      %v5235 = vsel %vm4563, %v5203, 0.0
      %v5236 = vsel %vm4564, %v5204, 0.0
      %v5237 = vsel %vm4565, %v5205, 0.0
      %v5238 = vsel %vm4566, %v5206, 0.0
      %v5239 = vsel %vm4567, %v5207, 0.0
      %v5240 = vsel %vm4568, %v5208, 0.0
      %v5241 = vsel %vm4569, %v5209, 0.0
      %v5242 = vsel %vm4570, %v5210, 0.0
      %v5243 = vsel %vm4571, %v5211, 0.0
      %v5244 = vsel %vm4572, %v5212, 0.0
      %v5245 = vsel %vm4573, %v5213, 0.0
      %v5246 = vsel %vm4574, %v5214, 0.0
      %v5247 = vsel %vm4575, %v5215, 0.0
      %v5248 = vsel %vm4576, %v5216, 0.0
      %v5249 = vsel %vm4577, %v5217, 0.0
      %v5250 = vsel %vm4578, %v5218, 0.0
      %v5251 = vsel %vm4579, %v5219, 0.0
      %v5252 = vsel %vm4580, %v5220, 0.0
      %v5253 = vsel %vm4581, %v5221, 0.0
      %v5254 = vsel %vm4582, %v5222, 0.0
      %v5255 = vsel %vm4583, %v5223, 0.0
      %v5256 = vsel %vm4584, %v5224, 0.0
      %v5257 = vsel %vm4585, %v5225, 0.0
      %v5258 = vsel %vm4586, %v5226, 0.0
      %5291 = vrot.lane.b32.xlu0 %v5227, 112
      %v5292 = vpop.permute.xlu0 %5291
      %5293 = vrot.lane.b32.xlu0 %v5228, 112
      %v5294 = vpop.permute.xlu0 %5293
      %5295 = vrot.lane.b32.xlu0 %v5229, 112
      %v5296 = vpop.permute.xlu0 %5295
      %5297 = vrot.lane.b32.xlu0 %v5230, 112
      %v5298 = vpop.permute.xlu0 %5297
      %5299 = vrot.lane.b32.xlu0 %v5231, 112
      %v5300 = vpop.permute.xlu0 %5299
      %5301 = vrot.lane.b32.xlu0 %v5232, 112
      %v5302 = vpop.permute.xlu0 %5301
      %5303 = vrot.lane.b32.xlu0 %v5233, 112
      %v5304 = vpop.permute.xlu0 %5303
      %5305 = vrot.lane.b32.xlu0 %v5234, 112
      %v5306 = vpop.permute.xlu0 %5305
      %5307 = vrot.lane.b32.xlu0 %v5235, 112
      %v5308 = vpop.permute.xlu0 %5307
      %5309 = vrot.lane.b32.xlu0 %v5236, 112
      %v5310 = vpop.permute.xlu0 %5309
      %5311 = vrot.lane.b32.xlu0 %v5237, 112
      %v5312 = vpop.permute.xlu0 %5311
      %5313 = vrot.lane.b32.xlu0 %v5238, 112
      %v5314 = vpop.permute.xlu0 %5313
      %5315 = vrot.lane.b32.xlu0 %v5239, 112
      %v5316 = vpop.permute.xlu0 %5315
      %5317 = vrot.lane.b32.xlu0 %v5240, 112
      %v5318 = vpop.permute.xlu0 %5317
      %5319 = vrot.lane.b32.xlu0 %v5241, 112
      %v5320 = vpop.permute.xlu0 %5319
      %5321 = vrot.lane.b32.xlu0 %v5242, 112
      %v5322 = vpop.permute.xlu0 %5321
      %5323 = vrot.lane.b32.xlu0 %v5243, 112
      %v5324 = vpop.permute.xlu0 %5323
      %5325 = vrot.lane.b32.xlu0 %v5244, 112
      %v5326 = vpop.permute.xlu0 %5325
      %5327 = vrot.lane.b32.xlu0 %v5245, 112
      %v5328 = vpop.permute.xlu0 %5327
      %5329 = vrot.lane.b32.xlu0 %v5246, 112
      %v5330 = vpop.permute.xlu0 %5329
      %5331 = vrot.lane.b32.xlu0 %v5247, 112
      %v5332 = vpop.permute.xlu0 %5331
      %5333 = vrot.lane.b32.xlu0 %v5248, 112
      %v5334 = vpop.permute.xlu0 %5333
      %5335 = vrot.lane.b32.xlu0 %v5249, 112
      %v5336 = vpop.permute.xlu0 %5335
      %5337 = vrot.lane.b32.xlu0 %v5250, 112
      %v5338 = vpop.permute.xlu0 %5337
      %5339 = vrot.lane.b32.xlu0 %v5251, 112
      %v5340 = vpop.permute.xlu0 %5339
      %5341 = vrot.lane.b32.xlu0 %v5252, 112
      %v5342 = vpop.permute.xlu0 %5341
      %5343 = vrot.lane.b32.xlu0 %v5253, 112
      %v5344 = vpop.permute.xlu0 %5343
      %5345 = vrot.lane.b32.xlu0 %v5254, 112
      %v5346 = vpop.permute.xlu0 %5345
      %5347 = vrot.lane.b32.xlu0 %v5255, 112
      %v5348 = vpop.permute.xlu0 %5347
      %5349 = vrot.lane.b32.xlu0 %v5256, 112
      %v5350 = vpop.permute.xlu0 %5349
      %5351 = vrot.lane.b32.xlu0 %v5257, 112
      %v5352 = vpop.permute.xlu0 %5351
      %5353 = vrot.lane.b32.xlu0 %v5258, 112
      %v5354 = vpop.permute.xlu0 %5353
      %5387 = vst.msk [vmem:[#allocation4 + $0x10] sm:$0xff] %vm2090, %v5292
      %5388 = vst.msk [vmem:[#allocation4 + $0x30] sm:$0xff] %vm2090, %v5294
      %5389 = vst.msk [vmem:[#allocation4 + $0x50] sm:$0xff] %vm2090, %v5296
      %5390 = vst.msk [vmem:[#allocation4 + $0x70] sm:$0xff] %vm2090, %v5298
      %5391 = vst.msk [vmem:[#allocation4 + $0x90] sm:$0xff] %vm2090, %v5300
      %5392 = vst.msk [vmem:[#allocation4 + $0xb0] sm:$0xff] %vm2090, %v5302
      %5393 = vst.msk [vmem:[#allocation4 + $0xd0] sm:$0xff] %vm2090, %v5304
      %5394 = vst.msk [vmem:[#allocation4 + $0xf0] sm:$0xff] %vm2090, %v5306
      %5395 = vst.msk [vmem:[#allocation4 + $0x110] sm:$0xff] %vm2090, %v5308
      %5396 = vst.msk [vmem:[#allocation4 + $0x130] sm:$0xff] %vm2090, %v5310
      %5397 = vst.msk [vmem:[#allocation4 + $0x150] sm:$0xff] %vm2090, %v5312
      %5398 = vst.msk [vmem:[#allocation4 + $0x170] sm:$0xff] %vm2090, %v5314
      %5399 = vst.msk [vmem:[#allocation4 + $0x190] sm:$0xff] %vm2090, %v5316
      %5400 = vst.msk [vmem:[#allocation4 + $0x1b0] sm:$0xff] %vm2090, %v5318
      %5401 = vst.msk [vmem:[#allocation4 + $0x1d0] sm:$0xff] %vm2090, %v5320
      %5402 = vst.msk [vmem:[#allocation4 + $0x1f0] sm:$0xff] %vm2090, %v5322
      %5403 = vst.msk [vmem:[#allocation4 + $0x210] sm:$0xff] %vm2090, %v5324
      %5404 = vst.msk [vmem:[#allocation4 + $0x230] sm:$0xff] %vm2090, %v5326
      %5405 = vst.msk [vmem:[#allocation4 + $0x250] sm:$0xff] %vm2090, %v5328
      %5406 = vst.msk [vmem:[#allocation4 + $0x270] sm:$0xff] %vm2090, %v5330
      %5407 = vst.msk [vmem:[#allocation4 + $0x290] sm:$0xff] %vm2090, %v5332
      %5408 = vst.msk [vmem:[#allocation4 + $0x2b0] sm:$0xff] %vm2090, %v5334
      %5409 = vst.msk [vmem:[#allocation4 + $0x2d0] sm:$0xff] %vm2090, %v5336
      %5410 = vst.msk [vmem:[#allocation4 + $0x2f0] sm:$0xff] %vm2090, %v5338
      %5411 = vst.msk [vmem:[#allocation4 + $0x310] sm:$0xff] %vm2090, %v5340
      %5412 = vst.msk [vmem:[#allocation4 + $0x330] sm:$0xff] %vm2090, %v5342
      %5413 = vst.msk [vmem:[#allocation4 + $0x350] sm:$0xff] %vm2090, %v5344
      %5414 = vst.msk [vmem:[#allocation4 + $0x370] sm:$0xff] %vm2090, %v5346
      %5415 = vst.msk [vmem:[#allocation4 + $0x390] sm:$0xff] %vm2090, %v5348
      %5416 = vst.msk [vmem:[#allocation4 + $0x3b0] sm:$0xff] %vm2090, %v5350
      %5417 = vst.msk [vmem:[#allocation4 + $0x3d0] sm:$0xff] %vm2090, %v5352
      %5418 = vst.msk [vmem:[#allocation4 + $0x3f0] sm:$0xff] %vm2090, %v5354
      %v5419 = vld [vmem:[#allocation2 + $0x65] sm:$0xff]
      %v5420 = vld [vmem:[#allocation2 + $0x6d] sm:$0xff]
      %v5421 = vld [vmem:[#allocation2 + $0x75] sm:$0xff]
      %v5422 = vld [vmem:[#allocation2 + $0x7d] sm:$0xff]
      %v5423 = vld [vmem:[#allocation2 + $0x85] sm:$0xff]
      %v5424 = vld [vmem:[#allocation2 + $0x8d] sm:$0xff]
      %v5425 = vld [vmem:[#allocation2 + $0x95] sm:$0xff]
      %v5426 = vld [vmem:[#allocation2 + $0x9d] sm:$0xff]
      %v5427 = vld [vmem:[#allocation2 + $0xa5] sm:$0xff]
      %v5428 = vld [vmem:[#allocation2 + $0xad] sm:$0xff]
      %v5429 = vld [vmem:[#allocation2 + $0xb5] sm:$0xff]
      %v5430 = vld [vmem:[#allocation2 + $0xbd] sm:$0xff]
      %v5431 = vld [vmem:[#allocation2 + $0xc5] sm:$0xff]
      %v5432 = vld [vmem:[#allocation2 + $0xcd] sm:$0xff]
      %v5433 = vld [vmem:[#allocation2 + $0xd5] sm:$0xff]
      %v5434 = vld [vmem:[#allocation2 + $0xdd] sm:$0xff]
      %v5435 = vld [vmem:[#allocation2 + $0xe5] sm:$0xff]
      %v5436 = vld [vmem:[#allocation2 + $0xed] sm:$0xff]
      %v5437 = vld [vmem:[#allocation2 + $0xf5] sm:$0xff]
      %v5438 = vld [vmem:[#allocation2 + $0xfd] sm:$0xff]
      %v5439 = vld [vmem:[#allocation2 + $0x105] sm:$0xff]
      %v5440 = vld [vmem:[#allocation2 + $0x10d] sm:$0xff]
      %v5441 = vld [vmem:[#allocation2 + $0x115] sm:$0xff]
      %v5442 = vld [vmem:[#allocation2 + $0x11d] sm:$0xff]
      %v5443 = vld [vmem:[#allocation2 + $0x125] sm:$0xff]
      %v5444 = vld [vmem:[#allocation2 + $0x12d] sm:$0xff]
      %v5445 = vld [vmem:[#allocation2 + $0x135] sm:$0xff]
      %v5446 = vld [vmem:[#allocation2 + $0x13d] sm:$0xff]
      %v5447 = vld [vmem:[#allocation2 + $0x145] sm:$0xff]
      %v5448 = vld [vmem:[#allocation2 + $0x14d] sm:$0xff]
      %v5449 = vld [vmem:[#allocation2 + $0x155] sm:$0xff]
      %v5450 = vld [vmem:[#allocation2 + $0x15d] sm:$0xff]
      %v5451 = vsel %vm4107, %v5419, 0.0
      %v5452 = vsel %vm4108, %v5420, 0.0
      %v5453 = vsel %vm4109, %v5421, 0.0
      %v5454 = vsel %vm4110, %v5422, 0.0
      %v5455 = vsel %vm4111, %v5423, 0.0
      %v5456 = vsel %vm4112, %v5424, 0.0
      %v5457 = vsel %vm4113, %v5425, 0.0
      %v5458 = vsel %vm4114, %v5426, 0.0
      %v5459 = vsel %vm4115, %v5427, 0.0
      %v5460 = vsel %vm4116, %v5428, 0.0
      %v5461 = vsel %vm4117, %v5429, 0.0
      %v5462 = vsel %vm4118, %v5430, 0.0
      %v5463 = vsel %vm4119, %v5431, 0.0
      %v5464 = vsel %vm4120, %v5432, 0.0
      %v5465 = vsel %vm4121, %v5433, 0.0
      %v5466 = vsel %vm4122, %v5434, 0.0
      %v5467 = vsel %vm4123, %v5435, 0.0
      %v5468 = vsel %vm4124, %v5436, 0.0
      %v5469 = vsel %vm4125, %v5437, 0.0
      %v5470 = vsel %vm4126, %v5438, 0.0
      %v5471 = vsel %vm4127, %v5439, 0.0
      %v5472 = vsel %vm4128, %v5440, 0.0
      %v5473 = vsel %vm4129, %v5441, 0.0
      %v5474 = vsel %vm4130, %v5442, 0.0
      %v5475 = vsel %vm4131, %v5443, 0.0
      %v5476 = vsel %vm4132, %v5444, 0.0
      %v5477 = vsel %vm4133, %v5445, 0.0
      %v5478 = vsel %vm4134, %v5446, 0.0
      %v5479 = vsel %vm4135, %v5447, 0.0
      %v5480 = vsel %vm4136, %v5448, 0.0
      %v5481 = vsel %vm4137, %v5449, 0.0
      %v5482 = vsel %vm4138, %v5450, 0.0
      %5483 = vst.msk [vmem:[#allocation4 + $0x18] sm:$0xff] %vm365, %v5451
      %5484 = vst.msk [vmem:[#allocation4 + $0x38] sm:$0xff] %vm365, %v5452
      %5485 = vst.msk [vmem:[#allocation4 + $0x58] sm:$0xff] %vm365, %v5453
      %5486 = vst.msk [vmem:[#allocation4 + $0x78] sm:$0xff] %vm365, %v5454
      %5487 = vst.msk [vmem:[#allocation4 + $0x98] sm:$0xff] %vm365, %v5455
      %5488 = vst.msk [vmem:[#allocation4 + $0xb8] sm:$0xff] %vm365, %v5456
      %5489 = vst.msk [vmem:[#allocation4 + $0xd8] sm:$0xff] %vm365, %v5457
      %5490 = vst.msk [vmem:[#allocation4 + $0xf8] sm:$0xff] %vm365, %v5458
      %5491 = vst.msk [vmem:[#allocation4 + $0x118] sm:$0xff] %vm365, %v5459
      %5492 = vst.msk [vmem:[#allocation4 + $0x138] sm:$0xff] %vm365, %v5460
      %5493 = vst.msk [vmem:[#allocation4 + $0x158] sm:$0xff] %vm365, %v5461
      %5494 = vst.msk [vmem:[#allocation4 + $0x178] sm:$0xff] %vm365, %v5462
      %5495 = vst.msk [vmem:[#allocation4 + $0x198] sm:$0xff] %vm365, %v5463
      %5496 = vst.msk [vmem:[#allocation4 + $0x1b8] sm:$0xff] %vm365, %v5464
      %5497 = vst.msk [vmem:[#allocation4 + $0x1d8] sm:$0xff] %vm365, %v5465
      %5498 = vst.msk [vmem:[#allocation4 + $0x1f8] sm:$0xff] %vm365, %v5466
      %5499 = vst.msk [vmem:[#allocation4 + $0x218] sm:$0xff] %vm365, %v5467
      %5500 = vst.msk [vmem:[#allocation4 + $0x238] sm:$0xff] %vm365, %v5468
      %5501 = vst.msk [vmem:[#allocation4 + $0x258] sm:$0xff] %vm365, %v5469
      %5502 = vst.msk [vmem:[#allocation4 + $0x278] sm:$0xff] %vm365, %v5470
      %5503 = vst.msk [vmem:[#allocation4 + $0x298] sm:$0xff] %vm365, %v5471
      %5504 = vst.msk [vmem:[#allocation4 + $0x2b8] sm:$0xff] %vm365, %v5472
      %5505 = vst.msk [vmem:[#allocation4 + $0x2d8] sm:$0xff] %vm365, %v5473
      %5506 = vst.msk [vmem:[#allocation4 + $0x2f8] sm:$0xff] %vm365, %v5474
      %5507 = vst.msk [vmem:[#allocation4 + $0x318] sm:$0xff] %vm365, %v5475
      %5508 = vst.msk [vmem:[#allocation4 + $0x338] sm:$0xff] %vm365, %v5476
      %5509 = vst.msk [vmem:[#allocation4 + $0x358] sm:$0xff] %vm365, %v5477
      %5510 = vst.msk [vmem:[#allocation4 + $0x378] sm:$0xff] %vm365, %v5478
      %5511 = vst.msk [vmem:[#allocation4 + $0x398] sm:$0xff] %vm365, %v5479
      %5512 = vst.msk [vmem:[#allocation4 + $0x3b8] sm:$0xff] %vm365, %v5480
      %5513 = vst.msk [vmem:[#allocation4 + $0x3d8] sm:$0xff] %vm365, %v5481
      %5514 = vst.msk [vmem:[#allocation4 + $0x3f8] sm:$0xff] %vm365, %v5482
      %v5515 = vld [vmem:[#allocation2 + $0x68] sm:$0xff]
      %v5516 = vld [vmem:[#allocation2 + $0x70] sm:$0xff]
      %v5517 = vld [vmem:[#allocation2 + $0x78] sm:$0xff]
      %v5518 = vld [vmem:[#allocation2 + $0x80] sm:$0xff]
      %v5519 = vld [vmem:[#allocation2 + $0x88] sm:$0xff]
      %v5520 = vld [vmem:[#allocation2 + $0x90] sm:$0xff]
      %v5521 = vld [vmem:[#allocation2 + $0x98] sm:$0xff]
      %v5522 = vld [vmem:[#allocation2 + $0xa0] sm:$0xff]
      %v5523 = vld [vmem:[#allocation2 + $0xa8] sm:$0xff]
      %v5524 = vld [vmem:[#allocation2 + $0xb0] sm:$0xff]
      %v5525 = vld [vmem:[#allocation2 + $0xb8] sm:$0xff]
      %v5526 = vld [vmem:[#allocation2 + $0xc0] sm:$0xff]
      %v5527 = vld [vmem:[#allocation2 + $0xc8] sm:$0xff]
      %v5528 = vld [vmem:[#allocation2 + $0xd0] sm:$0xff]
      %v5529 = vld [vmem:[#allocation2 + $0xd8] sm:$0xff]
      %v5530 = vld [vmem:[#allocation2 + $0xe0] sm:$0xff]
      %v5531 = vld [vmem:[#allocation2 + $0xe8] sm:$0xff]
      %v5532 = vld [vmem:[#allocation2 + $0xf0] sm:$0xff]
      %v5533 = vld [vmem:[#allocation2 + $0xf8] sm:$0xff]
      %v5534 = vld [vmem:[#allocation2 + $0x100] sm:$0xff]
      %v5535 = vld [vmem:[#allocation2 + $0x108] sm:$0xff]
      %v5536 = vld [vmem:[#allocation2 + $0x110] sm:$0xff]
      %v5537 = vld [vmem:[#allocation2 + $0x118] sm:$0xff]
      %v5538 = vld [vmem:[#allocation2 + $0x120] sm:$0xff]
      %v5539 = vld [vmem:[#allocation2 + $0x128] sm:$0xff]
      %v5540 = vld [vmem:[#allocation2 + $0x130] sm:$0xff]
      %v5541 = vld [vmem:[#allocation2 + $0x138] sm:$0xff]
      %v5542 = vld [vmem:[#allocation2 + $0x140] sm:$0xff]
      %v5543 = vld [vmem:[#allocation2 + $0x148] sm:$0xff]
      %v5544 = vld [vmem:[#allocation2 + $0x150] sm:$0xff]
      %v5545 = vld [vmem:[#allocation2 + $0x158] sm:$0xff]
      %v5546 = vld [vmem:[#allocation2 + $0x160] sm:$0xff]
      %5579 = vrot.lane.b32.xlu0 %v5515, 16
      %v5580 = vpop.permute.xlu0 %5579
      %5581 = vrot.lane.b32.xlu0 %v5516, 16
      %v5582 = vpop.permute.xlu0 %5581
      %5583 = vrot.lane.b32.xlu0 %v5517, 16
      %v5584 = vpop.permute.xlu0 %5583
      %5585 = vrot.lane.b32.xlu0 %v5518, 16
      %v5586 = vpop.permute.xlu0 %5585
      %5587 = vrot.lane.b32.xlu0 %v5519, 16
      %v5588 = vpop.permute.xlu0 %5587
      %5589 = vrot.lane.b32.xlu0 %v5520, 16
      %v5590 = vpop.permute.xlu0 %5589
      %5591 = vrot.lane.b32.xlu0 %v5521, 16
      %v5592 = vpop.permute.xlu0 %5591
      %5593 = vrot.lane.b32.xlu0 %v5522, 16
      %v5594 = vpop.permute.xlu0 %5593
      %5595 = vrot.lane.b32.xlu0 %v5523, 16
      %v5596 = vpop.permute.xlu0 %5595
      %5597 = vrot.lane.b32.xlu0 %v5524, 16
      %v5598 = vpop.permute.xlu0 %5597
      %5599 = vrot.lane.b32.xlu0 %v5525, 16
      %v5600 = vpop.permute.xlu0 %5599
      %5601 = vrot.lane.b32.xlu0 %v5526, 16
      %v5602 = vpop.permute.xlu0 %5601
      %5603 = vrot.lane.b32.xlu0 %v5527, 16
      %v5604 = vpop.permute.xlu0 %5603
      %5605 = vrot.lane.b32.xlu0 %v5528, 16
      %v5606 = vpop.permute.xlu0 %5605
      %5607 = vrot.lane.b32.xlu0 %v5529, 16
      %v5608 = vpop.permute.xlu0 %5607
      %5609 = vrot.lane.b32.xlu0 %v5530, 16
      %v5610 = vpop.permute.xlu0 %5609
      %5611 = vrot.lane.b32.xlu0 %v5531, 16
      %v5612 = vpop.permute.xlu0 %5611
      %5613 = vrot.lane.b32.xlu0 %v5532, 16
      %v5614 = vpop.permute.xlu0 %5613
      %5615 = vrot.lane.b32.xlu0 %v5533, 16
      %v5616 = vpop.permute.xlu0 %5615
      %5617 = vrot.lane.b32.xlu0 %v5534, 16
      %v5618 = vpop.permute.xlu0 %5617
      %5619 = vrot.lane.b32.xlu0 %v5535, 16
      %v5620 = vpop.permute.xlu0 %5619
      %5621 = vrot.lane.b32.xlu0 %v5536, 16
      %v5622 = vpop.permute.xlu0 %5621
      %5623 = vrot.lane.b32.xlu0 %v5537, 16
      %v5624 = vpop.permute.xlu0 %5623
      %5625 = vrot.lane.b32.xlu0 %v5538, 16
      %v5626 = vpop.permute.xlu0 %5625
      %5627 = vrot.lane.b32.xlu0 %v5539, 16
      %v5628 = vpop.permute.xlu0 %5627
      %5629 = vrot.lane.b32.xlu0 %v5540, 16
      %v5630 = vpop.permute.xlu0 %5629
      %5631 = vrot.lane.b32.xlu0 %v5541, 16
      %v5632 = vpop.permute.xlu0 %5631
      %5633 = vrot.lane.b32.xlu0 %v5542, 16
      %v5634 = vpop.permute.xlu0 %5633
      %5635 = vrot.lane.b32.xlu0 %v5543, 16
      %v5636 = vpop.permute.xlu0 %5635
      %5637 = vrot.lane.b32.xlu0 %v5544, 16
      %v5638 = vpop.permute.xlu0 %5637
      %5639 = vrot.lane.b32.xlu0 %v5545, 16
      %v5640 = vpop.permute.xlu0 %5639
      %5641 = vrot.lane.b32.xlu0 %v5546, 16
      %v5642 = vpop.permute.xlu0 %5641
      %5675 = vst.msk [vmem:[#allocation4 + $0x18] sm:$0xff] %vm772, %v5580
      %5676 = vst.msk [vmem:[#allocation4 + $0x38] sm:$0xff] %vm772, %v5582
      %5677 = vst.msk [vmem:[#allocation4 + $0x58] sm:$0xff] %vm772, %v5584
      %5678 = vst.msk [vmem:[#allocation4 + $0x78] sm:$0xff] %vm772, %v5586
      %5679 = vst.msk [vmem:[#allocation4 + $0x98] sm:$0xff] %vm772, %v5588
      %5680 = vst.msk [vmem:[#allocation4 + $0xb8] sm:$0xff] %vm772, %v5590
      %5681 = vst.msk [vmem:[#allocation4 + $0xd8] sm:$0xff] %vm772, %v5592
      %5682 = vst.msk [vmem:[#allocation4 + $0xf8] sm:$0xff] %vm772, %v5594
      %5683 = vst.msk [vmem:[#allocation4 + $0x118] sm:$0xff] %vm772, %v5596
      %5684 = vst.msk [vmem:[#allocation4 + $0x138] sm:$0xff] %vm772, %v5598
      %5685 = vst.msk [vmem:[#allocation4 + $0x158] sm:$0xff] %vm772, %v5600
      %5686 = vst.msk [vmem:[#allocation4 + $0x178] sm:$0xff] %vm772, %v5602
      %5687 = vst.msk [vmem:[#allocation4 + $0x198] sm:$0xff] %vm772, %v5604
      %5688 = vst.msk [vmem:[#allocation4 + $0x1b8] sm:$0xff] %vm772, %v5606
      %5689 = vst.msk [vmem:[#allocation4 + $0x1d8] sm:$0xff] %vm772, %v5608
      %5690 = vst.msk [vmem:[#allocation4 + $0x1f8] sm:$0xff] %vm772, %v5610
      %5691 = vst.msk [vmem:[#allocation4 + $0x218] sm:$0xff] %vm772, %v5612
      %5692 = vst.msk [vmem:[#allocation4 + $0x238] sm:$0xff] %vm772, %v5614
      %5693 = vst.msk [vmem:[#allocation4 + $0x258] sm:$0xff] %vm772, %v5616
      %5694 = vst.msk [vmem:[#allocation4 + $0x278] sm:$0xff] %vm772, %v5618
      %5695 = vst.msk [vmem:[#allocation4 + $0x298] sm:$0xff] %vm772, %v5620
      %5696 = vst.msk [vmem:[#allocation4 + $0x2b8] sm:$0xff] %vm772, %v5622
      %5697 = vst.msk [vmem:[#allocation4 + $0x2d8] sm:$0xff] %vm772, %v5624
      %5698 = vst.msk [vmem:[#allocation4 + $0x2f8] sm:$0xff] %vm772, %v5626
      %5699 = vst.msk [vmem:[#allocation4 + $0x318] sm:$0xff] %vm772, %v5628
      %5700 = vst.msk [vmem:[#allocation4 + $0x338] sm:$0xff] %vm772, %v5630
      %5701 = vst.msk [vmem:[#allocation4 + $0x358] sm:$0xff] %vm772, %v5632
      %5702 = vst.msk [vmem:[#allocation4 + $0x378] sm:$0xff] %vm772, %v5634
      %5703 = vst.msk [vmem:[#allocation4 + $0x398] sm:$0xff] %vm772, %v5636
      %5704 = vst.msk [vmem:[#allocation4 + $0x3b8] sm:$0xff] %vm772, %v5638
      %5705 = vst.msk [vmem:[#allocation4 + $0x3d8] sm:$0xff] %vm772, %v5640
      %5706 = vst.msk [vmem:[#allocation4 + $0x3f8] sm:$0xff] %vm772, %v5642
      %v5707 = vld [vmem:[#allocation2 + $0x6b] sm:$0xff]
      %v5708 = vld [vmem:[#allocation2 + $0x73] sm:$0xff]
      %v5709 = vld [vmem:[#allocation2 + $0x7b] sm:$0xff]
      %v5710 = vld [vmem:[#allocation2 + $0x83] sm:$0xff]
      %v5711 = vld [vmem:[#allocation2 + $0x8b] sm:$0xff]
      %v5712 = vld [vmem:[#allocation2 + $0x93] sm:$0xff]
      %v5713 = vld [vmem:[#allocation2 + $0x9b] sm:$0xff]
      %v5714 = vld [vmem:[#allocation2 + $0xa3] sm:$0xff]
      %v5715 = vld [vmem:[#allocation2 + $0xab] sm:$0xff]
      %v5716 = vld [vmem:[#allocation2 + $0xb3] sm:$0xff]
      %v5717 = vld [vmem:[#allocation2 + $0xbb] sm:$0xff]
      %v5718 = vld [vmem:[#allocation2 + $0xc3] sm:$0xff]
      %v5719 = vld [vmem:[#allocation2 + $0xcb] sm:$0xff]
      %v5720 = vld [vmem:[#allocation2 + $0xd3] sm:$0xff]
      %v5721 = vld [vmem:[#allocation2 + $0xdb] sm:$0xff]
      %v5722 = vld [vmem:[#allocation2 + $0xe3] sm:$0xff]
      %v5723 = vld [vmem:[#allocation2 + $0xeb] sm:$0xff]
      %v5724 = vld [vmem:[#allocation2 + $0xf3] sm:$0xff]
      %v5725 = vld [vmem:[#allocation2 + $0xfb] sm:$0xff]
      %v5726 = vld [vmem:[#allocation2 + $0x103] sm:$0xff]
      %v5727 = vld [vmem:[#allocation2 + $0x10b] sm:$0xff]
      %v5728 = vld [vmem:[#allocation2 + $0x113] sm:$0xff]
      %v5729 = vld [vmem:[#allocation2 + $0x11b] sm:$0xff]
      %v5730 = vld [vmem:[#allocation2 + $0x123] sm:$0xff]
      %v5731 = vld [vmem:[#allocation2 + $0x12b] sm:$0xff]
      %v5732 = vld [vmem:[#allocation2 + $0x133] sm:$0xff]
      %v5733 = vld [vmem:[#allocation2 + $0x13b] sm:$0xff]
      %v5734 = vld [vmem:[#allocation2 + $0x143] sm:$0xff]
      %v5735 = vld [vmem:[#allocation2 + $0x14b] sm:$0xff]
      %v5736 = vld [vmem:[#allocation2 + $0x153] sm:$0xff]
      %v5737 = vld [vmem:[#allocation2 + $0x15b] sm:$0xff]
      %v5738 = vld [vmem:[#allocation2 + $0x163] sm:$0xff]
      %v5739 = vsel %vm4555, %v5707, 0.0
      %v5740 = vsel %vm4556, %v5708, 0.0
      %v5741 = vsel %vm4557, %v5709, 0.0
      %v5742 = vsel %vm4558, %v5710, 0.0
      %v5743 = vsel %vm4559, %v5711, 0.0
      %v5744 = vsel %vm4560, %v5712, 0.0
      %v5745 = vsel %vm4561, %v5713, 0.0
      %v5746 = vsel %vm4562, %v5714, 0.0
      %v5747 = vsel %vm4563, %v5715, 0.0
      %v5748 = vsel %vm4564, %v5716, 0.0
      %v5749 = vsel %vm4565, %v5717, 0.0
      %v5750 = vsel %vm4566, %v5718, 0.0
      %v5751 = vsel %vm4567, %v5719, 0.0
      %v5752 = vsel %vm4568, %v5720, 0.0
      %v5753 = vsel %vm4569, %v5721, 0.0
      %v5754 = vsel %vm4570, %v5722, 0.0
      %v5755 = vsel %vm4571, %v5723, 0.0
      %v5756 = vsel %vm4572, %v5724, 0.0
      %v5757 = vsel %vm4573, %v5725, 0.0
      %v5758 = vsel %vm4574, %v5726, 0.0
      %v5759 = vsel %vm4575, %v5727, 0.0
      %v5760 = vsel %vm4576, %v5728, 0.0
      %v5761 = vsel %vm4577, %v5729, 0.0
      %v5762 = vsel %vm4578, %v5730, 0.0
      %v5763 = vsel %vm4579, %v5731, 0.0
      %v5764 = vsel %vm4580, %v5732, 0.0
      %v5765 = vsel %vm4581, %v5733, 0.0
      %v5766 = vsel %vm4582, %v5734, 0.0
      %v5767 = vsel %vm4583, %v5735, 0.0
      %v5768 = vsel %vm4584, %v5736, 0.0
      %v5769 = vsel %vm4585, %v5737, 0.0
      %v5770 = vsel %vm4586, %v5738, 0.0
      %5803 = vrot.lane.b32.xlu0 %v5739, 32
      %v5804 = vpop.permute.xlu0 %5803
      %5805 = vrot.lane.b32.xlu0 %v5740, 32
      %v5806 = vpop.permute.xlu0 %5805
      %5807 = vrot.lane.b32.xlu0 %v5741, 32
      %v5808 = vpop.permute.xlu0 %5807
      %5809 = vrot.lane.b32.xlu0 %v5742, 32
      %v5810 = vpop.permute.xlu0 %5809
      %5811 = vrot.lane.b32.xlu0 %v5743, 32
      %v5812 = vpop.permute.xlu0 %5811
      %5813 = vrot.lane.b32.xlu0 %v5744, 32
      %v5814 = vpop.permute.xlu0 %5813
      %5815 = vrot.lane.b32.xlu0 %v5745, 32
      %v5816 = vpop.permute.xlu0 %5815
      %5817 = vrot.lane.b32.xlu0 %v5746, 32
      %v5818 = vpop.permute.xlu0 %5817
      %5819 = vrot.lane.b32.xlu0 %v5747, 32
      %v5820 = vpop.permute.xlu0 %5819
      %5821 = vrot.lane.b32.xlu0 %v5748, 32
      %v5822 = vpop.permute.xlu0 %5821
      %5823 = vrot.lane.b32.xlu0 %v5749, 32
      %v5824 = vpop.permute.xlu0 %5823
      %5825 = vrot.lane.b32.xlu0 %v5750, 32
      %v5826 = vpop.permute.xlu0 %5825
      %5827 = vrot.lane.b32.xlu0 %v5751, 32
      %v5828 = vpop.permute.xlu0 %5827
      %5829 = vrot.lane.b32.xlu0 %v5752, 32
      %v5830 = vpop.permute.xlu0 %5829
      %5831 = vrot.lane.b32.xlu0 %v5753, 32
      %v5832 = vpop.permute.xlu0 %5831
      %5833 = vrot.lane.b32.xlu0 %v5754, 32
      %v5834 = vpop.permute.xlu0 %5833
      %5835 = vrot.lane.b32.xlu0 %v5755, 32
      %v5836 = vpop.permute.xlu0 %5835
      %5837 = vrot.lane.b32.xlu0 %v5756, 32
      %v5838 = vpop.permute.xlu0 %5837
      %5839 = vrot.lane.b32.xlu0 %v5757, 32
      %v5840 = vpop.permute.xlu0 %5839
      %5841 = vrot.lane.b32.xlu0 %v5758, 32
      %v5842 = vpop.permute.xlu0 %5841
      %5843 = vrot.lane.b32.xlu0 %v5759, 32
      %v5844 = vpop.permute.xlu0 %5843
      %5845 = vrot.lane.b32.xlu0 %v5760, 32
      %v5846 = vpop.permute.xlu0 %5845
      %5847 = vrot.lane.b32.xlu0 %v5761, 32
      %v5848 = vpop.permute.xlu0 %5847
      %5849 = vrot.lane.b32.xlu0 %v5762, 32
      %v5850 = vpop.permute.xlu0 %5849
      %5851 = vrot.lane.b32.xlu0 %v5763, 32
      %v5852 = vpop.permute.xlu0 %5851
      %5853 = vrot.lane.b32.xlu0 %v5764, 32
      %v5854 = vpop.permute.xlu0 %5853
      %5855 = vrot.lane.b32.xlu0 %v5765, 32
      %v5856 = vpop.permute.xlu0 %5855
      %5857 = vrot.lane.b32.xlu0 %v5766, 32
      %v5858 = vpop.permute.xlu0 %5857
      %5859 = vrot.lane.b32.xlu0 %v5767, 32
      %v5860 = vpop.permute.xlu0 %5859
      %5861 = vrot.lane.b32.xlu0 %v5768, 32
      %v5862 = vpop.permute.xlu0 %5861
      %5863 = vrot.lane.b32.xlu0 %v5769, 32
      %v5864 = vpop.permute.xlu0 %5863
      %5865 = vrot.lane.b32.xlu0 %v5770, 32
      %v5866 = vpop.permute.xlu0 %5865
      %5899 = vst.msk [vmem:[#allocation4 + $0x18] sm:$0xff] %vm1029, %v5804
      %5900 = vst.msk [vmem:[#allocation4 + $0x38] sm:$0xff] %vm1029, %v5806
      %5901 = vst.msk [vmem:[#allocation4 + $0x58] sm:$0xff] %vm1029, %v5808
      %5902 = vst.msk [vmem:[#allocation4 + $0x78] sm:$0xff] %vm1029, %v5810
      %5903 = vst.msk [vmem:[#allocation4 + $0x98] sm:$0xff] %vm1029, %v5812
      %5904 = vst.msk [vmem:[#allocation4 + $0xb8] sm:$0xff] %vm1029, %v5814
      %5905 = vst.msk [vmem:[#allocation4 + $0xd8] sm:$0xff] %vm1029, %v5816
      %5906 = vst.msk [vmem:[#allocation4 + $0xf8] sm:$0xff] %vm1029, %v5818
      %5907 = vst.msk [vmem:[#allocation4 + $0x118] sm:$0xff] %vm1029, %v5820
      %5908 = vst.msk [vmem:[#allocation4 + $0x138] sm:$0xff] %vm1029, %v5822
      %5909 = vst.msk [vmem:[#allocation4 + $0x158] sm:$0xff] %vm1029, %v5824
      %5910 = vst.msk [vmem:[#allocation4 + $0x178] sm:$0xff] %vm1029, %v5826
      %5911 = vst.msk [vmem:[#allocation4 + $0x198] sm:$0xff] %vm1029, %v5828
      %5912 = vst.msk [vmem:[#allocation4 + $0x1b8] sm:$0xff] %vm1029, %v5830
      %5913 = vst.msk [vmem:[#allocation4 + $0x1d8] sm:$0xff] %vm1029, %v5832
      %5914 = vst.msk [vmem:[#allocation4 + $0x1f8] sm:$0xff] %vm1029, %v5834
      %5915 = vst.msk [vmem:[#allocation4 + $0x218] sm:$0xff] %vm1029, %v5836
      %5916 = vst.msk [vmem:[#allocation4 + $0x238] sm:$0xff] %vm1029, %v5838
      %5917 = vst.msk [vmem:[#allocation4 + $0x258] sm:$0xff] %vm1029, %v5840
      %5918 = vst.msk [vmem:[#allocation4 + $0x278] sm:$0xff] %vm1029, %v5842
      %5919 = vst.msk [vmem:[#allocation4 + $0x298] sm:$0xff] %vm1029, %v5844
      %5920 = vst.msk [vmem:[#allocation4 + $0x2b8] sm:$0xff] %vm1029, %v5846
      %5921 = vst.msk [vmem:[#allocation4 + $0x2d8] sm:$0xff] %vm1029, %v5848
      %5922 = vst.msk [vmem:[#allocation4 + $0x2f8] sm:$0xff] %vm1029, %v5850
      %5923 = vst.msk [vmem:[#allocation4 + $0x318] sm:$0xff] %vm1029, %v5852
      %5924 = vst.msk [vmem:[#allocation4 + $0x338] sm:$0xff] %vm1029, %v5854
      %5925 = vst.msk [vmem:[#allocation4 + $0x358] sm:$0xff] %vm1029, %v5856
      %5926 = vst.msk [vmem:[#allocation4 + $0x378] sm:$0xff] %vm1029, %v5858
      %5927 = vst.msk [vmem:[#allocation4 + $0x398] sm:$0xff] %vm1029, %v5860
      %5928 = vst.msk [vmem:[#allocation4 + $0x3b8] sm:$0xff] %vm1029, %v5862
      %5929 = vst.msk [vmem:[#allocation4 + $0x3d8] sm:$0xff] %vm1029, %v5864
      %5930 = vst.msk [vmem:[#allocation4 + $0x3f8] sm:$0xff] %vm1029, %v5866
      %v5931 = vld [vmem:[#allocation4] sm:$0xff]
      %v5932 = vld [vmem:[#allocation4 + $0x8] sm:$0xff]
      %v5933 = vld [vmem:[#allocation4 + $0x10] sm:$0xff]
      %v5934 = vld [vmem:[#allocation4 + $0x18] sm:$0xff]
      %v5935 = vld [vmem:[#allocation4 + $0x20] sm:$0xff]
      %v5936 = vld [vmem:[#allocation4 + $0x28] sm:$0xff]
      %v5937 = vld [vmem:[#allocation4 + $0x30] sm:$0xff]
      %v5938 = vld [vmem:[#allocation4 + $0x38] sm:$0xff]
      %v5939 = vld [vmem:[#allocation4 + $0x40] sm:$0xff]
      %v5940 = vld [vmem:[#allocation4 + $0x48] sm:$0xff]
      %v5941 = vld [vmem:[#allocation4 + $0x50] sm:$0xff]
      %v5942 = vld [vmem:[#allocation4 + $0x58] sm:$0xff]
      %v5943 = vld [vmem:[#allocation4 + $0x60] sm:$0xff]
      %v5944 = vld [vmem:[#allocation4 + $0x68] sm:$0xff]
      %v5945 = vld [vmem:[#allocation4 + $0x70] sm:$0xff]
      %v5946 = vld [vmem:[#allocation4 + $0x78] sm:$0xff]
      %v5947 = vld [vmem:[#allocation4 + $0x80] sm:$0xff]
      %v5948 = vld [vmem:[#allocation4 + $0x88] sm:$0xff]
      %v5949 = vld [vmem:[#allocation4 + $0x90] sm:$0xff]
      %v5950 = vld [vmem:[#allocation4 + $0x98] sm:$0xff]
      %v5951 = vld [vmem:[#allocation4 + $0xa0] sm:$0xff]
      %v5952 = vld [vmem:[#allocation4 + $0xa8] sm:$0xff]
      %v5953 = vld [vmem:[#allocation4 + $0xb0] sm:$0xff]
      %v5954 = vld [vmem:[#allocation4 + $0xb8] sm:$0xff]
      %v5955 = vld [vmem:[#allocation4 + $0xc0] sm:$0xff]
      %v5956 = vld [vmem:[#allocation4 + $0xc8] sm:$0xff]
      %v5957 = vld [vmem:[#allocation4 + $0xd0] sm:$0xff]
      %v5958 = vld [vmem:[#allocation4 + $0xd8] sm:$0xff]
      %v5959 = vld [vmem:[#allocation4 + $0xe0] sm:$0xff]
      %v5960 = vld [vmem:[#allocation4 + $0xe8] sm:$0xff]
      %v5961 = vld [vmem:[#allocation4 + $0xf0] sm:$0xff]
      %v5962 = vld [vmem:[#allocation4 + $0xf8] sm:$0xff]
      %v5963 = vld [vmem:[#allocation4 + $0x100] sm:$0xff]
      %v5964 = vld [vmem:[#allocation4 + $0x108] sm:$0xff]
      %v5965 = vld [vmem:[#allocation4 + $0x110] sm:$0xff]
      %v5966 = vld [vmem:[#allocation4 + $0x118] sm:$0xff]
      %v5967 = vld [vmem:[#allocation4 + $0x120] sm:$0xff]
      %v5968 = vld [vmem:[#allocation4 + $0x128] sm:$0xff]
      %v5969 = vld [vmem:[#allocation4 + $0x130] sm:$0xff]
      %v5970 = vld [vmem:[#allocation4 + $0x138] sm:$0xff]
      %v5971 = vld [vmem:[#allocation4 + $0x140] sm:$0xff]
      %v5972 = vld [vmem:[#allocation4 + $0x148] sm:$0xff]
      %v5973 = vld [vmem:[#allocation4 + $0x150] sm:$0xff]
      %v5974 = vld [vmem:[#allocation4 + $0x158] sm:$0xff]
      %v5975 = vld [vmem:[#allocation4 + $0x160] sm:$0xff]
      %v5976 = vld [vmem:[#allocation4 + $0x168] sm:$0xff]
      %v5977 = vld [vmem:[#allocation4 + $0x170] sm:$0xff]
      %v5978 = vld [vmem:[#allocation4 + $0x178] sm:$0xff]
      %v5979 = vld [vmem:[#allocation4 + $0x180] sm:$0xff]
      %v5980 = vld [vmem:[#allocation4 + $0x188] sm:$0xff]
      %v5981 = vld [vmem:[#allocation4 + $0x190] sm:$0xff]
      %v5982 = vld [vmem:[#allocation4 + $0x198] sm:$0xff]
      %v5983 = vld [vmem:[#allocation4 + $0x1a0] sm:$0xff]
      %v5984 = vld [vmem:[#allocation4 + $0x1a8] sm:$0xff]
      %v5985 = vld [vmem:[#allocation4 + $0x1b0] sm:$0xff]
      %v5986 = vld [vmem:[#allocation4 + $0x1b8] sm:$0xff]
      %v5987 = vld [vmem:[#allocation4 + $0x1c0] sm:$0xff]
      %v5988 = vld [vmem:[#allocation4 + $0x1c8] sm:$0xff]
      %v5989 = vld [vmem:[#allocation4 + $0x1d0] sm:$0xff]
      %v5990 = vld [vmem:[#allocation4 + $0x1d8] sm:$0xff]
      %v5991 = vld [vmem:[#allocation4 + $0x1e0] sm:$0xff]
      %v5992 = vld [vmem:[#allocation4 + $0x1e8] sm:$0xff]
      %v5993 = vld [vmem:[#allocation4 + $0x1f0] sm:$0xff]
      %v5994 = vld [vmem:[#allocation4 + $0x1f8] sm:$0xff]
      %v5995 = vld [vmem:[#allocation4 + $0x200] sm:$0xff]
      %v5996 = vld [vmem:[#allocation4 + $0x208] sm:$0xff]
      %v5997 = vld [vmem:[#allocation4 + $0x210] sm:$0xff]
      %v5998 = vld [vmem:[#allocation4 + $0x218] sm:$0xff]
      %v5999 = vld [vmem:[#allocation4 + $0x220] sm:$0xff]
      %v6000 = vld [vmem:[#allocation4 + $0x228] sm:$0xff]
      %v6001 = vld [vmem:[#allocation4 + $0x230] sm:$0xff]
      %v6002 = vld [vmem:[#allocation4 + $0x238] sm:$0xff]
      %v6003 = vld [vmem:[#allocation4 + $0x240] sm:$0xff]
      %v6004 = vld [vmem:[#allocation4 + $0x248] sm:$0xff]
      %v6005 = vld [vmem:[#allocation4 + $0x250] sm:$0xff]
      %v6006 = vld [vmem:[#allocation4 + $0x258] sm:$0xff]
      %v6007 = vld [vmem:[#allocation4 + $0x260] sm:$0xff]
      %v6008 = vld [vmem:[#allocation4 + $0x268] sm:$0xff]
      %v6009 = vld [vmem:[#allocation4 + $0x270] sm:$0xff]
      %v6010 = vld [vmem:[#allocation4 + $0x278] sm:$0xff]
      %v6011 = vld [vmem:[#allocation4 + $0x280] sm:$0xff]
      %v6012 = vld [vmem:[#allocation4 + $0x288] sm:$0xff]
      %v6013 = vld [vmem:[#allocation4 + $0x290] sm:$0xff]
      %v6014 = vld [vmem:[#allocation4 + $0x298] sm:$0xff]
      %v6015 = vld [vmem:[#allocation4 + $0x2a0] sm:$0xff]
      %v6016 = vld [vmem:[#allocation4 + $0x2a8] sm:$0xff]
      %v6017 = vld [vmem:[#allocation4 + $0x2b0] sm:$0xff]
      %v6018 = vld [vmem:[#allocation4 + $0x2b8] sm:$0xff]
      %v6019 = vld [vmem:[#allocation4 + $0x2c0] sm:$0xff]
      %v6020 = vld [vmem:[#allocation4 + $0x2c8] sm:$0xff]
      %v6021 = vld [vmem:[#allocation4 + $0x2d0] sm:$0xff]
      %v6022 = vld [vmem:[#allocation4 + $0x2d8] sm:$0xff]
      %v6023 = vld [vmem:[#allocation4 + $0x2e0] sm:$0xff]
      %v6024 = vld [vmem:[#allocation4 + $0x2e8] sm:$0xff]
      %v6025 = vld [vmem:[#allocation4 + $0x2f0] sm:$0xff]
      %v6026 = vld [vmem:[#allocation4 + $0x2f8] sm:$0xff]
      %v6027 = vld [vmem:[#allocation4 + $0x300] sm:$0xff]
      %v6028 = vld [vmem:[#allocation4 + $0x308] sm:$0xff]
      %v6029 = vld [vmem:[#allocation4 + $0x310] sm:$0xff]
      %v6030 = vld [vmem:[#allocation4 + $0x318] sm:$0xff]
      %v6031 = vld [vmem:[#allocation4 + $0x320] sm:$0xff]
      %v6032 = vld [vmem:[#allocation4 + $0x328] sm:$0xff]
      %v6033 = vld [vmem:[#allocation4 + $0x330] sm:$0xff]
      %v6034 = vld [vmem:[#allocation4 + $0x338] sm:$0xff]
      %v6035 = vld [vmem:[#allocation4 + $0x340] sm:$0xff]
      %v6036 = vld [vmem:[#allocation4 + $0x348] sm:$0xff]
      %v6037 = vld [vmem:[#allocation4 + $0x350] sm:$0xff]
      %v6038 = vld [vmem:[#allocation4 + $0x358] sm:$0xff]
      %v6039 = vld [vmem:[#allocation4 + $0x360] sm:$0xff]
      %v6040 = vld [vmem:[#allocation4 + $0x368] sm:$0xff]
      %v6041 = vld [vmem:[#allocation4 + $0x370] sm:$0xff]
      %v6042 = vld [vmem:[#allocation4 + $0x378] sm:$0xff]
      %v6043 = vld [vmem:[#allocation4 + $0x380] sm:$0xff]
      %v6044 = vld [vmem:[#allocation4 + $0x388] sm:$0xff]
      %v6045 = vld [vmem:[#allocation4 + $0x390] sm:$0xff]
      %v6046 = vld [vmem:[#allocation4 + $0x398] sm:$0xff]
      %v6047 = vld [vmem:[#allocation4 + $0x3a0] sm:$0xff]
      %v6048 = vld [vmem:[#allocation4 + $0x3a8] sm:$0xff]
      %v6049 = vld [vmem:[#allocation4 + $0x3b0] sm:$0xff]
      %v6050 = vld [vmem:[#allocation4 + $0x3b8] sm:$0xff]
      %v6051 = vld [vmem:[#allocation4 + $0x3c0] sm:$0xff]
      %v6052 = vld [vmem:[#allocation4 + $0x3c8] sm:$0xff]
      %v6053 = vld [vmem:[#allocation4 + $0x3d0] sm:$0xff]
      %v6054 = vld [vmem:[#allocation4 + $0x3d8] sm:$0xff]
      %v6055 = vld [vmem:[#allocation4 + $0x3e0] sm:$0xff]
      %v6056 = vld [vmem:[#allocation4 + $0x3e8] sm:$0xff]
      %v6057 = vld [vmem:[#allocation4 + $0x3f0] sm:$0xff]
      %v6058 = vld [vmem:[#allocation4 + $0x3f8] sm:$0xff]
      %v6059 = vld [vmem:[%s1] sm:$0xff]
      %v6060 = vld [vmem:[%s1 + $0x8] sm:$0xff]
      %v6061 = vld [vmem:[%s1 + $0x10] sm:$0xff]
      %v6062 = vld [vmem:[%s1 + $0x18] sm:$0xff]
      %v6063 = vld [vmem:[%s1 + $0x20] sm:$0xff]
      %v6064 = vld [vmem:[%s1 + $0x28] sm:$0xff]
      %v6065 = vld [vmem:[%s1 + $0x30] sm:$0xff]
      %v6066 = vld [vmem:[%s1 + $0x38] sm:$0xff]
      %v6067 = vld [vmem:[%s1 + $0x40] sm:$0xff]
      %v6068 = vld [vmem:[%s1 + $0x48] sm:$0xff]
      %v6069 = vld [vmem:[%s1 + $0x50] sm:$0xff]
      %v6070 = vld [vmem:[%s1 + $0x58] sm:$0xff]
      %v6071 = vld [vmem:[%s1 + $0x60] sm:$0xff]
      %v6072 = vld [vmem:[%s1 + $0x68] sm:$0xff]
      %v6073 = vld [vmem:[%s1 + $0x70] sm:$0xff]
      %v6074 = vld [vmem:[%s1 + $0x78] sm:$0xff]
      %v6075 = vld [vmem:[%s1 + $0x80] sm:$0xff]
      %v6076 = vld [vmem:[%s1 + $0x88] sm:$0xff]
      %v6077 = vld [vmem:[%s1 + $0x90] sm:$0xff]
      %v6078 = vld [vmem:[%s1 + $0x98] sm:$0xff]
      %v6079 = vld [vmem:[%s1 + $0xa0] sm:$0xff]
      %v6080 = vld [vmem:[%s1 + $0xa8] sm:$0xff]
      %v6081 = vld [vmem:[%s1 + $0xb0] sm:$0xff]
      %v6082 = vld [vmem:[%s1 + $0xb8] sm:$0xff]
      %v6083 = vld [vmem:[%s1 + $0xc0] sm:$0xff]
      %v6084 = vld [vmem:[%s1 + $0xc8] sm:$0xff]
      %v6085 = vld [vmem:[%s1 + $0xd0] sm:$0xff]
      %v6086 = vld [vmem:[%s1 + $0xd8] sm:$0xff]
      %v6087 = vld [vmem:[%s1 + $0xe0] sm:$0xff]
      %v6088 = vld [vmem:[%s1 + $0xe8] sm:$0xff]
      %v6089 = vld [vmem:[%s1 + $0xf0] sm:$0xff]
      %v6090 = vld [vmem:[%s1 + $0xf8] sm:$0xff]
      %v6091 = vld [vmem:[%s1 + $0x100] sm:$0xff]
      %v6092 = vld [vmem:[%s1 + $0x108] sm:$0xff]
      %v6093 = vld [vmem:[%s1 + $0x110] sm:$0xff]
      %v6094 = vld [vmem:[%s1 + $0x118] sm:$0xff]
      %v6095 = vld [vmem:[%s1 + $0x120] sm:$0xff]
      %v6096 = vld [vmem:[%s1 + $0x128] sm:$0xff]
      %v6097 = vld [vmem:[%s1 + $0x130] sm:$0xff]
      %v6098 = vld [vmem:[%s1 + $0x138] sm:$0xff]
      %v6099 = vld [vmem:[%s1 + $0x140] sm:$0xff]
      %v6100 = vld [vmem:[%s1 + $0x148] sm:$0xff]
      %v6101 = vld [vmem:[%s1 + $0x150] sm:$0xff]
      %v6102 = vld [vmem:[%s1 + $0x158] sm:$0xff]
      %v6103 = vld [vmem:[%s1 + $0x160] sm:$0xff]
      %v6104 = vld [vmem:[%s1 + $0x168] sm:$0xff]
      %v6105 = vld [vmem:[%s1 + $0x170] sm:$0xff]
      %v6106 = vld [vmem:[%s1 + $0x178] sm:$0xff]
      %v6107 = vld [vmem:[%s1 + $0x180] sm:$0xff]
      %v6108 = vld [vmem:[%s1 + $0x188] sm:$0xff]
      %v6109 = vld [vmem:[%s1 + $0x190] sm:$0xff]
      %v6110 = vld [vmem:[%s1 + $0x198] sm:$0xff]
      %v6111 = vld [vmem:[%s1 + $0x1a0] sm:$0xff]
      %v6112 = vld [vmem:[%s1 + $0x1a8] sm:$0xff]
      %v6113 = vld [vmem:[%s2] sm:$0x1]
      %v6115 = vperm.slane %v6113, 0
      %v6118 = vsel %vm412, %v5934, 0
      %v6121 = vsel %vm412, %v5938, 0
      %v6124 = vsel %vm412, %v5942, 0
      %v6127 = vsel %vm412, %v5946, 0
      %v6130 = vsel %vm412, %v5950, 0
      %v6133 = vsel %vm412, %v5954, 0
      %v6136 = vsel %vm412, %v5958, 0
      %v6139 = vsel %vm412, %v5962, 0
      %v6142 = vsel %vm412, %v5966, 0
      %v6145 = vsel %vm412, %v5970, 0
      %v6148 = vsel %vm412, %v5974, 0
      %v6151 = vsel %vm412, %v5978, 0
      %v6154 = vsel %vm412, %v5982, 0
      %v6157 = vsel %vm412, %v5986, 0
      %v6160 = vsel %vm412, %v5990, 0
      %v6163 = vsel %vm412, %v5994, 0
      %v6166 = vsel %vm412, %v5998, 0
      %v6169 = vsel %vm412, %v6002, 0
      %v6172 = vsel %vm412, %v6006, 0
      %v6175 = vsel %vm412, %v6010, 0
      %v6178 = vsel %vm412, %v6014, 0
      %v6181 = vsel %vm412, %v6018, 0
      %v6184 = vsel %vm412, %v6022, 0
      %v6187 = vsel %vm412, %v6026, 0
      %v6190 = vsel %vm412, %v6030, 0
      %v6193 = vsel %vm412, %v6034, 0
      %v6196 = vsel %vm412, %v6038, 0
      %v6199 = vsel %vm412, %v6042, 0
      %v6202 = vsel %vm412, %v6046, 0
      %v6205 = vsel %vm412, %v6050, 0
      %v6208 = vsel %vm412, %v6054, 0
      %v6211 = vsel %vm412, %v6058, 0
      %6213 = vmatpush.msra.mxu0 %v6074
      %6214 = vmatpush.msra.mxu0 %v6073
      %6215 = vmatpush.msra.mxu0 %v6072
      %6216 = vmatpush.msra.mxu0 %v6071
      %6217 = vmatpush.msra.mxu0 %v6070
      %6218 = vmatpush.msra.mxu0 %v6069
      %6219 = vmatpush.msra.mxu0 %v6068
      %6220 = vmatpush.msra.mxu0 %v6067
      %6221 = vmatpush.msra.mxu0 %v6066
      %6222 = vmatpush.msra.mxu0 %v6065
      %6223 = vmatpush.msra.mxu0 %v6064
      %6224 = vmatpush.msra.mxu0 %v6063
      %6225 = vmatpush.msra.mxu0 %v6062
      %6226 = vmatpush.msra.mxu0 %v6061
      %6227 = vmatpush.msra.mxu0 %v6060
      %6228 = vmatpush.msra.mxu0 %v6059
      %6229 = vmatmul.f32.gmra.mxu0 %v5931
      %v6230 = vpop.f32.mrf.mxu0
      %v6231 = vadd.f32 %v6115, %v6230
      %6232 = vmatmul.f32.gmra.mxu0 %v5935
      %v6233 = vpop.f32.mrf.mxu0
      %v6234 = vadd.f32 %v6115, %v6233
      %6235 = vmatmul.f32.gmra.mxu0 %v5939
      %v6236 = vpop.f32.mrf.mxu0
      %v6237 = vadd.f32 %v6115, %v6236
      %6238 = vmatmul.f32.gmra.mxu0 %v5943
      %v6239 = vpop.f32.mrf.mxu0
      %v6240 = vadd.f32 %v6115, %v6239
      %6241 = vmatmul.f32.gmra.mxu0 %v5947
      %v6242 = vpop.f32.mrf.mxu0
      %v6243 = vadd.f32 %v6115, %v6242
      %6244 = vmatmul.f32.gmra.mxu0 %v5951
      %v6245 = vpop.f32.mrf.mxu0
      %v6246 = vadd.f32 %v6115, %v6245
      %6247 = vmatmul.f32.gmra.mxu0 %v5955
      %v6248 = vpop.f32.mrf.mxu0
      %v6249 = vadd.f32 %v6115, %v6248
      %6250 = vmatmul.f32.gmra.mxu0 %v5959
      %v6251 = vpop.f32.mrf.mxu0
      %v6252 = vadd.f32 %v6115, %v6251
      %6253 = vmatmul.f32.gmra.mxu0 %v5963
      %v6254 = vpop.f32.mrf.mxu0
      %v6255 = vadd.f32 %v6115, %v6254
      %6256 = vmatmul.f32.gmra.mxu0 %v5967
      %v6257 = vpop.f32.mrf.mxu0
      %v6258 = vadd.f32 %v6115, %v6257
      %6259 = vmatmul.f32.gmra.mxu0 %v5971
      %v6260 = vpop.f32.mrf.mxu0
      %v6261 = vadd.f32 %v6115, %v6260
      %6262 = vmatmul.f32.gmra.mxu0 %v5975
      %v6263 = vpop.f32.mrf.mxu0
      %v6264 = vadd.f32 %v6115, %v6263
      %6265 = vmatmul.f32.gmra.mxu0 %v5979
      %v6266 = vpop.f32.mrf.mxu0
      %v6267 = vadd.f32 %v6115, %v6266
      %6268 = vmatmul.f32.gmra.mxu0 %v5983
      %v6269 = vpop.f32.mrf.mxu0
      %v6270 = vadd.f32 %v6115, %v6269
      %6271 = vmatmul.f32.gmra.mxu0 %v5987
      %v6272 = vpop.f32.mrf.mxu0
      %v6273 = vadd.f32 %v6115, %v6272
      %6274 = vmatmul.f32.gmra.mxu0 %v5991
      %v6275 = vpop.f32.mrf.mxu0
      %v6276 = vadd.f32 %v6115, %v6275
      %6277 = vmatmul.f32.gmra.mxu0 %v5995
      %v6278 = vpop.f32.mrf.mxu0
      %v6279 = vadd.f32 %v6115, %v6278
      %6280 = vmatmul.f32.gmra.mxu0 %v5999
      %v6281 = vpop.f32.mrf.mxu0
      %v6282 = vadd.f32 %v6115, %v6281
      %6283 = vmatmul.f32.gmra.mxu0 %v6003
      %v6284 = vpop.f32.mrf.mxu0
      %v6285 = vadd.f32 %v6115, %v6284
      %6286 = vmatmul.f32.gmra.mxu0 %v6007
      %v6287 = vpop.f32.mrf.mxu0
      %v6288 = vadd.f32 %v6115, %v6287
      %6289 = vmatmul.f32.gmra.mxu0 %v6011
      %v6290 = vpop.f32.mrf.mxu0
      %v6291 = vadd.f32 %v6115, %v6290
      %6292 = vmatmul.f32.gmra.mxu0 %v6015
      %v6293 = vpop.f32.mrf.mxu0
      %v6294 = vadd.f32 %v6115, %v6293
      %6295 = vmatmul.f32.gmra.mxu0 %v6019
      %v6296 = vpop.f32.mrf.mxu0
      %v6297 = vadd.f32 %v6115, %v6296
      %6298 = vmatmul.f32.gmra.mxu0 %v6023
      %v6299 = vpop.f32.mrf.mxu0
      %v6300 = vadd.f32 %v6115, %v6299
      %6301 = vmatmul.f32.gmra.mxu0 %v6027
      %v6302 = vpop.f32.mrf.mxu0
      %v6303 = vadd.f32 %v6115, %v6302
      %6304 = vmatmul.f32.gmra.mxu0 %v6031
      %v6305 = vpop.f32.mrf.mxu0
      %v6306 = vadd.f32 %v6115, %v6305
      %6307 = vmatmul.f32.gmra.mxu0 %v6035
      %v6308 = vpop.f32.mrf.mxu0
      %v6309 = vadd.f32 %v6115, %v6308
      %6310 = vmatmul.f32.gmra.mxu0 %v6039
      %v6311 = vpop.f32.mrf.mxu0
      %v6312 = vadd.f32 %v6115, %v6311
      %6313 = vmatmul.f32.gmra.mxu0 %v6043
      %v6314 = vpop.f32.mrf.mxu0
      %v6315 = vadd.f32 %v6115, %v6314
      %6316 = vmatmul.f32.gmra.mxu0 %v6047
      %v6317 = vpop.f32.mrf.mxu0
      %v6318 = vadd.f32 %v6115, %v6317
      %6319 = vmatmul.f32.gmra.mxu0 %v6051
      %v6320 = vpop.f32.mrf.mxu0
      %v6321 = vadd.f32 %v6115, %v6320
      %6322 = vmatmul.f32.gmra.mxu0 %v6055
      %v6323 = vpop.f32.mrf.mxu0
      %v6324 = vadd.f32 %v6115, %v6323
      %6325 = vdwg.mxu0
      %6326 = vmatpush.msra.mxu0 %v6090
      %6327 = vmatpush.msra.mxu0 %v6089
      %6328 = vmatpush.msra.mxu0 %v6088
      %6329 = vmatpush.msra.mxu0 %v6087
      %6330 = vmatpush.msra.mxu0 %v6086
      %6331 = vmatpush.msra.mxu0 %v6085
      %6332 = vmatpush.msra.mxu0 %v6084
      %6333 = vmatpush.msra.mxu0 %v6083
      %6334 = vmatpush.msra.mxu0 %v6082
      %6335 = vmatpush.msra.mxu0 %v6081
      %6336 = vmatpush.msra.mxu0 %v6080
      %6337 = vmatpush.msra.mxu0 %v6079
      %6338 = vmatpush.msra.mxu0 %v6078
      %6339 = vmatpush.msra.mxu0 %v6077
      %6340 = vmatpush.msra.mxu0 %v6076
      %6341 = vmatpush.msra.mxu0 %v6075
      %6342 = vmatmul.f32.gmra.mxu0 %v5932
      %v6343 = vpop.f32.mrf.mxu0
      %v6344 = vadd.f32 %v6231, %v6343
      %6345 = vmatmul.f32.gmra.mxu0 %v5936
      %v6346 = vpop.f32.mrf.mxu0
      %v6347 = vadd.f32 %v6234, %v6346
      %6348 = vmatmul.f32.gmra.mxu0 %v5940
      %v6349 = vpop.f32.mrf.mxu0
      %v6350 = vadd.f32 %v6237, %v6349
      %6351 = vmatmul.f32.gmra.mxu0 %v5944
      %v6352 = vpop.f32.mrf.mxu0
      %v6353 = vadd.f32 %v6240, %v6352
      %6354 = vmatmul.f32.gmra.mxu0 %v5948
      %v6355 = vpop.f32.mrf.mxu0
      %v6356 = vadd.f32 %v6243, %v6355
      %6357 = vmatmul.f32.gmra.mxu0 %v5952
      %v6358 = vpop.f32.mrf.mxu0
      %v6359 = vadd.f32 %v6246, %v6358
      %6360 = vmatmul.f32.gmra.mxu0 %v5956
      %v6361 = vpop.f32.mrf.mxu0
      %v6362 = vadd.f32 %v6249, %v6361
      %6363 = vmatmul.f32.gmra.mxu0 %v5960
      %v6364 = vpop.f32.mrf.mxu0
      %v6365 = vadd.f32 %v6252, %v6364
      %6366 = vmatmul.f32.gmra.mxu0 %v5964
      %v6367 = vpop.f32.mrf.mxu0
      %v6368 = vadd.f32 %v6255, %v6367
      %6369 = vmatmul.f32.gmra.mxu0 %v5968
      %v6370 = vpop.f32.mrf.mxu0
      %v6371 = vadd.f32 %v6258, %v6370
      %6372 = vmatmul.f32.gmra.mxu0 %v5972
      %v6373 = vpop.f32.mrf.mxu0
      %v6374 = vadd.f32 %v6261, %v6373
      %6375 = vmatmul.f32.gmra.mxu0 %v5976
      %v6376 = vpop.f32.mrf.mxu0
      %v6377 = vadd.f32 %v6264, %v6376
      %6378 = vmatmul.f32.gmra.mxu0 %v5980
      %v6379 = vpop.f32.mrf.mxu0
      %v6380 = vadd.f32 %v6267, %v6379
      %6381 = vmatmul.f32.gmra.mxu0 %v5984
      %v6382 = vpop.f32.mrf.mxu0
      %v6383 = vadd.f32 %v6270, %v6382
      %6384 = vmatmul.f32.gmra.mxu0 %v5988
      %v6385 = vpop.f32.mrf.mxu0
      %v6386 = vadd.f32 %v6273, %v6385
      %6387 = vmatmul.f32.gmra.mxu0 %v5992
      %v6388 = vpop.f32.mrf.mxu0
      %v6389 = vadd.f32 %v6276, %v6388
      %6390 = vmatmul.f32.gmra.mxu0 %v5996
      %v6391 = vpop.f32.mrf.mxu0
      %v6392 = vadd.f32 %v6279, %v6391
      %6393 = vmatmul.f32.gmra.mxu0 %v6000
      %v6394 = vpop.f32.mrf.mxu0
      %v6395 = vadd.f32 %v6282, %v6394
      %6396 = vmatmul.f32.gmra.mxu0 %v6004
      %v6397 = vpop.f32.mrf.mxu0
      %v6398 = vadd.f32 %v6285, %v6397
      %6399 = vmatmul.f32.gmra.mxu0 %v6008
      %v6400 = vpop.f32.mrf.mxu0
      %v6401 = vadd.f32 %v6288, %v6400
      %6402 = vmatmul.f32.gmra.mxu0 %v6012
      %v6403 = vpop.f32.mrf.mxu0
      %v6404 = vadd.f32 %v6291, %v6403
      %6405 = vmatmul.f32.gmra.mxu0 %v6016
      %v6406 = vpop.f32.mrf.mxu0
      %v6407 = vadd.f32 %v6294, %v6406
      %6408 = vmatmul.f32.gmra.mxu0 %v6020
      %v6409 = vpop.f32.mrf.mxu0
      %v6410 = vadd.f32 %v6297, %v6409
      %6411 = vmatmul.f32.gmra.mxu0 %v6024
      %v6412 = vpop.f32.mrf.mxu0
      %v6413 = vadd.f32 %v6300, %v6412
      %6414 = vmatmul.f32.gmra.mxu0 %v6028
      %v6415 = vpop.f32.mrf.mxu0
      %v6416 = vadd.f32 %v6303, %v6415
      %6417 = vmatmul.f32.gmra.mxu0 %v6032
      %v6418 = vpop.f32.mrf.mxu0
      %v6419 = vadd.f32 %v6306, %v6418
      %6420 = vmatmul.f32.gmra.mxu0 %v6036
      %v6421 = vpop.f32.mrf.mxu0
      %v6422 = vadd.f32 %v6309, %v6421
      %6423 = vmatmul.f32.gmra.mxu0 %v6040
      %v6424 = vpop.f32.mrf.mxu0
      %v6425 = vadd.f32 %v6312, %v6424
      %6426 = vmatmul.f32.gmra.mxu0 %v6044
      %v6427 = vpop.f32.mrf.mxu0
      %v6428 = vadd.f32 %v6315, %v6427
      %6429 = vmatmul.f32.gmra.mxu0 %v6048
      %v6430 = vpop.f32.mrf.mxu0
      %v6431 = vadd.f32 %v6318, %v6430
      %6432 = vmatmul.f32.gmra.mxu0 %v6052
      %v6433 = vpop.f32.mrf.mxu0
      %v6434 = vadd.f32 %v6321, %v6433
      %6435 = vmatmul.f32.gmra.mxu0 %v6056
      %v6436 = vpop.f32.mrf.mxu0
      %v6437 = vadd.f32 %v6324, %v6436
      %6438 = vdwg.mxu0
      %6439 = vmatpush.msra.mxu0 %v6106
      %6440 = vmatpush.msra.mxu0 %v6105
      %6441 = vmatpush.msra.mxu0 %v6104
      %6442 = vmatpush.msra.mxu0 %v6103
      %6443 = vmatpush.msra.mxu0 %v6102
      %6444 = vmatpush.msra.mxu0 %v6101
      %6445 = vmatpush.msra.mxu0 %v6100
      %6446 = vmatpush.msra.mxu0 %v6099
      %6447 = vmatpush.msra.mxu0 %v6098
      %6448 = vmatpush.msra.mxu0 %v6097
      %6449 = vmatpush.msra.mxu0 %v6096
      %6450 = vmatpush.msra.mxu0 %v6095
      %6451 = vmatpush.msra.mxu0 %v6094
      %6452 = vmatpush.msra.mxu0 %v6093
      %6453 = vmatpush.msra.mxu0 %v6092
      %6454 = vmatpush.msra.mxu0 %v6091
      %6455 = vmatmul.f32.gmra.mxu0 %v5933
      %v6456 = vpop.f32.mrf.mxu0
      %v6457 = vadd.f32 %v6344, %v6456
      %6458 = vmatmul.f32.gmra.mxu0 %v5937
      %v6459 = vpop.f32.mrf.mxu0
      %v6460 = vadd.f32 %v6347, %v6459
      %6461 = vmatmul.f32.gmra.mxu0 %v5941
      %v6462 = vpop.f32.mrf.mxu0
      %v6463 = vadd.f32 %v6350, %v6462
      %6464 = vmatmul.f32.gmra.mxu0 %v5945
      %v6465 = vpop.f32.mrf.mxu0
      %v6466 = vadd.f32 %v6353, %v6465
      %6467 = vmatmul.f32.gmra.mxu0 %v5949
      %v6468 = vpop.f32.mrf.mxu0
      %v6469 = vadd.f32 %v6356, %v6468
      %6470 = vmatmul.f32.gmra.mxu0 %v5953
      %v6471 = vpop.f32.mrf.mxu0
      %v6472 = vadd.f32 %v6359, %v6471
      %6473 = vmatmul.f32.gmra.mxu0 %v5957
      %v6474 = vpop.f32.mrf.mxu0
      %v6475 = vadd.f32 %v6362, %v6474
      %6476 = vmatmul.f32.gmra.mxu0 %v5961
      %v6477 = vpop.f32.mrf.mxu0
      %v6478 = vadd.f32 %v6365, %v6477
      %6479 = vmatmul.f32.gmra.mxu0 %v5965
      %v6480 = vpop.f32.mrf.mxu0
      %v6481 = vadd.f32 %v6368, %v6480
      %6482 = vmatmul.f32.gmra.mxu0 %v5969
      %v6483 = vpop.f32.mrf.mxu0
      %v6484 = vadd.f32 %v6371, %v6483
      %6485 = vmatmul.f32.gmra.mxu0 %v5973
      %v6486 = vpop.f32.mrf.mxu0
      %v6487 = vadd.f32 %v6374, %v6486
      %6488 = vmatmul.f32.gmra.mxu0 %v5977
      %v6489 = vpop.f32.mrf.mxu0
      %v6490 = vadd.f32 %v6377, %v6489
      %6491 = vmatmul.f32.gmra.mxu0 %v5981
      %v6492 = vpop.f32.mrf.mxu0
      %v6493 = vadd.f32 %v6380, %v6492
      %6494 = vmatmul.f32.gmra.mxu0 %v5985
      %v6495 = vpop.f32.mrf.mxu0
      %v6496 = vadd.f32 %v6383, %v6495
      %6497 = vmatmul.f32.gmra.mxu0 %v5989
      %v6498 = vpop.f32.mrf.mxu0
      %v6499 = vadd.f32 %v6386, %v6498
      %6500 = vmatmul.f32.gmra.mxu0 %v5993
      %v6501 = vpop.f32.mrf.mxu0
      %v6502 = vadd.f32 %v6389, %v6501
      %6503 = vmatmul.f32.gmra.mxu0 %v5997
      %v6504 = vpop.f32.mrf.mxu0
      %v6505 = vadd.f32 %v6392, %v6504
      %6506 = vmatmul.f32.gmra.mxu0 %v6001
      %v6507 = vpop.f32.mrf.mxu0
      %v6508 = vadd.f32 %v6395, %v6507
      %6509 = vmatmul.f32.gmra.mxu0 %v6005
      %v6510 = vpop.f32.mrf.mxu0
      %v6511 = vadd.f32 %v6398, %v6510
      %6512 = vmatmul.f32.gmra.mxu0 %v6009
      %v6513 = vpop.f32.mrf.mxu0
      %v6514 = vadd.f32 %v6401, %v6513
      %6515 = vmatmul.f32.gmra.mxu0 %v6013
      %v6516 = vpop.f32.mrf.mxu0
      %v6517 = vadd.f32 %v6404, %v6516
      %6518 = vmatmul.f32.gmra.mxu0 %v6017
      %v6519 = vpop.f32.mrf.mxu0
      %v6520 = vadd.f32 %v6407, %v6519
      %6521 = vmatmul.f32.gmra.mxu0 %v6021
      %v6522 = vpop.f32.mrf.mxu0
      %v6523 = vadd.f32 %v6410, %v6522
      %6524 = vmatmul.f32.gmra.mxu0 %v6025
      %v6525 = vpop.f32.mrf.mxu0
      %v6526 = vadd.f32 %v6413, %v6525
      %6527 = vmatmul.f32.gmra.mxu0 %v6029
      %v6528 = vpop.f32.mrf.mxu0
      %v6529 = vadd.f32 %v6416, %v6528
      %6530 = vmatmul.f32.gmra.mxu0 %v6033
      %v6531 = vpop.f32.mrf.mxu0
      %v6532 = vadd.f32 %v6419, %v6531
      %6533 = vmatmul.f32.gmra.mxu0 %v6037
      %v6534 = vpop.f32.mrf.mxu0
      %v6535 = vadd.f32 %v6422, %v6534
      %6536 = vmatmul.f32.gmra.mxu0 %v6041
      %v6537 = vpop.f32.mrf.mxu0
      %v6538 = vadd.f32 %v6425, %v6537
      %6539 = vmatmul.f32.gmra.mxu0 %v6045
      %v6540 = vpop.f32.mrf.mxu0
      %v6541 = vadd.f32 %v6428, %v6540
      %6542 = vmatmul.f32.gmra.mxu0 %v6049
      %v6543 = vpop.f32.mrf.mxu0
      %v6544 = vadd.f32 %v6431, %v6543
      %6545 = vmatmul.f32.gmra.mxu0 %v6053
      %v6546 = vpop.f32.mrf.mxu0
      %v6547 = vadd.f32 %v6434, %v6546
      %6548 = vmatmul.f32.gmra.mxu0 %v6057
      %v6549 = vpop.f32.mrf.mxu0
      %v6550 = vadd.f32 %v6437, %v6549
      %6551 = vdwg.mxu0
      %6552 = vmatpush.msra.mxu0 0.0
      %6553 = vmatpush.msra.mxu0 0.0
      %6554 = vmatpush.msra.mxu0 0.0
      %6555 = vmatpush.msra.mxu0 0.0
      %6556 = vmatpush.msra.mxu0 0.0
      %6557 = vmatpush.msra.mxu0 0.0
      %6558 = vmatpush.msra.mxu0 0.0
      %6559 = vmatpush.msra.mxu0 0.0
      %6560 = vmatpush.msra.mxu0 0.0
      %6561 = vmatpush.msra.mxu0 0.0
      %6562 = vmatpush.msra.mxu0 %v6112
      %6563 = vmatpush.msra.mxu0 %v6111
      %6564 = vmatpush.msra.mxu0 %v6110
      %6565 = vmatpush.msra.mxu0 %v6109
      %6566 = vmatpush.msra.mxu0 %v6108
      %6567 = vmatpush.msra.mxu0 %v6107
      %6568 = vmatmul.f32.gmra.mxu0 %v6118
      %v6569 = vpop.f32.mrf.mxu0
      %v6570 = vadd.f32 %v6457, %v6569
      %6571 = vmatmul.f32.gmra.mxu0 %v6121
      %v6572 = vpop.f32.mrf.mxu0
      %v6573 = vadd.f32 %v6460, %v6572
      %6574 = vmatmul.f32.gmra.mxu0 %v6124
      %v6575 = vpop.f32.mrf.mxu0
      %v6576 = vadd.f32 %v6463, %v6575
      %6577 = vmatmul.f32.gmra.mxu0 %v6127
      %v6578 = vpop.f32.mrf.mxu0
      %v6579 = vadd.f32 %v6466, %v6578
      %6580 = vmatmul.f32.gmra.mxu0 %v6130
      %v6581 = vpop.f32.mrf.mxu0
      %v6582 = vadd.f32 %v6469, %v6581
      %6583 = vmatmul.f32.gmra.mxu0 %v6133
      %v6584 = vpop.f32.mrf.mxu0
      %v6585 = vadd.f32 %v6472, %v6584
      %6586 = vmatmul.f32.gmra.mxu0 %v6136
      %v6587 = vpop.f32.mrf.mxu0
      %v6588 = vadd.f32 %v6475, %v6587
      %6589 = vmatmul.f32.gmra.mxu0 %v6139
      %v6590 = vpop.f32.mrf.mxu0
      %v6591 = vadd.f32 %v6478, %v6590
      %6592 = vmatmul.f32.gmra.mxu0 %v6142
      %v6593 = vpop.f32.mrf.mxu0
      %v6594 = vadd.f32 %v6481, %v6593
      %6595 = vmatmul.f32.gmra.mxu0 %v6145
      %v6596 = vpop.f32.mrf.mxu0
      %v6597 = vadd.f32 %v6484, %v6596
      %6598 = vmatmul.f32.gmra.mxu0 %v6148
      %v6599 = vpop.f32.mrf.mxu0
      %v6600 = vadd.f32 %v6487, %v6599
      %6601 = vmatmul.f32.gmra.mxu0 %v6151
      %v6602 = vpop.f32.mrf.mxu0
      %v6603 = vadd.f32 %v6490, %v6602
      %6604 = vmatmul.f32.gmra.mxu0 %v6154
      %v6605 = vpop.f32.mrf.mxu0
      %v6606 = vadd.f32 %v6493, %v6605
      %6607 = vmatmul.f32.gmra.mxu0 %v6157
      %v6608 = vpop.f32.mrf.mxu0
      %v6609 = vadd.f32 %v6496, %v6608
      %6610 = vmatmul.f32.gmra.mxu0 %v6160
      %v6611 = vpop.f32.mrf.mxu0
      %v6612 = vadd.f32 %v6499, %v6611
      %6613 = vmatmul.f32.gmra.mxu0 %v6163
      %v6614 = vpop.f32.mrf.mxu0
      %v6615 = vadd.f32 %v6502, %v6614
      %6616 = vmatmul.f32.gmra.mxu0 %v6166
      %v6617 = vpop.f32.mrf.mxu0
      %v6618 = vadd.f32 %v6505, %v6617
      %6619 = vmatmul.f32.gmra.mxu0 %v6169
      %v6620 = vpop.f32.mrf.mxu0
      %v6621 = vadd.f32 %v6508, %v6620
      %6622 = vmatmul.f32.gmra.mxu0 %v6172
      %v6623 = vpop.f32.mrf.mxu0
      %v6624 = vadd.f32 %v6511, %v6623
      %6625 = vmatmul.f32.gmra.mxu0 %v6175
      %v6626 = vpop.f32.mrf.mxu0
      %v6627 = vadd.f32 %v6514, %v6626
      %6628 = vmatmul.f32.gmra.mxu0 %v6178
      %v6629 = vpop.f32.mrf.mxu0
      %v6630 = vadd.f32 %v6517, %v6629
      %6631 = vmatmul.f32.gmra.mxu0 %v6181
      %v6632 = vpop.f32.mrf.mxu0
      %v6633 = vadd.f32 %v6520, %v6632
      %6634 = vmatmul.f32.gmra.mxu0 %v6184
      %v6635 = vpop.f32.mrf.mxu0
      %v6636 = vadd.f32 %v6523, %v6635
      %6637 = vmatmul.f32.gmra.mxu0 %v6187
      %v6638 = vpop.f32.mrf.mxu0
      %v6639 = vadd.f32 %v6526, %v6638
      %6640 = vmatmul.f32.gmra.mxu0 %v6190
      %v6641 = vpop.f32.mrf.mxu0
      %v6642 = vadd.f32 %v6529, %v6641
      %6643 = vmatmul.f32.gmra.mxu0 %v6193
      %v6644 = vpop.f32.mrf.mxu0
      %v6645 = vadd.f32 %v6532, %v6644
      %6646 = vmatmul.f32.gmra.mxu0 %v6196
      %v6647 = vpop.f32.mrf.mxu0
      %v6648 = vadd.f32 %v6535, %v6647
      %6649 = vmatmul.f32.gmra.mxu0 %v6199
      %v6650 = vpop.f32.mrf.mxu0
      %v6651 = vadd.f32 %v6538, %v6650
      %6652 = vmatmul.f32.gmra.mxu0 %v6202
      %v6653 = vpop.f32.mrf.mxu0
      %v6654 = vadd.f32 %v6541, %v6653
      %6655 = vmatmul.f32.gmra.mxu0 %v6205
      %v6656 = vpop.f32.mrf.mxu0
      %v6657 = vadd.f32 %v6544, %v6656
      %6658 = vmatmul.f32.gmra.mxu0 %v6208
      %v6659 = vpop.f32.mrf.mxu0
      %v6660 = vadd.f32 %v6547, %v6659
      %6661 = vmatmul.f32.gmra.mxu0 %v6211
      %v6662 = vpop.f32.mrf.mxu0
      %v6663 = vadd.f32 %v6550, %v6662
      %6664 = vdwg.mxu0
      %v6665 = vsel %vm412, %v6570, 0.0
      %v6666 = vsel %vm412, %v6573, 0.0
      %v6667 = vadd.f32 %v6665, %v6666
      %v6668 = vsel %vm412, %v6576, 0.0
      %v6669 = vadd.f32 %v6667, %v6668
      %v6670 = vsel %vm412, %v6579, 0.0
      %v6671 = vadd.f32 %v6669, %v6670
      %v6672 = vsel %vm412, %v6582, 0.0
      %v6673 = vadd.f32 %v6671, %v6672
      %v6674 = vsel %vm412, %v6585, 0.0
      %v6675 = vadd.f32 %v6673, %v6674
      %v6676 = vsel %vm412, %v6588, 0.0
      %v6677 = vadd.f32 %v6675, %v6676
      %v6678 = vsel %vm412, %v6591, 0.0
      %v6679 = vadd.f32 %v6677, %v6678
      %v6680 = vsel %vm412, %v6594, 0.0
      %v6681 = vadd.f32 %v6679, %v6680
      %v6682 = vsel %vm412, %v6597, 0.0
      %v6683 = vadd.f32 %v6681, %v6682
      %v6684 = vsel %vm412, %v6600, 0.0
      %v6685 = vadd.f32 %v6683, %v6684
      %v6686 = vsel %vm412, %v6603, 0.0
      %v6687 = vadd.f32 %v6685, %v6686
      %v6688 = vsel %vm412, %v6606, 0.0
      %v6689 = vadd.f32 %v6687, %v6688
      %v6690 = vsel %vm412, %v6609, 0.0
      %v6691 = vadd.f32 %v6689, %v6690
      %v6692 = vsel %vm412, %v6612, 0.0
      %v6693 = vadd.f32 %v6691, %v6692
      %v6694 = vsel %vm412, %v6615, 0.0
      %v6695 = vadd.f32 %v6693, %v6694
      %v6696 = vsel %vm412, %v6618, 0.0
      %v6697 = vadd.f32 %v6695, %v6696
      %v6698 = vsel %vm412, %v6621, 0.0
      %v6699 = vadd.f32 %v6697, %v6698
      %v6700 = vsel %vm412, %v6624, 0.0
      %v6701 = vadd.f32 %v6699, %v6700
      %v6702 = vsel %vm412, %v6627, 0.0
      %v6703 = vadd.f32 %v6701, %v6702
      %v6704 = vsel %vm412, %v6630, 0.0
      %v6705 = vadd.f32 %v6703, %v6704
      %v6706 = vsel %vm412, %v6633, 0.0
      %v6707 = vadd.f32 %v6705, %v6706
      %v6708 = vsel %vm412, %v6636, 0.0
      %v6709 = vadd.f32 %v6707, %v6708
      %v6710 = vsel %vm412, %v6639, 0.0
      %v6711 = vadd.f32 %v6709, %v6710
      %v6712 = vsel %vm412, %v6642, 0.0
      %v6713 = vadd.f32 %v6711, %v6712
      %v6714 = vsel %vm412, %v6645, 0.0
      %v6715 = vadd.f32 %v6713, %v6714
      %v6716 = vsel %vm412, %v6648, 0.0
      %v6717 = vadd.f32 %v6715, %v6716
      %v6718 = vsel %vm412, %v6651, 0.0
      %v6719 = vadd.f32 %v6717, %v6718
      %v6720 = vsel %vm412, %v6654, 0.0
      %v6721 = vadd.f32 %v6719, %v6720
      %v6722 = vsel %vm412, %v6657, 0.0
      %v6723 = vadd.f32 %v6721, %v6722
      %v6724 = vsel %vm412, %v6660, 0.0
      %v6725 = vadd.f32 %v6723, %v6724
      %v6726 = vsel %vm412, %v6663, 0.0
      %v6727 = vadd.f32 %v6725, %v6726
      %v6728 = vrot.slane %v6727, 4
      %v6729 = vadd.f32 %v6727, %v6728
      %v6730 = vrot.slane %v6729, 2
      %v6731 = vadd.f32 %v6729, %v6730
      %v6732 = vrot.slane %v6731, 1
      %v6733 = vadd.f32 %v6731, %v6732
      %v6734 = vmul.f32 %v6733, 0.00390625
      %v6735 = vmul.f32 %v6570, %v6570
      %v6736 = vmul.f32 %v6573, %v6573
      %v6737 = vmul.f32 %v6576, %v6576
      %v6738 = vmul.f32 %v6579, %v6579
      %v6739 = vmul.f32 %v6582, %v6582
      %v6740 = vmul.f32 %v6585, %v6585
      %v6741 = vmul.f32 %v6588, %v6588
      %v6742 = vmul.f32 %v6591, %v6591
      %v6743 = vmul.f32 %v6594, %v6594
      %v6744 = vmul.f32 %v6597, %v6597
      %v6745 = vmul.f32 %v6600, %v6600
      %v6746 = vmul.f32 %v6603, %v6603
      %v6747 = vmul.f32 %v6606, %v6606
      %v6748 = vmul.f32 %v6609, %v6609
      %v6749 = vmul.f32 %v6612, %v6612
      %v6750 = vmul.f32 %v6615, %v6615
      %v6751 = vmul.f32 %v6618, %v6618
      %v6752 = vmul.f32 %v6621, %v6621
      %v6753 = vmul.f32 %v6624, %v6624
      %v6754 = vmul.f32 %v6627, %v6627
      %v6755 = vmul.f32 %v6630, %v6630
      %v6756 = vmul.f32 %v6633, %v6633
      %v6757 = vmul.f32 %v6636, %v6636
      %v6758 = vmul.f32 %v6639, %v6639
      %v6759 = vmul.f32 %v6642, %v6642
      %v6760 = vmul.f32 %v6645, %v6645
      %v6761 = vmul.f32 %v6648, %v6648
      %v6762 = vmul.f32 %v6651, %v6651
      %v6763 = vmul.f32 %v6654, %v6654
      %v6764 = vmul.f32 %v6657, %v6657
      %v6765 = vmul.f32 %v6660, %v6660
      %v6766 = vmul.f32 %v6663, %v6663
      %v6767 = vsel %vm412, %v6735, 0.0
      %v6768 = vsel %vm412, %v6736, 0.0
      %v6769 = vadd.f32 %v6767, %v6768
      %v6770 = vsel %vm412, %v6737, 0.0
      %v6771 = vadd.f32 %v6769, %v6770
      %v6772 = vsel %vm412, %v6738, 0.0
      %v6773 = vadd.f32 %v6771, %v6772
      %v6774 = vsel %vm412, %v6739, 0.0
      %v6775 = vadd.f32 %v6773, %v6774
      %v6776 = vsel %vm412, %v6740, 0.0
      %v6777 = vadd.f32 %v6775, %v6776
      %v6778 = vsel %vm412, %v6741, 0.0
      %v6779 = vadd.f32 %v6777, %v6778
      %v6780 = vsel %vm412, %v6742, 0.0
      %v6781 = vadd.f32 %v6779, %v6780
      %v6782 = vsel %vm412, %v6743, 0.0
      %v6783 = vadd.f32 %v6781, %v6782
      %v6784 = vsel %vm412, %v6744, 0.0
      %v6785 = vadd.f32 %v6783, %v6784
      %v6786 = vsel %vm412, %v6745, 0.0
      %v6787 = vadd.f32 %v6785, %v6786
      %v6788 = vsel %vm412, %v6746, 0.0
      %v6789 = vadd.f32 %v6787, %v6788
      %v6790 = vsel %vm412, %v6747, 0.0
      %v6791 = vadd.f32 %v6789, %v6790
      %v6792 = vsel %vm412, %v6748, 0.0
      %v6793 = vadd.f32 %v6791, %v6792
      %v6794 = vsel %vm412, %v6749, 0.0
      %v6795 = vadd.f32 %v6793, %v6794
      %v6796 = vsel %vm412, %v6750, 0.0
      %v6797 = vadd.f32 %v6795, %v6796
      %v6798 = vsel %vm412, %v6751, 0.0
      %v6799 = vadd.f32 %v6797, %v6798
      %v6800 = vsel %vm412, %v6752, 0.0
      %v6801 = vadd.f32 %v6799, %v6800
      %v6802 = vsel %vm412, %v6753, 0.0
      %v6803 = vadd.f32 %v6801, %v6802
      %v6804 = vsel %vm412, %v6754, 0.0
      %v6805 = vadd.f32 %v6803, %v6804
      %v6806 = vsel %vm412, %v6755, 0.0
      %v6807 = vadd.f32 %v6805, %v6806
      %v6808 = vsel %vm412, %v6756, 0.0
      %v6809 = vadd.f32 %v6807, %v6808
      %v6810 = vsel %vm412, %v6757, 0.0
      %v6811 = vadd.f32 %v6809, %v6810
      %v6812 = vsel %vm412, %v6758, 0.0
      %v6813 = vadd.f32 %v6811, %v6812
      %v6814 = vsel %vm412, %v6759, 0.0
      %v6815 = vadd.f32 %v6813, %v6814
      %v6816 = vsel %vm412, %v6760, 0.0
      %v6817 = vadd.f32 %v6815, %v6816
      %v6818 = vsel %vm412, %v6761, 0.0
      %v6819 = vadd.f32 %v6817, %v6818
      %v6820 = vsel %vm412, %v6762, 0.0
      %v6821 = vadd.f32 %v6819, %v6820
      %v6822 = vsel %vm412, %v6763, 0.0
      %v6823 = vadd.f32 %v6821, %v6822
      %v6824 = vsel %vm412, %v6764, 0.0
      %v6825 = vadd.f32 %v6823, %v6824
      %v6826 = vsel %vm412, %v6765, 0.0
      %v6827 = vadd.f32 %v6825, %v6826
      %v6828 = vsel %vm412, %v6766, 0.0
      %v6829 = vadd.f32 %v6827, %v6828
      %v6830 = vrot.slane %v6829, 4
      %v6831 = vadd.f32 %v6829, %v6830
      %v6832 = vrot.slane %v6831, 2
      %v6833 = vadd.f32 %v6831, %v6832
      %v6834 = vrot.slane %v6833, 1
      %v6835 = vadd.f32 %v6833, %v6834
      %v6836 = vmul.f32 %v6835, 0.00390625
      %v6837 = vmul.f32 %v6734, %v6734
      %v6838 = vsub.f32 %v6836, %v6837
      %v6839 = vmax.f32 %v6838, 0.0
      %v6840 = vrsqrt.pop %v6839
      %v6841 = vmul.f32 %v6840, %v6839
      %v6842 = vmul.f32 %v6841, %v6840
      %v6843 = vmul.f32 0.5, %v6842
      %v6844 = vsub.f32 1.5, %v6843
      %v6845 = vmul.f32 %v6840, %v6844
      %v6846 = vmul.f32 %v6839, %v6845
      %vm6847 = vcmp.eq.f32.partialorder %v6839, inf
      %v6848 = vsel %vm6847, %v6839, %v6846
      %vm6849 = vcmp.eq.f32.partialorder %v6839, 0.0
      %v6850 = vand.u32 %v6839, 2147483648
      %v6851 = vsel %vm6849, %v6850, %v6848
      %v6852 = vld [vmem:[%s3] sm:$0xff]
      %v6853 = vld [vmem:[%s3 + $0x8] sm:$0xff]
      %v6854 = vld [vmem:[%s3 + $0x10] sm:$0xff]
      %v6855 = vld [vmem:[%s3 + $0x18] sm:$0xff]
      %v6856 = vld [vmem:[%s3 + $0x20] sm:$0xff]
      %v6857 = vld [vmem:[%s3 + $0x28] sm:$0xff]
      %v6858 = vld [vmem:[%s4] sm:$0x1]
      %v6860 = vsel %vm412, %v6734, 0
      %6862 = vmatpush.msra.mxu0 0.0
      %6863 = vmatpush.msra.mxu0 0.0
      %6864 = vmatpush.msra.mxu0 0.0
      %6865 = vmatpush.msra.mxu0 0.0
      %6866 = vmatpush.msra.mxu0 0.0
      %6867 = vmatpush.msra.mxu0 0.0
      %6868 = vmatpush.msra.mxu0 0.0
      %6869 = vmatpush.msra.mxu0 0.0
      %6870 = vmatpush.msra.mxu0 0.0
      %6871 = vmatpush.msra.mxu0 0.0
      %6872 = vmatpush.msra.mxu0 %v6857
      %6873 = vmatpush.msra.mxu0 %v6856
      %6874 = vmatpush.msra.mxu0 %v6855
      %6875 = vmatpush.msra.mxu0 %v6854
      %6876 = vmatpush.msra.mxu0 %v6853
      %6877 = vmatpush.msra.mxu0 %v6852
      %6878 = vmatmul.f32.gmra.mxu0 %v6860
      %v6879 = vpop.f32.mrf.mxu0
      %v6880 = vadd.f32 %v6858, %v6879
      %6881 = vdwg.mxu0
      %v6882 = vmax.f32 %v6880, 0.0
      %v6883 = vld [vmem:[%s5] sm:$0x7]
      %v6884 = vld [vmem:[%s6] sm:$0x1]
      %vm6885 = vcmask 23552
      %v6887 = vsel %vm6885, %v6882, 0
      %vm6889 = vcmask 1042432
      %v6891 = vsel %vm6889, %v6883, 0
      %6893 = vmatpush.msra.mxu0 0.0
      %6894 = vmatpush.msra.mxu0 0.0
      %6895 = vmatpush.msra.mxu0 0.0
      %6896 = vmatpush.msra.mxu0 0.0
      %6897 = vmatpush.msra.mxu0 0.0
      %6898 = vmatpush.msra.mxu0 0.0
      %6899 = vmatpush.msra.mxu0 0.0
      %6900 = vmatpush.msra.mxu0 0.0
      %6901 = vmatpush.msra.mxu0 0.0
      %6902 = vmatpush.msra.mxu0 0.0
      %6903 = vmatpush.msra.mxu0 0.0
      %6904 = vmatpush.msra.mxu0 0.0
      %6905 = vmatpush.msra.mxu0 0.0
      %6906 = vmatpush.msra.mxu0 0.0
      %6907 = vmatpush.msra.mxu0 0.0
      %6908 = vmatpush.msra.mxu0 %v6891
      %6909 = vmatmul.f32.gmra.mxu0 %v6887
      %v6910 = vpop.f32.mrf.mxu0
      %v6911 = vadd.f32 %v6884, %v6910
      %6912 = vdwg.mxu0
      %v6913 = vsub.f32 0.0, %v6911
      %v6914 = vmul.f32 %v6913, 1.442695
      %v6915 = vpow.pop %v6914
      %v6916 = vadd.f32 %v6915, 1.0
      %v6917 = vrcp.pop %v6916
      %v6918 = vmul.f32 %v6916, %v6917
      %v6919 = vsub.f32 1.0, %v6918
      %v6920 = vmul.f32 %v6917, %v6919
      %v6921 = vadd.f32 %v6917, %v6920
      %vm6922 = vweird.f32 %v6916
      %vm6923 = vweird.f32 %v6917
      %vm6924 = vmor %vm6922, %vm6923
      %v6925 = vsel %vm6924, %v6917, %v6921
      %v6926 = vand.u32 2147483647, %v6916
      %vm6927 = vcmp.eq.f32.partialorder %v6926, 8.507059e+37
      %v6928 = vand.u32 %v6916, 2147483648
      %v6929 = vor.u32 1.1754944e-38, %v6928
      %v6930 = vsel %vm6927, %v6929, %v6925
      %v6931 = vmul.f32 1.0, %v6930
      %s6932 = scalar_lea.vmem %s3, 48
      %v6933 = vld [vmem:[%s6932] sm:$0xff]
      %v6934 = vld [vmem:[%s6932 + $0x8] sm:$0xff]
      %v6935 = vld [vmem:[%s6932 + $0x10] sm:$0xff]
      %v6936 = vld [vmem:[%s6932 + $0x18] sm:$0xff]
      %v6937 = vld [vmem:[%s6932 + $0x20] sm:$0xff]
      %v6938 = vld [vmem:[%s6932 + $0x28] sm:$0xff]
      %s6939 = scalar_lea.vmem %s4, 1
      %v6940 = vld [vmem:[%s6939] sm:$0x1]
      %v6942 = vsel %vm412, %v6851, 0
      %6944 = vmatpush.msra.mxu0 0.0
      %6945 = vmatpush.msra.mxu0 0.0
      %6946 = vmatpush.msra.mxu0 0.0
      %6947 = vmatpush.msra.mxu0 0.0
      %6948 = vmatpush.msra.mxu0 0.0
      %6949 = vmatpush.msra.mxu0 0.0
      %6950 = vmatpush.msra.mxu0 0.0
      %6951 = vmatpush.msra.mxu0 0.0
      %6952 = vmatpush.msra.mxu0 0.0
      %6953 = vmatpush.msra.mxu0 0.0
      %6954 = vmatpush.msra.mxu0 %v6938
      %6955 = vmatpush.msra.mxu0 %v6937
      %6956 = vmatpush.msra.mxu0 %v6936
      %6957 = vmatpush.msra.mxu0 %v6935
      %6958 = vmatpush.msra.mxu0 %v6934
      %6959 = vmatpush.msra.mxu0 %v6933
      %6960 = vmatmul.f32.gmra.mxu0 %v6942
      %v6961 = vpop.f32.mrf.mxu0
      %v6962 = vadd.f32 %v6940, %v6961
      %6963 = vdwg.mxu0
      %v6964 = vmax.f32 %v6962, 0.0
      %s6965 = scalar_lea.vmem %s5, 4
      %v6966 = vld [vmem:[%s6965] sm:$0x7]
      %s6967 = scalar_lea.vmem %s6, 1
      %v6968 = vld [vmem:[%s6967] sm:$0x1]
      %v6970 = vsel %vm6885, %v6964, 0
      %v6973 = vsel %vm6889, %v6966, 0
      %6975 = vmatpush.msra.mxu0 0.0
      %6976 = vmatpush.msra.mxu0 0.0
      %6977 = vmatpush.msra.mxu0 0.0
      %6978 = vmatpush.msra.mxu0 0.0
      %6979 = vmatpush.msra.mxu0 0.0
      %6980 = vmatpush.msra.mxu0 0.0
      %6981 = vmatpush.msra.mxu0 0.0
      %6982 = vmatpush.msra.mxu0 0.0
      %6983 = vmatpush.msra.mxu0 0.0
      %6984 = vmatpush.msra.mxu0 0.0
      %6985 = vmatpush.msra.mxu0 0.0
      %6986 = vmatpush.msra.mxu0 0.0
      %6987 = vmatpush.msra.mxu0 0.0
      %6988 = vmatpush.msra.mxu0 0.0
      %6989 = vmatpush.msra.mxu0 0.0
      %6990 = vmatpush.msra.mxu0 %v6973
      %6991 = vmatmul.f32.gmra.mxu0 %v6970
      %v6992 = vpop.f32.mrf.mxu0
      %v6993 = vadd.f32 %v6968, %v6992
      %6994 = vdwg.mxu0
      %v6995 = vsub.f32 0.0, %v6993
      %v6996 = vmul.f32 %v6995, 1.442695
      %v6997 = vpow.pop %v6996
      %v6998 = vadd.f32 %v6997, 1.0
      %v6999 = vrcp.pop %v6998
      %v7000 = vmul.f32 %v6998, %v6999
      %v7001 = vsub.f32 1.0, %v7000
      %v7002 = vmul.f32 %v6999, %v7001
      %v7003 = vadd.f32 %v6999, %v7002
      %vm7004 = vweird.f32 %v6998
      %vm7005 = vweird.f32 %v6999
      %vm7006 = vmor %vm7004, %vm7005
      %v7007 = vsel %vm7006, %v6999, %v7003
      %v7008 = vand.u32 2147483647, %v6998
      %vm7009 = vcmp.eq.f32.partialorder %v7008, 8.507059e+37
      %v7010 = vand.u32 %v6998, 2147483648
      %v7011 = vor.u32 1.1754944e-38, %v7010
      %v7012 = vsel %vm7009, %v7011, %v7007
      %v7013 = vmul.f32 1.0, %v7012
      %v7014 = vadd.f32 %v6931, %v7013
      %v7015 = vmul.f32 %v7014, 0.5
      %v7016 = vperm.slane %v7015, 0
      %v7017 = vmul.f32 %v6570, %v7016
      %v7018 = vmul.f32 %v6573, %v7016
      %v7019 = vmul.f32 %v6576, %v7016
      %v7020 = vmul.f32 %v6579, %v7016
      %v7021 = vmul.f32 %v6582, %v7016
      %v7022 = vmul.f32 %v6585, %v7016
      %v7023 = vmul.f32 %v6588, %v7016
      %v7024 = vmul.f32 %v6591, %v7016
      %v7025 = vmul.f32 %v6594, %v7016
      %v7026 = vmul.f32 %v6597, %v7016
      %v7027 = vmul.f32 %v6600, %v7016
      %v7028 = vmul.f32 %v6603, %v7016
      %v7029 = vmul.f32 %v6606, %v7016
      %v7030 = vmul.f32 %v6609, %v7016
      %v7031 = vmul.f32 %v6612, %v7016
      %v7032 = vmul.f32 %v6615, %v7016
      %v7033 = vmul.f32 %v6618, %v7016
      %v7034 = vmul.f32 %v6621, %v7016
      %v7035 = vmul.f32 %v6624, %v7016
      %v7036 = vmul.f32 %v6627, %v7016
      %v7037 = vmul.f32 %v6630, %v7016
      %v7038 = vmul.f32 %v6633, %v7016
      %v7039 = vmul.f32 %v6636, %v7016
      %v7040 = vmul.f32 %v6639, %v7016
      %v7041 = vmul.f32 %v6642, %v7016
      %v7042 = vmul.f32 %v6645, %v7016
      %v7043 = vmul.f32 %v6648, %v7016
      %v7044 = vmul.f32 %v6651, %v7016
      %v7045 = vmul.f32 %v6654, %v7016
      %v7046 = vmul.f32 %v6657, %v7016
      %v7047 = vmul.f32 %v6660, %v7016
      %v7048 = vmul.f32 %v6663, %v7016
      %v7049 = vmax.f32 %v7017, 0.0
      %v7050 = vmax.f32 %v7018, 0.0
      %v7051 = vmax.f32 %v7019, 0.0
      %v7052 = vmax.f32 %v7020, 0.0
      %v7053 = vmax.f32 %v7021, 0.0
      %v7054 = vmax.f32 %v7022, 0.0
      %v7055 = vmax.f32 %v7023, 0.0
      %v7056 = vmax.f32 %v7024, 0.0
      %v7057 = vmax.f32 %v7025, 0.0
      %v7058 = vmax.f32 %v7026, 0.0
      %v7059 = vmax.f32 %v7027, 0.0
      %v7060 = vmax.f32 %v7028, 0.0
      %v7061 = vmax.f32 %v7029, 0.0
      %v7062 = vmax.f32 %v7030, 0.0
      %v7063 = vmax.f32 %v7031, 0.0
      %v7064 = vmax.f32 %v7032, 0.0
      %v7065 = vmax.f32 %v7033, 0.0
      %v7066 = vmax.f32 %v7034, 0.0
      %v7067 = vmax.f32 %v7035, 0.0
      %v7068 = vmax.f32 %v7036, 0.0
      %v7069 = vmax.f32 %v7037, 0.0
      %v7070 = vmax.f32 %v7038, 0.0
      %v7071 = vmax.f32 %v7039, 0.0
      %v7072 = vmax.f32 %v7040, 0.0
      %v7073 = vmax.f32 %v7041, 0.0
      %v7074 = vmax.f32 %v7042, 0.0
      %v7075 = vmax.f32 %v7043, 0.0
      %v7076 = vmax.f32 %v7044, 0.0
      %v7077 = vmax.f32 %v7045, 0.0
      %v7078 = vmax.f32 %v7046, 0.0
      %v7079 = vmax.f32 %v7047, 0.0
      %v7080 = vmax.f32 %v7048, 0.0
      %7081 = vst.msk [vmem:[#allocation3 + $0x18] sm:$0xff] %vm412, %v7049
      %7082 = vst.msk [vmem:[#allocation3 + $0x20] sm:$0xff] %vm412, %v7050
      %7083 = vst.msk [vmem:[#allocation3 + $0x28] sm:$0xff] %vm412, %v7051
      %7084 = vst.msk [vmem:[#allocation3 + $0x30] sm:$0xff] %vm412, %v7052
      %7085 = vst.msk [vmem:[#allocation3 + $0x38] sm:$0xff] %vm412, %v7053
      %7086 = vst.msk [vmem:[#allocation3 + $0x40] sm:$0xff] %vm412, %v7054
      %7087 = vst.msk [vmem:[#allocation3 + $0x48] sm:$0xff] %vm412, %v7055
      %7088 = vst.msk [vmem:[#allocation3 + $0x50] sm:$0xff] %vm412, %v7056
      %7089 = vst.msk [vmem:[#allocation3 + $0x58] sm:$0xff] %vm412, %v7057
      %7090 = vst.msk [vmem:[#allocation3 + $0x60] sm:$0xff] %vm412, %v7058
      %7091 = vst.msk [vmem:[#allocation3 + $0x68] sm:$0xff] %vm412, %v7059
      %7092 = vst.msk [vmem:[#allocation3 + $0x70] sm:$0xff] %vm412, %v7060
      %7093 = vst.msk [vmem:[#allocation3 + $0x78] sm:$0xff] %vm412, %v7061
      %7094 = vst.msk [vmem:[#allocation3 + $0x80] sm:$0xff] %vm412, %v7062
      %7095 = vst.msk [vmem:[#allocation3 + $0x88] sm:$0xff] %vm412, %v7063
      %7096 = vst.msk [vmem:[#allocation3 + $0x90] sm:$0xff] %vm412, %v7064
      %7097 = vst.msk [vmem:[#allocation3 + $0x98] sm:$0xff] %vm412, %v7065
      %7098 = vst.msk [vmem:[#allocation3 + $0xa0] sm:$0xff] %vm412, %v7066
      %7099 = vst.msk [vmem:[#allocation3 + $0xa8] sm:$0xff] %vm412, %v7067
      %7100 = vst.msk [vmem:[#allocation3 + $0xb0] sm:$0xff] %vm412, %v7068
      %7101 = vst.msk [vmem:[#allocation3 + $0xb8] sm:$0xff] %vm412, %v7069
      %7102 = vst.msk [vmem:[#allocation3 + $0xc0] sm:$0xff] %vm412, %v7070
      %7103 = vst.msk [vmem:[#allocation3 + $0xc8] sm:$0xff] %vm412, %v7071
      %7104 = vst.msk [vmem:[#allocation3 + $0xd0] sm:$0xff] %vm412, %v7072
      %7105 = vst.msk [vmem:[#allocation3 + $0xd8] sm:$0xff] %vm412, %v7073
      %7106 = vst.msk [vmem:[#allocation3 + $0xe0] sm:$0xff] %vm412, %v7074
      %7107 = vst.msk [vmem:[#allocation3 + $0xe8] sm:$0xff] %vm412, %v7075
      %7108 = vst.msk [vmem:[#allocation3 + $0xf0] sm:$0xff] %vm412, %v7076
      %7109 = vst.msk [vmem:[#allocation3 + $0xf8] sm:$0xff] %vm412, %v7077
      %7110 = vst.msk [vmem:[#allocation3 + $0x100] sm:$0xff] %vm412, %v7078
      %7111 = vst.msk [vmem:[#allocation3 + $0x108] sm:$0xff] %vm412, %v7079
      %7112 = vst.msk [vmem:[#allocation3 + $0x110] sm:$0xff] %vm412, %v7080
      %v7113 = vld [vmem:[#allocation3 + $0x7] sm:$0xff]
      %v7114 = vld [vmem:[#allocation3 + $0xf] sm:$0xff]
      %v7115 = vld [vmem:[#allocation3 + $0x17] sm:$0xff]
      %v7116 = vld [vmem:[#allocation3 + $0x1f] sm:$0xff]
      %v7117 = vld [vmem:[#allocation3 + $0x27] sm:$0xff]
      %v7118 = vld [vmem:[#allocation3 + $0x2f] sm:$0xff]
      %v7119 = vld [vmem:[#allocation3 + $0x37] sm:$0xff]
      %v7120 = vld [vmem:[#allocation3 + $0x3f] sm:$0xff]
      %v7121 = vld [vmem:[#allocation3 + $0x47] sm:$0xff]
      %v7122 = vld [vmem:[#allocation3 + $0x4f] sm:$0xff]
      %v7123 = vld [vmem:[#allocation3 + $0x57] sm:$0xff]
      %v7124 = vld [vmem:[#allocation3 + $0x5f] sm:$0xff]
      %v7125 = vld [vmem:[#allocation3 + $0x67] sm:$0xff]
      %v7126 = vld [vmem:[#allocation3 + $0x6f] sm:$0xff]
      %v7127 = vld [vmem:[#allocation3 + $0x77] sm:$0xff]
      %v7128 = vld [vmem:[#allocation3 + $0x7f] sm:$0xff]
      %v7129 = vld [vmem:[#allocation3 + $0x87] sm:$0xff]
      %v7130 = vld [vmem:[#allocation3 + $0x8f] sm:$0xff]
      %v7131 = vld [vmem:[#allocation3 + $0x97] sm:$0xff]
      %v7132 = vld [vmem:[#allocation3 + $0x9f] sm:$0xff]
      %v7133 = vld [vmem:[#allocation3 + $0xa7] sm:$0xff]
      %v7134 = vld [vmem:[#allocation3 + $0xaf] sm:$0xff]
      %v7135 = vld [vmem:[#allocation3 + $0xb7] sm:$0xff]
      %v7136 = vld [vmem:[#allocation3 + $0xbf] sm:$0xff]
      %v7137 = vld [vmem:[#allocation3 + $0xc7] sm:$0xff]
      %v7138 = vld [vmem:[#allocation3 + $0xcf] sm:$0xff]
      %v7139 = vld [vmem:[#allocation3 + $0xd7] sm:$0xff]
      %v7140 = vld [vmem:[#allocation3 + $0xdf] sm:$0xff]
      %v7141 = vld [vmem:[#allocation3 + $0xe7] sm:$0xff]
      %v7142 = vld [vmem:[#allocation3 + $0xef] sm:$0xff]
      %v7143 = vld [vmem:[#allocation3 + $0xf7] sm:$0xff]
      %v7144 = vld [vmem:[#allocation3 + $0xff] sm:$0xff]
      %v7145 = vsel %vm516, %v7113, 0.0
      %v7146 = vsel %vm517, %v7114, 0.0
      %v7147 = vsel %vm518, %v7115, 0.0
      %v7148 = vsel %vm519, %v7116, 0.0
      %v7149 = vsel %vm520, %v7117, 0.0
      %v7150 = vsel %vm521, %v7118, 0.0
      %v7151 = vsel %vm522, %v7119, 0.0
      %v7152 = vsel %vm523, %v7120, 0.0
      %v7153 = vsel %vm524, %v7121, 0.0
      %v7154 = vsel %vm525, %v7122, 0.0
      %v7155 = vsel %vm526, %v7123, 0.0
      %v7156 = vsel %vm527, %v7124, 0.0
      %v7157 = vsel %vm528, %v7125, 0.0
      %v7158 = vsel %vm529, %v7126, 0.0
      %v7159 = vsel %vm530, %v7127, 0.0
      %v7160 = vsel %vm531, %v7128, 0.0
      %v7161 = vsel %vm532, %v7129, 0.0
      %v7162 = vsel %vm533, %v7130, 0.0
      %v7163 = vsel %vm534, %v7131, 0.0
      %v7164 = vsel %vm535, %v7132, 0.0
      %v7165 = vsel %vm536, %v7133, 0.0
      %v7166 = vsel %vm537, %v7134, 0.0
      %v7167 = vsel %vm538, %v7135, 0.0
      %v7168 = vsel %vm539, %v7136, 0.0
      %v7169 = vsel %vm540, %v7137, 0.0
      %v7170 = vsel %vm541, %v7138, 0.0
      %v7171 = vsel %vm542, %v7139, 0.0
      %v7172 = vsel %vm543, %v7140, 0.0
      %v7173 = vsel %vm544, %v7141, 0.0
      %v7174 = vsel %vm545, %v7142, 0.0
      %v7175 = vsel %vm546, %v7143, 0.0
      %v7176 = vsel %vm547, %v7144, 0.0
      %7177 = vst.msk [vmem:[#allocation4] sm:$0xff] %vm412, %v7145
      %7178 = vst.msk [vmem:[#allocation4 + $0x20] sm:$0xff] %vm412, %v7146
      %7179 = vst.msk [vmem:[#allocation4 + $0x40] sm:$0xff] %vm412, %v7147
      %7180 = vst.msk [vmem:[#allocation4 + $0x60] sm:$0xff] %vm412, %v7148
      %7181 = vst.msk [vmem:[#allocation4 + $0x80] sm:$0xff] %vm412, %v7149
      %7182 = vst.msk [vmem:[#allocation4 + $0xa0] sm:$0xff] %vm412, %v7150
      %7183 = vst.msk [vmem:[#allocation4 + $0xc0] sm:$0xff] %vm412, %v7151
      %7184 = vst.msk [vmem:[#allocation4 + $0xe0] sm:$0xff] %vm412, %v7152
      %7185 = vst.msk [vmem:[#allocation4 + $0x100] sm:$0xff] %vm412, %v7153
      %7186 = vst.msk [vmem:[#allocation4 + $0x120] sm:$0xff] %vm412, %v7154
      %7187 = vst.msk [vmem:[#allocation4 + $0x140] sm:$0xff] %vm412, %v7155
      %7188 = vst.msk [vmem:[#allocation4 + $0x160] sm:$0xff] %vm412, %v7156
      %7189 = vst.msk [vmem:[#allocation4 + $0x180] sm:$0xff] %vm412, %v7157
      %7190 = vst.msk [vmem:[#allocation4 + $0x1a0] sm:$0xff] %vm412, %v7158
      %7191 = vst.msk [vmem:[#allocation4 + $0x1c0] sm:$0xff] %vm412, %v7159
      %7192 = vst.msk [vmem:[#allocation4 + $0x1e0] sm:$0xff] %vm412, %v7160
      %7193 = vst.msk [vmem:[#allocation4 + $0x200] sm:$0xff] %vm412, %v7161
      %7194 = vst.msk [vmem:[#allocation4 + $0x220] sm:$0xff] %vm412, %v7162
      %7195 = vst.msk [vmem:[#allocation4 + $0x240] sm:$0xff] %vm412, %v7163
      %7196 = vst.msk [vmem:[#allocation4 + $0x260] sm:$0xff] %vm412, %v7164
      %7197 = vst.msk [vmem:[#allocation4 + $0x280] sm:$0xff] %vm412, %v7165
      %7198 = vst.msk [vmem:[#allocation4 + $0x2a0] sm:$0xff] %vm412, %v7166
      %7199 = vst.msk [vmem:[#allocation4 + $0x2c0] sm:$0xff] %vm412, %v7167
      %7200 = vst.msk [vmem:[#allocation4 + $0x2e0] sm:$0xff] %vm412, %v7168
      %7201 = vst.msk [vmem:[#allocation4 + $0x300] sm:$0xff] %vm412, %v7169
      %7202 = vst.msk [vmem:[#allocation4 + $0x320] sm:$0xff] %vm412, %v7170
      %7203 = vst.msk [vmem:[#allocation4 + $0x340] sm:$0xff] %vm412, %v7171
      %7204 = vst.msk [vmem:[#allocation4 + $0x360] sm:$0xff] %vm412, %v7172
      %7205 = vst.msk [vmem:[#allocation4 + $0x380] sm:$0xff] %vm412, %v7173
      %7206 = vst.msk [vmem:[#allocation4 + $0x3a0] sm:$0xff] %vm412, %v7174
      %7207 = vst.msk [vmem:[#allocation4 + $0x3c0] sm:$0xff] %vm412, %v7175
      %7208 = vst.msk [vmem:[#allocation4 + $0x3e0] sm:$0xff] %vm412, %v7176
      %v7209 = vld [vmem:[#allocation3 + $0x8] sm:$0xff]
      %v7210 = vld [vmem:[#allocation3 + $0x10] sm:$0xff]
      %v7211 = vld [vmem:[#allocation3 + $0x18] sm:$0xff]
      %v7212 = vld [vmem:[#allocation3 + $0x20] sm:$0xff]
      %v7213 = vld [vmem:[#allocation3 + $0x28] sm:$0xff]
      %v7214 = vld [vmem:[#allocation3 + $0x30] sm:$0xff]
      %v7215 = vld [vmem:[#allocation3 + $0x38] sm:$0xff]
      %v7216 = vld [vmem:[#allocation3 + $0x40] sm:$0xff]
      %v7217 = vld [vmem:[#allocation3 + $0x48] sm:$0xff]
      %v7218 = vld [vmem:[#allocation3 + $0x50] sm:$0xff]
      %v7219 = vld [vmem:[#allocation3 + $0x58] sm:$0xff]
      %v7220 = vld [vmem:[#allocation3 + $0x60] sm:$0xff]
      %v7221 = vld [vmem:[#allocation3 + $0x68] sm:$0xff]
      %v7222 = vld [vmem:[#allocation3 + $0x70] sm:$0xff]
      %v7223 = vld [vmem:[#allocation3 + $0x78] sm:$0xff]
      %v7224 = vld [vmem:[#allocation3 + $0x80] sm:$0xff]
      %v7225 = vld [vmem:[#allocation3 + $0x88] sm:$0xff]
      %v7226 = vld [vmem:[#allocation3 + $0x90] sm:$0xff]
      %v7227 = vld [vmem:[#allocation3 + $0x98] sm:$0xff]
      %v7228 = vld [vmem:[#allocation3 + $0xa0] sm:$0xff]
      %v7229 = vld [vmem:[#allocation3 + $0xa8] sm:$0xff]
      %v7230 = vld [vmem:[#allocation3 + $0xb0] sm:$0xff]
      %v7231 = vld [vmem:[#allocation3 + $0xb8] sm:$0xff]
      %v7232 = vld [vmem:[#allocation3 + $0xc0] sm:$0xff]
      %v7233 = vld [vmem:[#allocation3 + $0xc8] sm:$0xff]
      %v7234 = vld [vmem:[#allocation3 + $0xd0] sm:$0xff]
      %v7235 = vld [vmem:[#allocation3 + $0xd8] sm:$0xff]
      %v7236 = vld [vmem:[#allocation3 + $0xe0] sm:$0xff]
      %v7237 = vld [vmem:[#allocation3 + $0xe8] sm:$0xff]
      %v7238 = vld [vmem:[#allocation3 + $0xf0] sm:$0xff]
      %v7239 = vld [vmem:[#allocation3 + $0xf8] sm:$0xff]
      %v7240 = vld [vmem:[#allocation3 + $0x100] sm:$0xff]
      %7273 = vrot.lane.b32.xlu0 %v7209, 48
      %v7274 = vpop.permute.xlu0 %7273
      %7275 = vrot.lane.b32.xlu0 %v7210, 48
      %v7276 = vpop.permute.xlu0 %7275
      %7277 = vrot.lane.b32.xlu0 %v7211, 48
      %v7278 = vpop.permute.xlu0 %7277
      %7279 = vrot.lane.b32.xlu0 %v7212, 48
      %v7280 = vpop.permute.xlu0 %7279
      %7281 = vrot.lane.b32.xlu0 %v7213, 48
      %v7282 = vpop.permute.xlu0 %7281
      %7283 = vrot.lane.b32.xlu0 %v7214, 48
      %v7284 = vpop.permute.xlu0 %7283
      %7285 = vrot.lane.b32.xlu0 %v7215, 48
      %v7286 = vpop.permute.xlu0 %7285
      %7287 = vrot.lane.b32.xlu0 %v7216, 48
      %v7288 = vpop.permute.xlu0 %7287
      %7289 = vrot.lane.b32.xlu0 %v7217, 48
      %v7290 = vpop.permute.xlu0 %7289
      %7291 = vrot.lane.b32.xlu0 %v7218, 48
      %v7292 = vpop.permute.xlu0 %7291
      %7293 = vrot.lane.b32.xlu0 %v7219, 48
      %v7294 = vpop.permute.xlu0 %7293
      %7295 = vrot.lane.b32.xlu0 %v7220, 48
      %v7296 = vpop.permute.xlu0 %7295
      %7297 = vrot.lane.b32.xlu0 %v7221, 48
      %v7298 = vpop.permute.xlu0 %7297
      %7299 = vrot.lane.b32.xlu0 %v7222, 48
      %v7300 = vpop.permute.xlu0 %7299
      %7301 = vrot.lane.b32.xlu0 %v7223, 48
      %v7302 = vpop.permute.xlu0 %7301
      %7303 = vrot.lane.b32.xlu0 %v7224, 48
      %v7304 = vpop.permute.xlu0 %7303
      %7305 = vrot.lane.b32.xlu0 %v7225, 48
      %v7306 = vpop.permute.xlu0 %7305
      %7307 = vrot.lane.b32.xlu0 %v7226, 48
      %v7308 = vpop.permute.xlu0 %7307
      %7309 = vrot.lane.b32.xlu0 %v7227, 48
      %v7310 = vpop.permute.xlu0 %7309
      %7311 = vrot.lane.b32.xlu0 %v7228, 48
      %v7312 = vpop.permute.xlu0 %7311
      %7313 = vrot.lane.b32.xlu0 %v7229, 48
      %v7314 = vpop.permute.xlu0 %7313
      %7315 = vrot.lane.b32.xlu0 %v7230, 48
      %v7316 = vpop.permute.xlu0 %7315
      %7317 = vrot.lane.b32.xlu0 %v7231, 48
      %v7318 = vpop.permute.xlu0 %7317
      %7319 = vrot.lane.b32.xlu0 %v7232, 48
      %v7320 = vpop.permute.xlu0 %7319
      %7321 = vrot.lane.b32.xlu0 %v7233, 48
      %v7322 = vpop.permute.xlu0 %7321
      %7323 = vrot.lane.b32.xlu0 %v7234, 48
      %v7324 = vpop.permute.xlu0 %7323
      %7325 = vrot.lane.b32.xlu0 %v7235, 48
      %v7326 = vpop.permute.xlu0 %7325
      %7327 = vrot.lane.b32.xlu0 %v7236, 48
      %v7328 = vpop.permute.xlu0 %7327
      %7329 = vrot.lane.b32.xlu0 %v7237, 48
      %v7330 = vpop.permute.xlu0 %7329
      %7331 = vrot.lane.b32.xlu0 %v7238, 48
      %v7332 = vpop.permute.xlu0 %7331
      %7333 = vrot.lane.b32.xlu0 %v7239, 48
      %v7334 = vpop.permute.xlu0 %7333
      %7335 = vrot.lane.b32.xlu0 %v7240, 48
      %v7336 = vpop.permute.xlu0 %7335
      %vm7369 = vcmask 785792
      %7370 = vst.msk [vmem:[#allocation4] sm:$0xff] %vm7369, %v7274
      %7371 = vst.msk [vmem:[#allocation4 + $0x20] sm:$0xff] %vm7369, %v7276
      %7372 = vst.msk [vmem:[#allocation4 + $0x40] sm:$0xff] %vm7369, %v7278
      %7373 = vst.msk [vmem:[#allocation4 + $0x60] sm:$0xff] %vm7369, %v7280
      %7374 = vst.msk [vmem:[#allocation4 + $0x80] sm:$0xff] %vm7369, %v7282
      %7375 = vst.msk [vmem:[#allocation4 + $0xa0] sm:$0xff] %vm7369, %v7284
      %7376 = vst.msk [vmem:[#allocation4 + $0xc0] sm:$0xff] %vm7369, %v7286
      %7377 = vst.msk [vmem:[#allocation4 + $0xe0] sm:$0xff] %vm7369, %v7288
      %7378 = vst.msk [vmem:[#allocation4 + $0x100] sm:$0xff] %vm7369, %v7290
      %7379 = vst.msk [vmem:[#allocation4 + $0x120] sm:$0xff] %vm7369, %v7292
      %7380 = vst.msk [vmem:[#allocation4 + $0x140] sm:$0xff] %vm7369, %v7294
      %7381 = vst.msk [vmem:[#allocation4 + $0x160] sm:$0xff] %vm7369, %v7296
      %7382 = vst.msk [vmem:[#allocation4 + $0x180] sm:$0xff] %vm7369, %v7298
      %7383 = vst.msk [vmem:[#allocation4 + $0x1a0] sm:$0xff] %vm7369, %v7300
      %7384 = vst.msk [vmem:[#allocation4 + $0x1c0] sm:$0xff] %vm7369, %v7302
      %7385 = vst.msk [vmem:[#allocation4 + $0x1e0] sm:$0xff] %vm7369, %v7304
      %7386 = vst.msk [vmem:[#allocation4 + $0x200] sm:$0xff] %vm7369, %v7306
      %7387 = vst.msk [vmem:[#allocation4 + $0x220] sm:$0xff] %vm7369, %v7308
      %7388 = vst.msk [vmem:[#allocation4 + $0x240] sm:$0xff] %vm7369, %v7310
      %7389 = vst.msk [vmem:[#allocation4 + $0x260] sm:$0xff] %vm7369, %v7312
      %7390 = vst.msk [vmem:[#allocation4 + $0x280] sm:$0xff] %vm7369, %v7314
      %7391 = vst.msk [vmem:[#allocation4 + $0x2a0] sm:$0xff] %vm7369, %v7316
      %7392 = vst.msk [vmem:[#allocation4 + $0x2c0] sm:$0xff] %vm7369, %v7318
      %7393 = vst.msk [vmem:[#allocation4 + $0x2e0] sm:$0xff] %vm7369, %v7320
      %7394 = vst.msk [vmem:[#allocation4 + $0x300] sm:$0xff] %vm7369, %v7322
      %7395 = vst.msk [vmem:[#allocation4 + $0x320] sm:$0xff] %vm7369, %v7324
      %7396 = vst.msk [vmem:[#allocation4 + $0x340] sm:$0xff] %vm7369, %v7326
      %7397 = vst.msk [vmem:[#allocation4 + $0x360] sm:$0xff] %vm7369, %v7328
      %7398 = vst.msk [vmem:[#allocation4 + $0x380] sm:$0xff] %vm7369, %v7330
      %7399 = vst.msk [vmem:[#allocation4 + $0x3a0] sm:$0xff] %vm7369, %v7332
      %7400 = vst.msk [vmem:[#allocation4 + $0x3c0] sm:$0xff] %vm7369, %v7334
      %7401 = vst.msk [vmem:[#allocation4 + $0x3e0] sm:$0xff] %vm7369, %v7336
      %v7402 = vld [vmem:[#allocation3 + $0x9] sm:$0xff]
      %v7403 = vld [vmem:[#allocation3 + $0x11] sm:$0xff]
      %v7404 = vld [vmem:[#allocation3 + $0x19] sm:$0xff]
      %v7405 = vld [vmem:[#allocation3 + $0x21] sm:$0xff]
      %v7406 = vld [vmem:[#allocation3 + $0x29] sm:$0xff]
      %v7407 = vld [vmem:[#allocation3 + $0x31] sm:$0xff]
      %v7408 = vld [vmem:[#allocation3 + $0x39] sm:$0xff]
      %v7409 = vld [vmem:[#allocation3 + $0x41] sm:$0xff]
      %v7410 = vld [vmem:[#allocation3 + $0x49] sm:$0xff]
      %v7411 = vld [vmem:[#allocation3 + $0x51] sm:$0xff]
      %v7412 = vld [vmem:[#allocation3 + $0x59] sm:$0xff]
      %v7413 = vld [vmem:[#allocation3 + $0x61] sm:$0xff]
      %v7414 = vld [vmem:[#allocation3 + $0x69] sm:$0xff]
      %v7415 = vld [vmem:[#allocation3 + $0x71] sm:$0xff]
      %v7416 = vld [vmem:[#allocation3 + $0x79] sm:$0xff]
      %v7417 = vld [vmem:[#allocation3 + $0x81] sm:$0xff]
      %v7418 = vld [vmem:[#allocation3 + $0x89] sm:$0xff]
      %v7419 = vld [vmem:[#allocation3 + $0x91] sm:$0xff]
      %v7420 = vld [vmem:[#allocation3 + $0x99] sm:$0xff]
      %v7421 = vld [vmem:[#allocation3 + $0xa1] sm:$0xff]
      %v7422 = vld [vmem:[#allocation3 + $0xa9] sm:$0xff]
      %v7423 = vld [vmem:[#allocation3 + $0xb1] sm:$0xff]
      %v7424 = vld [vmem:[#allocation3 + $0xb9] sm:$0xff]
      %v7425 = vld [vmem:[#allocation3 + $0xc1] sm:$0xff]
      %v7426 = vld [vmem:[#allocation3 + $0xc9] sm:$0xff]
      %v7427 = vld [vmem:[#allocation3 + $0xd1] sm:$0xff]
      %v7428 = vld [vmem:[#allocation3 + $0xd9] sm:$0xff]
      %v7429 = vld [vmem:[#allocation3 + $0xe1] sm:$0xff]
      %v7430 = vld [vmem:[#allocation3 + $0xe9] sm:$0xff]
      %v7431 = vld [vmem:[#allocation3 + $0xf1] sm:$0xff]
      %v7432 = vld [vmem:[#allocation3 + $0xf9] sm:$0xff]
      %v7433 = vld [vmem:[#allocation3 + $0x101] sm:$0xff]
      %v7434 = vsel %vm837, %v7402, 0.0
      %v7435 = vsel %vm838, %v7403, 0.0
      %v7436 = vsel %vm839, %v7404, 0.0
      %v7437 = vsel %vm840, %v7405, 0.0
      %v7438 = vsel %vm841, %v7406, 0.0
      %v7439 = vsel %vm842, %v7407, 0.0
      %v7440 = vsel %vm843, %v7408, 0.0
      %v7441 = vsel %vm844, %v7409, 0.0
      %v7442 = vsel %vm845, %v7410, 0.0
      %v7443 = vsel %vm846, %v7411, 0.0
      %v7444 = vsel %vm847, %v7412, 0.0
      %v7445 = vsel %vm848, %v7413, 0.0
      %v7446 = vsel %vm849, %v7414, 0.0
      %v7447 = vsel %vm850, %v7415, 0.0
      %v7448 = vsel %vm851, %v7416, 0.0
      %v7449 = vsel %vm852, %v7417, 0.0
      %v7450 = vsel %vm853, %v7418, 0.0
      %v7451 = vsel %vm854, %v7419, 0.0
      %v7452 = vsel %vm855, %v7420, 0.0
      %v7453 = vsel %vm856, %v7421, 0.0
      %v7454 = vsel %vm857, %v7422, 0.0
      %v7455 = vsel %vm858, %v7423, 0.0
      %v7456 = vsel %vm859, %v7424, 0.0
      %v7457 = vsel %vm860, %v7425, 0.0
      %v7458 = vsel %vm861, %v7426, 0.0
      %v7459 = vsel %vm862, %v7427, 0.0
      %v7460 = vsel %vm863, %v7428, 0.0
      %v7461 = vsel %vm864, %v7429, 0.0
      %v7462 = vsel %vm865, %v7430, 0.0
      %v7463 = vsel %vm866, %v7431, 0.0
      %v7464 = vsel %vm867, %v7432, 0.0
      %v7465 = vsel %vm868, %v7433, 0.0
      %7498 = vrot.lane.b32.xlu0 %v7434, 96
      %v7499 = vpop.permute.xlu0 %7498
      %7500 = vrot.lane.b32.xlu0 %v7435, 96
      %v7501 = vpop.permute.xlu0 %7500
      %7502 = vrot.lane.b32.xlu0 %v7436, 96
      %v7503 = vpop.permute.xlu0 %7502
      %7504 = vrot.lane.b32.xlu0 %v7437, 96
      %v7505 = vpop.permute.xlu0 %7504
      %7506 = vrot.lane.b32.xlu0 %v7438, 96
      %v7507 = vpop.permute.xlu0 %7506
      %7508 = vrot.lane.b32.xlu0 %v7439, 96
      %v7509 = vpop.permute.xlu0 %7508
      %7510 = vrot.lane.b32.xlu0 %v7440, 96
      %v7511 = vpop.permute.xlu0 %7510
      %7512 = vrot.lane.b32.xlu0 %v7441, 96
      %v7513 = vpop.permute.xlu0 %7512
      %7514 = vrot.lane.b32.xlu0 %v7442, 96
      %v7515 = vpop.permute.xlu0 %7514
      %7516 = vrot.lane.b32.xlu0 %v7443, 96
      %v7517 = vpop.permute.xlu0 %7516
      %7518 = vrot.lane.b32.xlu0 %v7444, 96
      %v7519 = vpop.permute.xlu0 %7518
      %7520 = vrot.lane.b32.xlu0 %v7445, 96
      %v7521 = vpop.permute.xlu0 %7520
      %7522 = vrot.lane.b32.xlu0 %v7446, 96
      %v7523 = vpop.permute.xlu0 %7522
      %7524 = vrot.lane.b32.xlu0 %v7447, 96
      %v7525 = vpop.permute.xlu0 %7524
      %7526 = vrot.lane.b32.xlu0 %v7448, 96
      %v7527 = vpop.permute.xlu0 %7526
      %7528 = vrot.lane.b32.xlu0 %v7449, 96
      %v7529 = vpop.permute.xlu0 %7528
      %7530 = vrot.lane.b32.xlu0 %v7450, 96
      %v7531 = vpop.permute.xlu0 %7530
      %7532 = vrot.lane.b32.xlu0 %v7451, 96
      %v7533 = vpop.permute.xlu0 %7532
      %7534 = vrot.lane.b32.xlu0 %v7452, 96
      %v7535 = vpop.permute.xlu0 %7534
      %7536 = vrot.lane.b32.xlu0 %v7453, 96
      %v7537 = vpop.permute.xlu0 %7536
      %7538 = vrot.lane.b32.xlu0 %v7454, 96
      %v7539 = vpop.permute.xlu0 %7538
      %7540 = vrot.lane.b32.xlu0 %v7455, 96
      %v7541 = vpop.permute.xlu0 %7540
      %7542 = vrot.lane.b32.xlu0 %v7456, 96
      %v7543 = vpop.permute.xlu0 %7542
      %7544 = vrot.lane.b32.xlu0 %v7457, 96
      %v7545 = vpop.permute.xlu0 %7544
      %7546 = vrot.lane.b32.xlu0 %v7458, 96
      %v7547 = vpop.permute.xlu0 %7546
      %7548 = vrot.lane.b32.xlu0 %v7459, 96
      %v7549 = vpop.permute.xlu0 %7548
      %7550 = vrot.lane.b32.xlu0 %v7460, 96
      %v7551 = vpop.permute.xlu0 %7550
      %7552 = vrot.lane.b32.xlu0 %v7461, 96
      %v7553 = vpop.permute.xlu0 %7552
      %7554 = vrot.lane.b32.xlu0 %v7462, 96
      %v7555 = vpop.permute.xlu0 %7554
      %7556 = vrot.lane.b32.xlu0 %v7463, 96
      %v7557 = vpop.permute.xlu0 %7556
      %7558 = vrot.lane.b32.xlu0 %v7464, 96
      %v7559 = vpop.permute.xlu0 %7558
      %7560 = vrot.lane.b32.xlu0 %v7465, 96
      %v7561 = vpop.permute.xlu0 %7560
      %vm7594 = vcmask 1048320
      %7595 = vst.msk [vmem:[#allocation4] sm:$0xff] %vm7594, %v7499
      %7596 = vst.msk [vmem:[#allocation4 + $0x8] sm:$0xff] %vm365, %v7499
      %7597 = vst.msk [vmem:[#allocation4 + $0x20] sm:$0xff] %vm7594, %v7501
      %7598 = vst.msk [vmem:[#allocation4 + $0x28] sm:$0xff] %vm365, %v7501
      %7599 = vst.msk [vmem:[#allocation4 + $0x40] sm:$0xff] %vm7594, %v7503
      %7600 = vst.msk [vmem:[#allocation4 + $0x48] sm:$0xff] %vm365, %v7503
      %7601 = vst.msk [vmem:[#allocation4 + $0x60] sm:$0xff] %vm7594, %v7505
      %7602 = vst.msk [vmem:[#allocation4 + $0x68] sm:$0xff] %vm365, %v7505
      %7603 = vst.msk [vmem:[#allocation4 + $0x80] sm:$0xff] %vm7594, %v7507
      %7604 = vst.msk [vmem:[#allocation4 + $0x88] sm:$0xff] %vm365, %v7507
      %7605 = vst.msk [vmem:[#allocation4 + $0xa0] sm:$0xff] %vm7594, %v7509
      %7606 = vst.msk [vmem:[#allocation4 + $0xa8] sm:$0xff] %vm365, %v7509
      %7607 = vst.msk [vmem:[#allocation4 + $0xc0] sm:$0xff] %vm7594, %v7511
      %7608 = vst.msk [vmem:[#allocation4 + $0xc8] sm:$0xff] %vm365, %v7511
      %7609 = vst.msk [vmem:[#allocation4 + $0xe0] sm:$0xff] %vm7594, %v7513
      %7610 = vst.msk [vmem:[#allocation4 + $0xe8] sm:$0xff] %vm365, %v7513
      %7611 = vst.msk [vmem:[#allocation4 + $0x100] sm:$0xff] %vm7594, %v7515
      %7612 = vst.msk [vmem:[#allocation4 + $0x108] sm:$0xff] %vm365, %v7515
      %7613 = vst.msk [vmem:[#allocation4 + $0x120] sm:$0xff] %vm7594, %v7517
      %7614 = vst.msk [vmem:[#allocation4 + $0x128] sm:$0xff] %vm365, %v7517
      %7615 = vst.msk [vmem:[#allocation4 + $0x140] sm:$0xff] %vm7594, %v7519
      %7616 = vst.msk [vmem:[#allocation4 + $0x148] sm:$0xff] %vm365, %v7519
      %7617 = vst.msk [vmem:[#allocation4 + $0x160] sm:$0xff] %vm7594, %v7521
      %7618 = vst.msk [vmem:[#allocation4 + $0x168] sm:$0xff] %vm365, %v7521
      %7619 = vst.msk [vmem:[#allocation4 + $0x180] sm:$0xff] %vm7594, %v7523
      %7620 = vst.msk [vmem:[#allocation4 + $0x188] sm:$0xff] %vm365, %v7523
      %7621 = vst.msk [vmem:[#allocation4 + $0x1a0] sm:$0xff] %vm7594, %v7525
      %7622 = vst.msk [vmem:[#allocation4 + $0x1a8] sm:$0xff] %vm365, %v7525
      %7623 = vst.msk [vmem:[#allocation4 + $0x1c0] sm:$0xff] %vm7594, %v7527
      %7624 = vst.msk [vmem:[#allocation4 + $0x1c8] sm:$0xff] %vm365, %v7527
      %7625 = vst.msk [vmem:[#allocation4 + $0x1e0] sm:$0xff] %vm7594, %v7529
      %7626 = vst.msk [vmem:[#allocation4 + $0x1e8] sm:$0xff] %vm365, %v7529
      %7627 = vst.msk [vmem:[#allocation4 + $0x200] sm:$0xff] %vm7594, %v7531
      %7628 = vst.msk [vmem:[#allocation4 + $0x208] sm:$0xff] %vm365, %v7531
      %7629 = vst.msk [vmem:[#allocation4 + $0x220] sm:$0xff] %vm7594, %v7533
      %7630 = vst.msk [vmem:[#allocation4 + $0x228] sm:$0xff] %vm365, %v7533
      %7631 = vst.msk [vmem:[#allocation4 + $0x240] sm:$0xff] %vm7594, %v7535
      %7632 = vst.msk [vmem:[#allocation4 + $0x248] sm:$0xff] %vm365, %v7535
      %7633 = vst.msk [vmem:[#allocation4 + $0x260] sm:$0xff] %vm7594, %v7537
      %7634 = vst.msk [vmem:[#allocation4 + $0x268] sm:$0xff] %vm365, %v7537
      %7635 = vst.msk [vmem:[#allocation4 + $0x280] sm:$0xff] %vm7594, %v7539
      %7636 = vst.msk [vmem:[#allocation4 + $0x288] sm:$0xff] %vm365, %v7539
      %7637 = vst.msk [vmem:[#allocation4 + $0x2a0] sm:$0xff] %vm7594, %v7541
      %7638 = vst.msk [vmem:[#allocation4 + $0x2a8] sm:$0xff] %vm365, %v7541
      %7639 = vst.msk [vmem:[#allocation4 + $0x2c0] sm:$0xff] %vm7594, %v7543
      %7640 = vst.msk [vmem:[#allocation4 + $0x2c8] sm:$0xff] %vm365, %v7543
      %7641 = vst.msk [vmem:[#allocation4 + $0x2e0] sm:$0xff] %vm7594, %v7545
      %7642 = vst.msk [vmem:[#allocation4 + $0x2e8] sm:$0xff] %vm365, %v7545
      %7643 = vst.msk [vmem:[#allocation4 + $0x300] sm:$0xff] %vm7594, %v7547
      %7644 = vst.msk [vmem:[#allocation4 + $0x308] sm:$0xff] %vm365, %v7547
      %7645 = vst.msk [vmem:[#allocation4 + $0x320] sm:$0xff] %vm7594, %v7549
      %7646 = vst.msk [vmem:[#allocation4 + $0x328] sm:$0xff] %vm365, %v7549
      %7647 = vst.msk [vmem:[#allocation4 + $0x340] sm:$0xff] %vm7594, %v7551
      %7648 = vst.msk [vmem:[#allocation4 + $0x348] sm:$0xff] %vm365, %v7551
      %7649 = vst.msk [vmem:[#allocation4 + $0x360] sm:$0xff] %vm7594, %v7553
      %7650 = vst.msk [vmem:[#allocation4 + $0x368] sm:$0xff] %vm365, %v7553
      %7651 = vst.msk [vmem:[#allocation4 + $0x380] sm:$0xff] %vm7594, %v7555
      %7652 = vst.msk [vmem:[#allocation4 + $0x388] sm:$0xff] %vm365, %v7555
      %7653 = vst.msk [vmem:[#allocation4 + $0x3a0] sm:$0xff] %vm7594, %v7557
      %7654 = vst.msk [vmem:[#allocation4 + $0x3a8] sm:$0xff] %vm365, %v7557
      %7655 = vst.msk [vmem:[#allocation4 + $0x3c0] sm:$0xff] %vm7594, %v7559
      %7656 = vst.msk [vmem:[#allocation4 + $0x3c8] sm:$0xff] %vm365, %v7559
      %7657 = vst.msk [vmem:[#allocation4 + $0x3e0] sm:$0xff] %vm7594, %v7561
      %7658 = vst.msk [vmem:[#allocation4 + $0x3e8] sm:$0xff] %vm365, %v7561
      %v7659 = vld [vmem:[#allocation3 + $0x17] sm:$0xff]
      %v7660 = vld [vmem:[#allocation3 + $0x1f] sm:$0xff]
      %v7661 = vld [vmem:[#allocation3 + $0x27] sm:$0xff]
      %v7662 = vld [vmem:[#allocation3 + $0x2f] sm:$0xff]
      %v7663 = vld [vmem:[#allocation3 + $0x37] sm:$0xff]
      %v7664 = vld [vmem:[#allocation3 + $0x3f] sm:$0xff]
      %v7665 = vld [vmem:[#allocation3 + $0x47] sm:$0xff]
      %v7666 = vld [vmem:[#allocation3 + $0x4f] sm:$0xff]
      %v7667 = vld [vmem:[#allocation3 + $0x57] sm:$0xff]
      %v7668 = vld [vmem:[#allocation3 + $0x5f] sm:$0xff]
      %v7669 = vld [vmem:[#allocation3 + $0x67] sm:$0xff]
      %v7670 = vld [vmem:[#allocation3 + $0x6f] sm:$0xff]
      %v7671 = vld [vmem:[#allocation3 + $0x77] sm:$0xff]
      %v7672 = vld [vmem:[#allocation3 + $0x7f] sm:$0xff]
      %v7673 = vld [vmem:[#allocation3 + $0x87] sm:$0xff]
      %v7674 = vld [vmem:[#allocation3 + $0x8f] sm:$0xff]
      %v7675 = vld [vmem:[#allocation3 + $0x97] sm:$0xff]
      %v7676 = vld [vmem:[#allocation3 + $0x9f] sm:$0xff]
      %v7677 = vld [vmem:[#allocation3 + $0xa7] sm:$0xff]
      %v7678 = vld [vmem:[#allocation3 + $0xaf] sm:$0xff]
      %v7679 = vld [vmem:[#allocation3 + $0xb7] sm:$0xff]
      %v7680 = vld [vmem:[#allocation3 + $0xbf] sm:$0xff]
      %v7681 = vld [vmem:[#allocation3 + $0xc7] sm:$0xff]
      %v7682 = vld [vmem:[#allocation3 + $0xcf] sm:$0xff]
      %v7683 = vld [vmem:[#allocation3 + $0xd7] sm:$0xff]
      %v7684 = vld [vmem:[#allocation3 + $0xdf] sm:$0xff]
      %v7685 = vld [vmem:[#allocation3 + $0xe7] sm:$0xff]
      %v7686 = vld [vmem:[#allocation3 + $0xef] sm:$0xff]
      %v7687 = vld [vmem:[#allocation3 + $0xf7] sm:$0xff]
      %v7688 = vld [vmem:[#allocation3 + $0xff] sm:$0xff]
      %v7689 = vld [vmem:[#allocation3 + $0x107] sm:$0xff]
      %v7690 = vld [vmem:[#allocation3 + $0x10f] sm:$0xff]
      %v7691 = vsel %vm516, %v7659, 0.0
      %v7692 = vsel %vm517, %v7660, 0.0
      %v7693 = vsel %vm518, %v7661, 0.0
      %v7694 = vsel %vm519, %v7662, 0.0
      %v7695 = vsel %vm520, %v7663, 0.0
      %v7696 = vsel %vm521, %v7664, 0.0
      %v7697 = vsel %vm522, %v7665, 0.0
      %v7698 = vsel %vm523, %v7666, 0.0
      %v7699 = vsel %vm524, %v7667, 0.0
      %v7700 = vsel %vm525, %v7668, 0.0
      %v7701 = vsel %vm526, %v7669, 0.0
      %v7702 = vsel %vm527, %v7670, 0.0
      %v7703 = vsel %vm528, %v7671, 0.0
      %v7704 = vsel %vm529, %v7672, 0.0
      %v7705 = vsel %vm530, %v7673, 0.0
      %v7706 = vsel %vm531, %v7674, 0.0
      %v7707 = vsel %vm532, %v7675, 0.0
      %v7708 = vsel %vm533, %v7676, 0.0
      %v7709 = vsel %vm534, %v7677, 0.0
      %v7710 = vsel %vm535, %v7678, 0.0
      %v7711 = vsel %vm536, %v7679, 0.0
      %v7712 = vsel %vm537, %v7680, 0.0
      %v7713 = vsel %vm538, %v7681, 0.0
      %v7714 = vsel %vm539, %v7682, 0.0
      %v7715 = vsel %vm540, %v7683, 0.0
      %v7716 = vsel %vm541, %v7684, 0.0
      %v7717 = vsel %vm542, %v7685, 0.0
      %v7718 = vsel %vm543, %v7686, 0.0
      %v7719 = vsel %vm544, %v7687, 0.0
      %v7720 = vsel %vm545, %v7688, 0.0
      %v7721 = vsel %vm546, %v7689, 0.0
      %v7722 = vsel %vm547, %v7690, 0.0
      %7755 = vrot.lane.b32.xlu0 %v7691, 16
      %v7756 = vpop.permute.xlu0 %7755
      %7757 = vrot.lane.b32.xlu0 %v7692, 16
      %v7758 = vpop.permute.xlu0 %7757
      %7759 = vrot.lane.b32.xlu0 %v7693, 16
      %v7760 = vpop.permute.xlu0 %7759
      %7761 = vrot.lane.b32.xlu0 %v7694, 16
      %v7762 = vpop.permute.xlu0 %7761
      %7763 = vrot.lane.b32.xlu0 %v7695, 16
      %v7764 = vpop.permute.xlu0 %7763
      %7765 = vrot.lane.b32.xlu0 %v7696, 16
      %v7766 = vpop.permute.xlu0 %7765
      %7767 = vrot.lane.b32.xlu0 %v7697, 16
      %v7768 = vpop.permute.xlu0 %7767
      %7769 = vrot.lane.b32.xlu0 %v7698, 16
      %v7770 = vpop.permute.xlu0 %7769
      %7771 = vrot.lane.b32.xlu0 %v7699, 16
      %v7772 = vpop.permute.xlu0 %7771
      %7773 = vrot.lane.b32.xlu0 %v7700, 16
      %v7774 = vpop.permute.xlu0 %7773
      %7775 = vrot.lane.b32.xlu0 %v7701, 16
      %v7776 = vpop.permute.xlu0 %7775
      %7777 = vrot.lane.b32.xlu0 %v7702, 16
      %v7778 = vpop.permute.xlu0 %7777
      %7779 = vrot.lane.b32.xlu0 %v7703, 16
      %v7780 = vpop.permute.xlu0 %7779
      %7781 = vrot.lane.b32.xlu0 %v7704, 16
      %v7782 = vpop.permute.xlu0 %7781
      %7783 = vrot.lane.b32.xlu0 %v7705, 16
      %v7784 = vpop.permute.xlu0 %7783
      %7785 = vrot.lane.b32.xlu0 %v7706, 16
      %v7786 = vpop.permute.xlu0 %7785
      %7787 = vrot.lane.b32.xlu0 %v7707, 16
      %v7788 = vpop.permute.xlu0 %7787
      %7789 = vrot.lane.b32.xlu0 %v7708, 16
      %v7790 = vpop.permute.xlu0 %7789
      %7791 = vrot.lane.b32.xlu0 %v7709, 16
      %v7792 = vpop.permute.xlu0 %7791
      %7793 = vrot.lane.b32.xlu0 %v7710, 16
      %v7794 = vpop.permute.xlu0 %7793
      %7795 = vrot.lane.b32.xlu0 %v7711, 16
      %v7796 = vpop.permute.xlu0 %7795
      %7797 = vrot.lane.b32.xlu0 %v7712, 16
      %v7798 = vpop.permute.xlu0 %7797
      %7799 = vrot.lane.b32.xlu0 %v7713, 16
      %v7800 = vpop.permute.xlu0 %7799
      %7801 = vrot.lane.b32.xlu0 %v7714, 16
      %v7802 = vpop.permute.xlu0 %7801
      %7803 = vrot.lane.b32.xlu0 %v7715, 16
      %v7804 = vpop.permute.xlu0 %7803
      %7805 = vrot.lane.b32.xlu0 %v7716, 16
      %v7806 = vpop.permute.xlu0 %7805
      %7807 = vrot.lane.b32.xlu0 %v7717, 16
      %v7808 = vpop.permute.xlu0 %7807
      %7809 = vrot.lane.b32.xlu0 %v7718, 16
      %v7810 = vpop.permute.xlu0 %7809
      %7811 = vrot.lane.b32.xlu0 %v7719, 16
      %v7812 = vpop.permute.xlu0 %7811
      %7813 = vrot.lane.b32.xlu0 %v7720, 16
      %v7814 = vpop.permute.xlu0 %7813
      %7815 = vrot.lane.b32.xlu0 %v7721, 16
      %v7816 = vpop.permute.xlu0 %7815
      %7817 = vrot.lane.b32.xlu0 %v7722, 16
      %v7818 = vpop.permute.xlu0 %7817
      %vm7851 = vcmask 523392
      %7852 = vst.msk [vmem:[#allocation4 + $0x8] sm:$0xff] %vm7851, %v7756
      %7853 = vst.msk [vmem:[#allocation4 + $0x28] sm:$0xff] %vm7851, %v7758
      %7854 = vst.msk [vmem:[#allocation4 + $0x48] sm:$0xff] %vm7851, %v7760
      %7855 = vst.msk [vmem:[#allocation4 + $0x68] sm:$0xff] %vm7851, %v7762
      %7856 = vst.msk [vmem:[#allocation4 + $0x88] sm:$0xff] %vm7851, %v7764
      %7857 = vst.msk [vmem:[#allocation4 + $0xa8] sm:$0xff] %vm7851, %v7766
      %7858 = vst.msk [vmem:[#allocation4 + $0xc8] sm:$0xff] %vm7851, %v7768
      %7859 = vst.msk [vmem:[#allocation4 + $0xe8] sm:$0xff] %vm7851, %v7770
      %7860 = vst.msk [vmem:[#allocation4 + $0x108] sm:$0xff] %vm7851, %v7772
      %7861 = vst.msk [vmem:[#allocation4 + $0x128] sm:$0xff] %vm7851, %v7774
      %7862 = vst.msk [vmem:[#allocation4 + $0x148] sm:$0xff] %vm7851, %v7776
      %7863 = vst.msk [vmem:[#allocation4 + $0x168] sm:$0xff] %vm7851, %v7778
      %7864 = vst.msk [vmem:[#allocation4 + $0x188] sm:$0xff] %vm7851, %v7780
      %7865 = vst.msk [vmem:[#allocation4 + $0x1a8] sm:$0xff] %vm7851, %v7782
      %7866 = vst.msk [vmem:[#allocation4 + $0x1c8] sm:$0xff] %vm7851, %v7784
      %7867 = vst.msk [vmem:[#allocation4 + $0x1e8] sm:$0xff] %vm7851, %v7786
      %7868 = vst.msk [vmem:[#allocation4 + $0x208] sm:$0xff] %vm7851, %v7788
      %7869 = vst.msk [vmem:[#allocation4 + $0x228] sm:$0xff] %vm7851, %v7790
      %7870 = vst.msk [vmem:[#allocation4 + $0x248] sm:$0xff] %vm7851, %v7792
      %7871 = vst.msk [vmem:[#allocation4 + $0x268] sm:$0xff] %vm7851, %v7794
      %7872 = vst.msk [vmem:[#allocation4 + $0x288] sm:$0xff] %vm7851, %v7796
      %7873 = vst.msk [vmem:[#allocation4 + $0x2a8] sm:$0xff] %vm7851, %v7798
      %7874 = vst.msk [vmem:[#allocation4 + $0x2c8] sm:$0xff] %vm7851, %v7800
      %7875 = vst.msk [vmem:[#allocation4 + $0x2e8] sm:$0xff] %vm7851, %v7802
      %7876 = vst.msk [vmem:[#allocation4 + $0x308] sm:$0xff] %vm7851, %v7804
      %7877 = vst.msk [vmem:[#allocation4 + $0x328] sm:$0xff] %vm7851, %v7806
      %7878 = vst.msk [vmem:[#allocation4 + $0x348] sm:$0xff] %vm7851, %v7808
      %7879 = vst.msk [vmem:[#allocation4 + $0x368] sm:$0xff] %vm7851, %v7810
      %7880 = vst.msk [vmem:[#allocation4 + $0x388] sm:$0xff] %vm7851, %v7812
      %7881 = vst.msk [vmem:[#allocation4 + $0x3a8] sm:$0xff] %vm7851, %v7814
      %7882 = vst.msk [vmem:[#allocation4 + $0x3c8] sm:$0xff] %vm7851, %v7816
      %7883 = vst.msk [vmem:[#allocation4 + $0x3e8] sm:$0xff] %vm7851, %v7818
      %v7884 = vld [vmem:[#allocation3 + $0x18] sm:$0xff]
      %v7885 = vld [vmem:[#allocation3 + $0x20] sm:$0xff]
      %v7886 = vld [vmem:[#allocation3 + $0x28] sm:$0xff]
      %v7887 = vld [vmem:[#allocation3 + $0x30] sm:$0xff]
      %v7888 = vld [vmem:[#allocation3 + $0x38] sm:$0xff]
      %v7889 = vld [vmem:[#allocation3 + $0x40] sm:$0xff]
      %v7890 = vld [vmem:[#allocation3 + $0x48] sm:$0xff]
      %v7891 = vld [vmem:[#allocation3 + $0x50] sm:$0xff]
      %v7892 = vld [vmem:[#allocation3 + $0x58] sm:$0xff]
      %v7893 = vld [vmem:[#allocation3 + $0x60] sm:$0xff]
      %v7894 = vld [vmem:[#allocation3 + $0x68] sm:$0xff]
      %v7895 = vld [vmem:[#allocation3 + $0x70] sm:$0xff]
      %v7896 = vld [vmem:[#allocation3 + $0x78] sm:$0xff]
      %v7897 = vld [vmem:[#allocation3 + $0x80] sm:$0xff]
      %v7898 = vld [vmem:[#allocation3 + $0x88] sm:$0xff]
      %v7899 = vld [vmem:[#allocation3 + $0x90] sm:$0xff]
      %v7900 = vld [vmem:[#allocation3 + $0x98] sm:$0xff]
      %v7901 = vld [vmem:[#allocation3 + $0xa0] sm:$0xff]
      %v7902 = vld [vmem:[#allocation3 + $0xa8] sm:$0xff]
      %v7903 = vld [vmem:[#allocation3 + $0xb0] sm:$0xff]
      %v7904 = vld [vmem:[#allocation3 + $0xb8] sm:$0xff]
      %v7905 = vld [vmem:[#allocation3 + $0xc0] sm:$0xff]
      %v7906 = vld [vmem:[#allocation3 + $0xc8] sm:$0xff]
      %v7907 = vld [vmem:[#allocation3 + $0xd0] sm:$0xff]
      %v7908 = vld [vmem:[#allocation3 + $0xd8] sm:$0xff]
      %v7909 = vld [vmem:[#allocation3 + $0xe0] sm:$0xff]
      %v7910 = vld [vmem:[#allocation3 + $0xe8] sm:$0xff]
      %v7911 = vld [vmem:[#allocation3 + $0xf0] sm:$0xff]
      %v7912 = vld [vmem:[#allocation3 + $0xf8] sm:$0xff]
      %v7913 = vld [vmem:[#allocation3 + $0x100] sm:$0xff]
      %v7914 = vld [vmem:[#allocation3 + $0x108] sm:$0xff]
      %v7915 = vld [vmem:[#allocation3 + $0x110] sm:$0xff]
      %7948 = vrot.lane.b32.xlu0 %v7884, 64
      %v7949 = vpop.permute.xlu0 %7948
      %7950 = vrot.lane.b32.xlu0 %v7885, 64
      %v7951 = vpop.permute.xlu0 %7950
      %7952 = vrot.lane.b32.xlu0 %v7886, 64
      %v7953 = vpop.permute.xlu0 %7952
      %7954 = vrot.lane.b32.xlu0 %v7887, 64
      %v7955 = vpop.permute.xlu0 %7954
      %7956 = vrot.lane.b32.xlu0 %v7888, 64
      %v7957 = vpop.permute.xlu0 %7956
      %7958 = vrot.lane.b32.xlu0 %v7889, 64
      %v7959 = vpop.permute.xlu0 %7958
      %7960 = vrot.lane.b32.xlu0 %v7890, 64
      %v7961 = vpop.permute.xlu0 %7960
      %7962 = vrot.lane.b32.xlu0 %v7891, 64
      %v7963 = vpop.permute.xlu0 %7962
      %7964 = vrot.lane.b32.xlu0 %v7892, 64
      %v7965 = vpop.permute.xlu0 %7964
      %7966 = vrot.lane.b32.xlu0 %v7893, 64
      %v7967 = vpop.permute.xlu0 %7966
      %7968 = vrot.lane.b32.xlu0 %v7894, 64
      %v7969 = vpop.permute.xlu0 %7968
      %7970 = vrot.lane.b32.xlu0 %v7895, 64
      %v7971 = vpop.permute.xlu0 %7970
      %7972 = vrot.lane.b32.xlu0 %v7896, 64
      %v7973 = vpop.permute.xlu0 %7972
      %7974 = vrot.lane.b32.xlu0 %v7897, 64
      %v7975 = vpop.permute.xlu0 %7974
      %7976 = vrot.lane.b32.xlu0 %v7898, 64
      %v7977 = vpop.permute.xlu0 %7976
      %7978 = vrot.lane.b32.xlu0 %v7899, 64
      %v7979 = vpop.permute.xlu0 %7978
      %7980 = vrot.lane.b32.xlu0 %v7900, 64
      %v7981 = vpop.permute.xlu0 %7980
      %7982 = vrot.lane.b32.xlu0 %v7901, 64
      %v7983 = vpop.permute.xlu0 %7982
      %7984 = vrot.lane.b32.xlu0 %v7902, 64
      %v7985 = vpop.permute.xlu0 %7984
      %7986 = vrot.lane.b32.xlu0 %v7903, 64
      %v7987 = vpop.permute.xlu0 %7986
      %7988 = vrot.lane.b32.xlu0 %v7904, 64
      %v7989 = vpop.permute.xlu0 %7988
      %7990 = vrot.lane.b32.xlu0 %v7905, 64
      %v7991 = vpop.permute.xlu0 %7990
      %7992 = vrot.lane.b32.xlu0 %v7906, 64
      %v7993 = vpop.permute.xlu0 %7992
      %7994 = vrot.lane.b32.xlu0 %v7907, 64
      %v7995 = vpop.permute.xlu0 %7994
      %7996 = vrot.lane.b32.xlu0 %v7908, 64
      %v7997 = vpop.permute.xlu0 %7996
      %7998 = vrot.lane.b32.xlu0 %v7909, 64
      %v7999 = vpop.permute.xlu0 %7998
      %8000 = vrot.lane.b32.xlu0 %v7910, 64
      %v8001 = vpop.permute.xlu0 %8000
      %8002 = vrot.lane.b32.xlu0 %v7911, 64
      %v8003 = vpop.permute.xlu0 %8002
      %8004 = vrot.lane.b32.xlu0 %v7912, 64
      %v8005 = vpop.permute.xlu0 %8004
      %8006 = vrot.lane.b32.xlu0 %v7913, 64
      %v8007 = vpop.permute.xlu0 %8006
      %8008 = vrot.lane.b32.xlu0 %v7914, 64
      %v8009 = vpop.permute.xlu0 %8008
      %8010 = vrot.lane.b32.xlu0 %v7915, 64
      %v8011 = vpop.permute.xlu0 %8010
      %vm8044 = vcmask 916992
      %8045 = vst.msk [vmem:[#allocation4 + $0x8] sm:$0xff] %vm8044, %v7949
      %8046 = vst.msk [vmem:[#allocation4 + $0x28] sm:$0xff] %vm8044, %v7951
      %8047 = vst.msk [vmem:[#allocation4 + $0x48] sm:$0xff] %vm8044, %v7953
      %8048 = vst.msk [vmem:[#allocation4 + $0x68] sm:$0xff] %vm8044, %v7955
      %8049 = vst.msk [vmem:[#allocation4 + $0x88] sm:$0xff] %vm8044, %v7957
      %8050 = vst.msk [vmem:[#allocation4 + $0xa8] sm:$0xff] %vm8044, %v7959
      %8051 = vst.msk [vmem:[#allocation4 + $0xc8] sm:$0xff] %vm8044, %v7961
      %8052 = vst.msk [vmem:[#allocation4 + $0xe8] sm:$0xff] %vm8044, %v7963
      %8053 = vst.msk [vmem:[#allocation4 + $0x108] sm:$0xff] %vm8044, %v7965
      %8054 = vst.msk [vmem:[#allocation4 + $0x128] sm:$0xff] %vm8044, %v7967
      %8055 = vst.msk [vmem:[#allocation4 + $0x148] sm:$0xff] %vm8044, %v7969
      %8056 = vst.msk [vmem:[#allocation4 + $0x168] sm:$0xff] %vm8044, %v7971
      %8057 = vst.msk [vmem:[#allocation4 + $0x188] sm:$0xff] %vm8044, %v7973
      %8058 = vst.msk [vmem:[#allocation4 + $0x1a8] sm:$0xff] %vm8044, %v7975
      %8059 = vst.msk [vmem:[#allocation4 + $0x1c8] sm:$0xff] %vm8044, %v7977
      %8060 = vst.msk [vmem:[#allocation4 + $0x1e8] sm:$0xff] %vm8044, %v7979
      %8061 = vst.msk [vmem:[#allocation4 + $0x208] sm:$0xff] %vm8044, %v7981
      %8062 = vst.msk [vmem:[#allocation4 + $0x228] sm:$0xff] %vm8044, %v7983
      %8063 = vst.msk [vmem:[#allocation4 + $0x248] sm:$0xff] %vm8044, %v7985
      %8064 = vst.msk [vmem:[#allocation4 + $0x268] sm:$0xff] %vm8044, %v7987
      %8065 = vst.msk [vmem:[#allocation4 + $0x288] sm:$0xff] %vm8044, %v7989
      %8066 = vst.msk [vmem:[#allocation4 + $0x2a8] sm:$0xff] %vm8044, %v7991
      %8067 = vst.msk [vmem:[#allocation4 + $0x2c8] sm:$0xff] %vm8044, %v7993
      %8068 = vst.msk [vmem:[#allocation4 + $0x2e8] sm:$0xff] %vm8044, %v7995
      %8069 = vst.msk [vmem:[#allocation4 + $0x308] sm:$0xff] %vm8044, %v7997
      %8070 = vst.msk [vmem:[#allocation4 + $0x328] sm:$0xff] %vm8044, %v7999
      %8071 = vst.msk [vmem:[#allocation4 + $0x348] sm:$0xff] %vm8044, %v8001
      %8072 = vst.msk [vmem:[#allocation4 + $0x368] sm:$0xff] %vm8044, %v8003
      %8073 = vst.msk [vmem:[#allocation4 + $0x388] sm:$0xff] %vm8044, %v8005
      %8074 = vst.msk [vmem:[#allocation4 + $0x3a8] sm:$0xff] %vm8044, %v8007
      %8075 = vst.msk [vmem:[#allocation4 + $0x3c8] sm:$0xff] %vm8044, %v8009
      %8076 = vst.msk [vmem:[#allocation4 + $0x3e8] sm:$0xff] %vm8044, %v8011
      %v8077 = vld [vmem:[#allocation3 + $0x19] sm:$0xff]
      %v8078 = vld [vmem:[#allocation3 + $0x21] sm:$0xff]
      %v8079 = vld [vmem:[#allocation3 + $0x29] sm:$0xff]
      %v8080 = vld [vmem:[#allocation3 + $0x31] sm:$0xff]
      %v8081 = vld [vmem:[#allocation3 + $0x39] sm:$0xff]
      %v8082 = vld [vmem:[#allocation3 + $0x41] sm:$0xff]
      %v8083 = vld [vmem:[#allocation3 + $0x49] sm:$0xff]
      %v8084 = vld [vmem:[#allocation3 + $0x51] sm:$0xff]
      %v8085 = vld [vmem:[#allocation3 + $0x59] sm:$0xff]
      %v8086 = vld [vmem:[#allocation3 + $0x61] sm:$0xff]
      %v8087 = vld [vmem:[#allocation3 + $0x69] sm:$0xff]
      %v8088 = vld [vmem:[#allocation3 + $0x71] sm:$0xff]
      %v8089 = vld [vmem:[#allocation3 + $0x79] sm:$0xff]
      %v8090 = vld [vmem:[#allocation3 + $0x81] sm:$0xff]
      %v8091 = vld [vmem:[#allocation3 + $0x89] sm:$0xff]
      %v8092 = vld [vmem:[#allocation3 + $0x91] sm:$0xff]
      %v8093 = vld [vmem:[#allocation3 + $0x99] sm:$0xff]
      %v8094 = vld [vmem:[#allocation3 + $0xa1] sm:$0xff]
      %v8095 = vld [vmem:[#allocation3 + $0xa9] sm:$0xff]
      %v8096 = vld [vmem:[#allocation3 + $0xb1] sm:$0xff]
      %v8097 = vld [vmem:[#allocation3 + $0xb9] sm:$0xff]
      %v8098 = vld [vmem:[#allocation3 + $0xc1] sm:$0xff]
      %v8099 = vld [vmem:[#allocation3 + $0xc9] sm:$0xff]
      %v8100 = vld [vmem:[#allocation3 + $0xd1] sm:$0xff]
      %v8101 = vld [vmem:[#allocation3 + $0xd9] sm:$0xff]
      %v8102 = vld [vmem:[#allocation3 + $0xe1] sm:$0xff]
      %v8103 = vld [vmem:[#allocation3 + $0xe9] sm:$0xff]
      %v8104 = vld [vmem:[#allocation3 + $0xf1] sm:$0xff]
      %v8105 = vld [vmem:[#allocation3 + $0xf9] sm:$0xff]
      %v8106 = vld [vmem:[#allocation3 + $0x101] sm:$0xff]
      %v8107 = vld [vmem:[#allocation3 + $0x109] sm:$0xff]
      %v8108 = vld [vmem:[#allocation3 + $0x111] sm:$0xff]
      %v8109 = vsel %vm837, %v8077, 0.0
      %v8110 = vsel %vm838, %v8078, 0.0
      %v8111 = vsel %vm839, %v8079, 0.0
      %v8112 = vsel %vm840, %v8080, 0.0
      %v8113 = vsel %vm841, %v8081, 0.0
      %v8114 = vsel %vm842, %v8082, 0.0
      %v8115 = vsel %vm843, %v8083, 0.0
      %v8116 = vsel %vm844, %v8084, 0.0
      %v8117 = vsel %vm845, %v8085, 0.0
      %v8118 = vsel %vm846, %v8086, 0.0
      %v8119 = vsel %vm847, %v8087, 0.0
      %v8120 = vsel %vm848, %v8088, 0.0
      %v8121 = vsel %vm849, %v8089, 0.0
      %v8122 = vsel %vm850, %v8090, 0.0
      %v8123 = vsel %vm851, %v8091, 0.0
      %v8124 = vsel %vm852, %v8092, 0.0
      %v8125 = vsel %vm853, %v8093, 0.0
      %v8126 = vsel %vm854, %v8094, 0.0
      %v8127 = vsel %vm855, %v8095, 0.0
      %v8128 = vsel %vm856, %v8096, 0.0
      %v8129 = vsel %vm857, %v8097, 0.0
      %v8130 = vsel %vm858, %v8098, 0.0
      %v8131 = vsel %vm859, %v8099, 0.0
      %v8132 = vsel %vm860, %v8100, 0.0
      %v8133 = vsel %vm861, %v8101, 0.0
      %v8134 = vsel %vm862, %v8102, 0.0
      %v8135 = vsel %vm863, %v8103, 0.0
      %v8136 = vsel %vm864, %v8104, 0.0
      %v8137 = vsel %vm865, %v8105, 0.0
      %v8138 = vsel %vm866, %v8106, 0.0
      %v8139 = vsel %vm867, %v8107, 0.0
      %v8140 = vsel %vm868, %v8108, 0.0
      %8173 = vrot.lane.b32.xlu0 %v8109, 112
      %v8174 = vpop.permute.xlu0 %8173
      %8175 = vrot.lane.b32.xlu0 %v8110, 112
      %v8176 = vpop.permute.xlu0 %8175
      %8177 = vrot.lane.b32.xlu0 %v8111, 112
      %v8178 = vpop.permute.xlu0 %8177
      %8179 = vrot.lane.b32.xlu0 %v8112, 112
      %v8180 = vpop.permute.xlu0 %8179
      %8181 = vrot.lane.b32.xlu0 %v8113, 112
      %v8182 = vpop.permute.xlu0 %8181
      %8183 = vrot.lane.b32.xlu0 %v8114, 112
      %v8184 = vpop.permute.xlu0 %8183
      %8185 = vrot.lane.b32.xlu0 %v8115, 112
      %v8186 = vpop.permute.xlu0 %8185
      %8187 = vrot.lane.b32.xlu0 %v8116, 112
      %v8188 = vpop.permute.xlu0 %8187
      %8189 = vrot.lane.b32.xlu0 %v8117, 112
      %v8190 = vpop.permute.xlu0 %8189
      %8191 = vrot.lane.b32.xlu0 %v8118, 112
      %v8192 = vpop.permute.xlu0 %8191
      %8193 = vrot.lane.b32.xlu0 %v8119, 112
      %v8194 = vpop.permute.xlu0 %8193
      %8195 = vrot.lane.b32.xlu0 %v8120, 112
      %v8196 = vpop.permute.xlu0 %8195
      %8197 = vrot.lane.b32.xlu0 %v8121, 112
      %v8198 = vpop.permute.xlu0 %8197
      %8199 = vrot.lane.b32.xlu0 %v8122, 112
      %v8200 = vpop.permute.xlu0 %8199
      %8201 = vrot.lane.b32.xlu0 %v8123, 112
      %v8202 = vpop.permute.xlu0 %8201
      %8203 = vrot.lane.b32.xlu0 %v8124, 112
      %v8204 = vpop.permute.xlu0 %8203
      %8205 = vrot.lane.b32.xlu0 %v8125, 112
      %v8206 = vpop.permute.xlu0 %8205
      %8207 = vrot.lane.b32.xlu0 %v8126, 112
      %v8208 = vpop.permute.xlu0 %8207
      %8209 = vrot.lane.b32.xlu0 %v8127, 112
      %v8210 = vpop.permute.xlu0 %8209
      %8211 = vrot.lane.b32.xlu0 %v8128, 112
      %v8212 = vpop.permute.xlu0 %8211
      %8213 = vrot.lane.b32.xlu0 %v8129, 112
      %v8214 = vpop.permute.xlu0 %8213
      %8215 = vrot.lane.b32.xlu0 %v8130, 112
      %v8216 = vpop.permute.xlu0 %8215
      %8217 = vrot.lane.b32.xlu0 %v8131, 112
      %v8218 = vpop.permute.xlu0 %8217
      %8219 = vrot.lane.b32.xlu0 %v8132, 112
      %v8220 = vpop.permute.xlu0 %8219
      %8221 = vrot.lane.b32.xlu0 %v8133, 112
      %v8222 = vpop.permute.xlu0 %8221
      %8223 = vrot.lane.b32.xlu0 %v8134, 112
      %v8224 = vpop.permute.xlu0 %8223
      %8225 = vrot.lane.b32.xlu0 %v8135, 112
      %v8226 = vpop.permute.xlu0 %8225
      %8227 = vrot.lane.b32.xlu0 %v8136, 112
      %v8228 = vpop.permute.xlu0 %8227
      %8229 = vrot.lane.b32.xlu0 %v8137, 112
      %v8230 = vpop.permute.xlu0 %8229
      %8231 = vrot.lane.b32.xlu0 %v8138, 112
      %v8232 = vpop.permute.xlu0 %8231
      %8233 = vrot.lane.b32.xlu0 %v8139, 112
      %v8234 = vpop.permute.xlu0 %8233
      %8235 = vrot.lane.b32.xlu0 %v8140, 112
      %v8236 = vpop.permute.xlu0 %8235
      %8269 = vst.msk [vmem:[#allocation4 + $0x8] sm:$0xff] %vm2090, %v8174
      %vm8270 = vcmask 261120
      %8271 = vst.msk [vmem:[#allocation4 + $0x10] sm:$0xff] %vm8270, %v8174
      %8272 = vst.msk [vmem:[#allocation4 + $0x28] sm:$0xff] %vm2090, %v8176
      %8273 = vst.msk [vmem:[#allocation4 + $0x30] sm:$0xff] %vm8270, %v8176
      %8274 = vst.msk [vmem:[#allocation4 + $0x48] sm:$0xff] %vm2090, %v8178
      %8275 = vst.msk [vmem:[#allocation4 + $0x50] sm:$0xff] %vm8270, %v8178
      %8276 = vst.msk [vmem:[#allocation4 + $0x68] sm:$0xff] %vm2090, %v8180
      %8277 = vst.msk [vmem:[#allocation4 + $0x70] sm:$0xff] %vm8270, %v8180
      %8278 = vst.msk [vmem:[#allocation4 + $0x88] sm:$0xff] %vm2090, %v8182
      %8279 = vst.msk [vmem:[#allocation4 + $0x90] sm:$0xff] %vm8270, %v8182
      %8280 = vst.msk [vmem:[#allocation4 + $0xa8] sm:$0xff] %vm2090, %v8184
      %8281 = vst.msk [vmem:[#allocation4 + $0xb0] sm:$0xff] %vm8270, %v8184
      %8282 = vst.msk [vmem:[#allocation4 + $0xc8] sm:$0xff] %vm2090, %v8186
      %8283 = vst.msk [vmem:[#allocation4 + $0xd0] sm:$0xff] %vm8270, %v8186
      %8284 = vst.msk [vmem:[#allocation4 + $0xe8] sm:$0xff] %vm2090, %v8188
      %8285 = vst.msk [vmem:[#allocation4 + $0xf0] sm:$0xff] %vm8270, %v8188
      %8286 = vst.msk [vmem:[#allocation4 + $0x108] sm:$0xff] %vm2090, %v8190
      %8287 = vst.msk [vmem:[#allocation4 + $0x110] sm:$0xff] %vm8270, %v8190
      %8288 = vst.msk [vmem:[#allocation4 + $0x128] sm:$0xff] %vm2090, %v8192
      %8289 = vst.msk [vmem:[#allocation4 + $0x130] sm:$0xff] %vm8270, %v8192
      %8290 = vst.msk [vmem:[#allocation4 + $0x148] sm:$0xff] %vm2090, %v8194
      %8291 = vst.msk [vmem:[#allocation4 + $0x150] sm:$0xff] %vm8270, %v8194
      %8292 = vst.msk [vmem:[#allocation4 + $0x168] sm:$0xff] %vm2090, %v8196
      %8293 = vst.msk [vmem:[#allocation4 + $0x170] sm:$0xff] %vm8270, %v8196
      %8294 = vst.msk [vmem:[#allocation4 + $0x188] sm:$0xff] %vm2090, %v8198
      %8295 = vst.msk [vmem:[#allocation4 + $0x190] sm:$0xff] %vm8270, %v8198
      %8296 = vst.msk [vmem:[#allocation4 + $0x1a8] sm:$0xff] %vm2090, %v8200
      %8297 = vst.msk [vmem:[#allocation4 + $0x1b0] sm:$0xff] %vm8270, %v8200
      %8298 = vst.msk [vmem:[#allocation4 + $0x1c8] sm:$0xff] %vm2090, %v8202
      %8299 = vst.msk [vmem:[#allocation4 + $0x1d0] sm:$0xff] %vm8270, %v8202
      %8300 = vst.msk [vmem:[#allocation4 + $0x1e8] sm:$0xff] %vm2090, %v8204
      %8301 = vst.msk [vmem:[#allocation4 + $0x1f0] sm:$0xff] %vm8270, %v8204
      %8302 = vst.msk [vmem:[#allocation4 + $0x208] sm:$0xff] %vm2090, %v8206
      %8303 = vst.msk [vmem:[#allocation4 + $0x210] sm:$0xff] %vm8270, %v8206
      %8304 = vst.msk [vmem:[#allocation4 + $0x228] sm:$0xff] %vm2090, %v8208
      %8305 = vst.msk [vmem:[#allocation4 + $0x230] sm:$0xff] %vm8270, %v8208
      %8306 = vst.msk [vmem:[#allocation4 + $0x248] sm:$0xff] %vm2090, %v8210
      %8307 = vst.msk [vmem:[#allocation4 + $0x250] sm:$0xff] %vm8270, %v8210
      %8308 = vst.msk [vmem:[#allocation4 + $0x268] sm:$0xff] %vm2090, %v8212
      %8309 = vst.msk [vmem:[#allocation4 + $0x270] sm:$0xff] %vm8270, %v8212
      %8310 = vst.msk [vmem:[#allocation4 + $0x288] sm:$0xff] %vm2090, %v8214
      %8311 = vst.msk [vmem:[#allocation4 + $0x290] sm:$0xff] %vm8270, %v8214
      %8312 = vst.msk [vmem:[#allocation4 + $0x2a8] sm:$0xff] %vm2090, %v8216
      %8313 = vst.msk [vmem:[#allocation4 + $0x2b0] sm:$0xff] %vm8270, %v8216
      %8314 = vst.msk [vmem:[#allocation4 + $0x2c8] sm:$0xff] %vm2090, %v8218
      %8315 = vst.msk [vmem:[#allocation4 + $0x2d0] sm:$0xff] %vm8270, %v8218
      %8316 = vst.msk [vmem:[#allocation4 + $0x2e8] sm:$0xff] %vm2090, %v8220
      %8317 = vst.msk [vmem:[#allocation4 + $0x2f0] sm:$0xff] %vm8270, %v8220
      %8318 = vst.msk [vmem:[#allocation4 + $0x308] sm:$0xff] %vm2090, %v8222
      %8319 = vst.msk [vmem:[#allocation4 + $0x310] sm:$0xff] %vm8270, %v8222
      %8320 = vst.msk [vmem:[#allocation4 + $0x328] sm:$0xff] %vm2090, %v8224
      %8321 = vst.msk [vmem:[#allocation4 + $0x330] sm:$0xff] %vm8270, %v8224
      %8322 = vst.msk [vmem:[#allocation4 + $0x348] sm:$0xff] %vm2090, %v8226
      %8323 = vst.msk [vmem:[#allocation4 + $0x350] sm:$0xff] %vm8270, %v8226
      %8324 = vst.msk [vmem:[#allocation4 + $0x368] sm:$0xff] %vm2090, %v8228
      %8325 = vst.msk [vmem:[#allocation4 + $0x370] sm:$0xff] %vm8270, %v8228
      %8326 = vst.msk [vmem:[#allocation4 + $0x388] sm:$0xff] %vm2090, %v8230
      %8327 = vst.msk [vmem:[#allocation4 + $0x390] sm:$0xff] %vm8270, %v8230
      %8328 = vst.msk [vmem:[#allocation4 + $0x3a8] sm:$0xff] %vm2090, %v8232
      %8329 = vst.msk [vmem:[#allocation4 + $0x3b0] sm:$0xff] %vm8270, %v8232
      %8330 = vst.msk [vmem:[#allocation4 + $0x3c8] sm:$0xff] %vm2090, %v8234
      %8331 = vst.msk [vmem:[#allocation4 + $0x3d0] sm:$0xff] %vm8270, %v8234
      %8332 = vst.msk [vmem:[#allocation4 + $0x3e8] sm:$0xff] %vm2090, %v8236
      %8333 = vst.msk [vmem:[#allocation4 + $0x3f0] sm:$0xff] %vm8270, %v8236
      %v8334 = vld [vmem:[#allocation3 + $0x27] sm:$0xff]
      %v8335 = vld [vmem:[#allocation3 + $0x2f] sm:$0xff]
      %v8336 = vld [vmem:[#allocation3 + $0x37] sm:$0xff]
      %v8337 = vld [vmem:[#allocation3 + $0x3f] sm:$0xff]
      %v8338 = vld [vmem:[#allocation3 + $0x47] sm:$0xff]
      %v8339 = vld [vmem:[#allocation3 + $0x4f] sm:$0xff]
      %v8340 = vld [vmem:[#allocation3 + $0x57] sm:$0xff]
      %v8341 = vld [vmem:[#allocation3 + $0x5f] sm:$0xff]
      %v8342 = vld [vmem:[#allocation3 + $0x67] sm:$0xff]
      %v8343 = vld [vmem:[#allocation3 + $0x6f] sm:$0xff]
      %v8344 = vld [vmem:[#allocation3 + $0x77] sm:$0xff]
      %v8345 = vld [vmem:[#allocation3 + $0x7f] sm:$0xff]
      %v8346 = vld [vmem:[#allocation3 + $0x87] sm:$0xff]
      %v8347 = vld [vmem:[#allocation3 + $0x8f] sm:$0xff]
      %v8348 = vld [vmem:[#allocation3 + $0x97] sm:$0xff]
      %v8349 = vld [vmem:[#allocation3 + $0x9f] sm:$0xff]
      %v8350 = vld [vmem:[#allocation3 + $0xa7] sm:$0xff]
      %v8351 = vld [vmem:[#allocation3 + $0xaf] sm:$0xff]
      %v8352 = vld [vmem:[#allocation3 + $0xb7] sm:$0xff]
      %v8353 = vld [vmem:[#allocation3 + $0xbf] sm:$0xff]
      %v8354 = vld [vmem:[#allocation3 + $0xc7] sm:$0xff]
      %v8355 = vld [vmem:[#allocation3 + $0xcf] sm:$0xff]
      %v8356 = vld [vmem:[#allocation3 + $0xd7] sm:$0xff]
      %v8357 = vld [vmem:[#allocation3 + $0xdf] sm:$0xff]
      %v8358 = vld [vmem:[#allocation3 + $0xe7] sm:$0xff]
      %v8359 = vld [vmem:[#allocation3 + $0xef] sm:$0xff]
      %v8360 = vld [vmem:[#allocation3 + $0xf7] sm:$0xff]
      %v8361 = vld [vmem:[#allocation3 + $0xff] sm:$0xff]
      %v8362 = vld [vmem:[#allocation3 + $0x107] sm:$0xff]
      %v8363 = vld [vmem:[#allocation3 + $0x10f] sm:$0xff]
      %v8364 = vld [vmem:[#allocation3 + $0x117] sm:$0xff]
      %v8365 = vld [vmem:[#allocation3 + $0x11f] sm:$0xff]
      %v8366 = vsel %vm516, %v8334, 0.0
      %v8367 = vsel %vm517, %v8335, 0.0
      %v8368 = vsel %vm518, %v8336, 0.0
      %v8369 = vsel %vm519, %v8337, 0.0
      %v8370 = vsel %vm520, %v8338, 0.0
      %v8371 = vsel %vm521, %v8339, 0.0
      %v8372 = vsel %vm522, %v8340, 0.0
      %v8373 = vsel %vm523, %v8341, 0.0
      %v8374 = vsel %vm524, %v8342, 0.0
      %v8375 = vsel %vm525, %v8343, 0.0
      %v8376 = vsel %vm526, %v8344, 0.0
      %v8377 = vsel %vm527, %v8345, 0.0
      %v8378 = vsel %vm528, %v8346, 0.0
      %v8379 = vsel %vm529, %v8347, 0.0
      %v8380 = vsel %vm530, %v8348, 0.0
      %v8381 = vsel %vm531, %v8349, 0.0
      %v8382 = vsel %vm532, %v8350, 0.0
      %v8383 = vsel %vm533, %v8351, 0.0
      %v8384 = vsel %vm534, %v8352, 0.0
      %v8385 = vsel %vm535, %v8353, 0.0
      %v8386 = vsel %vm536, %v8354, 0.0
      %v8387 = vsel %vm537, %v8355, 0.0
      %v8388 = vsel %vm538, %v8356, 0.0
      %v8389 = vsel %vm539, %v8357, 0.0
      %v8390 = vsel %vm540, %v8358, 0.0
      %v8391 = vsel %vm541, %v8359, 0.0
      %v8392 = vsel %vm542, %v8360, 0.0
      %v8393 = vsel %vm543, %v8361, 0.0
      %v8394 = vsel %vm544, %v8362, 0.0
      %v8395 = vsel %vm545, %v8363, 0.0
      %v8396 = vsel %vm546, %v8364, 0.0
      %v8397 = vsel %vm547, %v8365, 0.0
      %8430 = vrot.lane.b32.xlu0 %v8366, 32
      %v8431 = vpop.permute.xlu0 %8430
      %8432 = vrot.lane.b32.xlu0 %v8367, 32
      %v8433 = vpop.permute.xlu0 %8432
      %8434 = vrot.lane.b32.xlu0 %v8368, 32
      %v8435 = vpop.permute.xlu0 %8434
      %8436 = vrot.lane.b32.xlu0 %v8369, 32
      %v8437 = vpop.permute.xlu0 %8436
      %8438 = vrot.lane.b32.xlu0 %v8370, 32
      %v8439 = vpop.permute.xlu0 %8438
      %8440 = vrot.lane.b32.xlu0 %v8371, 32
      %v8441 = vpop.permute.xlu0 %8440
      %8442 = vrot.lane.b32.xlu0 %v8372, 32
      %v8443 = vpop.permute.xlu0 %8442
      %8444 = vrot.lane.b32.xlu0 %v8373, 32
      %v8445 = vpop.permute.xlu0 %8444
      %8446 = vrot.lane.b32.xlu0 %v8374, 32
      %v8447 = vpop.permute.xlu0 %8446
      %8448 = vrot.lane.b32.xlu0 %v8375, 32
      %v8449 = vpop.permute.xlu0 %8448
      %8450 = vrot.lane.b32.xlu0 %v8376, 32
      %v8451 = vpop.permute.xlu0 %8450
      %8452 = vrot.lane.b32.xlu0 %v8377, 32
      %v8453 = vpop.permute.xlu0 %8452
      %8454 = vrot.lane.b32.xlu0 %v8378, 32
      %v8455 = vpop.permute.xlu0 %8454
      %8456 = vrot.lane.b32.xlu0 %v8379, 32
      %v8457 = vpop.permute.xlu0 %8456
      %8458 = vrot.lane.b32.xlu0 %v8380, 32
      %v8459 = vpop.permute.xlu0 %8458
      %8460 = vrot.lane.b32.xlu0 %v8381, 32
      %v8461 = vpop.permute.xlu0 %8460
      %8462 = vrot.lane.b32.xlu0 %v8382, 32
      %v8463 = vpop.permute.xlu0 %8462
      %8464 = vrot.lane.b32.xlu0 %v8383, 32
      %v8465 = vpop.permute.xlu0 %8464
      %8466 = vrot.lane.b32.xlu0 %v8384, 32
      %v8467 = vpop.permute.xlu0 %8466
      %8468 = vrot.lane.b32.xlu0 %v8385, 32
      %v8469 = vpop.permute.xlu0 %8468
      %8470 = vrot.lane.b32.xlu0 %v8386, 32
      %v8471 = vpop.permute.xlu0 %8470
      %8472 = vrot.lane.b32.xlu0 %v8387, 32
      %v8473 = vpop.permute.xlu0 %8472
      %8474 = vrot.lane.b32.xlu0 %v8388, 32
      %v8475 = vpop.permute.xlu0 %8474
      %8476 = vrot.lane.b32.xlu0 %v8389, 32
      %v8477 = vpop.permute.xlu0 %8476
      %8478 = vrot.lane.b32.xlu0 %v8390, 32
      %v8479 = vpop.permute.xlu0 %8478
      %8480 = vrot.lane.b32.xlu0 %v8391, 32
      %v8481 = vpop.permute.xlu0 %8480
      %8482 = vrot.lane.b32.xlu0 %v8392, 32
      %v8483 = vpop.permute.xlu0 %8482
      %8484 = vrot.lane.b32.xlu0 %v8393, 32
      %v8485 = vpop.permute.xlu0 %8484
      %8486 = vrot.lane.b32.xlu0 %v8394, 32
      %v8487 = vpop.permute.xlu0 %8486
      %8488 = vrot.lane.b32.xlu0 %v8395, 32
      %v8489 = vpop.permute.xlu0 %8488
      %8490 = vrot.lane.b32.xlu0 %v8396, 32
      %v8491 = vpop.permute.xlu0 %8490
      %8492 = vrot.lane.b32.xlu0 %v8397, 32
      %v8493 = vpop.permute.xlu0 %8492
      %vm8526 = vcmask 654592
      %8527 = vst.msk [vmem:[#allocation4 + $0x10] sm:$0xff] %vm8526, %v8431
      %8528 = vst.msk [vmem:[#allocation4 + $0x30] sm:$0xff] %vm8526, %v8433
      %8529 = vst.msk [vmem:[#allocation4 + $0x50] sm:$0xff] %vm8526, %v8435
      %8530 = vst.msk [vmem:[#allocation4 + $0x70] sm:$0xff] %vm8526, %v8437
      %8531 = vst.msk [vmem:[#allocation4 + $0x90] sm:$0xff] %vm8526, %v8439
      %8532 = vst.msk [vmem:[#allocation4 + $0xb0] sm:$0xff] %vm8526, %v8441
      %8533 = vst.msk [vmem:[#allocation4 + $0xd0] sm:$0xff] %vm8526, %v8443
      %8534 = vst.msk [vmem:[#allocation4 + $0xf0] sm:$0xff] %vm8526, %v8445
      %8535 = vst.msk [vmem:[#allocation4 + $0x110] sm:$0xff] %vm8526, %v8447
      %8536 = vst.msk [vmem:[#allocation4 + $0x130] sm:$0xff] %vm8526, %v8449
      %8537 = vst.msk [vmem:[#allocation4 + $0x150] sm:$0xff] %vm8526, %v8451
      %8538 = vst.msk [vmem:[#allocation4 + $0x170] sm:$0xff] %vm8526, %v8453
      %8539 = vst.msk [vmem:[#allocation4 + $0x190] sm:$0xff] %vm8526, %v8455
      %8540 = vst.msk [vmem:[#allocation4 + $0x1b0] sm:$0xff] %vm8526, %v8457
      %8541 = vst.msk [vmem:[#allocation4 + $0x1d0] sm:$0xff] %vm8526, %v8459
      %8542 = vst.msk [vmem:[#allocation4 + $0x1f0] sm:$0xff] %vm8526, %v8461
      %8543 = vst.msk [vmem:[#allocation4 + $0x210] sm:$0xff] %vm8526, %v8463
      %8544 = vst.msk [vmem:[#allocation4 + $0x230] sm:$0xff] %vm8526, %v8465
      %8545 = vst.msk [vmem:[#allocation4 + $0x250] sm:$0xff] %vm8526, %v8467
      %8546 = vst.msk [vmem:[#allocation4 + $0x270] sm:$0xff] %vm8526, %v8469
      %8547 = vst.msk [vmem:[#allocation4 + $0x290] sm:$0xff] %vm8526, %v8471
      %8548 = vst.msk [vmem:[#allocation4 + $0x2b0] sm:$0xff] %vm8526, %v8473
      %8549 = vst.msk [vmem:[#allocation4 + $0x2d0] sm:$0xff] %vm8526, %v8475
      %8550 = vst.msk [vmem:[#allocation4 + $0x2f0] sm:$0xff] %vm8526, %v8477
      %8551 = vst.msk [vmem:[#allocation4 + $0x310] sm:$0xff] %vm8526, %v8479
      %8552 = vst.msk [vmem:[#allocation4 + $0x330] sm:$0xff] %vm8526, %v8481
      %8553 = vst.msk [vmem:[#allocation4 + $0x350] sm:$0xff] %vm8526, %v8483
      %8554 = vst.msk [vmem:[#allocation4 + $0x370] sm:$0xff] %vm8526, %v8485
      %8555 = vst.msk [vmem:[#allocation4 + $0x390] sm:$0xff] %vm8526, %v8487
      %8556 = vst.msk [vmem:[#allocation4 + $0x3b0] sm:$0xff] %vm8526, %v8489
      %8557 = vst.msk [vmem:[#allocation4 + $0x3d0] sm:$0xff] %vm8526, %v8491
      %8558 = vst.msk [vmem:[#allocation4 + $0x3f0] sm:$0xff] %vm8526, %v8493
      %v8559 = vld [vmem:[#allocation3 + $0x28] sm:$0xff]
      %v8560 = vld [vmem:[#allocation3 + $0x30] sm:$0xff]
      %v8561 = vld [vmem:[#allocation3 + $0x38] sm:$0xff]
      %v8562 = vld [vmem:[#allocation3 + $0x40] sm:$0xff]
      %v8563 = vld [vmem:[#allocation3 + $0x48] sm:$0xff]
      %v8564 = vld [vmem:[#allocation3 + $0x50] sm:$0xff]
      %v8565 = vld [vmem:[#allocation3 + $0x58] sm:$0xff]
      %v8566 = vld [vmem:[#allocation3 + $0x60] sm:$0xff]
      %v8567 = vld [vmem:[#allocation3 + $0x68] sm:$0xff]
      %v8568 = vld [vmem:[#allocation3 + $0x70] sm:$0xff]
      %v8569 = vld [vmem:[#allocation3 + $0x78] sm:$0xff]
      %v8570 = vld [vmem:[#allocation3 + $0x80] sm:$0xff]
      %v8571 = vld [vmem:[#allocation3 + $0x88] sm:$0xff]
      %v8572 = vld [vmem:[#allocation3 + $0x90] sm:$0xff]
      %v8573 = vld [vmem:[#allocation3 + $0x98] sm:$0xff]
      %v8574 = vld [vmem:[#allocation3 + $0xa0] sm:$0xff]
      %v8575 = vld [vmem:[#allocation3 + $0xa8] sm:$0xff]
      %v8576 = vld [vmem:[#allocation3 + $0xb0] sm:$0xff]
      %v8577 = vld [vmem:[#allocation3 + $0xb8] sm:$0xff]
      %v8578 = vld [vmem:[#allocation3 + $0xc0] sm:$0xff]
      %v8579 = vld [vmem:[#allocation3 + $0xc8] sm:$0xff]
      %v8580 = vld [vmem:[#allocation3 + $0xd0] sm:$0xff]
      %v8581 = vld [vmem:[#allocation3 + $0xd8] sm:$0xff]
      %v8582 = vld [vmem:[#allocation3 + $0xe0] sm:$0xff]
      %v8583 = vld [vmem:[#allocation3 + $0xe8] sm:$0xff]
      %v8584 = vld [vmem:[#allocation3 + $0xf0] sm:$0xff]
      %v8585 = vld [vmem:[#allocation3 + $0xf8] sm:$0xff]
      %v8586 = vld [vmem:[#allocation3 + $0x100] sm:$0xff]
      %v8587 = vld [vmem:[#allocation3 + $0x108] sm:$0xff]
      %v8588 = vld [vmem:[#allocation3 + $0x110] sm:$0xff]
      %v8589 = vld [vmem:[#allocation3 + $0x118] sm:$0xff]
      %v8590 = vld [vmem:[#allocation3 + $0x120] sm:$0xff]
      %8623 = vrot.lane.b32.xlu0 %v8559, 80
      %v8624 = vpop.permute.xlu0 %8623
      %8625 = vrot.lane.b32.xlu0 %v8560, 80
      %v8626 = vpop.permute.xlu0 %8625
      %8627 = vrot.lane.b32.xlu0 %v8561, 80
      %v8628 = vpop.permute.xlu0 %8627
      %8629 = vrot.lane.b32.xlu0 %v8562, 80
      %v8630 = vpop.permute.xlu0 %8629
      %8631 = vrot.lane.b32.xlu0 %v8563, 80
      %v8632 = vpop.permute.xlu0 %8631
      %8633 = vrot.lane.b32.xlu0 %v8564, 80
      %v8634 = vpop.permute.xlu0 %8633
      %8635 = vrot.lane.b32.xlu0 %v8565, 80
      %v8636 = vpop.permute.xlu0 %8635
      %8637 = vrot.lane.b32.xlu0 %v8566, 80
      %v8638 = vpop.permute.xlu0 %8637
      %8639 = vrot.lane.b32.xlu0 %v8567, 80
      %v8640 = vpop.permute.xlu0 %8639
      %8641 = vrot.lane.b32.xlu0 %v8568, 80
      %v8642 = vpop.permute.xlu0 %8641
      %8643 = vrot.lane.b32.xlu0 %v8569, 80
      %v8644 = vpop.permute.xlu0 %8643
      %8645 = vrot.lane.b32.xlu0 %v8570, 80
      %v8646 = vpop.permute.xlu0 %8645
      %8647 = vrot.lane.b32.xlu0 %v8571, 80
      %v8648 = vpop.permute.xlu0 %8647
      %8649 = vrot.lane.b32.xlu0 %v8572, 80
      %v8650 = vpop.permute.xlu0 %8649
      %8651 = vrot.lane.b32.xlu0 %v8573, 80
      %v8652 = vpop.permute.xlu0 %8651
      %8653 = vrot.lane.b32.xlu0 %v8574, 80
      %v8654 = vpop.permute.xlu0 %8653
      %8655 = vrot.lane.b32.xlu0 %v8575, 80
      %v8656 = vpop.permute.xlu0 %8655
      %8657 = vrot.lane.b32.xlu0 %v8576, 80
      %v8658 = vpop.permute.xlu0 %8657
      %8659 = vrot.lane.b32.xlu0 %v8577, 80
      %v8660 = vpop.permute.xlu0 %8659
      %8661 = vrot.lane.b32.xlu0 %v8578, 80
      %v8662 = vpop.permute.xlu0 %8661
      %8663 = vrot.lane.b32.xlu0 %v8579, 80
      %v8664 = vpop.permute.xlu0 %8663
      %8665 = vrot.lane.b32.xlu0 %v8580, 80
      %v8666 = vpop.permute.xlu0 %8665
      %8667 = vrot.lane.b32.xlu0 %v8581, 80
      %v8668 = vpop.permute.xlu0 %8667
      %8669 = vrot.lane.b32.xlu0 %v8582, 80
      %v8670 = vpop.permute.xlu0 %8669
      %8671 = vrot.lane.b32.xlu0 %v8583, 80
      %v8672 = vpop.permute.xlu0 %8671
      %8673 = vrot.lane.b32.xlu0 %v8584, 80
      %v8674 = vpop.permute.xlu0 %8673
      %8675 = vrot.lane.b32.xlu0 %v8585, 80
      %v8676 = vpop.permute.xlu0 %8675
      %8677 = vrot.lane.b32.xlu0 %v8586, 80
      %v8678 = vpop.permute.xlu0 %8677
      %8679 = vrot.lane.b32.xlu0 %v8587, 80
      %v8680 = vpop.permute.xlu0 %8679
      %8681 = vrot.lane.b32.xlu0 %v8588, 80
      %v8682 = vpop.permute.xlu0 %8681
      %8683 = vrot.lane.b32.xlu0 %v8589, 80
      %v8684 = vpop.permute.xlu0 %8683
      %8685 = vrot.lane.b32.xlu0 %v8590, 80
      %v8686 = vpop.permute.xlu0 %8685
      %vm8719 = vcmask 1048192
      %8720 = vst.msk [vmem:[#allocation4 + $0x10] sm:$0xff] %vm8719, %v8624
      %8721 = vst.msk [vmem:[#allocation4 + $0x30] sm:$0xff] %vm8719, %v8626
      %8722 = vst.msk [vmem:[#allocation4 + $0x50] sm:$0xff] %vm8719, %v8628
      %8723 = vst.msk [vmem:[#allocation4 + $0x70] sm:$0xff] %vm8719, %v8630
      %8724 = vst.msk [vmem:[#allocation4 + $0x90] sm:$0xff] %vm8719, %v8632
      %8725 = vst.msk [vmem:[#allocation4 + $0xb0] sm:$0xff] %vm8719, %v8634
      %8726 = vst.msk [vmem:[#allocation4 + $0xd0] sm:$0xff] %vm8719, %v8636
      %8727 = vst.msk [vmem:[#allocation4 + $0xf0] sm:$0xff] %vm8719, %v8638
      %8728 = vst.msk [vmem:[#allocation4 + $0x110] sm:$0xff] %vm8719, %v8640
      %8729 = vst.msk [vmem:[#allocation4 + $0x130] sm:$0xff] %vm8719, %v8642
      %8730 = vst.msk [vmem:[#allocation4 + $0x150] sm:$0xff] %vm8719, %v8644
      %8731 = vst.msk [vmem:[#allocation4 + $0x170] sm:$0xff] %vm8719, %v8646
      %8732 = vst.msk [vmem:[#allocation4 + $0x190] sm:$0xff] %vm8719, %v8648
      %8733 = vst.msk [vmem:[#allocation4 + $0x1b0] sm:$0xff] %vm8719, %v8650
      %8734 = vst.msk [vmem:[#allocation4 + $0x1d0] sm:$0xff] %vm8719, %v8652
      %8735 = vst.msk [vmem:[#allocation4 + $0x1f0] sm:$0xff] %vm8719, %v8654
      %8736 = vst.msk [vmem:[#allocation4 + $0x210] sm:$0xff] %vm8719, %v8656
      %8737 = vst.msk [vmem:[#allocation4 + $0x230] sm:$0xff] %vm8719, %v8658
      %8738 = vst.msk [vmem:[#allocation4 + $0x250] sm:$0xff] %vm8719, %v8660
      %8739 = vst.msk [vmem:[#allocation4 + $0x270] sm:$0xff] %vm8719, %v8662
      %8740 = vst.msk [vmem:[#allocation4 + $0x290] sm:$0xff] %vm8719, %v8664
      %8741 = vst.msk [vmem:[#allocation4 + $0x2b0] sm:$0xff] %vm8719, %v8666
      %8742 = vst.msk [vmem:[#allocation4 + $0x2d0] sm:$0xff] %vm8719, %v8668
      %8743 = vst.msk [vmem:[#allocation4 + $0x2f0] sm:$0xff] %vm8719, %v8670
      %8744 = vst.msk [vmem:[#allocation4 + $0x310] sm:$0xff] %vm8719, %v8672
      %8745 = vst.msk [vmem:[#allocation4 + $0x330] sm:$0xff] %vm8719, %v8674
      %8746 = vst.msk [vmem:[#allocation4 + $0x350] sm:$0xff] %vm8719, %v8676
      %8747 = vst.msk [vmem:[#allocation4 + $0x370] sm:$0xff] %vm8719, %v8678
      %8748 = vst.msk [vmem:[#allocation4 + $0x390] sm:$0xff] %vm8719, %v8680
      %8749 = vst.msk [vmem:[#allocation4 + $0x3b0] sm:$0xff] %vm8719, %v8682
      %8750 = vst.msk [vmem:[#allocation4 + $0x3d0] sm:$0xff] %vm8719, %v8684
      %8751 = vst.msk [vmem:[#allocation4 + $0x3f0] sm:$0xff] %vm8719, %v8686
      %v8752 = vld [vmem:[#allocation3 + $0x29] sm:$0xff]
      %v8753 = vld [vmem:[#allocation3 + $0x31] sm:$0xff]
      %v8754 = vld [vmem:[#allocation3 + $0x39] sm:$0xff]
      %v8755 = vld [vmem:[#allocation3 + $0x41] sm:$0xff]
      %v8756 = vld [vmem:[#allocation3 + $0x49] sm:$0xff]
      %v8757 = vld [vmem:[#allocation3 + $0x51] sm:$0xff]
      %v8758 = vld [vmem:[#allocation3 + $0x59] sm:$0xff]
      %v8759 = vld [vmem:[#allocation3 + $0x61] sm:$0xff]
      %v8760 = vld [vmem:[#allocation3 + $0x69] sm:$0xff]
      %v8761 = vld [vmem:[#allocation3 + $0x71] sm:$0xff]
      %v8762 = vld [vmem:[#allocation3 + $0x79] sm:$0xff]
      %v8763 = vld [vmem:[#allocation3 + $0x81] sm:$0xff]
      %v8764 = vld [vmem:[#allocation3 + $0x89] sm:$0xff]
      %v8765 = vld [vmem:[#allocation3 + $0x91] sm:$0xff]
      %v8766 = vld [vmem:[#allocation3 + $0x99] sm:$0xff]
      %v8767 = vld [vmem:[#allocation3 + $0xa1] sm:$0xff]
      %v8768 = vld [vmem:[#allocation3 + $0xa9] sm:$0xff]
      %v8769 = vld [vmem:[#allocation3 + $0xb1] sm:$0xff]
      %v8770 = vld [vmem:[#allocation3 + $0xb9] sm:$0xff]
      %v8771 = vld [vmem:[#allocation3 + $0xc1] sm:$0xff]
      %v8772 = vld [vmem:[#allocation3 + $0xc9] sm:$0xff]
      %v8773 = vld [vmem:[#allocation3 + $0xd1] sm:$0xff]
      %v8774 = vld [vmem:[#allocation3 + $0xd9] sm:$0xff]
      %v8775 = vld [vmem:[#allocation3 + $0xe1] sm:$0xff]
      %v8776 = vld [vmem:[#allocation3 + $0xe9] sm:$0xff]
      %v8777 = vld [vmem:[#allocation3 + $0xf1] sm:$0xff]
      %v8778 = vld [vmem:[#allocation3 + $0xf9] sm:$0xff]
      %v8779 = vld [vmem:[#allocation3 + $0x101] sm:$0xff]
      %v8780 = vld [vmem:[#allocation3 + $0x109] sm:$0xff]
      %v8781 = vld [vmem:[#allocation3 + $0x111] sm:$0xff]
      %v8782 = vld [vmem:[#allocation3 + $0x119] sm:$0xff]
      %v8783 = vld [vmem:[#allocation3 + $0x121] sm:$0xff]
      %v8784 = vsel %vm837, %v8752, 0.0
      %v8785 = vsel %vm838, %v8753, 0.0
      %v8786 = vsel %vm839, %v8754, 0.0
      %v8787 = vsel %vm840, %v8755, 0.0
      %v8788 = vsel %vm841, %v8756, 0.0
      %v8789 = vsel %vm842, %v8757, 0.0
      %v8790 = vsel %vm843, %v8758, 0.0
      %v8791 = vsel %vm844, %v8759, 0.0
      %v8792 = vsel %vm845, %v8760, 0.0
      %v8793 = vsel %vm846, %v8761, 0.0
      %v8794 = vsel %vm847, %v8762, 0.0
      %v8795 = vsel %vm848, %v8763, 0.0
      %v8796 = vsel %vm849, %v8764, 0.0
      %v8797 = vsel %vm850, %v8765, 0.0
      %v8798 = vsel %vm851, %v8766, 0.0
      %v8799 = vsel %vm852, %v8767, 0.0
      %v8800 = vsel %vm853, %v8768, 0.0
      %v8801 = vsel %vm854, %v8769, 0.0
      %v8802 = vsel %vm855, %v8770, 0.0
      %v8803 = vsel %vm856, %v8771, 0.0
      %v8804 = vsel %vm857, %v8772, 0.0
      %v8805 = vsel %vm858, %v8773, 0.0
      %v8806 = vsel %vm859, %v8774, 0.0
      %v8807 = vsel %vm860, %v8775, 0.0
      %v8808 = vsel %vm861, %v8776, 0.0
      %v8809 = vsel %vm862, %v8777, 0.0
      %v8810 = vsel %vm863, %v8778, 0.0
      %v8811 = vsel %vm864, %v8779, 0.0
      %v8812 = vsel %vm865, %v8780, 0.0
      %v8813 = vsel %vm866, %v8781, 0.0
      %v8814 = vsel %vm867, %v8782, 0.0
      %v8815 = vsel %vm868, %v8783, 0.0
      %8816 = vst.msk [vmem:[#allocation4 + $0x18] sm:$0xff] %vm412, %v8784
      %8817 = vst.msk [vmem:[#allocation4 + $0x38] sm:$0xff] %vm412, %v8785
      %8818 = vst.msk [vmem:[#allocation4 + $0x58] sm:$0xff] %vm412, %v8786
      %8819 = vst.msk [vmem:[#allocation4 + $0x78] sm:$0xff] %vm412, %v8787
      %8820 = vst.msk [vmem:[#allocation4 + $0x98] sm:$0xff] %vm412, %v8788
      %8821 = vst.msk [vmem:[#allocation4 + $0xb8] sm:$0xff] %vm412, %v8789
      %8822 = vst.msk [vmem:[#allocation4 + $0xd8] sm:$0xff] %vm412, %v8790
      %8823 = vst.msk [vmem:[#allocation4 + $0xf8] sm:$0xff] %vm412, %v8791
      %8824 = vst.msk [vmem:[#allocation4 + $0x118] sm:$0xff] %vm412, %v8792
      %8825 = vst.msk [vmem:[#allocation4 + $0x138] sm:$0xff] %vm412, %v8793
      %8826 = vst.msk [vmem:[#allocation4 + $0x158] sm:$0xff] %vm412, %v8794
      %8827 = vst.msk [vmem:[#allocation4 + $0x178] sm:$0xff] %vm412, %v8795
      %8828 = vst.msk [vmem:[#allocation4 + $0x198] sm:$0xff] %vm412, %v8796
      %8829 = vst.msk [vmem:[#allocation4 + $0x1b8] sm:$0xff] %vm412, %v8797
      %8830 = vst.msk [vmem:[#allocation4 + $0x1d8] sm:$0xff] %vm412, %v8798
      %8831 = vst.msk [vmem:[#allocation4 + $0x1f8] sm:$0xff] %vm412, %v8799
      %8832 = vst.msk [vmem:[#allocation4 + $0x218] sm:$0xff] %vm412, %v8800
      %8833 = vst.msk [vmem:[#allocation4 + $0x238] sm:$0xff] %vm412, %v8801
      %8834 = vst.msk [vmem:[#allocation4 + $0x258] sm:$0xff] %vm412, %v8802
      %8835 = vst.msk [vmem:[#allocation4 + $0x278] sm:$0xff] %vm412, %v8803
      %8836 = vst.msk [vmem:[#allocation4 + $0x298] sm:$0xff] %vm412, %v8804
      %8837 = vst.msk [vmem:[#allocation4 + $0x2b8] sm:$0xff] %vm412, %v8805
      %8838 = vst.msk [vmem:[#allocation4 + $0x2d8] sm:$0xff] %vm412, %v8806
      %8839 = vst.msk [vmem:[#allocation4 + $0x2f8] sm:$0xff] %vm412, %v8807
      %8840 = vst.msk [vmem:[#allocation4 + $0x318] sm:$0xff] %vm412, %v8808
      %8841 = vst.msk [vmem:[#allocation4 + $0x338] sm:$0xff] %vm412, %v8809
      %8842 = vst.msk [vmem:[#allocation4 + $0x358] sm:$0xff] %vm412, %v8810
      %8843 = vst.msk [vmem:[#allocation4 + $0x378] sm:$0xff] %vm412, %v8811
      %8844 = vst.msk [vmem:[#allocation4 + $0x398] sm:$0xff] %vm412, %v8812
      %8845 = vst.msk [vmem:[#allocation4 + $0x3b8] sm:$0xff] %vm412, %v8813
      %8846 = vst.msk [vmem:[#allocation4 + $0x3d8] sm:$0xff] %vm412, %v8814
      %8847 = vst.msk [vmem:[#allocation4 + $0x3f8] sm:$0xff] %vm412, %v8815
      %v8848 = vld [vmem:[#allocation4] sm:$0xff]
      %v8849 = vld [vmem:[#allocation4 + $0x8] sm:$0xff]
      %v8850 = vld [vmem:[#allocation4 + $0x10] sm:$0xff]
      %v8851 = vld [vmem:[#allocation4 + $0x18] sm:$0xff]
      %v8852 = vld [vmem:[#allocation4 + $0x20] sm:$0xff]
      %v8853 = vld [vmem:[#allocation4 + $0x28] sm:$0xff]
      %v8854 = vld [vmem:[#allocation4 + $0x30] sm:$0xff]
      %v8855 = vld [vmem:[#allocation4 + $0x38] sm:$0xff]
      %v8856 = vld [vmem:[#allocation4 + $0x40] sm:$0xff]
      %v8857 = vld [vmem:[#allocation4 + $0x48] sm:$0xff]
      %v8858 = vld [vmem:[#allocation4 + $0x50] sm:$0xff]
      %v8859 = vld [vmem:[#allocation4 + $0x58] sm:$0xff]
      %v8860 = vld [vmem:[#allocation4 + $0x60] sm:$0xff]
      %v8861 = vld [vmem:[#allocation4 + $0x68] sm:$0xff]
      %v8862 = vld [vmem:[#allocation4 + $0x70] sm:$0xff]
      %v8863 = vld [vmem:[#allocation4 + $0x78] sm:$0xff]
      %v8864 = vld [vmem:[#allocation4 + $0x80] sm:$0xff]
      %v8865 = vld [vmem:[#allocation4 + $0x88] sm:$0xff]
      %v8866 = vld [vmem:[#allocation4 + $0x90] sm:$0xff]
      %v8867 = vld [vmem:[#allocation4 + $0x98] sm:$0xff]
      %v8868 = vld [vmem:[#allocation4 + $0xa0] sm:$0xff]
      %v8869 = vld [vmem:[#allocation4 + $0xa8] sm:$0xff]
      %v8870 = vld [vmem:[#allocation4 + $0xb0] sm:$0xff]
      %v8871 = vld [vmem:[#allocation4 + $0xb8] sm:$0xff]
      %v8872 = vld [vmem:[#allocation4 + $0xc0] sm:$0xff]
      %v8873 = vld [vmem:[#allocation4 + $0xc8] sm:$0xff]
      %v8874 = vld [vmem:[#allocation4 + $0xd0] sm:$0xff]
      %v8875 = vld [vmem:[#allocation4 + $0xd8] sm:$0xff]
      %v8876 = vld [vmem:[#allocation4 + $0xe0] sm:$0xff]
      %v8877 = vld [vmem:[#allocation4 + $0xe8] sm:$0xff]
      %v8878 = vld [vmem:[#allocation4 + $0xf0] sm:$0xff]
      %v8879 = vld [vmem:[#allocation4 + $0xf8] sm:$0xff]
      %v8880 = vld [vmem:[#allocation4 + $0x100] sm:$0xff]
      %v8881 = vld [vmem:[#allocation4 + $0x108] sm:$0xff]
      %v8882 = vld [vmem:[#allocation4 + $0x110] sm:$0xff]
      %v8883 = vld [vmem:[#allocation4 + $0x118] sm:$0xff]
      %v8884 = vld [vmem:[#allocation4 + $0x120] sm:$0xff]
      %v8885 = vld [vmem:[#allocation4 + $0x128] sm:$0xff]
      %v8886 = vld [vmem:[#allocation4 + $0x130] sm:$0xff]
      %v8887 = vld [vmem:[#allocation4 + $0x138] sm:$0xff]
      %v8888 = vld [vmem:[#allocation4 + $0x140] sm:$0xff]
      %v8889 = vld [vmem:[#allocation4 + $0x148] sm:$0xff]
      %v8890 = vld [vmem:[#allocation4 + $0x150] sm:$0xff]
      %v8891 = vld [vmem:[#allocation4 + $0x158] sm:$0xff]
      %v8892 = vld [vmem:[#allocation4 + $0x160] sm:$0xff]
      %v8893 = vld [vmem:[#allocation4 + $0x168] sm:$0xff]
      %v8894 = vld [vmem:[#allocation4 + $0x170] sm:$0xff]
      %v8895 = vld [vmem:[#allocation4 + $0x178] sm:$0xff]
      %v8896 = vld [vmem:[#allocation4 + $0x180] sm:$0xff]
      %v8897 = vld [vmem:[#allocation4 + $0x188] sm:$0xff]
      %v8898 = vld [vmem:[#allocation4 + $0x190] sm:$0xff]
      %v8899 = vld [vmem:[#allocation4 + $0x198] sm:$0xff]
      %v8900 = vld [vmem:[#allocation4 + $0x1a0] sm:$0xff]
      %v8901 = vld [vmem:[#allocation4 + $0x1a8] sm:$0xff]
      %v8902 = vld [vmem:[#allocation4 + $0x1b0] sm:$0xff]
      %v8903 = vld [vmem:[#allocation4 + $0x1b8] sm:$0xff]
      %v8904 = vld [vmem:[#allocation4 + $0x1c0] sm:$0xff]
      %v8905 = vld [vmem:[#allocation4 + $0x1c8] sm:$0xff]
      %v8906 = vld [vmem:[#allocation4 + $0x1d0] sm:$0xff]
      %v8907 = vld [vmem:[#allocation4 + $0x1d8] sm:$0xff]
      %v8908 = vld [vmem:[#allocation4 + $0x1e0] sm:$0xff]
      %v8909 = vld [vmem:[#allocation4 + $0x1e8] sm:$0xff]
      %v8910 = vld [vmem:[#allocation4 + $0x1f0] sm:$0xff]
      %v8911 = vld [vmem:[#allocation4 + $0x1f8] sm:$0xff]
      %v8912 = vld [vmem:[#allocation4 + $0x200] sm:$0xff]
      %v8913 = vld [vmem:[#allocation4 + $0x208] sm:$0xff]
      %v8914 = vld [vmem:[#allocation4 + $0x210] sm:$0xff]
      %v8915 = vld [vmem:[#allocation4 + $0x218] sm:$0xff]
      %v8916 = vld [vmem:[#allocation4 + $0x220] sm:$0xff]
      %v8917 = vld [vmem:[#allocation4 + $0x228] sm:$0xff]
      %v8918 = vld [vmem:[#allocation4 + $0x230] sm:$0xff]
      %v8919 = vld [vmem:[#allocation4 + $0x238] sm:$0xff]
      %v8920 = vld [vmem:[#allocation4 + $0x240] sm:$0xff]
      %v8921 = vld [vmem:[#allocation4 + $0x248] sm:$0xff]
      %v8922 = vld [vmem:[#allocation4 + $0x250] sm:$0xff]
      %v8923 = vld [vmem:[#allocation4 + $0x258] sm:$0xff]
      %v8924 = vld [vmem:[#allocation4 + $0x260] sm:$0xff]
      %v8925 = vld [vmem:[#allocation4 + $0x268] sm:$0xff]
      %v8926 = vld [vmem:[#allocation4 + $0x270] sm:$0xff]
      %v8927 = vld [vmem:[#allocation4 + $0x278] sm:$0xff]
      %v8928 = vld [vmem:[#allocation4 + $0x280] sm:$0xff]
      %v8929 = vld [vmem:[#allocation4 + $0x288] sm:$0xff]
      %v8930 = vld [vmem:[#allocation4 + $0x290] sm:$0xff]
      %v8931 = vld [vmem:[#allocation4 + $0x298] sm:$0xff]
      %v8932 = vld [vmem:[#allocation4 + $0x2a0] sm:$0xff]
      %v8933 = vld [vmem:[#allocation4 + $0x2a8] sm:$0xff]
      %v8934 = vld [vmem:[#allocation4 + $0x2b0] sm:$0xff]
      %v8935 = vld [vmem:[#allocation4 + $0x2b8] sm:$0xff]
      %v8936 = vld [vmem:[#allocation4 + $0x2c0] sm:$0xff]
      %v8937 = vld [vmem:[#allocation4 + $0x2c8] sm:$0xff]
      %v8938 = vld [vmem:[#allocation4 + $0x2d0] sm:$0xff]
      %v8939 = vld [vmem:[#allocation4 + $0x2d8] sm:$0xff]
      %v8940 = vld [vmem:[#allocation4 + $0x2e0] sm:$0xff]
      %v8941 = vld [vmem:[#allocation4 + $0x2e8] sm:$0xff]
      %v8942 = vld [vmem:[#allocation4 + $0x2f0] sm:$0xff]
      %v8943 = vld [vmem:[#allocation4 + $0x2f8] sm:$0xff]
      %v8944 = vld [vmem:[#allocation4 + $0x300] sm:$0xff]
      %v8945 = vld [vmem:[#allocation4 + $0x308] sm:$0xff]
      %v8946 = vld [vmem:[#allocation4 + $0x310] sm:$0xff]
      %v8947 = vld [vmem:[#allocation4 + $0x318] sm:$0xff]
      %v8948 = vld [vmem:[#allocation4 + $0x320] sm:$0xff]
      %v8949 = vld [vmem:[#allocation4 + $0x328] sm:$0xff]
      %v8950 = vld [vmem:[#allocation4 + $0x330] sm:$0xff]
      %v8951 = vld [vmem:[#allocation4 + $0x338] sm:$0xff]
      %v8952 = vld [vmem:[#allocation4 + $0x340] sm:$0xff]
      %v8953 = vld [vmem:[#allocation4 + $0x348] sm:$0xff]
      %v8954 = vld [vmem:[#allocation4 + $0x350] sm:$0xff]
      %v8955 = vld [vmem:[#allocation4 + $0x358] sm:$0xff]
      %v8956 = vld [vmem:[#allocation4 + $0x360] sm:$0xff]
      %v8957 = vld [vmem:[#allocation4 + $0x368] sm:$0xff]
      %v8958 = vld [vmem:[#allocation4 + $0x370] sm:$0xff]
      %v8959 = vld [vmem:[#allocation4 + $0x378] sm:$0xff]
      %v8960 = vld [vmem:[#allocation4 + $0x380] sm:$0xff]
      %v8961 = vld [vmem:[#allocation4 + $0x388] sm:$0xff]
      %v8962 = vld [vmem:[#allocation4 + $0x390] sm:$0xff]
      %v8963 = vld [vmem:[#allocation4 + $0x398] sm:$0xff]
      %v8964 = vld [vmem:[#allocation4 + $0x3a0] sm:$0xff]
      %v8965 = vld [vmem:[#allocation4 + $0x3a8] sm:$0xff]
      %v8966 = vld [vmem:[#allocation4 + $0x3b0] sm:$0xff]
      %v8967 = vld [vmem:[#allocation4 + $0x3b8] sm:$0xff]
      %v8968 = vld [vmem:[#allocation4 + $0x3c0] sm:$0xff]
      %v8969 = vld [vmem:[#allocation4 + $0x3c8] sm:$0xff]
      %v8970 = vld [vmem:[#allocation4 + $0x3d0] sm:$0xff]
      %v8971 = vld [vmem:[#allocation4 + $0x3d8] sm:$0xff]
      %v8972 = vld [vmem:[#allocation4 + $0x3e0] sm:$0xff]
      %v8973 = vld [vmem:[#allocation4 + $0x3e8] sm:$0xff]
      %v8974 = vld [vmem:[#allocation4 + $0x3f0] sm:$0xff]
      %v8975 = vld [vmem:[#allocation4 + $0x3f8] sm:$0xff]
      %v8976 = vld [vmem:[%s7] sm:$0xff]
      %v8977 = vld [vmem:[%s7 + $0x8] sm:$0xff]
      %v8978 = vld [vmem:[%s7 + $0x10] sm:$0xff]
      %v8979 = vld [vmem:[%s7 + $0x18] sm:$0xff]
      %v8980 = vld [vmem:[%s7 + $0x20] sm:$0xff]
      %v8981 = vld [vmem:[%s7 + $0x28] sm:$0xff]
      %v8982 = vld [vmem:[%s7 + $0x30] sm:$0xff]
      %v8983 = vld [vmem:[%s7 + $0x38] sm:$0xff]
      %v8984 = vld [vmem:[%s7 + $0x40] sm:$0xff]
      %v8985 = vld [vmem:[%s7 + $0x48] sm:$0xff]
      %v8986 = vld [vmem:[%s7 + $0x50] sm:$0xff]
      %v8987 = vld [vmem:[%s7 + $0x58] sm:$0xff]
      %v8988 = vld [vmem:[%s7 + $0x60] sm:$0xff]
      %v8989 = vld [vmem:[%s7 + $0x68] sm:$0xff]
      %v8990 = vld [vmem:[%s7 + $0x70] sm:$0xff]
      %v8991 = vld [vmem:[%s7 + $0x78] sm:$0xff]
      %v8992 = vld [vmem:[%s7 + $0x80] sm:$0xff]
      %v8993 = vld [vmem:[%s7 + $0x88] sm:$0xff]
      %v8994 = vld [vmem:[%s7 + $0x90] sm:$0xff]
      %v8995 = vld [vmem:[%s7 + $0x98] sm:$0xff]
      %v8996 = vld [vmem:[%s7 + $0xa0] sm:$0xff]
      %v8997 = vld [vmem:[%s7 + $0xa8] sm:$0xff]
      %v8998 = vld [vmem:[%s7 + $0xb0] sm:$0xff]
      %v8999 = vld [vmem:[%s7 + $0xb8] sm:$0xff]
      %v9000 = vld [vmem:[%s7 + $0xc0] sm:$0xff]
      %v9001 = vld [vmem:[%s7 + $0xc8] sm:$0xff]
      %v9002 = vld [vmem:[%s7 + $0xd0] sm:$0xff]
      %v9003 = vld [vmem:[%s7 + $0xd8] sm:$0xff]
      %v9004 = vld [vmem:[%s7 + $0xe0] sm:$0xff]
      %v9005 = vld [vmem:[%s7 + $0xe8] sm:$0xff]
      %v9006 = vld [vmem:[%s7 + $0xf0] sm:$0xff]
      %v9007 = vld [vmem:[%s7 + $0xf8] sm:$0xff]
      %v9008 = vld [vmem:[%s7 + $0x100] sm:$0xff]
      %v9009 = vld [vmem:[%s7 + $0x108] sm:$0xff]
      %v9010 = vld [vmem:[%s7 + $0x110] sm:$0xff]
      %v9011 = vld [vmem:[%s7 + $0x118] sm:$0xff]
      %v9012 = vld [vmem:[%s7 + $0x120] sm:$0xff]
      %v9013 = vld [vmem:[%s7 + $0x128] sm:$0xff]
      %v9014 = vld [vmem:[%s7 + $0x130] sm:$0xff]
      %v9015 = vld [vmem:[%s7 + $0x138] sm:$0xff]
      %v9016 = vld [vmem:[%s7 + $0x140] sm:$0xff]
      %v9017 = vld [vmem:[%s7 + $0x148] sm:$0xff]
      %v9018 = vld [vmem:[%s7 + $0x150] sm:$0xff]
      %v9019 = vld [vmem:[%s7 + $0x158] sm:$0xff]
      %v9020 = vld [vmem:[%s7 + $0x160] sm:$0xff]
      %v9021 = vld [vmem:[%s7 + $0x168] sm:$0xff]
      %v9022 = vld [vmem:[%s7 + $0x170] sm:$0xff]
      %v9023 = vld [vmem:[%s7 + $0x178] sm:$0xff]
      %v9024 = vld [vmem:[%s7 + $0x180] sm:$0xff]
      %v9025 = vld [vmem:[%s7 + $0x188] sm:$0xff]
      %v9026 = vld [vmem:[%s7 + $0x190] sm:$0xff]
      %v9027 = vld [vmem:[%s7 + $0x198] sm:$0xff]
      %v9028 = vld [vmem:[%s7 + $0x1a0] sm:$0xff]
      %v9029 = vld [vmem:[%s7 + $0x1a8] sm:$0xff]
      %v9030 = vld [vmem:[%s8] sm:$0x1]
      %v9032 = vperm.slane %v9030, 0
      %v9035 = vsel %vm412, %v8851, 0
      %v9038 = vsel %vm412, %v8855, 0
      %v9041 = vsel %vm412, %v8859, 0
      %v9044 = vsel %vm412, %v8863, 0
      %v9047 = vsel %vm412, %v8867, 0
      %v9050 = vsel %vm412, %v8871, 0
      %v9053 = vsel %vm412, %v8875, 0
      %v9056 = vsel %vm412, %v8879, 0
      %v9059 = vsel %vm412, %v8883, 0
      %v9062 = vsel %vm412, %v8887, 0
      %v9065 = vsel %vm412, %v8891, 0
      %v9068 = vsel %vm412, %v8895, 0
      %v9071 = vsel %vm412, %v8899, 0
      %v9074 = vsel %vm412, %v8903, 0
      %v9077 = vsel %vm412, %v8907, 0
      %v9080 = vsel %vm412, %v8911, 0
      %v9083 = vsel %vm412, %v8915, 0
      %v9086 = vsel %vm412, %v8919, 0
      %v9089 = vsel %vm412, %v8923, 0
      %v9092 = vsel %vm412, %v8927, 0
      %v9095 = vsel %vm412, %v8931, 0
      %v9098 = vsel %vm412, %v8935, 0
      %v9101 = vsel %vm412, %v8939, 0
      %v9104 = vsel %vm412, %v8943, 0
      %v9107 = vsel %vm412, %v8947, 0
      %v9110 = vsel %vm412, %v8951, 0
      %v9113 = vsel %vm412, %v8955, 0
      %v9116 = vsel %vm412, %v8959, 0
      %v9119 = vsel %vm412, %v8963, 0
      %v9122 = vsel %vm412, %v8967, 0
      %v9125 = vsel %vm412, %v8971, 0
      %v9128 = vsel %vm412, %v8975, 0
      %9130 = vmatpush.msra.mxu0 %v8991
      %9131 = vmatpush.msra.mxu0 %v8990
      %9132 = vmatpush.msra.mxu0 %v8989
      %9133 = vmatpush.msra.mxu0 %v8988
      %9134 = vmatpush.msra.mxu0 %v8987
      %9135 = vmatpush.msra.mxu0 %v8986
      %9136 = vmatpush.msra.mxu0 %v8985
      %9137 = vmatpush.msra.mxu0 %v8984
      %9138 = vmatpush.msra.mxu0 %v8983
      %9139 = vmatpush.msra.mxu0 %v8982
      %9140 = vmatpush.msra.mxu0 %v8981
      %9141 = vmatpush.msra.mxu0 %v8980
      %9142 = vmatpush.msra.mxu0 %v8979
      %9143 = vmatpush.msra.mxu0 %v8978
      %9144 = vmatpush.msra.mxu0 %v8977
      %9145 = vmatpush.msra.mxu0 %v8976
      %9146 = vmatmul.f32.gmra.mxu0 %v8848
      %v9147 = vpop.f32.mrf.mxu0
      %v9148 = vadd.f32 %v9032, %v9147
      %9149 = vmatmul.f32.gmra.mxu0 %v8852
      %v9150 = vpop.f32.mrf.mxu0
      %v9151 = vadd.f32 %v9032, %v9150
      %9152 = vmatmul.f32.gmra.mxu0 %v8856
      %v9153 = vpop.f32.mrf.mxu0
      %v9154 = vadd.f32 %v9032, %v9153
      %9155 = vmatmul.f32.gmra.mxu0 %v8860
      %v9156 = vpop.f32.mrf.mxu0
      %v9157 = vadd.f32 %v9032, %v9156
      %9158 = vmatmul.f32.gmra.mxu0 %v8864
      %v9159 = vpop.f32.mrf.mxu0
      %v9160 = vadd.f32 %v9032, %v9159
      %9161 = vmatmul.f32.gmra.mxu0 %v8868
      %v9162 = vpop.f32.mrf.mxu0
      %v9163 = vadd.f32 %v9032, %v9162
      %9164 = vmatmul.f32.gmra.mxu0 %v8872
      %v9165 = vpop.f32.mrf.mxu0
      %v9166 = vadd.f32 %v9032, %v9165
      %9167 = vmatmul.f32.gmra.mxu0 %v8876
      %v9168 = vpop.f32.mrf.mxu0
      %v9169 = vadd.f32 %v9032, %v9168
      %9170 = vmatmul.f32.gmra.mxu0 %v8880
      %v9171 = vpop.f32.mrf.mxu0
      %v9172 = vadd.f32 %v9032, %v9171
      %9173 = vmatmul.f32.gmra.mxu0 %v8884
      %v9174 = vpop.f32.mrf.mxu0
      %v9175 = vadd.f32 %v9032, %v9174
      %9176 = vmatmul.f32.gmra.mxu0 %v8888
      %v9177 = vpop.f32.mrf.mxu0
      %v9178 = vadd.f32 %v9032, %v9177
      %9179 = vmatmul.f32.gmra.mxu0 %v8892
      %v9180 = vpop.f32.mrf.mxu0
      %v9181 = vadd.f32 %v9032, %v9180
      %9182 = vmatmul.f32.gmra.mxu0 %v8896
      %v9183 = vpop.f32.mrf.mxu0
      %v9184 = vadd.f32 %v9032, %v9183
      %9185 = vmatmul.f32.gmra.mxu0 %v8900
      %v9186 = vpop.f32.mrf.mxu0
      %v9187 = vadd.f32 %v9032, %v9186
      %9188 = vmatmul.f32.gmra.mxu0 %v8904
      %v9189 = vpop.f32.mrf.mxu0
      %v9190 = vadd.f32 %v9032, %v9189
      %9191 = vmatmul.f32.gmra.mxu0 %v8908
      %v9192 = vpop.f32.mrf.mxu0
      %v9193 = vadd.f32 %v9032, %v9192
      %9194 = vmatmul.f32.gmra.mxu0 %v8912
      %v9195 = vpop.f32.mrf.mxu0
      %v9196 = vadd.f32 %v9032, %v9195
      %9197 = vmatmul.f32.gmra.mxu0 %v8916
      %v9198 = vpop.f32.mrf.mxu0
      %v9199 = vadd.f32 %v9032, %v9198
      %9200 = vmatmul.f32.gmra.mxu0 %v8920
      %v9201 = vpop.f32.mrf.mxu0
      %v9202 = vadd.f32 %v9032, %v9201
      %9203 = vmatmul.f32.gmra.mxu0 %v8924
      %v9204 = vpop.f32.mrf.mxu0
      %v9205 = vadd.f32 %v9032, %v9204
      %9206 = vmatmul.f32.gmra.mxu0 %v8928
      %v9207 = vpop.f32.mrf.mxu0
      %v9208 = vadd.f32 %v9032, %v9207
      %9209 = vmatmul.f32.gmra.mxu0 %v8932
      %v9210 = vpop.f32.mrf.mxu0
      %v9211 = vadd.f32 %v9032, %v9210
      %9212 = vmatmul.f32.gmra.mxu0 %v8936
      %v9213 = vpop.f32.mrf.mxu0
      %v9214 = vadd.f32 %v9032, %v9213
      %9215 = vmatmul.f32.gmra.mxu0 %v8940
      %v9216 = vpop.f32.mrf.mxu0
      %v9217 = vadd.f32 %v9032, %v9216
      %9218 = vmatmul.f32.gmra.mxu0 %v8944
      %v9219 = vpop.f32.mrf.mxu0
      %v9220 = vadd.f32 %v9032, %v9219
      %9221 = vmatmul.f32.gmra.mxu0 %v8948
      %v9222 = vpop.f32.mrf.mxu0
      %v9223 = vadd.f32 %v9032, %v9222
      %9224 = vmatmul.f32.gmra.mxu0 %v8952
      %v9225 = vpop.f32.mrf.mxu0
      %v9226 = vadd.f32 %v9032, %v9225
      %9227 = vmatmul.f32.gmra.mxu0 %v8956
      %v9228 = vpop.f32.mrf.mxu0
      %v9229 = vadd.f32 %v9032, %v9228
      %9230 = vmatmul.f32.gmra.mxu0 %v8960
      %v9231 = vpop.f32.mrf.mxu0
      %v9232 = vadd.f32 %v9032, %v9231
      %9233 = vmatmul.f32.gmra.mxu0 %v8964
      %v9234 = vpop.f32.mrf.mxu0
      %v9235 = vadd.f32 %v9032, %v9234
      %9236 = vmatmul.f32.gmra.mxu0 %v8968
      %v9237 = vpop.f32.mrf.mxu0
      %v9238 = vadd.f32 %v9032, %v9237
      %9239 = vmatmul.f32.gmra.mxu0 %v8972
      %v9240 = vpop.f32.mrf.mxu0
      %v9241 = vadd.f32 %v9032, %v9240
      %9242 = vdwg.mxu0
      %9243 = vmatpush.msra.mxu0 %v9007
      %9244 = vmatpush.msra.mxu0 %v9006
      %9245 = vmatpush.msra.mxu0 %v9005
      %9246 = vmatpush.msra.mxu0 %v9004
      %9247 = vmatpush.msra.mxu0 %v9003
      %9248 = vmatpush.msra.mxu0 %v9002
      %9249 = vmatpush.msra.mxu0 %v9001
      %9250 = vmatpush.msra.mxu0 %v9000
      %9251 = vmatpush.msra.mxu0 %v8999
      %9252 = vmatpush.msra.mxu0 %v8998
      %9253 = vmatpush.msra.mxu0 %v8997
      %9254 = vmatpush.msra.mxu0 %v8996
      %9255 = vmatpush.msra.mxu0 %v8995
      %9256 = vmatpush.msra.mxu0 %v8994
      %9257 = vmatpush.msra.mxu0 %v8993
      %9258 = vmatpush.msra.mxu0 %v8992
      %9259 = vmatmul.f32.gmra.mxu0 %v8849
      %v9260 = vpop.f32.mrf.mxu0
      %v9261 = vadd.f32 %v9148, %v9260
      %9262 = vmatmul.f32.gmra.mxu0 %v8853
      %v9263 = vpop.f32.mrf.mxu0
      %v9264 = vadd.f32 %v9151, %v9263
      %9265 = vmatmul.f32.gmra.mxu0 %v8857
      %v9266 = vpop.f32.mrf.mxu0
      %v9267 = vadd.f32 %v9154, %v9266
      %9268 = vmatmul.f32.gmra.mxu0 %v8861
      %v9269 = vpop.f32.mrf.mxu0
      %v9270 = vadd.f32 %v9157, %v9269
      %9271 = vmatmul.f32.gmra.mxu0 %v8865
      %v9272 = vpop.f32.mrf.mxu0
      %v9273 = vadd.f32 %v9160, %v9272
      %9274 = vmatmul.f32.gmra.mxu0 %v8869
      %v9275 = vpop.f32.mrf.mxu0
      %v9276 = vadd.f32 %v9163, %v9275
      %9277 = vmatmul.f32.gmra.mxu0 %v8873
      %v9278 = vpop.f32.mrf.mxu0
      %v9279 = vadd.f32 %v9166, %v9278
      %9280 = vmatmul.f32.gmra.mxu0 %v8877
      %v9281 = vpop.f32.mrf.mxu0
      %v9282 = vadd.f32 %v9169, %v9281
      %9283 = vmatmul.f32.gmra.mxu0 %v8881
      %v9284 = vpop.f32.mrf.mxu0
      %v9285 = vadd.f32 %v9172, %v9284
      %9286 = vmatmul.f32.gmra.mxu0 %v8885
      %v9287 = vpop.f32.mrf.mxu0
      %v9288 = vadd.f32 %v9175, %v9287
      %9289 = vmatmul.f32.gmra.mxu0 %v8889
      %v9290 = vpop.f32.mrf.mxu0
      %v9291 = vadd.f32 %v9178, %v9290
      %9292 = vmatmul.f32.gmra.mxu0 %v8893
      %v9293 = vpop.f32.mrf.mxu0
      %v9294 = vadd.f32 %v9181, %v9293
      %9295 = vmatmul.f32.gmra.mxu0 %v8897
      %v9296 = vpop.f32.mrf.mxu0
      %v9297 = vadd.f32 %v9184, %v9296
      %9298 = vmatmul.f32.gmra.mxu0 %v8901
      %v9299 = vpop.f32.mrf.mxu0
      %v9300 = vadd.f32 %v9187, %v9299
      %9301 = vmatmul.f32.gmra.mxu0 %v8905
      %v9302 = vpop.f32.mrf.mxu0
      %v9303 = vadd.f32 %v9190, %v9302
      %9304 = vmatmul.f32.gmra.mxu0 %v8909
      %v9305 = vpop.f32.mrf.mxu0
      %v9306 = vadd.f32 %v9193, %v9305
      %9307 = vmatmul.f32.gmra.mxu0 %v8913
      %v9308 = vpop.f32.mrf.mxu0
      %v9309 = vadd.f32 %v9196, %v9308
      %9310 = vmatmul.f32.gmra.mxu0 %v8917
      %v9311 = vpop.f32.mrf.mxu0
      %v9312 = vadd.f32 %v9199, %v9311
      %9313 = vmatmul.f32.gmra.mxu0 %v8921
      %v9314 = vpop.f32.mrf.mxu0
      %v9315 = vadd.f32 %v9202, %v9314
      %9316 = vmatmul.f32.gmra.mxu0 %v8925
      %v9317 = vpop.f32.mrf.mxu0
      %v9318 = vadd.f32 %v9205, %v9317
      %9319 = vmatmul.f32.gmra.mxu0 %v8929
      %v9320 = vpop.f32.mrf.mxu0
      %v9321 = vadd.f32 %v9208, %v9320
      %9322 = vmatmul.f32.gmra.mxu0 %v8933
      %v9323 = vpop.f32.mrf.mxu0
      %v9324 = vadd.f32 %v9211, %v9323
      %9325 = vmatmul.f32.gmra.mxu0 %v8937
      %v9326 = vpop.f32.mrf.mxu0
      %v9327 = vadd.f32 %v9214, %v9326
      %9328 = vmatmul.f32.gmra.mxu0 %v8941
      %v9329 = vpop.f32.mrf.mxu0
      %v9330 = vadd.f32 %v9217, %v9329
      %9331 = vmatmul.f32.gmra.mxu0 %v8945
      %v9332 = vpop.f32.mrf.mxu0
      %v9333 = vadd.f32 %v9220, %v9332
      %9334 = vmatmul.f32.gmra.mxu0 %v8949
      %v9335 = vpop.f32.mrf.mxu0
      %v9336 = vadd.f32 %v9223, %v9335
      %9337 = vmatmul.f32.gmra.mxu0 %v8953
      %v9338 = vpop.f32.mrf.mxu0
      %v9339 = vadd.f32 %v9226, %v9338
      %9340 = vmatmul.f32.gmra.mxu0 %v8957
      %v9341 = vpop.f32.mrf.mxu0
      %v9342 = vadd.f32 %v9229, %v9341
      %9343 = vmatmul.f32.gmra.mxu0 %v8961
      %v9344 = vpop.f32.mrf.mxu0
      %v9345 = vadd.f32 %v9232, %v9344
      %9346 = vmatmul.f32.gmra.mxu0 %v8965
      %v9347 = vpop.f32.mrf.mxu0
      %v9348 = vadd.f32 %v9235, %v9347
      %9349 = vmatmul.f32.gmra.mxu0 %v8969
      %v9350 = vpop.f32.mrf.mxu0
      %v9351 = vadd.f32 %v9238, %v9350
      %9352 = vmatmul.f32.gmra.mxu0 %v8973
      %v9353 = vpop.f32.mrf.mxu0
      %v9354 = vadd.f32 %v9241, %v9353
      %9355 = vdwg.mxu0
      %9356 = vmatpush.msra.mxu0 %v9023
      %9357 = vmatpush.msra.mxu0 %v9022
      %9358 = vmatpush.msra.mxu0 %v9021
      %9359 = vmatpush.msra.mxu0 %v9020
      %9360 = vmatpush.msra.mxu0 %v9019
      %9361 = vmatpush.msra.mxu0 %v9018
      %9362 = vmatpush.msra.mxu0 %v9017
      %9363 = vmatpush.msra.mxu0 %v9016
      %9364 = vmatpush.msra.mxu0 %v9015
      %9365 = vmatpush.msra.mxu0 %v9014
      %9366 = vmatpush.msra.mxu0 %v9013
      %9367 = vmatpush.msra.mxu0 %v9012
      %9368 = vmatpush.msra.mxu0 %v9011
      %9369 = vmatpush.msra.mxu0 %v9010
      %9370 = vmatpush.msra.mxu0 %v9009
      %9371 = vmatpush.msra.mxu0 %v9008
      %9372 = vmatmul.f32.gmra.mxu0 %v8850
      %v9373 = vpop.f32.mrf.mxu0
      %v9374 = vadd.f32 %v9261, %v9373
      %9375 = vmatmul.f32.gmra.mxu0 %v8854
      %v9376 = vpop.f32.mrf.mxu0
      %v9377 = vadd.f32 %v9264, %v9376
      %9378 = vmatmul.f32.gmra.mxu0 %v8858
      %v9379 = vpop.f32.mrf.mxu0
      %v9380 = vadd.f32 %v9267, %v9379
      %9381 = vmatmul.f32.gmra.mxu0 %v8862
      %v9382 = vpop.f32.mrf.mxu0
      %v9383 = vadd.f32 %v9270, %v9382
      %9384 = vmatmul.f32.gmra.mxu0 %v8866
      %v9385 = vpop.f32.mrf.mxu0
      %v9386 = vadd.f32 %v9273, %v9385
      %9387 = vmatmul.f32.gmra.mxu0 %v8870
      %v9388 = vpop.f32.mrf.mxu0
      %v9389 = vadd.f32 %v9276, %v9388
      %9390 = vmatmul.f32.gmra.mxu0 %v8874
      %v9391 = vpop.f32.mrf.mxu0
      %v9392 = vadd.f32 %v9279, %v9391
      %9393 = vmatmul.f32.gmra.mxu0 %v8878
      %v9394 = vpop.f32.mrf.mxu0
      %v9395 = vadd.f32 %v9282, %v9394
      %9396 = vmatmul.f32.gmra.mxu0 %v8882
      %v9397 = vpop.f32.mrf.mxu0
      %v9398 = vadd.f32 %v9285, %v9397
      %9399 = vmatmul.f32.gmra.mxu0 %v8886
      %v9400 = vpop.f32.mrf.mxu0
      %v9401 = vadd.f32 %v9288, %v9400
      %9402 = vmatmul.f32.gmra.mxu0 %v8890
      %v9403 = vpop.f32.mrf.mxu0
      %v9404 = vadd.f32 %v9291, %v9403
      %9405 = vmatmul.f32.gmra.mxu0 %v8894
      %v9406 = vpop.f32.mrf.mxu0
      %v9407 = vadd.f32 %v9294, %v9406
      %9408 = vmatmul.f32.gmra.mxu0 %v8898
      %v9409 = vpop.f32.mrf.mxu0
      %v9410 = vadd.f32 %v9297, %v9409
      %9411 = vmatmul.f32.gmra.mxu0 %v8902
      %v9412 = vpop.f32.mrf.mxu0
      %v9413 = vadd.f32 %v9300, %v9412
      %9414 = vmatmul.f32.gmra.mxu0 %v8906
      %v9415 = vpop.f32.mrf.mxu0
      %v9416 = vadd.f32 %v9303, %v9415
      %9417 = vmatmul.f32.gmra.mxu0 %v8910
      %v9418 = vpop.f32.mrf.mxu0
      %v9419 = vadd.f32 %v9306, %v9418
      %9420 = vmatmul.f32.gmra.mxu0 %v8914
      %v9421 = vpop.f32.mrf.mxu0
      %v9422 = vadd.f32 %v9309, %v9421
      %9423 = vmatmul.f32.gmra.mxu0 %v8918
      %v9424 = vpop.f32.mrf.mxu0
      %v9425 = vadd.f32 %v9312, %v9424
      %9426 = vmatmul.f32.gmra.mxu0 %v8922
      %v9427 = vpop.f32.mrf.mxu0
      %v9428 = vadd.f32 %v9315, %v9427
      %9429 = vmatmul.f32.gmra.mxu0 %v8926
      %v9430 = vpop.f32.mrf.mxu0
      %v9431 = vadd.f32 %v9318, %v9430
      %9432 = vmatmul.f32.gmra.mxu0 %v8930
      %v9433 = vpop.f32.mrf.mxu0
      %v9434 = vadd.f32 %v9321, %v9433
      %9435 = vmatmul.f32.gmra.mxu0 %v8934
      %v9436 = vpop.f32.mrf.mxu0
      %v9437 = vadd.f32 %v9324, %v9436
      %9438 = vmatmul.f32.gmra.mxu0 %v8938
      %v9439 = vpop.f32.mrf.mxu0
      %v9440 = vadd.f32 %v9327, %v9439
      %9441 = vmatmul.f32.gmra.mxu0 %v8942
      %v9442 = vpop.f32.mrf.mxu0
      %v9443 = vadd.f32 %v9330, %v9442
      %9444 = vmatmul.f32.gmra.mxu0 %v8946
      %v9445 = vpop.f32.mrf.mxu0
      %v9446 = vadd.f32 %v9333, %v9445
      %9447 = vmatmul.f32.gmra.mxu0 %v8950
      %v9448 = vpop.f32.mrf.mxu0
      %v9449 = vadd.f32 %v9336, %v9448
      %9450 = vmatmul.f32.gmra.mxu0 %v8954
      %v9451 = vpop.f32.mrf.mxu0
      %v9452 = vadd.f32 %v9339, %v9451
      %9453 = vmatmul.f32.gmra.mxu0 %v8958
      %v9454 = vpop.f32.mrf.mxu0
      %v9455 = vadd.f32 %v9342, %v9454
      %9456 = vmatmul.f32.gmra.mxu0 %v8962
      %v9457 = vpop.f32.mrf.mxu0
      %v9458 = vadd.f32 %v9345, %v9457
      %9459 = vmatmul.f32.gmra.mxu0 %v8966
      %v9460 = vpop.f32.mrf.mxu0
      %v9461 = vadd.f32 %v9348, %v9460
      %9462 = vmatmul.f32.gmra.mxu0 %v8970
      %v9463 = vpop.f32.mrf.mxu0
      %v9464 = vadd.f32 %v9351, %v9463
      %9465 = vmatmul.f32.gmra.mxu0 %v8974
      %v9466 = vpop.f32.mrf.mxu0
      %v9467 = vadd.f32 %v9354, %v9466
      %9468 = vdwg.mxu0
      %9469 = vmatpush.msra.mxu0 0.0
      %9470 = vmatpush.msra.mxu0 0.0
      %9471 = vmatpush.msra.mxu0 0.0
      %9472 = vmatpush.msra.mxu0 0.0
      %9473 = vmatpush.msra.mxu0 0.0
      %9474 = vmatpush.msra.mxu0 0.0
      %9475 = vmatpush.msra.mxu0 0.0
      %9476 = vmatpush.msra.mxu0 0.0
      %9477 = vmatpush.msra.mxu0 0.0
      %9478 = vmatpush.msra.mxu0 0.0
      %9479 = vmatpush.msra.mxu0 %v9029
      %9480 = vmatpush.msra.mxu0 %v9028
      %9481 = vmatpush.msra.mxu0 %v9027
      %9482 = vmatpush.msra.mxu0 %v9026
      %9483 = vmatpush.msra.mxu0 %v9025
      %9484 = vmatpush.msra.mxu0 %v9024
      %9485 = vmatmul.f32.gmra.mxu0 %v9035
      %v9486 = vpop.f32.mrf.mxu0
      %v9487 = vadd.f32 %v9374, %v9486
      %9488 = vmatmul.f32.gmra.mxu0 %v9038
      %v9489 = vpop.f32.mrf.mxu0
      %v9490 = vadd.f32 %v9377, %v9489
      %9491 = vmatmul.f32.gmra.mxu0 %v9041
      %v9492 = vpop.f32.mrf.mxu0
      %v9493 = vadd.f32 %v9380, %v9492
      %9494 = vmatmul.f32.gmra.mxu0 %v9044
      %v9495 = vpop.f32.mrf.mxu0
      %v9496 = vadd.f32 %v9383, %v9495
      %9497 = vmatmul.f32.gmra.mxu0 %v9047
      %v9498 = vpop.f32.mrf.mxu0
      %v9499 = vadd.f32 %v9386, %v9498
      %9500 = vmatmul.f32.gmra.mxu0 %v9050
      %v9501 = vpop.f32.mrf.mxu0
      %v9502 = vadd.f32 %v9389, %v9501
      %9503 = vmatmul.f32.gmra.mxu0 %v9053
      %v9504 = vpop.f32.mrf.mxu0
      %v9505 = vadd.f32 %v9392, %v9504
      %9506 = vmatmul.f32.gmra.mxu0 %v9056
      %v9507 = vpop.f32.mrf.mxu0
      %v9508 = vadd.f32 %v9395, %v9507
      %9509 = vmatmul.f32.gmra.mxu0 %v9059
      %v9510 = vpop.f32.mrf.mxu0
      %v9511 = vadd.f32 %v9398, %v9510
      %9512 = vmatmul.f32.gmra.mxu0 %v9062
      %v9513 = vpop.f32.mrf.mxu0
      %v9514 = vadd.f32 %v9401, %v9513
      %9515 = vmatmul.f32.gmra.mxu0 %v9065
      %v9516 = vpop.f32.mrf.mxu0
      %v9517 = vadd.f32 %v9404, %v9516
      %9518 = vmatmul.f32.gmra.mxu0 %v9068
      %v9519 = vpop.f32.mrf.mxu0
      %v9520 = vadd.f32 %v9407, %v9519
      %9521 = vmatmul.f32.gmra.mxu0 %v9071
      %v9522 = vpop.f32.mrf.mxu0
      %v9523 = vadd.f32 %v9410, %v9522
      %9524 = vmatmul.f32.gmra.mxu0 %v9074
      %v9525 = vpop.f32.mrf.mxu0
      %v9526 = vadd.f32 %v9413, %v9525
      %9527 = vmatmul.f32.gmra.mxu0 %v9077
      %v9528 = vpop.f32.mrf.mxu0
      %v9529 = vadd.f32 %v9416, %v9528
      %9530 = vmatmul.f32.gmra.mxu0 %v9080
      %v9531 = vpop.f32.mrf.mxu0
      %v9532 = vadd.f32 %v9419, %v9531
      %9533 = vmatmul.f32.gmra.mxu0 %v9083
      %v9534 = vpop.f32.mrf.mxu0
      %v9535 = vadd.f32 %v9422, %v9534
      %9536 = vmatmul.f32.gmra.mxu0 %v9086
      %v9537 = vpop.f32.mrf.mxu0
      %v9538 = vadd.f32 %v9425, %v9537
      %9539 = vmatmul.f32.gmra.mxu0 %v9089
      %v9540 = vpop.f32.mrf.mxu0
      %v9541 = vadd.f32 %v9428, %v9540
      %9542 = vmatmul.f32.gmra.mxu0 %v9092
      %v9543 = vpop.f32.mrf.mxu0
      %v9544 = vadd.f32 %v9431, %v9543
      %9545 = vmatmul.f32.gmra.mxu0 %v9095
      %v9546 = vpop.f32.mrf.mxu0
      %v9547 = vadd.f32 %v9434, %v9546
      %9548 = vmatmul.f32.gmra.mxu0 %v9098
      %v9549 = vpop.f32.mrf.mxu0
      %v9550 = vadd.f32 %v9437, %v9549
      %9551 = vmatmul.f32.gmra.mxu0 %v9101
      %v9552 = vpop.f32.mrf.mxu0
      %v9553 = vadd.f32 %v9440, %v9552
      %9554 = vmatmul.f32.gmra.mxu0 %v9104
      %v9555 = vpop.f32.mrf.mxu0
      %v9556 = vadd.f32 %v9443, %v9555
      %9557 = vmatmul.f32.gmra.mxu0 %v9107
      %v9558 = vpop.f32.mrf.mxu0
      %v9559 = vadd.f32 %v9446, %v9558
      %9560 = vmatmul.f32.gmra.mxu0 %v9110
      %v9561 = vpop.f32.mrf.mxu0
      %v9562 = vadd.f32 %v9449, %v9561
      %9563 = vmatmul.f32.gmra.mxu0 %v9113
      %v9564 = vpop.f32.mrf.mxu0
      %v9565 = vadd.f32 %v9452, %v9564
      %9566 = vmatmul.f32.gmra.mxu0 %v9116
      %v9567 = vpop.f32.mrf.mxu0
      %v9568 = vadd.f32 %v9455, %v9567
      %9569 = vmatmul.f32.gmra.mxu0 %v9119
      %v9570 = vpop.f32.mrf.mxu0
      %v9571 = vadd.f32 %v9458, %v9570
      %9572 = vmatmul.f32.gmra.mxu0 %v9122
      %v9573 = vpop.f32.mrf.mxu0
      %v9574 = vadd.f32 %v9461, %v9573
      %9575 = vmatmul.f32.gmra.mxu0 %v9125
      %v9576 = vpop.f32.mrf.mxu0
      %v9577 = vadd.f32 %v9464, %v9576
      %9578 = vmatmul.f32.gmra.mxu0 %v9128
      %v9579 = vpop.f32.mrf.mxu0
      %v9580 = vadd.f32 %v9467, %v9579
      %9581 = vdwg.mxu0
      %v9582 = vadd.f32 %v333, %v9487
      %v9583 = vadd.f32 %v334, %v9490
      %v9584 = vadd.f32 %v335, %v9493
      %v9585 = vadd.f32 %v336, %v9496
      %v9586 = vadd.f32 %v337, %v9499
      %v9587 = vadd.f32 %v338, %v9502
      %v9588 = vadd.f32 %v339, %v9505
      %v9589 = vadd.f32 %v340, %v9508
      %v9590 = vadd.f32 %v341, %v9511
      %v9591 = vadd.f32 %v342, %v9514
      %v9592 = vadd.f32 %v343, %v9517
      %v9593 = vadd.f32 %v344, %v9520
      %v9594 = vadd.f32 %v345, %v9523
      %v9595 = vadd.f32 %v346, %v9526
      %v9596 = vadd.f32 %v347, %v9529
      %v9597 = vadd.f32 %v348, %v9532
      %v9598 = vadd.f32 %v349, %v9535
      %v9599 = vadd.f32 %v350, %v9538
      %v9600 = vadd.f32 %v351, %v9541
      %v9601 = vadd.f32 %v352, %v9544
      %v9602 = vadd.f32 %v353, %v9547
      %v9603 = vadd.f32 %v354, %v9550
      %v9604 = vadd.f32 %v355, %v9553
      %v9605 = vadd.f32 %v356, %v9556
      %v9606 = vadd.f32 %v357, %v9559
      %v9607 = vadd.f32 %v358, %v9562
      %v9608 = vadd.f32 %v359, %v9565
      %v9609 = vadd.f32 %v360, %v9568
      %v9610 = vadd.f32 %v361, %v9571
      %v9611 = vadd.f32 %v362, %v9574
      %v9612 = vadd.f32 %v363, %v9577
      %v9613 = vadd.f32 %v364, %v9580
      %9614 = vxpose.xlu0.b32.start [1/16] %v9582, 128
      %9615 = vxpose.xlu0.b32.cont [2/16] %v9583, 128
      %9616 = vxpose.xlu0.b32.cont [3/16] %v9584, 128
      %9617 = vxpose.xlu0.b32.cont [4/16] %v9585, 128
      %9618 = vxpose.xlu0.b32.cont [5/16] %v9586, 128
      %9619 = vxpose.xlu0.b32.cont [6/16] %v9587, 128
      %9620 = vxpose.xlu0.b32.cont [7/16] %v9588, 128
      %9621 = vxpose.xlu0.b32.cont [8/16] %v9589, 128
      %9622 = vxpose.xlu0.b32.cont [9/16] %v9590, 128
      %9623 = vxpose.xlu0.b32.cont [10/16] %v9591, 128
      %9624 = vxpose.xlu0.b32.cont [11/16] %v9592, 128
      %9625 = vxpose.xlu0.b32.cont [12/16] %v9593, 128
      %9626 = vxpose.xlu0.b32.cont [13/16] %v9594, 128
      %9627 = vxpose.xlu0.b32.cont [14/16] %v9595, 128
      %9628 = vxpose.xlu0.b32.cont [15/16] %v9596, 128
      %9629 = vxpose.xlu0.b32.end [16/16] %v9597, 128
      %v9630 = vpop.trf.xlu0
      %v9631 = vpop.trf.xlu0
      %v9632 = vpop.trf.xlu0
      %v9633 = vpop.trf.xlu0
      %v9634 = vpop.trf.xlu0
      %v9635 = vpop.trf.xlu0
      %v9636 = vpop.trf.xlu0
      %v9637 = vpop.trf.xlu0
      %v9638 = vpop.trf.xlu0
      %v9639 = vpop.trf.xlu0
      %v9640 = vpop.trf.xlu0
      %v9641 = vpop.trf.xlu0
      %v9642 = vpop.trf.xlu0
      %v9643 = vpop.trf.xlu0
      %v9644 = vpop.trf.xlu0
      %v9645 = vpop.trf.xlu0
      %9646 = vxpose.xlu0.b32.start [1/16] %v9598, 128
      %9647 = vxpose.xlu0.b32.cont [2/16] %v9599, 128
      %9648 = vxpose.xlu0.b32.cont [3/16] %v9600, 128
      %9649 = vxpose.xlu0.b32.cont [4/16] %v9601, 128
      %9650 = vxpose.xlu0.b32.cont [5/16] %v9602, 128
      %9651 = vxpose.xlu0.b32.cont [6/16] %v9603, 128
      %9652 = vxpose.xlu0.b32.cont [7/16] %v9604, 128
      %9653 = vxpose.xlu0.b32.cont [8/16] %v9605, 128
      %9654 = vxpose.xlu0.b32.cont [9/16] %v9606, 128
      %9655 = vxpose.xlu0.b32.cont [10/16] %v9607, 128
      %9656 = vxpose.xlu0.b32.cont [11/16] %v9608, 128
      %9657 = vxpose.xlu0.b32.cont [12/16] %v9609, 128
      %9658 = vxpose.xlu0.b32.cont [13/16] %v9610, 128
      %9659 = vxpose.xlu0.b32.cont [14/16] %v9611, 128
      %9660 = vxpose.xlu0.b32.cont [15/16] %v9612, 128
      %9661 = vxpose.xlu0.b32.end [16/16] %v9613, 128
      %v9662 = vpop.trf.xlu0
      %v9663 = vpop.trf.xlu0
      %v9664 = vpop.trf.xlu0
      %v9665 = vpop.trf.xlu0
      %v9666 = vpop.trf.xlu0
      %v9667 = vpop.trf.xlu0
      %v9668 = vpop.trf.xlu0
      %v9669 = vpop.trf.xlu0
      %v9670 = vpop.trf.xlu0
      %v9671 = vpop.trf.xlu0
      %v9672 = vpop.trf.xlu0
      %v9673 = vpop.trf.xlu0
      %v9674 = vpop.trf.xlu0
      %v9675 = vpop.trf.xlu0
      %v9676 = vpop.trf.xlu0
      %v9677 = vpop.trf.xlu0
      %9678 = vst [vmem:[%s332] sm:$0xff] %v9630
      %9679 = vst [vmem:[%s332 + $0x8] sm:$0xff] %v9662
      %9680 = vst [vmem:[%s332 + $0x10] sm:$0xff] %v9631
      %9681 = vst [vmem:[%s332 + $0x18] sm:$0xff] %v9663
      %p9682 = scmp.lt.s32.totalorder %s20, 1
      %s9683 = scalar_select %p9682, %s20, 1
      %s9684 = smul.addr %s9683, 4
      %s9685 = smul.addr %s9684, 8
      %s9686 = scalar_lea.vmem %s9, %s9685
      // Predicated region
      $region57: #{dilate_res_block.1} parent=55 // pred_check
        %p9687 = pneg %p232
      $region58: #{dilate_res_block.1} parent=55 // pred_check_branch
        %9689 = sbr.rel (%p9687) target = $region60
      $region59: #{dilate_res_block.1} parent=55 // pred_region
        _
      $region60: #{dilate_res_block.1} parent=55 // pred_fallthru
        _
    $region56: #{dilate_res_block.1} parent=5 // pred_fallthru
      _
    %p9690 = scmp.le.s32.totalorder 2, %s15
    // Predicated region
    $region61: #{dilate_res_block.1} parent=5 // pred_check
      %p9691 = pneg %p9690
    $region62: #{dilate_res_block.1} parent=5 // pred_check_branch
      %9693 = sbr.rel (%p9691) target = $region64
    $region63: #{dilate_res_block.1} parent=5 // pred_region
      %s9694 = ssub.s32 %s15, 2
      // Predicated region
      $region65: #{dilate_res_block.1} parent=63 // pred_check
        %p9695 = pneg %p238
      $region66: #{dilate_res_block.1} parent=63 // pred_check_branch
        %9697 = sbr.rel (%p9695) target = $region68
      $region67: #{dilate_res_block.1} parent=63 // pred_region
        %p9698 = scmp.lt.s32.totalorder %s21, 1
        %s9699 = scalar_select %p9698, %s21, 1
        %s9700 = smul.addr %s9699, 4
        %s9701 = smul.addr %s9700, 8
        %s9702 = scalar_lea.vmem %s9, %s9701
      $region68: #{dilate_res_block.1} parent=63 // pred_fallthru
        _
    $region64: #{dilate_res_block.1} parent=5 // pred_fallthru
      _
  $region6: #{dilate_res_block.1} parent=0 // loop_footer
    %s19 = sadd.s32 1, %s15
  $region7: #{dilate_res_block.1} parent=0 // loop_footer_branch
    %14 = sbr.rel target = $region3
  $region8: #{dilate_res_block.1} parent=0 // loop_exit
    _

</llo_original>
